<compile_context>
chip_gen: v5e
topology: v5e:2x2
jax: 0.10.0
libtpu: 0.0.40
codegen_flags: <defaults>
</compile_context>

<pallas_src>
import functools
from typing import NamedTuple

import jax
import jax.numpy as jnp
from jax.experimental import pallas as pl
from jax.experimental.pallas import tpu as pltpu

EPS = 1e-5

# 3x3 taps in (dh, dw) order matching a (3, 3, Cin, Cout) weight reshaped to
# (9, Cin, Cout): tap index t = (dh + 1) * 3 + (dw + 1).
_TAPS = tuple((dh, dw) for dh in (-1, 0, 1) for dw in (-1, 0, 1))
# Stride-2 convs: input row 2*o + d lives in phase p at row o + shift.
_PHASE = {-1: (1, -1), 0: (0, 0), 1: (1, 0)}


class Geom(NamedTuple):
    H: int
    W: int
    Wp: int       # padded row width (W + 2)
    margin: int   # leading zero margin of the flat buffer
    G0: int       # flat index of padded position (row 1, col 0); multiple of 8
    Lslab: int    # H * Wp : padded rows 1..H, flattened (the "slab")
    Lp: int       # total flat buffer length (with zero margins)


def make_geom(h, w):
    wp = w + 2
    margin = (-wp) % 8
    if margin == 0:
        margin = 8
    return Geom(h, w, wp, margin, margin + wp, h * wp, margin + (h + 2) * wp + 8)


# ----------------------------------------------------------------------------
# In-kernel helpers
# ----------------------------------------------------------------------------
def _conv_accum_from_flat(src_ref, w_ref, g0, wp, lslab):
    """3x3 conv as 9 shifted bf16 matmuls over a padded-flat ref -> f32 acc."""
    cout = w_ref.shape[-1]
    acc = jnp.zeros((lslab, cout), jnp.float32)
    for t, (dh, dw) in enumerate(_TAPS):
        start = g0 + dh * wp + dw
        lhs = src_ref[start:start + lslab, :].astype(jnp.bfloat16)
        acc = acc + jnp.dot(lhs, w_ref[t], preferred_element_type=jnp.float32)
    return acc


def _stage1_kernel(x_ref, w0, b0, w1, b1, w2, b2, m_ref, o_ref,
                   buf_a, buf_b, *, geom):
    """Stem conv+BN+ReLU, then the layer1 BasicBlock (all stride 1)."""
    g0, wp, lslab = geom.G0, geom.Wp, geom.Lslab
    mask = m_ref[...]

    # conv stem + BN + ReLU
    acc = _conv_accum_from_flat(x_ref, w0, g0, wp, lslab)
    a0 = jnp.maximum(acc + b0[...], 0.0) * mask
    buf_a[...] = jnp.zeros(buf_a.shape, buf_a.dtype)
    buf_a[g0:g0 + lslab, :] = a0

    # layer1 conv1 + BN + ReLU
    acc = _conv_accum_from_flat(buf_a, w1, g0, wp, lslab)
    a1 = jnp.maximum(acc + b1[...], 0.0) * mask
    buf_b[...] = jnp.zeros(buf_b.shape, buf_b.dtype)
    buf_b[g0:g0 + lslab, :] = a1

    # layer1 conv2 + BN + identity residual + ReLU
    acc = _conv_accum_from_flat(buf_b, w2, g0, wp, lslab)
    res = buf_a[g0:g0 + lslab, :]
    o_ref[...] = (jnp.maximum(acc + b2[...] + res, 0.0) * mask).astype(o_ref.dtype)


def _down_block_kernel(p00, p01, p10, p11, w1, b1, wd, bd, w2, b2, m_ref,
                       o_ref, buf, *, geom):
    """BasicBlock with stride-2 conv1 and stride-2 conv3x3+BN downsample."""
    g0, wp, lslab = geom.G0, geom.Wp, geom.Lslab
    cout = w1.shape[-1]
    mask = m_ref[...]
    phases = ((p00, p01), (p10, p11))

    # conv1 (stride 2) and downsample conv (stride 2) share their inputs:
    # each tap is a unit-stride slice of one of the 4 space-to-depth phases.
    acc1 = jnp.zeros((lslab, cout), jnp.float32)
    accd = jnp.zeros((lslab, cout), jnp.float32)
    for t, (dh, dw) in enumerate(_TAPS):
        ph, ah = _PHASE[dh]
        pw, aw = _PHASE[dw]
        start = g0 + ah * wp + aw
        lhs = phases[ph][pw][start:start + lslab, :].astype(jnp.bfloat16)
        acc1 = acc1 + jnp.dot(lhs, w1[t], preferred_element_type=jnp.float32)
        accd = accd + jnp.dot(lhs, wd[t], preferred_element_type=jnp.float32)

    c1 = jnp.maximum(acc1 + b1[...], 0.0) * mask       # conv1 + BN + ReLU
    res = accd + bd[...]                               # downsample BN (no ReLU)

    buf[...] = jnp.zeros(buf.shape, buf.dtype)
    buf[g0:g0 + lslab, :] = c1

    # conv2 (stride 1) + BN + residual + ReLU
    acc2 = _conv_accum_from_flat(buf, w2, g0, wp, lslab)
    o_ref[...] = (jnp.maximum(acc2 + b2[...] + res, 0.0) * mask).astype(o_ref.dtype)


# ----------------------------------------------------------------------------
# pallas_call wrappers (grid over batch, "parallel" for v7x dual-TC)
# ----------------------------------------------------------------------------
def _stage1_call(xflat, w0, b0, w1, b1, w2, b2, mask, geom):
    n = xflat.shape[0]
    cin = xflat.shape[-1]
    c = w0.shape[-1]
    return pl.pallas_call(
        functools.partial(_stage1_kernel, geom=geom),
        out_shape=jax.ShapeDtypeStruct((n, geom.Lslab, c), jnp.float32),
        grid=(n,),
        in_specs=[
            pl.BlockSpec((None, geom.Lp, cin), lambda i: (i, 0, 0)),
            pl.BlockSpec((9, cin, c), lambda i: (0, 0, 0)),
            pl.BlockSpec((1, c), lambda i: (0, 0)),
            pl.BlockSpec((9, c, c), lambda i: (0, 0, 0)),
            pl.BlockSpec((1, c), lambda i: (0, 0)),
            pl.BlockSpec((9, c, c), lambda i: (0, 0, 0)),
            pl.BlockSpec((1, c), lambda i: (0, 0)),
            pl.BlockSpec((geom.Lslab, 1), lambda i: (0, 0)),
        ],
        out_specs=pl.BlockSpec((None, geom.Lslab, c), lambda i: (i, 0, 0)),
        scratch_shapes=[pltpu.VMEM((geom.Lp, c), jnp.float32),
                        pltpu.VMEM((geom.Lp, c), jnp.float32)],
        compiler_params=pltpu.CompilerParams(
            dimension_semantics=("parallel",)),
    )(xflat, w0, b0, w1, b1, w2, b2, mask)


def _down_block_call(phases, w1, b1, wd, bd, w2, b2, mask, geom):
    n = phases[0].shape[0]
    cin = phases[0].shape[-1]
    cout = w1.shape[-1]
    phase_spec = pl.BlockSpec((None, geom.Lp, cin), lambda i: (i, 0, 0))
    b_spec = pl.BlockSpec((1, cout), lambda i: (0, 0))
    return pl.pallas_call(
        functools.partial(_down_block_kernel, geom=geom),
        out_shape=jax.ShapeDtypeStruct((n, geom.Lslab, cout), jnp.float32),
        grid=(n,),
        in_specs=[phase_spec, phase_spec, phase_spec, phase_spec,
                  pl.BlockSpec((9, cin, cout), lambda i: (0, 0, 0)), b_spec,
                  pl.BlockSpec((9, cin, cout), lambda i: (0, 0, 0)), b_spec,
                  pl.BlockSpec((9, cout, cout), lambda i: (0, 0, 0)), b_spec,
                  pl.BlockSpec((geom.Lslab, 1), lambda i: (0, 0))],
        out_specs=pl.BlockSpec((None, geom.Lslab, cout), lambda i: (i, 0, 0)),
        scratch_shapes=[pltpu.VMEM((geom.Lp, cout), jnp.float32)],
        compiler_params=pltpu.CompilerParams(
            dimension_semantics=("parallel",)),
    )(*phases, w1, b1, wd, bd, w2, b2, mask)


# ----------------------------------------------------------------------------
# Plain-JAX glue (layout only: padding, space-to-depth, un-flattening)
# ----------------------------------------------------------------------------
def _fold_bn(p):
    """Fold BN scale into conv weights (bf16 for MXU); keep shift in f32."""
    w, gamma, beta, mean, var = p
    scale = gamma * jax.lax.rsqrt(var + EPS)
    wf = (w * scale).astype(jnp.bfloat16)                 # (3,3,Cin,Cout)
    shift = (beta - mean * scale).astype(jnp.float32).reshape(1, -1)
    return wf, shift


def _kernel_weight(p, pad_cin_to=None):
    wf, shift = _fold_bn(p)
    cin = wf.shape[2]
    if pad_cin_to is not None and cin < pad_cin_to:
        wf = jnp.pad(wf, ((0, 0), (0, 0), (0, pad_cin_to - cin), (0, 0)))
        cin = pad_cin_to
    return wf.reshape(9, cin, wf.shape[3]), shift


def _to_padflat(x, geom):
    """(N, H, W, C) -> zero-padded, row-flattened (N, Lp, C) float32."""
    n, h, w, c = x.shape
    xp = jnp.pad(x, ((0, 0), (1, 1), (1, 1), (0, 0)))
    flat = xp.reshape(n, (h + 2) * geom.Wp, c)
    post = geom.Lp - geom.margin - (h + 2) * geom.Wp
    return jnp.pad(flat, ((0, 0), (geom.margin, post), (0, 0))).astype(jnp.float32)


def _phases_padflat(x, geom_out):
    """Space-to-depth phase split used by in-kernel stride-2 convs."""
    return [_to_padflat(x[:, p::2, q::2, :], geom_out)
            for p in (0, 1) for q in (0, 1)]


def _from_slab(slab, geom, c):
    n = slab.shape[0]
    return slab.reshape(n, geom.H, geom.Wp, c)[:, :, 1:geom.W + 1, :]


def _interior_mask(geom):
    col = jnp.arange(geom.Lslab, dtype=jnp.int32) % geom.Wp
    return ((col >= 1) & (col <= geom.W)).astype(jnp.float32)[:, None]


# ----------------------------------------------------------------------------
# Encoder forward (Pallas path)
# ----------------------------------------------------------------------------
def attn_encoder_forward(x_nchw, params):
    x = jnp.transpose(x_nchw, (0, 2, 3, 1)).astype(jnp.float32)   # NHWC
    n, h, w, cin = x.shape
    g1 = make_geom(h, w)
    g2 = make_geom(h // 2, w // 2)
    g3 = make_geom(h // 4, w // 4)

    # ---- stage 1: stem + layer1 BasicBlock (stride 1, 32 channels) ----
    w0, b0 = _kernel_weight(params["stem"], pad_cin_to=32)
    p1, p2, _, _ = params["layer1"][0]
    w11, b11 = _kernel_weight(p1)
    w12, b12 = _kernel_weight(p2)
    x32 = jnp.pad(x, ((0, 0), (0, 0), (0, 0), (0, 32 - cin)))
    s1 = _stage1_call(_to_padflat(x32, g1), w0, b0, w11, b11, w12, b12,
                      _interior_mask(g1), g1)
    a1 = _from_slab(s1, g1, 32)                                   # (N,16,16,32)

    # ---- stage 2: layer2 BasicBlock (stride 2, 32 -> 64) ----
    p1, p2, pd, _ = params["layer2"][0]
    w21, b21 = _kernel_weight(p1)
    w2d, b2d = _kernel_weight(pd)
    w22, b22 = _kernel_weight(p2)
    s2 = _down_block_call(_phases_padflat(a1, g2), w21, b21, w2d, b2d, w22, b22,
                          _interior_mask(g2), g2)
    a2 = _from_slab(s2, g2, 64)                                   # (N,8,8,64)

    # ---- stage 3: layer3 BasicBlock (stride 2, 64 -> 128) ----
    p1, p2, pd, _ = params["layer3"][0]
    w31, b31 = _kernel_weight(p1)
    w3d, b3d = _kernel_weight(pd)
    w32, b32 = _kernel_weight(p2)
    s3 = _down_block_call(_phases_padflat(a2, g3), w31, b31, w3d, b3d, w32, b32,
                          _interior_mask(g3), g3)
    a3 = _from_slab(s3, g3, 128)                                  # (N,4,4,128)

    out = jnp.transpose(a3, (0, 3, 1, 2))                         # NCHW
    return out.reshape(n, out.shape[1], -1)                       # (N, 128, 16)


# ----------------------------------------------------------------------------
# Pure-JAX reference (same BN fold + bf16 MXU quantization, via lax.conv)
# ----------------------------------------------------------------------------
def _ref_conv_bn(x, p, stride=1, relu=True, residual=None):
    wf, shift = _fold_bn(p)
    out = jax.lax.conv_general_dilated(
        x.astype(jnp.bfloat16), wf, (stride, stride), ((1, 1), (1, 1)),
        dimension_numbers=("NHWC", "HWIO", "NHWC"),
        preferred_element_type=jnp.float32)
    out = out + shift
    if residual is not None:
        out = out + residual
    if relu:
        out = jnp.maximum(out, 0.0)
    return out


def _ref_block(x, p1, p2, pd, stride):
    res = _ref_conv_bn(x, pd, stride=stride, relu=False) if pd is not None else x
    out = _ref_conv_bn(x, p1, stride=stride, relu=True)
    return _ref_conv_bn(out, p2, stride=1, relu=True, residual=res)


def reference_forward(x_nchw, params):
    x = jnp.transpose(x_nchw, (0, 2, 3, 1)).astype(jnp.float32)
    out = _ref_conv_bn(x, params["stem"], stride=1, relu=True)
    for blk in params["layer1"]:
        out = _ref_block(out, *blk)
    for blk in params["layer2"]:
        out = _ref_block(out, *blk)
    for blk in params["layer3"]:
        out = _ref_block(out, *blk)
    n, ho, wo, c = out.shape
    return jnp.transpose(out, (0, 3, 1, 2)).reshape(n, c, ho * wo)


# ----------------------------------------------------------------------------
# Deterministic parameter initialization
# ----------------------------------------------------------------------------
def _init_conv_bn(key, cin, cout):
    kw, kg, kb, km, kv = jax.random.split(key, 5)
    w = jax.random.normal(kw, (3, 3, cin, cout), jnp.float32) * (2.0 / (9 * cin)) ** 0.5
    gamma = 1.0 + 0.1 * jax.random.normal(kg, (cout,), jnp.float32)
    beta = 0.1 * jax.random.normal(kb, (cout,), jnp.float32)
    mean = 0.1 * jax.random.normal(km, (cout,), jnp.float32)
    var = jax.random.uniform(kv, (cout,), jnp.float32, minval=0.5, maxval=1.5)
    return (w, gamma, beta, mean, var)


def init_params(key):
    ks = jax.random.split(key, 9)
    params = {}
    params["stem"] = _init_conv_bn(ks[0], 3, 32)
    # layer1: BasicBlock(32 -> 32, stride 1, no downsample)
    params["layer1"] = [(_init_conv_bn(ks[1], 32, 32),
                         _init_conv_bn(ks[2], 32, 32),
                         None, 1)]
    # layer2: BasicBlock(32 -> 64, stride 2, downsample = conv3x3 + BN)
    params["layer2"] = [(_init_conv_bn(ks[3], 32, 64),
                         _init_conv_bn(ks[4], 64, 64),
                         _init_conv_bn(ks[5], 32, 64), 2)]
    # layer3: BasicBlock(64 -> 128, stride 2, downsample = conv3x3 + BN)
    params["layer3"] = [(_init_conv_bn(ks[6], 64, 128),
                         _init_conv_bn(ks[7], 128, 128),
                         _init_conv_bn(ks[8], 64, 128), 2)]
    return params


if __name__ == "__main__":
    key = jax.random.PRNGKey(0)
    kx, kp = jax.random.split(key)
    # PyTorch-style NCHW input: batch=2, 3 input channels, 16x16 spatial.
    x = jax.random.normal(kx, (2, 3, 16, 16), jnp.float32)
    params = init_params(kp)

    out = jax.block_until_ready(attn_encoder_forward(x, params))
    assert out.shape == (2, 128, 16), out.shape

    ref = jax.block_until_ready(reference_forward(x, params))
    max_err = float(jnp.max(jnp.abs(out - ref)))
    assert jnp.allclose(out, ref, atol=3e-2, rtol=3e-2), f"max abs err {max_err}"

    print("KERNEL_OK")
</pallas_src>

<mosaic_0001>
module attributes {stable_mosaic.version = 11 : i64} {
  func.func @_stage1_kernel(%arg0: i32, %arg1: memref<1x338x32xf32, #tpu.memory_space<vmem>>, %arg2: memref<9x32x32xbf16, #tpu.memory_space<vmem>>, %arg3: memref<1x32xf32, #tpu.memory_space<vmem>>, %arg4: memref<9x32x32xbf16, #tpu.memory_space<vmem>>, %arg5: memref<1x32xf32, #tpu.memory_space<vmem>>, %arg6: memref<9x32x32xbf16, #tpu.memory_space<vmem>>, %arg7: memref<1x32xf32, #tpu.memory_space<vmem>>, %arg8: memref<288x1xf32, #tpu.memory_space<vmem>>, %arg9: memref<1x288x32xf32, #tpu.memory_space<vmem>>, %arg10: memref<338x32xf32, #tpu.memory_space<vmem>>, %arg11: memref<338x32xf32, #tpu.memory_space<vmem>>) attributes {dimension_semantics = [#tpu.dimension_semantics<parallel>], iteration_bounds = array<i64: 2>, scalar_prefetch = 0 : i64, scratch_operands = 2 : i64, tpu.core_type = #tpu.core_type<tc>, window_params = [{transform_indices = @transform_0, window_bounds = array<i64: 1, 338, 32>}, {pipeline_mode = #tpu.pipeline_mode<synchronous>, transform_indices = @transform_1, window_bounds = array<i64: 9, 32, 32>}, {pipeline_mode = #tpu.pipeline_mode<synchronous>, transform_indices = @transform_2, window_bounds = array<i64: 1, 32>}, {pipeline_mode = #tpu.pipeline_mode<synchronous>, transform_indices = @transform_3, window_bounds = array<i64: 9, 32, 32>}, {pipeline_mode = #tpu.pipeline_mode<synchronous>, transform_indices = @transform_4, window_bounds = array<i64: 1, 32>}, {pipeline_mode = #tpu.pipeline_mode<synchronous>, transform_indices = @transform_5, window_bounds = array<i64: 9, 32, 32>}, {pipeline_mode = #tpu.pipeline_mode<synchronous>, transform_indices = @transform_6, window_bounds = array<i64: 1, 32>}, {pipeline_mode = #tpu.pipeline_mode<synchronous>, transform_indices = @transform_7, window_bounds = array<i64: 288, 1>}, {transform_indices = @transform_8, window_bounds = array<i64: 1, 288, 32>}]} {
    %c0 = arith.constant 0 : index
    %c0_0 = arith.constant 0 : index
    %0 = vector.load %arg8[%c0, %c0_0] : memref<288x1xf32, #tpu.memory_space<vmem>>, vector<288x1xf32>
    %cst = arith.constant 0.000000e+00 : f32
    %1 = vector.broadcast %cst : f32 to vector<288x32xf32>
    %c0_1 = arith.constant 0 : index
    %c5 = arith.constant 5 : index
    %c0_2 = arith.constant 0 : index
    %2 = vector.load %arg1[%c0_1, %c5, %c0_2] : memref<1x338x32xf32, #tpu.memory_space<vmem>>, vector<1x288x32xf32>
    %3 = vector.shape_cast %2 : vector<1x288x32xf32> to vector<288x32xf32>
    %4 = arith.truncf %3 : vector<288x32xf32> to vector<288x32xbf16>
    %c0_3 = arith.constant 0 : index
    %c0_4 = arith.constant 0 : index
    %c0_5 = arith.constant 0 : index
    %5 = vector.load %arg2[%c0_3, %c0_4, %c0_5] : memref<9x32x32xbf16, #tpu.memory_space<vmem>>, vector<1x32x32xbf16>
    %6 = vector.shape_cast %5 : vector<1x32x32xbf16> to vector<32x32xbf16>
    %cst_6 = arith.constant dense<0.000000e+00> : vector<288x32xf32>
    %7 = tpu.matmul %4, %6, %cst_6 {dimension_numbers = #tpu.dot_dimension_numbers<[1], [0], [0], [1], [0, 0, 1, 1], [], []>} : vector<288x32xbf16>, vector<32x32xbf16>, vector<288x32xf32> -> vector<288x32xf32>
    %8 = arith.addf %1, %7 : vector<288x32xf32>
    %c0_7 = arith.constant 0 : index
    %c6 = arith.constant 6 : index
    %c0_8 = arith.constant 0 : index
    %9 = vector.load %arg1[%c0_7, %c6, %c0_8] : memref<1x338x32xf32, #tpu.memory_space<vmem>>, vector<1x288x32xf32>
    %10 = vector.shape_cast %9 : vector<1x288x32xf32> to vector<288x32xf32>
    %11 = arith.truncf %10 : vector<288x32xf32> to vector<288x32xbf16>
    %c1 = arith.constant 1 : index
    %c0_9 = arith.constant 0 : index
    %c0_10 = arith.constant 0 : index
    %12 = vector.load %arg2[%c1, %c0_9, %c0_10] : memref<9x32x32xbf16, #tpu.memory_space<vmem>>, vector<1x32x32xbf16>
    %13 = vector.shape_cast %12 : vector<1x32x32xbf16> to vector<32x32xbf16>
    %cst_11 = arith.constant dense<0.000000e+00> : vector<288x32xf32>
    %14 = tpu.matmul %11, %13, %cst_11 {dimension_numbers = #tpu.dot_dimension_numbers<[1], [0], [0], [1], [0, 0, 1, 1], [], []>} : vector<288x32xbf16>, vector<32x32xbf16>, vector<288x32xf32> -> vector<288x32xf32>
    %15 = arith.addf %8, %14 : vector<288x32xf32>
    %c0_12 = arith.constant 0 : index
    %c7 = arith.constant 7 : index
    %c0_13 = arith.constant 0 : index
    %16 = vector.load %arg1[%c0_12, %c7, %c0_13] : memref<1x338x32xf32, #tpu.memory_space<vmem>>, vector<1x288x32xf32>
    %17 = vector.shape_cast %16 : vector<1x288x32xf32> to vector<288x32xf32>
    %18 = arith.truncf %17 : vector<288x32xf32> to vector<288x32xbf16>
    %c2 = arith.constant 2 : index
    %c0_14 = arith.constant 0 : index
    %c0_15 = arith.constant 0 : index
    %19 = vector.load %arg2[%c2, %c0_14, %c0_15] : memref<9x32x32xbf16, #tpu.memory_space<vmem>>, vector<1x32x32xbf16>
    %20 = vector.shape_cast %19 : vector<1x32x32xbf16> to vector<32x32xbf16>
    %cst_16 = arith.constant dense<0.000000e+00> : vector<288x32xf32>
    %21 = tpu.matmul %18, %20, %cst_16 {dimension_numbers = #tpu.dot_dimension_numbers<[1], [0], [0], [1], [0, 0, 1, 1], [], []>} : vector<288x32xbf16>, vector<32x32xbf16>, vector<288x32xf32> -> vector<288x32xf32>
    %22 = arith.addf %15, %21 : vector<288x32xf32>
    %c0_17 = arith.constant 0 : index
    %c23 = arith.constant 23 : index
    %c0_18 = arith.constant 0 : index
    %23 = vector.load %arg1[%c0_17, %c23, %c0_18] : memref<1x338x32xf32, #tpu.memory_space<vmem>>, vector<1x288x32xf32>
    %24 = vector.shape_cast %23 : vector<1x288x32xf32> to vector<288x32xf32>
    %25 = arith.truncf %24 : vector<288x32xf32> to vector<288x32xbf16>
    %c3 = arith.constant 3 : index
    %c0_19 = arith.constant 0 : index
    %c0_20 = arith.constant 0 : index
    %26 = vector.load %arg2[%c3, %c0_19, %c0_20] : memref<9x32x32xbf16, #tpu.memory_space<vmem>>, vector<1x32x32xbf16>
    %27 = vector.shape_cast %26 : vector<1x32x32xbf16> to vector<32x32xbf16>
    %cst_21 = arith.constant dense<0.000000e+00> : vector<288x32xf32>
    %28 = tpu.matmul %25, %27, %cst_21 {dimension_numbers = #tpu.dot_dimension_numbers<[1], [0], [0], [1], [0, 0, 1, 1], [], []>} : vector<288x32xbf16>, vector<32x32xbf16>, vector<288x32xf32> -> vector<288x32xf32>
    %29 = arith.addf %22, %28 : vector<288x32xf32>
    %c0_22 = arith.constant 0 : index
    %c24 = arith.constant 24 : index
    %c0_23 = arith.constant 0 : index
    %30 = vector.load %arg1[%c0_22, %c24, %c0_23] : memref<1x338x32xf32, #tpu.memory_space<vmem>>, vector<1x288x32xf32>
    %31 = vector.shape_cast %30 : vector<1x288x32xf32> to vector<288x32xf32>
    %32 = arith.truncf %31 : vector<288x32xf32> to vector<288x32xbf16>
    %c4 = arith.constant 4 : index
    %c0_24 = arith.constant 0 : index
    %c0_25 = arith.constant 0 : index
    %33 = vector.load %arg2[%c4, %c0_24, %c0_25] : memref<9x32x32xbf16, #tpu.memory_space<vmem>>, vector<1x32x32xbf16>
    %34 = vector.shape_cast %33 : vector<1x32x32xbf16> to vector<32x32xbf16>
    %cst_26 = arith.constant dense<0.000000e+00> : vector<288x32xf32>
    %35 = tpu.matmul %32, %34, %cst_26 {dimension_numbers = #tpu.dot_dimension_numbers<[1], [0], [0], [1], [0, 0, 1, 1], [], []>} : vector<288x32xbf16>, vector<32x32xbf16>, vector<288x32xf32> -> vector<288x32xf32>
    %36 = arith.addf %29, %35 : vector<288x32xf32>
    %c0_27 = arith.constant 0 : index
    %c25 = arith.constant 25 : index
    %c0_28 = arith.constant 0 : index
    %37 = vector.load %arg1[%c0_27, %c25, %c0_28] : memref<1x338x32xf32, #tpu.memory_space<vmem>>, vector<1x288x32xf32>
    %38 = vector.shape_cast %37 : vector<1x288x32xf32> to vector<288x32xf32>
    %39 = arith.truncf %38 : vector<288x32xf32> to vector<288x32xbf16>
    %c5_29 = arith.constant 5 : index
    %c0_30 = arith.constant 0 : index
    %c0_31 = arith.constant 0 : index
    %40 = vector.load %arg2[%c5_29, %c0_30, %c0_31] : memref<9x32x32xbf16, #tpu.memory_space<vmem>>, vector<1x32x32xbf16>
    %41 = vector.shape_cast %40 : vector<1x32x32xbf16> to vector<32x32xbf16>
    %cst_32 = arith.constant dense<0.000000e+00> : vector<288x32xf32>
    %42 = tpu.matmul %39, %41, %cst_32 {dimension_numbers = #tpu.dot_dimension_numbers<[1], [0], [0], [1], [0, 0, 1, 1], [], []>} : vector<288x32xbf16>, vector<32x32xbf16>, vector<288x32xf32> -> vector<288x32xf32>
    %43 = arith.addf %36, %42 : vector<288x32xf32>
    %c0_33 = arith.constant 0 : index
    %c41 = arith.constant 41 : index
    %c0_34 = arith.constant 0 : index
    %44 = vector.load %arg1[%c0_33, %c41, %c0_34] : memref<1x338x32xf32, #tpu.memory_space<vmem>>, vector<1x288x32xf32>
    %45 = vector.shape_cast %44 : vector<1x288x32xf32> to vector<288x32xf32>
    %46 = arith.truncf %45 : vector<288x32xf32> to vector<288x32xbf16>
    %c6_35 = arith.constant 6 : index
    %c0_36 = arith.constant 0 : index
    %c0_37 = arith.constant 0 : index
    %47 = vector.load %arg2[%c6_35, %c0_36, %c0_37] : memref<9x32x32xbf16, #tpu.memory_space<vmem>>, vector<1x32x32xbf16>
    %48 = vector.shape_cast %47 : vector<1x32x32xbf16> to vector<32x32xbf16>
    %cst_38 = arith.constant dense<0.000000e+00> : vector<288x32xf32>
    %49 = tpu.matmul %46, %48, %cst_38 {dimension_numbers = #tpu.dot_dimension_numbers<[1], [0], [0], [1], [0, 0, 1, 1], [], []>} : vector<288x32xbf16>, vector<32x32xbf16>, vector<288x32xf32> -> vector<288x32xf32>
    %50 = arith.addf %43, %49 : vector<288x32xf32>
    %c0_39 = arith.constant 0 : index
    %c42 = arith.constant 42 : index
    %c0_40 = arith.constant 0 : index
    %51 = vector.load %arg1[%c0_39, %c42, %c0_40] : memref<1x338x32xf32, #tpu.memory_space<vmem>>, vector<1x288x32xf32>
    %52 = vector.shape_cast %51 : vector<1x288x32xf32> to vector<288x32xf32>
    %53 = arith.truncf %52 : vector<288x32xf32> to vector<288x32xbf16>
    %c7_41 = arith.constant 7 : index
    %c0_42 = arith.constant 0 : index
    %c0_43 = arith.constant 0 : index
    %54 = vector.load %arg2[%c7_41, %c0_42, %c0_43] : memref<9x32x32xbf16, #tpu.memory_space<vmem>>, vector<1x32x32xbf16>
    %55 = vector.shape_cast %54 : vector<1x32x32xbf16> to vector<32x32xbf16>
    %cst_44 = arith.constant dense<0.000000e+00> : vector<288x32xf32>
    %56 = tpu.matmul %53, %55, %cst_44 {dimension_numbers = #tpu.dot_dimension_numbers<[1], [0], [0], [1], [0, 0, 1, 1], [], []>} : vector<288x32xbf16>, vector<32x32xbf16>, vector<288x32xf32> -> vector<288x32xf32>
    %57 = arith.addf %50, %56 : vector<288x32xf32>
    %c0_45 = arith.constant 0 : index
    %c43 = arith.constant 43 : index
    %c0_46 = arith.constant 0 : index
    %58 = vector.load %arg1[%c0_45, %c43, %c0_46] : memref<1x338x32xf32, #tpu.memory_space<vmem>>, vector<1x288x32xf32>
    %59 = vector.shape_cast %58 : vector<1x288x32xf32> to vector<288x32xf32>
    %60 = arith.truncf %59 : vector<288x32xf32> to vector<288x32xbf16>
    %c8 = arith.constant 8 : index
    %c0_47 = arith.constant 0 : index
    %c0_48 = arith.constant 0 : index
    %61 = vector.load %arg2[%c8, %c0_47, %c0_48] : memref<9x32x32xbf16, #tpu.memory_space<vmem>>, vector<1x32x32xbf16>
    %62 = vector.shape_cast %61 : vector<1x32x32xbf16> to vector<32x32xbf16>
    %cst_49 = arith.constant dense<0.000000e+00> : vector<288x32xf32>
    %63 = tpu.matmul %60, %62, %cst_49 {dimension_numbers = #tpu.dot_dimension_numbers<[1], [0], [0], [1], [0, 0, 1, 1], [], []>} : vector<288x32xbf16>, vector<32x32xbf16>, vector<288x32xf32> -> vector<288x32xf32>
    %64 = arith.addf %57, %63 : vector<288x32xf32>
    %c0_50 = arith.constant 0 : index
    %c0_51 = arith.constant 0 : index
    %65 = vector.load %arg3[%c0_50, %c0_51] : memref<1x32xf32, #tpu.memory_space<vmem>>, vector<1x32xf32>
    %66 = vector.broadcast %65 : vector<1x32xf32> to vector<288x32xf32>
    %67 = arith.addf %64, %66 : vector<288x32xf32>
    %cst_52 = arith.constant 0.000000e+00 : f32
    %68 = vector.broadcast %cst_52 : f32 to vector<288x32xf32>
    %69 = arith.maximumf %67, %68 : vector<288x32xf32>
    %70 = vector.broadcast %0 : vector<288x1xf32> to vector<288x32xf32>
    %71 = arith.mulf %69, %70 : vector<288x32xf32>
    %cst_53 = arith.constant 0.000000e+00 : f32
    %72 = vector.broadcast %cst_53 : f32 to vector<338x32xf32>
    %c0_54 = arith.constant 0 : index
    %c0_55 = arith.constant 0 : index
    %73 = vector.load %arg10[%c0_54, %c0_55] : memref<338x32xf32, #tpu.memory_space<vmem>>, vector<338x32xf32>
    tpu.vector_store %arg10[%c0_54, %c0_55], %72 {strides = array<i32>} : memref<338x32xf32, #tpu.memory_space<vmem>>, vector<338x32xf32>,
    %c24_56 = arith.constant 24 : index
    %c0_57 = arith.constant 0 : index
    %74 = vector.load %arg10[%c24_56, %c0_57] : memref<338x32xf32, #tpu.memory_space<vmem>>, vector<288x32xf32>
    tpu.vector_store %arg10[%c24_56, %c0_57], %71 {strides = array<i32>} : memref<338x32xf32, #tpu.memory_space<vmem>>, vector<288x32xf32>,
    %cst_58 = arith.constant 0.000000e+00 : f32
    %75 = vector.broadcast %cst_58 : f32 to vector<288x32xf32>
    %c5_59 = arith.constant 5 : index
    %c0_60 = arith.constant 0 : index
    %76 = vector.load %arg10[%c5_59, %c0_60] : memref<338x32xf32, #tpu.memory_space<vmem>>, vector<288x32xf32>
    %77 = arith.truncf %76 : vector<288x32xf32> to vector<288x32xbf16>
    %c0_61 = arith.constant 0 : index
    %c0_62 = arith.constant 0 : index
    %c0_63 = arith.constant 0 : index
    %78 = vector.load %arg4[%c0_61, %c0_62, %c0_63] : memref<9x32x32xbf16, #tpu.memory_space<vmem>>, vector<1x32x32xbf16>
    %79 = vector.shape_cast %78 : vector<1x32x32xbf16> to vector<32x32xbf16>
    %cst_64 = arith.constant dense<0.000000e+00> : vector<288x32xf32>
    %80 = tpu.matmul %77, %79, %cst_64 {dimension_numbers = #tpu.dot_dimension_numbers<[1], [0], [0], [1], [0, 0, 1, 1], [], []>} : vector<288x32xbf16>, vector<32x32xbf16>, vector<288x32xf32> -> vector<288x32xf32>
    %81 = arith.addf %75, %80 : vector<288x32xf32>
    %c6_65 = arith.constant 6 : index
    %c0_66 = arith.constant 0 : index
    %82 = vector.load %arg10[%c6_65, %c0_66] : memref<338x32xf32, #tpu.memory_space<vmem>>, vector<288x32xf32>
    %83 = arith.truncf %82 : vector<288x32xf32> to vector<288x32xbf16>
    %c1_67 = arith.constant 1 : index
    %c0_68 = arith.constant 0 : index
    %c0_69 = arith.constant 0 : index
    %84 = vector.load %arg4[%c1_67, %c0_68, %c0_69] : memref<9x32x32xbf16, #tpu.memory_space<vmem>>, vector<1x32x32xbf16>
    %85 = vector.shape_cast %84 : vector<1x32x32xbf16> to vector<32x32xbf16>
    %cst_70 = arith.constant dense<0.000000e+00> : vector<288x32xf32>
    %86 = tpu.matmul %83, %85, %cst_70 {dimension_numbers = #tpu.dot_dimension_numbers<[1], [0], [0], [1], [0, 0, 1, 1], [], []>} : vector<288x32xbf16>, vector<32x32xbf16>, vector<288x32xf32> -> vector<288x32xf32>
    %87 = arith.addf %81, %86 : vector<288x32xf32>
    %c7_71 = arith.constant 7 : index
    %c0_72 = arith.constant 0 : index
    %88 = vector.load %arg10[%c7_71, %c0_72] : memref<338x32xf32, #tpu.memory_space<vmem>>, vector<288x32xf32>
    %89 = arith.truncf %88 : vector<288x32xf32> to vector<288x32xbf16>
    %c2_73 = arith.constant 2 : index
    %c0_74 = arith.constant 0 : index
    %c0_75 = arith.constant 0 : index
    %90 = vector.load %arg4[%c2_73, %c0_74, %c0_75] : memref<9x32x32xbf16, #tpu.memory_space<vmem>>, vector<1x32x32xbf16>
    %91 = vector.shape_cast %90 : vector<1x32x32xbf16> to vector<32x32xbf16>
    %cst_76 = arith.constant dense<0.000000e+00> : vector<288x32xf32>
    %92 = tpu.matmul %89, %91, %cst_76 {dimension_numbers = #tpu.dot_dimension_numbers<[1], [0], [0], [1], [0, 0, 1, 1], [], []>} : vector<288x32xbf16>, vector<32x32xbf16>, vector<288x32xf32> -> vector<288x32xf32>
    %93 = arith.addf %87, %92 : vector<288x32xf32>
    %c23_77 = arith.constant 23 : index
    %c0_78 = arith.constant 0 : index
    %94 = vector.load %arg10[%c23_77, %c0_78] : memref<338x32xf32, #tpu.memory_space<vmem>>, vector<288x32xf32>
    %95 = arith.truncf %94 : vector<288x32xf32> to vector<288x32xbf16>
    %c3_79 = arith.constant 3 : index
    %c0_80 = arith.constant 0 : index
    %c0_81 = arith.constant 0 : index
    %96 = vector.load %arg4[%c3_79, %c0_80, %c0_81] : memref<9x32x32xbf16, #tpu.memory_space<vmem>>, vector<1x32x32xbf16>
    %97 = vector.shape_cast %96 : vector<1x32x32xbf16> to vector<32x32xbf16>
    %cst_82 = arith.constant dense<0.000000e+00> : vector<288x32xf32>
    %98 = tpu.matmul %95, %97, %cst_82 {dimension_numbers = #tpu.dot_dimension_numbers<[1], [0], [0], [1], [0, 0, 1, 1], [], []>} : vector<288x32xbf16>, vector<32x32xbf16>, vector<288x32xf32> -> vector<288x32xf32>
    %99 = arith.addf %93, %98 : vector<288x32xf32>
    %c24_83 = arith.constant 24 : index
    %c0_84 = arith.constant 0 : index
    %100 = vector.load %arg10[%c24_83, %c0_84] : memref<338x32xf32, #tpu.memory_space<vmem>>, vector<288x32xf32>
    %101 = arith.truncf %100 : vector<288x32xf32> to vector<288x32xbf16>
    %c4_85 = arith.constant 4 : index
    %c0_86 = arith.constant 0 : index
    %c0_87 = arith.constant 0 : index
    %102 = vector.load %arg4[%c4_85, %c0_86, %c0_87] : memref<9x32x32xbf16, #tpu.memory_space<vmem>>, vector<1x32x32xbf16>
    %103 = vector.shape_cast %102 : vector<1x32x32xbf16> to vector<32x32xbf16>
    %cst_88 = arith.constant dense<0.000000e+00> : vector<288x32xf32>
    %104 = tpu.matmul %101, %103, %cst_88 {dimension_numbers = #tpu.dot_dimension_numbers<[1], [0], [0], [1], [0, 0, 1, 1], [], []>} : vector<288x32xbf16>, vector<32x32xbf16>, vector<288x32xf32> -> vector<288x32xf32>
    %105 = arith.addf %99, %104 : vector<288x32xf32>
    %c25_89 = arith.constant 25 : index
    %c0_90 = arith.constant 0 : index
    %106 = vector.load %arg10[%c25_89, %c0_90] : memref<338x32xf32, #tpu.memory_space<vmem>>, vector<288x32xf32>
    %107 = arith.truncf %106 : vector<288x32xf32> to vector<288x32xbf16>
    %c5_91 = arith.constant 5 : index
    %c0_92 = arith.constant 0 : index
    %c0_93 = arith.constant 0 : index
    %108 = vector.load %arg4[%c5_91, %c0_92, %c0_93] : memref<9x32x32xbf16, #tpu.memory_space<vmem>>, vector<1x32x32xbf16>
    %109 = vector.shape_cast %108 : vector<1x32x32xbf16> to vector<32x32xbf16>
    %cst_94 = arith.constant dense<0.000000e+00> : vector<288x32xf32>
    %110 = tpu.matmul %107, %109, %cst_94 {dimension_numbers = #tpu.dot_dimension_numbers<[1], [0], [0], [1], [0, 0, 1, 1], [], []>} : vector<288x32xbf16>, vector<32x32xbf16>, vector<288x32xf32> -> vector<288x32xf32>
    %111 = arith.addf %105, %110 : vector<288x32xf32>
    %c41_95 = arith.constant 41 : index
    %c0_96 = arith.constant 0 : index
    %112 = vector.load %arg10[%c41_95, %c0_96] : memref<338x32xf32, #tpu.memory_space<vmem>>, vector<288x32xf32>
    %113 = arith.truncf %112 : vector<288x32xf32> to vector<288x32xbf16>
    %c6_97 = arith.constant 6 : index
    %c0_98 = arith.constant 0 : index
    %c0_99 = arith.constant 0 : index
    %114 = vector.load %arg4[%c6_97, %c0_98, %c0_99] : memref<9x32x32xbf16, #tpu.memory_space<vmem>>, vector<1x32x32xbf16>
    %115 = vector.shape_cast %114 : vector<1x32x32xbf16> to vector<32x32xbf16>
    %cst_100 = arith.constant dense<0.000000e+00> : vector<288x32xf32>
    %116 = tpu.matmul %113, %115, %cst_100 {dimension_numbers = #tpu.dot_dimension_numbers<[1], [0], [0], [1], [0, 0, 1, 1], [], []>} : vector<288x32xbf16>, vector<32x32xbf16>, vector<288x32xf32> -> vector<288x32xf32>
    %117 = arith.addf %111, %116 : vector<288x32xf32>
    %c42_101 = arith.constant 42 : index
    %c0_102 = arith.constant 0 : index
    %118 = vector.load %arg10[%c42_101, %c0_102] : memref<338x32xf32, #tpu.memory_space<vmem>>, vector<288x32xf32>
    %119 = arith.truncf %118 : vector<288x32xf32> to vector<288x32xbf16>
    %c7_103 = arith.constant 7 : index
    %c0_104 = arith.constant 0 : index
    %c0_105 = arith.constant 0 : index
    %120 = vector.load %arg4[%c7_103, %c0_104, %c0_105] : memref<9x32x32xbf16, #tpu.memory_space<vmem>>, vector<1x32x32xbf16>
    %121 = vector.shape_cast %120 : vector<1x32x32xbf16> to vector<32x32xbf16>
    %cst_106 = arith.constant dense<0.000000e+00> : vector<288x32xf32>
    %122 = tpu.matmul %119, %121, %cst_106 {dimension_numbers = #tpu.dot_dimension_numbers<[1], [0], [0], [1], [0, 0, 1, 1], [], []>} : vector<288x32xbf16>, vector<32x32xbf16>, vector<288x32xf32> -> vector<288x32xf32>
    %123 = arith.addf %117, %122 : vector<288x32xf32>
    %c43_107 = arith.constant 43 : index
    %c0_108 = arith.constant 0 : index
    %124 = vector.load %arg10[%c43_107, %c0_108] : memref<338x32xf32, #tpu.memory_space<vmem>>, vector<288x32xf32>
    %125 = arith.truncf %124 : vector<288x32xf32> to vector<288x32xbf16>
    %c8_109 = arith.constant 8 : index
    %c0_110 = arith.constant 0 : index
    %c0_111 = arith.constant 0 : index
    %126 = vector.load %arg4[%c8_109, %c0_110, %c0_111] : memref<9x32x32xbf16, #tpu.memory_space<vmem>>, vector<1x32x32xbf16>
    %127 = vector.shape_cast %126 : vector<1x32x32xbf16> to vector<32x32xbf16>
    %cst_112 = arith.constant dense<0.000000e+00> : vector<288x32xf32>
    %128 = tpu.matmul %125, %127, %cst_112 {dimension_numbers = #tpu.dot_dimension_numbers<[1], [0], [0], [1], [0, 0, 1, 1], [], []>} : vector<288x32xbf16>, vector<32x32xbf16>, vector<288x32xf32> -> vector<288x32xf32>
    %129 = arith.addf %123, %128 : vector<288x32xf32>
    %c0_113 = arith.constant 0 : index
    %c0_114 = arith.constant 0 : index
    %130 = vector.load %arg5[%c0_113, %c0_114] : memref<1x32xf32, #tpu.memory_space<vmem>>, vector<1x32xf32>
    %131 = vector.broadcast %130 : vector<1x32xf32> to vector<288x32xf32>
    %132 = arith.addf %129, %131 : vector<288x32xf32>
    %cst_115 = arith.constant 0.000000e+00 : f32
    %133 = vector.broadcast %cst_115 : f32 to vector<288x32xf32>
    %134 = arith.maximumf %132, %133 : vector<288x32xf32>
    %135 = vector.broadcast %0 : vector<288x1xf32> to vector<288x32xf32>
    %136 = arith.mulf %134, %135 : vector<288x32xf32>
    %cst_116 = arith.constant 0.000000e+00 : f32
    %137 = vector.broadcast %cst_116 : f32 to vector<338x32xf32>
    %c0_117 = arith.constant 0 : index
    %c0_118 = arith.constant 0 : index
    %138 = vector.load %arg11[%c0_117, %c0_118] : memref<338x32xf32, #tpu.memory_space<vmem>>, vector<338x32xf32>
    tpu.vector_store %arg11[%c0_117, %c0_118], %137 {strides = array<i32>} : memref<338x32xf32, #tpu.memory_space<vmem>>, vector<338x32xf32>,
    %c24_119 = arith.constant 24 : index
    %c0_120 = arith.constant 0 : index
    %139 = vector.load %arg11[%c24_119, %c0_120] : memref<338x32xf32, #tpu.memory_space<vmem>>, vector<288x32xf32>
    tpu.vector_store %arg11[%c24_119, %c0_120], %136 {strides = array<i32>} : memref<338x32xf32, #tpu.memory_space<vmem>>, vector<288x32xf32>,
    %cst_121 = arith.constant 0.000000e+00 : f32
    %140 = vector.broadcast %cst_121 : f32 to vector<288x32xf32>
    %c5_122 = arith.constant 5 : index
    %c0_123 = arith.constant 0 : index
    %141 = vector.load %arg11[%c5_122, %c0_123] : memref<338x32xf32, #tpu.memory_space<vmem>>, vector<288x32xf32>
    %142 = arith.truncf %141 : vector<288x32xf32> to vector<288x32xbf16>
    %c0_124 = arith.constant 0 : index
    %c0_125 = arith.constant 0 : index
    %c0_126 = arith.constant 0 : index
    %143 = vector.load %arg6[%c0_124, %c0_125, %c0_126] : memref<9x32x32xbf16, #tpu.memory_space<vmem>>, vector<1x32x32xbf16>
    %144 = vector.shape_cast %143 : vector<1x32x32xbf16> to vector<32x32xbf16>
    %cst_127 = arith.constant dense<0.000000e+00> : vector<288x32xf32>
    %145 = tpu.matmul %142, %144, %cst_127 {dimension_numbers = #tpu.dot_dimension_numbers<[1], [0], [0], [1], [0, 0, 1, 1], [], []>} : vector<288x32xbf16>, vector<32x32xbf16>, vector<288x32xf32> -> vector<288x32xf32>
    %146 = arith.addf %140, %145 : vector<288x32xf32>
    %c6_128 = arith.constant 6 : index
    %c0_129 = arith.constant 0 : index
    %147 = vector.load %arg11[%c6_128, %c0_129] : memref<338x32xf32, #tpu.memory_space<vmem>>, vector<288x32xf32>
    %148 = arith.truncf %147 : vector<288x32xf32> to vector<288x32xbf16>
    %c1_130 = arith.constant 1 : index
    %c0_131 = arith.constant 0 : index
    %c0_132 = arith.constant 0 : index
    %149 = vector.load %arg6[%c1_130, %c0_131, %c0_132] : memref<9x32x32xbf16, #tpu.memory_space<vmem>>, vector<1x32x32xbf16>
    %150 = vector.shape_cast %149 : vector<1x32x32xbf16> to vector<32x32xbf16>
    %cst_133 = arith.constant dense<0.000000e+00> : vector<288x32xf32>
    %151 = tpu.matmul %148, %150, %cst_133 {dimension_numbers = #tpu.dot_dimension_numbers<[1], [0], [0], [1], [0, 0, 1, 1], [], []>} : vector<288x32xbf16>, vector<32x32xbf16>, vector<288x32xf32> -> vector<288x32xf32>
    %152 = arith.addf %146, %151 : vector<288x32xf32>
    %c7_134 = arith.constant 7 : index
    %c0_135 = arith.constant 0 : index
    %153 = vector.load %arg11[%c7_134, %c0_135] : memref<338x32xf32, #tpu.memory_space<vmem>>, vector<288x32xf32>
    %154 = arith.truncf %153 : vector<288x32xf32> to vector<288x32xbf16>
    %c2_136 = arith.constant 2 : index
    %c0_137 = arith.constant 0 : index
    %c0_138 = arith.constant 0 : index
    %155 = vector.load %arg6[%c2_136, %c0_137, %c0_138] : memref<9x32x32xbf16, #tpu.memory_space<vmem>>, vector<1x32x32xbf16>
    %156 = vector.shape_cast %155 : vector<1x32x32xbf16> to vector<32x32xbf16>
    %cst_139 = arith.constant dense<0.000000e+00> : vector<288x32xf32>
    %157 = tpu.matmul %154, %156, %cst_139 {dimension_numbers = #tpu.dot_dimension_numbers<[1], [0], [0], [1], [0, 0, 1, 1], [], []>} : vector<288x32xbf16>, vector<32x32xbf16>, vector<288x32xf32> -> vector<288x32xf32>
    %158 = arith.addf %152, %157 : vector<288x32xf32>
    %c23_140 = arith.constant 23 : index
    %c0_141 = arith.constant 0 : index
    %159 = vector.load %arg11[%c23_140, %c0_141] : memref<338x32xf32, #tpu.memory_space<vmem>>, vector<288x32xf32>
    %160 = arith.truncf %159 : vector<288x32xf32> to vector<288x32xbf16>
    %c3_142 = arith.constant 3 : index
    %c0_143 = arith.constant 0 : index
    %c0_144 = arith.constant 0 : index
    %161 = vector.load %arg6[%c3_142, %c0_143, %c0_144] : memref<9x32x32xbf16, #tpu.memory_space<vmem>>, vector<1x32x32xbf16>
    %162 = vector.shape_cast %161 : vector<1x32x32xbf16> to vector<32x32xbf16>
    %cst_145 = arith.constant dense<0.000000e+00> : vector<288x32xf32>
    %163 = tpu.matmul %160, %162, %cst_145 {dimension_numbers = #tpu.dot_dimension_numbers<[1], [0], [0], [1], [0, 0, 1, 1], [], []>} : vector<288x32xbf16>, vector<32x32xbf16>, vector<288x32xf32> -> vector<288x32xf32>
    %164 = arith.addf %158, %163 : vector<288x32xf32>
    %c24_146 = arith.constant 24 : index
    %c0_147 = arith.constant 0 : index
    %165 = vector.load %arg11[%c24_146, %c0_147] : memref<338x32xf32, #tpu.memory_space<vmem>>, vector<288x32xf32>
    %166 = arith.truncf %165 : vector<288x32xf32> to vector<288x32xbf16>
    %c4_148 = arith.constant 4 : index
    %c0_149 = arith.constant 0 : index
    %c0_150 = arith.constant 0 : index
    %167 = vector.load %arg6[%c4_148, %c0_149, %c0_150] : memref<9x32x32xbf16, #tpu.memory_space<vmem>>, vector<1x32x32xbf16>
    %168 = vector.shape_cast %167 : vector<1x32x32xbf16> to vector<32x32xbf16>
    %cst_151 = arith.constant dense<0.000000e+00> : vector<288x32xf32>
    %169 = tpu.matmul %166, %168, %cst_151 {dimension_numbers = #tpu.dot_dimension_numbers<[1], [0], [0], [1], [0, 0, 1, 1], [], []>} : vector<288x32xbf16>, vector<32x32xbf16>, vector<288x32xf32> -> vector<288x32xf32>
    %170 = arith.addf %164, %169 : vector<288x32xf32>
    %c25_152 = arith.constant 25 : index
    %c0_153 = arith.constant 0 : index
    %171 = vector.load %arg11[%c25_152, %c0_153] : memref<338x32xf32, #tpu.memory_space<vmem>>, vector<288x32xf32>
    %172 = arith.truncf %171 : vector<288x32xf32> to vector<288x32xbf16>
    %c5_154 = arith.constant 5 : index
    %c0_155 = arith.constant 0 : index
    %c0_156 = arith.constant 0 : index
    %173 = vector.load %arg6[%c5_154, %c0_155, %c0_156] : memref<9x32x32xbf16, #tpu.memory_space<vmem>>, vector<1x32x32xbf16>
    %174 = vector.shape_cast %173 : vector<1x32x32xbf16> to vector<32x32xbf16>
    %cst_157 = arith.constant dense<0.000000e+00> : vector<288x32xf32>
    %175 = tpu.matmul %172, %174, %cst_157 {dimension_numbers = #tpu.dot_dimension_numbers<[1], [0], [0], [1], [0, 0, 1, 1], [], []>} : vector<288x32xbf16>, vector<32x32xbf16>, vector<288x32xf32> -> vector<288x32xf32>
    %176 = arith.addf %170, %175 : vector<288x32xf32>
    %c41_158 = arith.constant 41 : index
    %c0_159 = arith.constant 0 : index
    %177 = vector.load %arg11[%c41_158, %c0_159] : memref<338x32xf32, #tpu.memory_space<vmem>>, vector<288x32xf32>
    %178 = arith.truncf %177 : vector<288x32xf32> to vector<288x32xbf16>
    %c6_160 = arith.constant 6 : index
    %c0_161 = arith.constant 0 : index
    %c0_162 = arith.constant 0 : index
    %179 = vector.load %arg6[%c6_160, %c0_161, %c0_162] : memref<9x32x32xbf16, #tpu.memory_space<vmem>>, vector<1x32x32xbf16>
    %180 = vector.shape_cast %179 : vector<1x32x32xbf16> to vector<32x32xbf16>
    %cst_163 = arith.constant dense<0.000000e+00> : vector<288x32xf32>
    %181 = tpu.matmul %178, %180, %cst_163 {dimension_numbers = #tpu.dot_dimension_numbers<[1], [0], [0], [1], [0, 0, 1, 1], [], []>} : vector<288x32xbf16>, vector<32x32xbf16>, vector<288x32xf32> -> vector<288x32xf32>
    %182 = arith.addf %176, %181 : vector<288x32xf32>
    %c42_164 = arith.constant 42 : index
    %c0_165 = arith.constant 0 : index
    %183 = vector.load %arg11[%c42_164, %c0_165] : memref<338x32xf32, #tpu.memory_space<vmem>>, vector<288x32xf32>
    %184 = arith.truncf %183 : vector<288x32xf32> to vector<288x32xbf16>
    %c7_166 = arith.constant 7 : index
    %c0_167 = arith.constant 0 : index
    %c0_168 = arith.constant 0 : index
    %185 = vector.load %arg6[%c7_166, %c0_167, %c0_168] : memref<9x32x32xbf16, #tpu.memory_space<vmem>>, vector<1x32x32xbf16>
    %186 = vector.shape_cast %185 : vector<1x32x32xbf16> to vector<32x32xbf16>
    %cst_169 = arith.constant dense<0.000000e+00> : vector<288x32xf32>
    %187 = tpu.matmul %184, %186, %cst_169 {dimension_numbers = #tpu.dot_dimension_numbers<[1], [0], [0], [1], [0, 0, 1, 1], [], []>} : vector<288x32xbf16>, vector<32x32xbf16>, vector<288x32xf32> -> vector<288x32xf32>
    %188 = arith.addf %182, %187 : vector<288x32xf32>
    %c43_170 = arith.constant 43 : index
    %c0_171 = arith.constant 0 : index
    %189 = vector.load %arg11[%c43_170, %c0_171] : memref<338x32xf32, #tpu.memory_space<vmem>>, vector<288x32xf32>
    %190 = arith.truncf %189 : vector<288x32xf32> to vector<288x32xbf16>
    %c8_172 = arith.constant 8 : index
    %c0_173 = arith.constant 0 : index
    %c0_174 = arith.constant 0 : index
    %191 = vector.load %arg6[%c8_172, %c0_173, %c0_174] : memref<9x32x32xbf16, #tpu.memory_space<vmem>>, vector<1x32x32xbf16>
    %192 = vector.shape_cast %191 : vector<1x32x32xbf16> to vector<32x32xbf16>
    %cst_175 = arith.constant dense<0.000000e+00> : vector<288x32xf32>
    %193 = tpu.matmul %190, %192, %cst_175 {dimension_numbers = #tpu.dot_dimension_numbers<[1], [0], [0], [1], [0, 0, 1, 1], [], []>} : vector<288x32xbf16>, vector<32x32xbf16>, vector<288x32xf32> -> vector<288x32xf32>
    %194 = arith.addf %188, %193 : vector<288x32xf32>
    %c24_176 = arith.constant 24 : index
    %c0_177 = arith.constant 0 : index
    %195 = vector.load %arg10[%c24_176, %c0_177] : memref<338x32xf32, #tpu.memory_space<vmem>>, vector<288x32xf32>
    %c0_178 = arith.constant 0 : index
    %c0_179 = arith.constant 0 : index
    %196 = vector.load %arg7[%c0_178, %c0_179] : memref<1x32xf32, #tpu.memory_space<vmem>>, vector<1x32xf32>
    %197 = vector.broadcast %196 : vector<1x32xf32> to vector<288x32xf32>
    %198 = arith.addf %194, %197 : vector<288x32xf32>
    %199 = arith.addf %198, %195 : vector<288x32xf32>
    %cst_180 = arith.constant 0.000000e+00 : f32
    %200 = vector.broadcast %cst_180 : f32 to vector<288x32xf32>
    %201 = arith.maximumf %199, %200 : vector<288x32xf32>
    %202 = vector.broadcast %0 : vector<288x1xf32> to vector<288x32xf32>
    %203 = arith.mulf %201, %202 : vector<288x32xf32>
    %c0_181 = arith.constant 0 : index
    %c0_182 = arith.constant 0 : index
    %c0_183 = arith.constant 0 : index
    %204 = vector.load %arg9[%c0_181, %c0_182, %c0_183] : memref<1x288x32xf32, #tpu.memory_space<vmem>>, vector<1x288x32xf32>
    %205 = vector.shape_cast %204 : vector<1x288x32xf32> to vector<288x32xf32>
    %206 = vector.shape_cast %203 : vector<288x32xf32> to vector<1x288x32xf32>
    tpu.vector_store %arg9[%c0_181, %c0_182, %c0_183], %206 {strides = array<i32>} : memref<1x288x32xf32, #tpu.memory_space<vmem>>, vector<1x288x32xf32>,
    return
  }
  func.func @transform_0(%arg0: i32) -> (i32, i32, i32) {
    %c0_i32 = arith.constant 0 : i32
    %c0_i32_0 = arith.constant 0 : i32
    %c0_i32_1 = arith.constant 0 : i32
    return %arg0, %c0_i32, %c0_i32_0 : i32, i32, i32
  }
  func.func @transform_1(%arg0: i32) -> (i32, i32, i32) {
    %c0_i32 = arith.constant 0 : i32
    %c0_i32_0 = arith.constant 0 : i32
    %c0_i32_1 = arith.constant 0 : i32
    %c0_i32_2 = arith.constant 0 : i32
    return %c0_i32, %c0_i32_0, %c0_i32_1 : i32, i32, i32
  }
  func.func @transform_2(%arg0: i32) -> (i32, i32) {
    %c0_i32 = arith.constant 0 : i32
    %c0_i32_0 = arith.constant 0 : i32
    %c0_i32_1 = arith.constant 0 : i32
    return %c0_i32, %c0_i32_0 : i32, i32
  }
  func.func @transform_3(%arg0: i32) -> (i32, i32, i32) {
    %c0_i32 = arith.constant 0 : i32
    %c0_i32_0 = arith.constant 0 : i32
    %c0_i32_1 = arith.constant 0 : i32
    %c0_i32_2 = arith.constant 0 : i32
    return %c0_i32, %c0_i32_0, %c0_i32_1 : i32, i32, i32
  }
  func.func @transform_4(%arg0: i32) -> (i32, i32) {
    %c0_i32 = arith.constant 0 : i32
    %c0_i32_0 = arith.constant 0 : i32
    %c0_i32_1 = arith.constant 0 : i32
    return %c0_i32, %c0_i32_0 : i32, i32
  }
  func.func @transform_5(%arg0: i32) -> (i32, i32, i32) {
    %c0_i32 = arith.constant 0 : i32
    %c0_i32_0 = arith.constant 0 : i32
    %c0_i32_1 = arith.constant 0 : i32
    %c0_i32_2 = arith.constant 0 : i32
    return %c0_i32, %c0_i32_0, %c0_i32_1 : i32, i32, i32
  }
  func.func @transform_6(%arg0: i32) -> (i32, i32) {
    %c0_i32 = arith.constant 0 : i32
    %c0_i32_0 = arith.constant 0 : i32
    %c0_i32_1 = arith.constant 0 : i32
    return %c0_i32, %c0_i32_0 : i32, i32
  }
  func.func @transform_7(%arg0: i32) -> (i32, i32) {
    %c0_i32 = arith.constant 0 : i32
    %c0_i32_0 = arith.constant 0 : i32
    %c0_i32_1 = arith.constant 0 : i32
    return %c0_i32, %c0_i32_0 : i32, i32
  }
  func.func @transform_8(%arg0: i32) -> (i32, i32, i32) {
    %c0_i32 = arith.constant 0 : i32
    %c0_i32_0 = arith.constant 0 : i32
    %c0_i32_1 = arith.constant 0 : i32
    return %arg0, %c0_i32, %c0_i32_0 : i32, i32, i32
  }
}

</mosaic_0001>

<llo_original>
// kernel: tpu_custom_call.1
$region0: #{tpu_custom_call.1}
  #allocation0 [shape = 'u32[]', space=smem, size = 0x4, offset = 0x4, fixed_abs, tag = 'smem constant byte address 0x4 - core index']
  #allocation1 [shape = 'u32[72,128]{1,0:T(1,128)}', space=vmem, size = 0x9000, scoped, tag = 'internal scratch']
  #allocation2 [shape = 'f32[338,32]{1,0:T(8,128)}', space=vmem, size = 0x2b000, scoped, tag = 'scratch operand']
  #allocation3 [shape = 'f32[338,32]{1,0:T(8,128)}', space=vmem, size = 0x2b000, scoped, tag = 'scratch operand']
  %s0 = inlined_call_operand.vmem [shape: f32[2,338,32], index: 0, kind: input, shape index: {}]
  %s1 = inlined_call_operand.vmem [shape: bf16[9,32,32], index: 1, kind: input, shape index: {}]
  %s2 = inlined_call_operand.vmem [shape: f32[1,32], index: 2, kind: input, shape index: {}]
  %s3 = inlined_call_operand.vmem [shape: bf16[9,32,32], index: 3, kind: input, shape index: {}]
  %s4 = inlined_call_operand.vmem [shape: f32[1,32], index: 4, kind: input, shape index: {}]
  %s5 = inlined_call_operand.vmem [shape: bf16[9,32,32], index: 5, kind: input, shape index: {}]
  %s6 = inlined_call_operand.vmem [shape: f32[1,32], index: 6, kind: input, shape index: {}]
  %s7 = inlined_call_operand.vmem [shape: f32[288,1], index: 7, kind: input, shape index: {}]
  %s8 = inlined_call_operand.vmem [shape: f32[2,288,32], index: 8, kind: output, shape index: {}]
  %s9 = sld [smem:[#allocation0]]
  $region65: #{tpu_custom_call.1} parent=0
    _
  %s11 = ssub.s32 1, %s9
  %s12 = scalar_select 0, %s11, %s9
  loop: start=0, step=1, limit=4
  $region2: #{tpu_custom_call.1} parent=0 // loop_pre_header
    _
  $region3: #{tpu_custom_call.1} parent=0 // loop_header
    %s14 = sphi 0, %s18
    %p15 = scmp.ge.s32.totalorder %s14, 4
    %s24 = sphi 0, %s26
    %s27 = sphi 0, %s24
    %s28 = sphi 0, %s27
    %s44 = sphi 0, %s28
    %s48 = sphi 0, %s48
    %s50 = sphi 0, %s48
    %s51 = sphi 0, %s50
    %s65 = sphi 0, %s51
    %s69 = sphi 0, %s69
    %s71 = sphi 0, %s69
    %s72 = sphi 0, %s71
    %s86 = sphi 0, %s72
    %s90 = sphi 0, %s90
    %s92 = sphi 0, %s90
    %s93 = sphi 0, %s92
    %s107 = sphi 0, %s93
    %s111 = sphi 0, %s111
    %s113 = sphi 0, %s111
    %s114 = sphi 0, %s113
    %s128 = sphi 0, %s114
    %s132 = sphi 0, %s132
    %s134 = sphi 0, %s132
    %s135 = sphi 0, %s134
    %s149 = sphi 0, %s135
    %s153 = sphi 0, %s153
    %s155 = sphi 0, %s153
    %s156 = sphi 0, %s155
    %s170 = sphi 0, %s156
    %s174 = sphi 0, %s174
    %s176 = sphi 0, %s174
    %s177 = sphi 0, %s176
    %s191 = sphi 0, %s177
    %s197 = sphi 0, %s199
    %s200 = sphi 0, %s197
    %s201 = sphi 0, %s200
    %s217 = sphi 0, %s201
  $region4: #{tpu_custom_call.1} parent=0 // loop_header_branch
    %17 = sbr.rel (%p15) target = $region8
  $region5: #{tpu_custom_call.1} parent=0 // loop_body
    %s19 = ssub.s32 %s14, 1
    %s20 = ssub.s32 %s14, 2
    %s21 = sadd.s32 %s14, 1
    %s22 = ssub.s32 %s14, %s21
    %p23 = scmp.eq.s32.totalorder %s22, 0
    %s25 = sadd.s32 %s24, 1
    %s26 = scalar_select %p23, %s24, %s25
    %p29 = pneg %p23
    %p30 = scmp.eq.s32.totalorder %s14, 1
    %p31 = por %p29, %p30
    %p32 = scmp.ne.s32.totalorder %s24, %s27
    %p33 = scmp.eq.s32.totalorder %s14, 0
    %p34 = por %p32, %p33
    %p35 = scmp.ne.s32.totalorder %s24, %s27
    %p36 = scmp.eq.s32.totalorder %s19, 1
    %p37 = por %p35, %p36
    %p38 = scmp.ne.s32.totalorder %s27, %s28
    %p39 = scmp.eq.s32.totalorder %s19, 0
    %p40 = por %p38, %p39
    %p41 = scmp.ne.s32.totalorder %s27, %s28
    %p42 = scmp.eq.s32.totalorder %s20, 1
    %p43 = por %p41, %p42
    %p45 = scmp.ne.s32.totalorder %s28, %s44
    %p46 = scmp.eq.s32.totalorder %s20, 0
    %p47 = por %p45, %p46
    %s49 = sadd.s32 %s48, 1
    %p52 = scmp.eq.s32.totalorder %s14, 1
    %p53 = scmp.ne.s32.totalorder %s48, %s50
    %p54 = scmp.eq.s32.totalorder %s14, 0
    %p55 = por %p53, %p54
    %p56 = scmp.ne.s32.totalorder %s48, %s50
    %p57 = scmp.eq.s32.totalorder %s19, 1
    %p58 = por %p56, %p57
    %p59 = scmp.ne.s32.totalorder %s50, %s51
    %p60 = scmp.eq.s32.totalorder %s19, 0
    %p61 = por %p59, %p60
    %p62 = scmp.ne.s32.totalorder %s50, %s51
    %p63 = scmp.eq.s32.totalorder %s20, 1
    %p64 = por %p62, %p63
    %p66 = scmp.ne.s32.totalorder %s51, %s65
    %p67 = scmp.eq.s32.totalorder %s20, 0
    %p68 = por %p66, %p67
    %s70 = sadd.s32 %s69, 1
    %p73 = scmp.eq.s32.totalorder %s14, 1
    %p74 = scmp.ne.s32.totalorder %s69, %s71
    %p75 = scmp.eq.s32.totalorder %s14, 0
    %p76 = por %p74, %p75
    %p77 = scmp.ne.s32.totalorder %s69, %s71
    %p78 = scmp.eq.s32.totalorder %s19, 1
    %p79 = por %p77, %p78
    %p80 = scmp.ne.s32.totalorder %s71, %s72
    %p81 = scmp.eq.s32.totalorder %s19, 0
    %p82 = por %p80, %p81
    %p83 = scmp.ne.s32.totalorder %s71, %s72
    %p84 = scmp.eq.s32.totalorder %s20, 1
    %p85 = por %p83, %p84
    %p87 = scmp.ne.s32.totalorder %s72, %s86
    %p88 = scmp.eq.s32.totalorder %s20, 0
    %p89 = por %p87, %p88
    %s91 = sadd.s32 %s90, 1
    %p94 = scmp.eq.s32.totalorder %s14, 1
    %p95 = scmp.ne.s32.totalorder %s90, %s92
    %p96 = scmp.eq.s32.totalorder %s14, 0
    %p97 = por %p95, %p96
    %p98 = scmp.ne.s32.totalorder %s90, %s92
    %p99 = scmp.eq.s32.totalorder %s19, 1
    %p100 = por %p98, %p99
    %p101 = scmp.ne.s32.totalorder %s92, %s93
    %p102 = scmp.eq.s32.totalorder %s19, 0
    %p103 = por %p101, %p102
    %p104 = scmp.ne.s32.totalorder %s92, %s93
    %p105 = scmp.eq.s32.totalorder %s20, 1
    %p106 = por %p104, %p105
    %p108 = scmp.ne.s32.totalorder %s93, %s107
    %p109 = scmp.eq.s32.totalorder %s20, 0
    %p110 = por %p108, %p109
    %s112 = sadd.s32 %s111, 1
    %p115 = scmp.eq.s32.totalorder %s14, 1
    %p116 = scmp.ne.s32.totalorder %s111, %s113
    %p117 = scmp.eq.s32.totalorder %s14, 0
    %p118 = por %p116, %p117
    %p119 = scmp.ne.s32.totalorder %s111, %s113
    %p120 = scmp.eq.s32.totalorder %s19, 1
    %p121 = por %p119, %p120
    %p122 = scmp.ne.s32.totalorder %s113, %s114
    %p123 = scmp.eq.s32.totalorder %s19, 0
    %p124 = por %p122, %p123
    %p125 = scmp.ne.s32.totalorder %s113, %s114
    %p126 = scmp.eq.s32.totalorder %s20, 1
    %p127 = por %p125, %p126
    %p129 = scmp.ne.s32.totalorder %s114, %s128
    %p130 = scmp.eq.s32.totalorder %s20, 0
    %p131 = por %p129, %p130
    %s133 = sadd.s32 %s132, 1
    %p136 = scmp.eq.s32.totalorder %s14, 1
    %p137 = scmp.ne.s32.totalorder %s132, %s134
    %p138 = scmp.eq.s32.totalorder %s14, 0
    %p139 = por %p137, %p138
    %p140 = scmp.ne.s32.totalorder %s132, %s134
    %p141 = scmp.eq.s32.totalorder %s19, 1
    %p142 = por %p140, %p141
    %p143 = scmp.ne.s32.totalorder %s134, %s135
    %p144 = scmp.eq.s32.totalorder %s19, 0
    %p145 = por %p143, %p144
    %p146 = scmp.ne.s32.totalorder %s134, %s135
    %p147 = scmp.eq.s32.totalorder %s20, 1
    %p148 = por %p146, %p147
    %p150 = scmp.ne.s32.totalorder %s135, %s149
    %p151 = scmp.eq.s32.totalorder %s20, 0
    %p152 = por %p150, %p151
    %s154 = sadd.s32 %s153, 1
    %p157 = scmp.eq.s32.totalorder %s14, 1
    %p158 = scmp.ne.s32.totalorder %s153, %s155
    %p159 = scmp.eq.s32.totalorder %s14, 0
    %p160 = por %p158, %p159
    %p161 = scmp.ne.s32.totalorder %s153, %s155
    %p162 = scmp.eq.s32.totalorder %s19, 1
    %p163 = por %p161, %p162
    %p164 = scmp.ne.s32.totalorder %s155, %s156
    %p165 = scmp.eq.s32.totalorder %s19, 0
    %p166 = por %p164, %p165
    %p167 = scmp.ne.s32.totalorder %s155, %s156
    %p168 = scmp.eq.s32.totalorder %s20, 1
    %p169 = por %p167, %p168
    %p171 = scmp.ne.s32.totalorder %s156, %s170
    %p172 = scmp.eq.s32.totalorder %s20, 0
    %p173 = por %p171, %p172
    %s175 = sadd.s32 %s174, 1
    %p178 = scmp.eq.s32.totalorder %s14, 1
    %p179 = scmp.ne.s32.totalorder %s174, %s176
    %p180 = scmp.eq.s32.totalorder %s14, 0
    %p181 = por %p179, %p180
    %p182 = scmp.ne.s32.totalorder %s174, %s176
    %p183 = scmp.eq.s32.totalorder %s19, 1
    %p184 = por %p182, %p183
    %p185 = scmp.ne.s32.totalorder %s176, %s177
    %p186 = scmp.eq.s32.totalorder %s19, 0
    %p187 = por %p185, %p186
    %p188 = scmp.ne.s32.totalorder %s176, %s177
    %p189 = scmp.eq.s32.totalorder %s20, 1
    %p190 = por %p188, %p189
    %p192 = scmp.ne.s32.totalorder %s177, %s191
    %p193 = scmp.eq.s32.totalorder %s20, 0
    %p194 = por %p192, %p193
    %s195 = ssub.s32 %s14, %s21
    %p196 = scmp.eq.s32.totalorder %s195, 0
    %s198 = sadd.s32 %s197, 1
    %s199 = scalar_select %p196, %s197, %s198
    %p202 = pneg %p196
    %p203 = scmp.eq.s32.totalorder %s14, 1
    %p204 = por %p202, %p203
    %p205 = scmp.ne.s32.totalorder %s197, %s200
    %p206 = scmp.eq.s32.totalorder %s14, 0
    %p207 = por %p205, %p206
    %p208 = scmp.ne.s32.totalorder %s197, %s200
    %p209 = scmp.eq.s32.totalorder %s19, 1
    %p210 = por %p208, %p209
    %p211 = scmp.ne.s32.totalorder %s200, %s201
    %p212 = scmp.eq.s32.totalorder %s19, 0
    %p213 = por %p211, %p212
    %p214 = scmp.ne.s32.totalorder %s200, %s201
    %p215 = scmp.eq.s32.totalorder %s20, 1
    %p216 = por %p214, %p215
    %p218 = scmp.ne.s32.totalorder %s201, %s217
    %p219 = scmp.eq.s32.totalorder %s20, 0
    %p220 = por %p218, %p219
    %p221 = scmp.le.s32.totalorder 1, %s14
    %p222 = scmp.lt.s32.totalorder %s14, 3
    %p223 = pnand %p221, %p222
    %p224 = pneg %p223
    // Predicated region
    $region9: #{tpu_custom_call.1} parent=5 // pred_check
      _
    $region10: #{tpu_custom_call.1} parent=5 // pred_check_branch
      %226 = sbr.rel (%p223) target = $region12
    $region11: #{tpu_custom_call.1} parent=5 // pred_region
      %s227 = ssub.s32 %s14, 1
      // Predicated region
      $region13: #{tpu_custom_call.1} parent=11 // pred_check
        %p228 = pneg %p61
      $region14: #{tpu_custom_call.1} parent=11 // pred_check_branch
        %230 = sbr.rel (%p228) target = $region16
      $region15: #{tpu_custom_call.1} parent=11 // pred_region
        _
      $region16: #{tpu_custom_call.1} parent=11 // pred_fallthru
        _
      // Predicated region
      $region17: #{tpu_custom_call.1} parent=11 // pred_check
        %p231 = pneg %p82
      $region18: #{tpu_custom_call.1} parent=11 // pred_check_branch
        %233 = sbr.rel (%p231) target = $region20
      $region19: #{tpu_custom_call.1} parent=11 // pred_region
        _
      $region20: #{tpu_custom_call.1} parent=11 // pred_fallthru
        _
      // Predicated region
      $region21: #{tpu_custom_call.1} parent=11 // pred_check
        %p234 = pneg %p103
      $region22: #{tpu_custom_call.1} parent=11 // pred_check_branch
        %236 = sbr.rel (%p234) target = $region24
      $region23: #{tpu_custom_call.1} parent=11 // pred_region
        _
      $region24: #{tpu_custom_call.1} parent=11 // pred_fallthru
        _
      // Predicated region
      $region25: #{tpu_custom_call.1} parent=11 // pred_check
        %p237 = pneg %p124
      $region26: #{tpu_custom_call.1} parent=11 // pred_check_branch
        %239 = sbr.rel (%p237) target = $region28
      $region27: #{tpu_custom_call.1} parent=11 // pred_region
        _
      $region28: #{tpu_custom_call.1} parent=11 // pred_fallthru
        _
      // Predicated region
      $region29: #{tpu_custom_call.1} parent=11 // pred_check
        %p240 = pneg %p145
      $region30: #{tpu_custom_call.1} parent=11 // pred_check_branch
        %242 = sbr.rel (%p240) target = $region32
      $region31: #{tpu_custom_call.1} parent=11 // pred_region
        _
      $region32: #{tpu_custom_call.1} parent=11 // pred_fallthru
        _
      // Predicated region
      $region33: #{tpu_custom_call.1} parent=11 // pred_check
        %p243 = pneg %p166
      $region34: #{tpu_custom_call.1} parent=11 // pred_check_branch
        %245 = sbr.rel (%p243) target = $region36
      $region35: #{tpu_custom_call.1} parent=11 // pred_region
        _
      $region36: #{tpu_custom_call.1} parent=11 // pred_fallthru
        _
      // Predicated region
      $region37: #{tpu_custom_call.1} parent=11 // pred_check
        %p246 = pneg %p187
      $region38: #{tpu_custom_call.1} parent=11 // pred_check_branch
        %248 = sbr.rel (%p246) target = $region40
      $region39: #{tpu_custom_call.1} parent=11 // pred_region
        _
      $region40: #{tpu_custom_call.1} parent=11 // pred_fallthru
        _
    $region12: #{tpu_custom_call.1} parent=5 // pred_fallthru
      _
    %p249 = scmp.lt.s32.totalorder %s14, 2
    // Predicated region
    $region41: #{tpu_custom_call.1} parent=5 // pred_check
      %p250 = pneg %p249
    $region42: #{tpu_custom_call.1} parent=5 // pred_check_branch
      %252 = sbr.rel (%p250) target = $region44
    $region43: #{tpu_custom_call.1} parent=5 // pred_region
      // Predicated region
      $region45: #{tpu_custom_call.1} parent=43 // pred_check
        %p253 = pneg %p34
      $region46: #{tpu_custom_call.1} parent=43 // pred_check_branch
        %255 = sbr.rel (%p253) target = $region48
      $region47: #{tpu_custom_call.1} parent=43 // pred_region
        %p256 = scmp.lt.s32.totalorder %s14, 1
        %s257 = scalar_select %p256, %s14, 1
        %s258 = smul.addr %s257, 43
        %s259 = smul.addr %s258, 8
        %s260 = scalar_lea.vmem %s0, %s259
      $region48: #{tpu_custom_call.1} parent=43 // pred_fallthru
        _
    $region44: #{tpu_custom_call.1} parent=5 // pred_fallthru
      _
    %p261 = scmp.le.s32.totalorder 1, %s14
    %p262 = scmp.lt.s32.totalorder %s14, 3
    %p263 = pnand %p261, %p262
    %p264 = pneg %p263
    // Predicated region
    $region49: #{tpu_custom_call.1} parent=5 // pred_check
      _
    $region50: #{tpu_custom_call.1} parent=5 // pred_check_branch
      %266 = sbr.rel (%p263) target = $region52
    $region51: #{tpu_custom_call.1} parent=5 // pred_region
      %s267 = ssub.s32 %s14, 1
      %p268 = scmp.lt.s32.totalorder %s19, 1
      %s269 = scalar_select %p268, %s19, 1
      %s270 = smul.addr %s269, 43
      %s271 = smul.addr %s270, 8
      %s272 = scalar_lea.vmem %s0, %s271
      %p273 = pneg %p40
      %p274 = pneg %p37
      %p275 = pneg %p61
      %p276 = pneg %p58
      %p277 = pneg %p82
      %p278 = pneg %p79
      %p279 = pneg %p103
      %p280 = pneg %p100
      %p281 = pneg %p124
      %p282 = pneg %p121
      %p283 = pneg %p145
      %p284 = pneg %p142
      %p285 = pneg %p166
      %p286 = pneg %p163
      %p287 = pneg %p187
      %p288 = pneg %p184
      %p289 = pneg %p213
      %p290 = pneg %p210
      %p291 = scmp.lt.s32.totalorder %s19, 1
      %s292 = scalar_select %p291, %s19, 1
      %s293 = smul.addr %s292, 36
      %s294 = smul.addr %s293, 8
      %s295 = scalar_lea.vmem %s8, %s294
      %p296 = scmp.lt.s32.totalorder %s19, 1
      %s297 = scalar_select %p296, %s19, 1
      %s298 = smul.addr %s297, 43
      %s299 = smul.addr %s298, 8
      %s300 = scalar_lea.vmem %s0, %s299
      %p301 = scmp.lt.s32.totalorder %s19, 1
      %s302 = scalar_select %p301, %s19, 1
      %s303 = smul.addr %s302, 36
      %s304 = smul.addr %s303, 8
      %s305 = scalar_lea.vmem %s8, %s304
      %v307 = vld [vmem:[%s7] sm:$0xff]
      %v308 = vld [vmem:[%s7 + $0x8] sm:$0xff]
      %v309 = vld [vmem:[%s7 + $0x10] sm:$0xff]
      %v310 = vld [vmem:[%s7 + $0x18] sm:$0xff]
      %v311 = vld [vmem:[%s7 + $0x20] sm:$0xff]
      %v312 = vld [vmem:[%s7 + $0x28] sm:$0xff]
      %v313 = vld [vmem:[%s7 + $0x30] sm:$0xff]
      %v314 = vld [vmem:[%s7 + $0x38] sm:$0xff]
      %v315 = vld [vmem:[%s7 + $0x40] sm:$0xff]
      %v316 = vld [vmem:[%s7 + $0x48] sm:$0xff]
      %v317 = vld [vmem:[%s7 + $0x50] sm:$0xff]
      %v318 = vld [vmem:[%s7 + $0x58] sm:$0xff]
      %v319 = vld [vmem:[%s7 + $0x60] sm:$0xff]
      %v320 = vld [vmem:[%s7 + $0x68] sm:$0xff]
      %v321 = vld [vmem:[%s7 + $0x70] sm:$0xff]
      %v322 = vld [vmem:[%s7 + $0x78] sm:$0xff]
      %v323 = vld [vmem:[%s7 + $0x80] sm:$0xff]
      %v324 = vld [vmem:[%s7 + $0x88] sm:$0xff]
      %v325 = vld [vmem:[%s7 + $0x90] sm:$0xff]
      %v326 = vld [vmem:[%s7 + $0x98] sm:$0xff]
      %v327 = vld [vmem:[%s7 + $0xa0] sm:$0xff]
      %v328 = vld [vmem:[%s7 + $0xa8] sm:$0xff]
      %v329 = vld [vmem:[%s7 + $0xb0] sm:$0xff]
      %v330 = vld [vmem:[%s7 + $0xb8] sm:$0xff]
      %v331 = vld [vmem:[%s7 + $0xc0] sm:$0xff]
      %v332 = vld [vmem:[%s7 + $0xc8] sm:$0xff]
      %v333 = vld [vmem:[%s7 + $0xd0] sm:$0xff]
      %v334 = vld [vmem:[%s7 + $0xd8] sm:$0xff]
      %v335 = vld [vmem:[%s7 + $0xe0] sm:$0xff]
      %v336 = vld [vmem:[%s7 + $0xe8] sm:$0xff]
      %v337 = vld [vmem:[%s7 + $0xf0] sm:$0xff]
      %v338 = vld [vmem:[%s7 + $0xf8] sm:$0xff]
      %v339 = vld [vmem:[%s7 + $0x100] sm:$0xff]
      %v340 = vld [vmem:[%s7 + $0x108] sm:$0xff]
      %v341 = vld [vmem:[%s7 + $0x110] sm:$0xff]
      %v342 = vld [vmem:[%s7 + $0x118] sm:$0xff]
      %v343 = vld [vmem:[%s300 + $0x5] sm:$0xff]
      %v344 = vld [vmem:[%s300 + $0xd] sm:$0xff]
      %v345 = vld [vmem:[%s300 + $0x15] sm:$0xff]
      %v346 = vld [vmem:[%s300 + $0x1d] sm:$0xff]
      %v347 = vld [vmem:[%s300 + $0x25] sm:$0xff]
      %v348 = vld [vmem:[%s300 + $0x2d] sm:$0xff]
      %v349 = vld [vmem:[%s300 + $0x35] sm:$0xff]
      %v350 = vld [vmem:[%s300 + $0x3d] sm:$0xff]
      %v351 = vld [vmem:[%s300 + $0x45] sm:$0xff]
      %v352 = vld [vmem:[%s300 + $0x4d] sm:$0xff]
      %v353 = vld [vmem:[%s300 + $0x55] sm:$0xff]
      %v354 = vld [vmem:[%s300 + $0x5d] sm:$0xff]
      %v355 = vld [vmem:[%s300 + $0x65] sm:$0xff]
      %v356 = vld [vmem:[%s300 + $0x6d] sm:$0xff]
      %v357 = vld [vmem:[%s300 + $0x75] sm:$0xff]
      %v358 = vld [vmem:[%s300 + $0x7d] sm:$0xff]
      %v359 = vld [vmem:[%s300 + $0x85] sm:$0xff]
      %v360 = vld [vmem:[%s300 + $0x8d] sm:$0xff]
      %v361 = vld [vmem:[%s300 + $0x95] sm:$0xff]
      %v362 = vld [vmem:[%s300 + $0x9d] sm:$0xff]
      %v363 = vld [vmem:[%s300 + $0xa5] sm:$0xff]
      %v364 = vld [vmem:[%s300 + $0xad] sm:$0xff]
      %v365 = vld [vmem:[%s300 + $0xb5] sm:$0xff]
      %v366 = vld [vmem:[%s300 + $0xbd] sm:$0xff]
      %v367 = vld [vmem:[%s300 + $0xc5] sm:$0xff]
      %v368 = vld [vmem:[%s300 + $0xcd] sm:$0xff]
      %v369 = vld [vmem:[%s300 + $0xd5] sm:$0xff]
      %v370 = vld [vmem:[%s300 + $0xdd] sm:$0xff]
      %v371 = vld [vmem:[%s300 + $0xe5] sm:$0xff]
      %v372 = vld [vmem:[%s300 + $0xed] sm:$0xff]
      %v373 = vld [vmem:[%s300 + $0xf5] sm:$0xff]
      %v374 = vld [vmem:[%s300 + $0xfd] sm:$0xff]
      %v375 = vld [vmem:[%s300 + $0x105] sm:$0xff]
      %v376 = vld [vmem:[%s300 + $0x10d] sm:$0xff]
      %v377 = vld [vmem:[%s300 + $0x115] sm:$0xff]
      %v378 = vld [vmem:[%s300 + $0x11d] sm:$0xff]
      %v379 = vpack.c.bf16 %v344, %v343
      %v380 = vpack.c.bf16 %v346, %v345
      %v381 = vpack.c.bf16 %v348, %v347
      %v382 = vpack.c.bf16 %v350, %v349
      %v383 = vpack.c.bf16 %v352, %v351
      %v384 = vpack.c.bf16 %v354, %v353
      %v385 = vpack.c.bf16 %v356, %v355
      %v386 = vpack.c.bf16 %v358, %v357
      %v387 = vpack.c.bf16 %v360, %v359
      %v388 = vpack.c.bf16 %v362, %v361
      %v389 = vpack.c.bf16 %v364, %v363
      %v390 = vpack.c.bf16 %v366, %v365
      %v391 = vpack.c.bf16 %v368, %v367
      %v392 = vpack.c.bf16 %v370, %v369
      %v393 = vpack.c.bf16 %v372, %v371
      %v394 = vpack.c.bf16 %v374, %v373
      %v395 = vpack.c.bf16 %v376, %v375
      %v396 = vpack.c.bf16 %v378, %v377
      %v397 = vld [vmem:[%s1] sm:$0xf]
      %v398 = vld [vmem:[%s1 + $0x4] sm:$0xf]
      %v399 = vld [vmem:[%s1 + $0x8] sm:$0xf]
      %v400 = vld [vmem:[%s1 + $0xc] sm:$0xf]
      %v401 = vld [vmem:[%s300 + $0x6] sm:$0xff]
      %v402 = vld [vmem:[%s300 + $0xe] sm:$0xff]
      %v403 = vld [vmem:[%s300 + $0x16] sm:$0xff]
      %v404 = vld [vmem:[%s300 + $0x1e] sm:$0xff]
      %v405 = vld [vmem:[%s300 + $0x26] sm:$0xff]
      %v406 = vld [vmem:[%s300 + $0x2e] sm:$0xff]
      %v407 = vld [vmem:[%s300 + $0x36] sm:$0xff]
      %v408 = vld [vmem:[%s300 + $0x3e] sm:$0xff]
      %v409 = vld [vmem:[%s300 + $0x46] sm:$0xff]
      %v410 = vld [vmem:[%s300 + $0x4e] sm:$0xff]
      %v411 = vld [vmem:[%s300 + $0x56] sm:$0xff]
      %v412 = vld [vmem:[%s300 + $0x5e] sm:$0xff]
      %v413 = vld [vmem:[%s300 + $0x66] sm:$0xff]
      %v414 = vld [vmem:[%s300 + $0x6e] sm:$0xff]
      %v415 = vld [vmem:[%s300 + $0x76] sm:$0xff]
      %v416 = vld [vmem:[%s300 + $0x7e] sm:$0xff]
      %v417 = vld [vmem:[%s300 + $0x86] sm:$0xff]
      %v418 = vld [vmem:[%s300 + $0x8e] sm:$0xff]
      %v419 = vld [vmem:[%s300 + $0x96] sm:$0xff]
      %v420 = vld [vmem:[%s300 + $0x9e] sm:$0xff]
      %v421 = vld [vmem:[%s300 + $0xa6] sm:$0xff]
      %v422 = vld [vmem:[%s300 + $0xae] sm:$0xff]
      %v423 = vld [vmem:[%s300 + $0xb6] sm:$0xff]
      %v424 = vld [vmem:[%s300 + $0xbe] sm:$0xff]
      %v425 = vld [vmem:[%s300 + $0xc6] sm:$0xff]
      %v426 = vld [vmem:[%s300 + $0xce] sm:$0xff]
      %v427 = vld [vmem:[%s300 + $0xd6] sm:$0xff]
      %v428 = vld [vmem:[%s300 + $0xde] sm:$0xff]
      %v429 = vld [vmem:[%s300 + $0xe6] sm:$0xff]
      %v430 = vld [vmem:[%s300 + $0xee] sm:$0xff]
      %v431 = vld [vmem:[%s300 + $0xf6] sm:$0xff]
      %v432 = vld [vmem:[%s300 + $0xfe] sm:$0xff]
      %v433 = vld [vmem:[%s300 + $0x106] sm:$0xff]
      %v434 = vld [vmem:[%s300 + $0x10e] sm:$0xff]
      %v435 = vld [vmem:[%s300 + $0x116] sm:$0xff]
      %v436 = vld [vmem:[%s300 + $0x11e] sm:$0xff]
      %v437 = vpack.c.bf16 %v402, %v401
      %v438 = vpack.c.bf16 %v404, %v403
      %v439 = vpack.c.bf16 %v406, %v405
      %v440 = vpack.c.bf16 %v408, %v407
      %v441 = vpack.c.bf16 %v410, %v409
      %v442 = vpack.c.bf16 %v412, %v411
      %v443 = vpack.c.bf16 %v414, %v413
      %v444 = vpack.c.bf16 %v416, %v415
      %v445 = vpack.c.bf16 %v418, %v417
      %v446 = vpack.c.bf16 %v420, %v419
      %v447 = vpack.c.bf16 %v422, %v421
      %v448 = vpack.c.bf16 %v424, %v423
      %v449 = vpack.c.bf16 %v426, %v425
      %v450 = vpack.c.bf16 %v428, %v427
      %v451 = vpack.c.bf16 %v430, %v429
      %v452 = vpack.c.bf16 %v432, %v431
      %v453 = vpack.c.bf16 %v434, %v433
      %v454 = vpack.c.bf16 %v436, %v435
      %s455 = scalar_lea.vmem %s1, 16
      %v456 = vld [vmem:[%s455] sm:$0xf]
      %v457 = vld [vmem:[%s455 + $0x4] sm:$0xf]
      %v458 = vld [vmem:[%s455 + $0x8] sm:$0xf]
      %v459 = vld [vmem:[%s455 + $0xc] sm:$0xf]
      %v464 = vunpack.c.l.b16 %v456
      %v465 = vunpack.c.l.b16 %v457
      %v466 = vunpack.c.l.b16 %v458
      %v467 = vunpack.c.l.b16 %v459
      %v468 = vpack.c.b16 %v465, %v464
      %v469 = vpack.c.b16 %v467, %v466
      %vm472 = vcmask 261120
      %v474 = vsel %vm472, %v437, 0
      %v477 = vsel %vm472, %v438, 0
      %v480 = vsel %vm472, %v439, 0
      %v483 = vsel %vm472, %v440, 0
      %v486 = vsel %vm472, %v441, 0
      %v489 = vsel %vm472, %v442, 0
      %v492 = vsel %vm472, %v443, 0
      %v495 = vsel %vm472, %v444, 0
      %v498 = vsel %vm472, %v445, 0
      %v501 = vsel %vm472, %v446, 0
      %v504 = vsel %vm472, %v447, 0
      %v507 = vsel %vm472, %v448, 0
      %v510 = vsel %vm472, %v449, 0
      %v513 = vsel %vm472, %v450, 0
      %v516 = vsel %vm472, %v451, 0
      %v519 = vsel %vm472, %v452, 0
      %v522 = vsel %vm472, %v453, 0
      %v525 = vsel %vm472, %v454, 0
      %527 = vmatpush.bf16.msra.mxu0 0
      %528 = vmatpush.bf16.msra.mxu0 0
      %529 = vmatpush.bf16.msra.mxu0 0
      %530 = vmatpush.bf16.msra.mxu0 0
      %531 = vmatpush.bf16.msra.mxu0 0
      %532 = vmatpush.bf16.msra.mxu0 0
      %533 = vmatpush.bf16.msra.mxu0 %v469
      %534 = vmatpush.bf16.msra.mxu0 %v468
      %535 = vmatmul.bf16.gmra.mxu0 %v474
      %v536 = vpop.f32.mrf.mxu0
      %v537 = vadd.f32 0.0, %v536
      %v538 = vpop.f32.mrf.mxu0
      %v539 = vadd.f32 0.0, %v538
      %540 = vmatmul.bf16.gmra.mxu0 %v477
      %v541 = vpop.f32.mrf.mxu0
      %v542 = vadd.f32 0.0, %v541
      %v543 = vpop.f32.mrf.mxu0
      %v544 = vadd.f32 0.0, %v543
      %545 = vmatmul.bf16.gmra.mxu0 %v480
      %v546 = vpop.f32.mrf.mxu0
      %v547 = vadd.f32 0.0, %v546
      %v548 = vpop.f32.mrf.mxu0
      %v549 = vadd.f32 0.0, %v548
      %550 = vmatmul.bf16.gmra.mxu0 %v483
      %v551 = vpop.f32.mrf.mxu0
      %v552 = vadd.f32 0.0, %v551
      %v553 = vpop.f32.mrf.mxu0
      %v554 = vadd.f32 0.0, %v553
      %555 = vmatmul.bf16.gmra.mxu0 %v486
      %v556 = vpop.f32.mrf.mxu0
      %v557 = vadd.f32 0.0, %v556
      %v558 = vpop.f32.mrf.mxu0
      %v559 = vadd.f32 0.0, %v558
      %560 = vmatmul.bf16.gmra.mxu0 %v489
      %v561 = vpop.f32.mrf.mxu0
      %v562 = vadd.f32 0.0, %v561
      %v563 = vpop.f32.mrf.mxu0
      %v564 = vadd.f32 0.0, %v563
      %565 = vmatmul.bf16.gmra.mxu0 %v492
      %v566 = vpop.f32.mrf.mxu0
      %v567 = vadd.f32 0.0, %v566
      %v568 = vpop.f32.mrf.mxu0
      %v569 = vadd.f32 0.0, %v568
      %570 = vmatmul.bf16.gmra.mxu0 %v495
      %v571 = vpop.f32.mrf.mxu0
      %v572 = vadd.f32 0.0, %v571
      %v573 = vpop.f32.mrf.mxu0
      %v574 = vadd.f32 0.0, %v573
      %575 = vmatmul.bf16.gmra.mxu0 %v498
      %v576 = vpop.f32.mrf.mxu0
      %v577 = vadd.f32 0.0, %v576
      %v578 = vpop.f32.mrf.mxu0
      %v579 = vadd.f32 0.0, %v578
      %580 = vmatmul.bf16.gmra.mxu0 %v501
      %v581 = vpop.f32.mrf.mxu0
      %v582 = vadd.f32 0.0, %v581
      %v583 = vpop.f32.mrf.mxu0
      %v584 = vadd.f32 0.0, %v583
      %585 = vmatmul.bf16.gmra.mxu0 %v504
      %v586 = vpop.f32.mrf.mxu0
      %v587 = vadd.f32 0.0, %v586
      %v588 = vpop.f32.mrf.mxu0
      %v589 = vadd.f32 0.0, %v588
      %590 = vmatmul.bf16.gmra.mxu0 %v507
      %v591 = vpop.f32.mrf.mxu0
      %v592 = vadd.f32 0.0, %v591
      %v593 = vpop.f32.mrf.mxu0
      %v594 = vadd.f32 0.0, %v593
      %595 = vmatmul.bf16.gmra.mxu0 %v510
      %v596 = vpop.f32.mrf.mxu0
      %v597 = vadd.f32 0.0, %v596
      %v598 = vpop.f32.mrf.mxu0
      %v599 = vadd.f32 0.0, %v598
      %600 = vmatmul.bf16.gmra.mxu0 %v513
      %v601 = vpop.f32.mrf.mxu0
      %v602 = vadd.f32 0.0, %v601
      %v603 = vpop.f32.mrf.mxu0
      %v604 = vadd.f32 0.0, %v603
      %605 = vmatmul.bf16.gmra.mxu0 %v516
      %v606 = vpop.f32.mrf.mxu0
      %v607 = vadd.f32 0.0, %v606
      %v608 = vpop.f32.mrf.mxu0
      %v609 = vadd.f32 0.0, %v608
      %610 = vmatmul.bf16.gmra.mxu0 %v519
      %v611 = vpop.f32.mrf.mxu0
      %v612 = vadd.f32 0.0, %v611
      %v613 = vpop.f32.mrf.mxu0
      %v614 = vadd.f32 0.0, %v613
      %615 = vmatmul.bf16.gmra.mxu0 %v522
      %v616 = vpop.f32.mrf.mxu0
      %v617 = vadd.f32 0.0, %v616
      %v618 = vpop.f32.mrf.mxu0
      %v619 = vadd.f32 0.0, %v618
      %620 = vmatmul.bf16.gmra.mxu0 %v525
      %v621 = vpop.f32.mrf.mxu0
      %v622 = vadd.f32 0.0, %v621
      %v623 = vpop.f32.mrf.mxu0
      %v624 = vadd.f32 0.0, %v623
      %625 = vdwg.mxu0
      %v630 = vunpack.c.l.b16 %v397
      %v631 = vunpack.c.l.b16 %v398
      %v632 = vunpack.c.l.b16 %v399
      %v633 = vunpack.c.l.b16 %v400
      %v634 = vpack.c.b16 %v631, %v630
      %v635 = vpack.c.b16 %v633, %v632
      %v639 = vsel %vm472, %v379, 0
      %v642 = vsel %vm472, %v380, 0
      %v645 = vsel %vm472, %v381, 0
      %v648 = vsel %vm472, %v382, 0
      %v651 = vsel %vm472, %v383, 0
      %v654 = vsel %vm472, %v384, 0
      %v657 = vsel %vm472, %v385, 0
      %v660 = vsel %vm472, %v386, 0
      %v663 = vsel %vm472, %v387, 0
      %v666 = vsel %vm472, %v388, 0
      %v669 = vsel %vm472, %v389, 0
      %v672 = vsel %vm472, %v390, 0
      %v675 = vsel %vm472, %v391, 0
      %v678 = vsel %vm472, %v392, 0
      %v681 = vsel %vm472, %v393, 0
      %v684 = vsel %vm472, %v394, 0
      %v687 = vsel %vm472, %v395, 0
      %v690 = vsel %vm472, %v396, 0
      %692 = vmatpush.bf16.msra.mxu0 0
      %693 = vmatpush.bf16.msra.mxu0 0
      %694 = vmatpush.bf16.msra.mxu0 0
      %695 = vmatpush.bf16.msra.mxu0 0
      %696 = vmatpush.bf16.msra.mxu0 0
      %697 = vmatpush.bf16.msra.mxu0 0
      %698 = vmatpush.bf16.msra.mxu0 %v635
      %699 = vmatpush.bf16.msra.mxu0 %v634
      %700 = vmatmul.bf16.gmra.mxu0 %v639
      %v701 = vpop.f32.mrf.mxu0
      %v702 = vadd.f32 %v537, %v701
      %v703 = vpop.f32.mrf.mxu0
      %v704 = vadd.f32 %v539, %v703
      %705 = vmatmul.bf16.gmra.mxu0 %v642
      %v706 = vpop.f32.mrf.mxu0
      %v707 = vadd.f32 %v542, %v706
      %v708 = vpop.f32.mrf.mxu0
      %v709 = vadd.f32 %v544, %v708
      %710 = vmatmul.bf16.gmra.mxu0 %v645
      %v711 = vpop.f32.mrf.mxu0
      %v712 = vadd.f32 %v547, %v711
      %v713 = vpop.f32.mrf.mxu0
      %v714 = vadd.f32 %v549, %v713
      %715 = vmatmul.bf16.gmra.mxu0 %v648
      %v716 = vpop.f32.mrf.mxu0
      %v717 = vadd.f32 %v552, %v716
      %v718 = vpop.f32.mrf.mxu0
      %v719 = vadd.f32 %v554, %v718
      %720 = vmatmul.bf16.gmra.mxu0 %v651
      %v721 = vpop.f32.mrf.mxu0
      %v722 = vadd.f32 %v557, %v721
      %v723 = vpop.f32.mrf.mxu0
      %v724 = vadd.f32 %v559, %v723
      %725 = vmatmul.bf16.gmra.mxu0 %v654
      %v726 = vpop.f32.mrf.mxu0
      %v727 = vadd.f32 %v562, %v726
      %v728 = vpop.f32.mrf.mxu0
      %v729 = vadd.f32 %v564, %v728
      %730 = vmatmul.bf16.gmra.mxu0 %v657
      %v731 = vpop.f32.mrf.mxu0
      %v732 = vadd.f32 %v567, %v731
      %v733 = vpop.f32.mrf.mxu0
      %v734 = vadd.f32 %v569, %v733
      %735 = vmatmul.bf16.gmra.mxu0 %v660
      %v736 = vpop.f32.mrf.mxu0
      %v737 = vadd.f32 %v572, %v736
      %v738 = vpop.f32.mrf.mxu0
      %v739 = vadd.f32 %v574, %v738
      %740 = vmatmul.bf16.gmra.mxu0 %v663
      %v741 = vpop.f32.mrf.mxu0
      %v742 = vadd.f32 %v577, %v741
      %v743 = vpop.f32.mrf.mxu0
      %v744 = vadd.f32 %v579, %v743
      %745 = vmatmul.bf16.gmra.mxu0 %v666
      %v746 = vpop.f32.mrf.mxu0
      %v747 = vadd.f32 %v582, %v746
      %v748 = vpop.f32.mrf.mxu0
      %v749 = vadd.f32 %v584, %v748
      %750 = vmatmul.bf16.gmra.mxu0 %v669
      %v751 = vpop.f32.mrf.mxu0
      %v752 = vadd.f32 %v587, %v751
      %v753 = vpop.f32.mrf.mxu0
      %v754 = vadd.f32 %v589, %v753
      %755 = vmatmul.bf16.gmra.mxu0 %v672
      %v756 = vpop.f32.mrf.mxu0
      %v757 = vadd.f32 %v592, %v756
      %v758 = vpop.f32.mrf.mxu0
      %v759 = vadd.f32 %v594, %v758
      %760 = vmatmul.bf16.gmra.mxu0 %v675
      %v761 = vpop.f32.mrf.mxu0
      %v762 = vadd.f32 %v597, %v761
      %v763 = vpop.f32.mrf.mxu0
      %v764 = vadd.f32 %v599, %v763
      %765 = vmatmul.bf16.gmra.mxu0 %v678
      %v766 = vpop.f32.mrf.mxu0
      %v767 = vadd.f32 %v602, %v766
      %v768 = vpop.f32.mrf.mxu0
      %v769 = vadd.f32 %v604, %v768
      %770 = vmatmul.bf16.gmra.mxu0 %v681
      %v771 = vpop.f32.mrf.mxu0
      %v772 = vadd.f32 %v607, %v771
      %v773 = vpop.f32.mrf.mxu0
      %v774 = vadd.f32 %v609, %v773
      %775 = vmatmul.bf16.gmra.mxu0 %v684
      %v776 = vpop.f32.mrf.mxu0
      %v777 = vadd.f32 %v612, %v776
      %v778 = vpop.f32.mrf.mxu0
      %v779 = vadd.f32 %v614, %v778
      %780 = vmatmul.bf16.gmra.mxu0 %v687
      %v781 = vpop.f32.mrf.mxu0
      %v782 = vadd.f32 %v617, %v781
      %v783 = vpop.f32.mrf.mxu0
      %v784 = vadd.f32 %v619, %v783
      %785 = vmatmul.bf16.gmra.mxu0 %v690
      %v786 = vpop.f32.mrf.mxu0
      %v787 = vadd.f32 %v622, %v786
      %v788 = vpop.f32.mrf.mxu0
      %v789 = vadd.f32 %v624, %v788
      %790 = vdwg.mxu0
      %v791 = vld [vmem:[%s300 + $0x7] sm:$0xff]
      %v792 = vld [vmem:[%s300 + $0xf] sm:$0xff]
      %v793 = vld [vmem:[%s300 + $0x17] sm:$0xff]
      %v794 = vld [vmem:[%s300 + $0x1f] sm:$0xff]
      %v795 = vld [vmem:[%s300 + $0x27] sm:$0xff]
      %v796 = vld [vmem:[%s300 + $0x2f] sm:$0xff]
      %v797 = vld [vmem:[%s300 + $0x37] sm:$0xff]
      %v798 = vld [vmem:[%s300 + $0x3f] sm:$0xff]
      %v799 = vld [vmem:[%s300 + $0x47] sm:$0xff]
      %v800 = vld [vmem:[%s300 + $0x4f] sm:$0xff]
      %v801 = vld [vmem:[%s300 + $0x57] sm:$0xff]
      %v802 = vld [vmem:[%s300 + $0x5f] sm:$0xff]
      %v803 = vld [vmem:[%s300 + $0x67] sm:$0xff]
      %v804 = vld [vmem:[%s300 + $0x6f] sm:$0xff]
      %v805 = vld [vmem:[%s300 + $0x77] sm:$0xff]
      %v806 = vld [vmem:[%s300 + $0x7f] sm:$0xff]
      %v807 = vld [vmem:[%s300 + $0x87] sm:$0xff]
      %v808 = vld [vmem:[%s300 + $0x8f] sm:$0xff]
      %v809 = vld [vmem:[%s300 + $0x97] sm:$0xff]
      %v810 = vld [vmem:[%s300 + $0x9f] sm:$0xff]
      %v811 = vld [vmem:[%s300 + $0xa7] sm:$0xff]
      %v812 = vld [vmem:[%s300 + $0xaf] sm:$0xff]
      %v813 = vld [vmem:[%s300 + $0xb7] sm:$0xff]
      %v814 = vld [vmem:[%s300 + $0xbf] sm:$0xff]
      %v815 = vld [vmem:[%s300 + $0xc7] sm:$0xff]
      %v816 = vld [vmem:[%s300 + $0xcf] sm:$0xff]
      %v817 = vld [vmem:[%s300 + $0xd7] sm:$0xff]
      %v818 = vld [vmem:[%s300 + $0xdf] sm:$0xff]
      %v819 = vld [vmem:[%s300 + $0xe7] sm:$0xff]
      %v820 = vld [vmem:[%s300 + $0xef] sm:$0xff]
      %v821 = vld [vmem:[%s300 + $0xf7] sm:$0xff]
      %v822 = vld [vmem:[%s300 + $0xff] sm:$0xff]
      %v823 = vld [vmem:[%s300 + $0x107] sm:$0xff]
      %v824 = vld [vmem:[%s300 + $0x10f] sm:$0xff]
      %v825 = vld [vmem:[%s300 + $0x117] sm:$0xff]
      %v826 = vld [vmem:[%s300 + $0x11f] sm:$0xff]
      %v827 = vpack.c.bf16 %v792, %v791
      %v828 = vpack.c.bf16 %v794, %v793
      %v829 = vpack.c.bf16 %v796, %v795
      %v830 = vpack.c.bf16 %v798, %v797
      %v831 = vpack.c.bf16 %v800, %v799
      %v832 = vpack.c.bf16 %v802, %v801
      %v833 = vpack.c.bf16 %v804, %v803
      %v834 = vpack.c.bf16 %v806, %v805
      %v835 = vpack.c.bf16 %v808, %v807
      %v836 = vpack.c.bf16 %v810, %v809
      %v837 = vpack.c.bf16 %v812, %v811
      %v838 = vpack.c.bf16 %v814, %v813
      %v839 = vpack.c.bf16 %v816, %v815
      %v840 = vpack.c.bf16 %v818, %v817
      %v841 = vpack.c.bf16 %v820, %v819
      %v842 = vpack.c.bf16 %v822, %v821
      %v843 = vpack.c.bf16 %v824, %v823
      %v844 = vpack.c.bf16 %v826, %v825
      %s845 = scalar_lea.vmem %s1, 32
      %v846 = vld [vmem:[%s845] sm:$0xf]
      %v847 = vld [vmem:[%s845 + $0x4] sm:$0xf]
      %v848 = vld [vmem:[%s845 + $0x8] sm:$0xf]
      %v849 = vld [vmem:[%s845 + $0xc] sm:$0xf]
      %v854 = vunpack.c.l.b16 %v846
      %v855 = vunpack.c.l.b16 %v847
      %v856 = vunpack.c.l.b16 %v848
      %v857 = vunpack.c.l.b16 %v849
      %v858 = vpack.c.b16 %v855, %v854
      %v859 = vpack.c.b16 %v857, %v856
      %v863 = vsel %vm472, %v827, 0
      %v866 = vsel %vm472, %v828, 0
      %v869 = vsel %vm472, %v829, 0
      %v872 = vsel %vm472, %v830, 0
      %v875 = vsel %vm472, %v831, 0
      %v878 = vsel %vm472, %v832, 0
      %v881 = vsel %vm472, %v833, 0
      %v884 = vsel %vm472, %v834, 0
      %v887 = vsel %vm472, %v835, 0
      %v890 = vsel %vm472, %v836, 0
      %v893 = vsel %vm472, %v837, 0
      %v896 = vsel %vm472, %v838, 0
      %v899 = vsel %vm472, %v839, 0
      %v902 = vsel %vm472, %v840, 0
      %v905 = vsel %vm472, %v841, 0
      %v908 = vsel %vm472, %v842, 0
      %v911 = vsel %vm472, %v843, 0
      %v914 = vsel %vm472, %v844, 0
      %916 = vmatpush.bf16.msra.mxu0 0
      %917 = vmatpush.bf16.msra.mxu0 0
      %918 = vmatpush.bf16.msra.mxu0 0
      %919 = vmatpush.bf16.msra.mxu0 0
      %920 = vmatpush.bf16.msra.mxu0 0
      %921 = vmatpush.bf16.msra.mxu0 0
      %922 = vmatpush.bf16.msra.mxu0 %v859
      %923 = vmatpush.bf16.msra.mxu0 %v858
      %924 = vmatmul.bf16.gmra.mxu0 %v863
      %v925 = vpop.f32.mrf.mxu0
      %v926 = vadd.f32 0.0, %v925
      %v927 = vpop.f32.mrf.mxu0
      %v928 = vadd.f32 0.0, %v927
      %929 = vmatmul.bf16.gmra.mxu0 %v866
      %v930 = vpop.f32.mrf.mxu0
      %v931 = vadd.f32 0.0, %v930
      %v932 = vpop.f32.mrf.mxu0
      %v933 = vadd.f32 0.0, %v932
      %934 = vmatmul.bf16.gmra.mxu0 %v869
      %v935 = vpop.f32.mrf.mxu0
      %v936 = vadd.f32 0.0, %v935
      %v937 = vpop.f32.mrf.mxu0
      %v938 = vadd.f32 0.0, %v937
      %939 = vmatmul.bf16.gmra.mxu0 %v872
      %v940 = vpop.f32.mrf.mxu0
      %v941 = vadd.f32 0.0, %v940
      %v942 = vpop.f32.mrf.mxu0
      %v943 = vadd.f32 0.0, %v942
      %944 = vmatmul.bf16.gmra.mxu0 %v875
      %v945 = vpop.f32.mrf.mxu0
      %v946 = vadd.f32 0.0, %v945
      %v947 = vpop.f32.mrf.mxu0
      %v948 = vadd.f32 0.0, %v947
      %949 = vmatmul.bf16.gmra.mxu0 %v878
      %v950 = vpop.f32.mrf.mxu0
      %v951 = vadd.f32 0.0, %v950
      %v952 = vpop.f32.mrf.mxu0
      %v953 = vadd.f32 0.0, %v952
      %954 = vmatmul.bf16.gmra.mxu0 %v881
      %v955 = vpop.f32.mrf.mxu0
      %v956 = vadd.f32 0.0, %v955
      %v957 = vpop.f32.mrf.mxu0
      %v958 = vadd.f32 0.0, %v957
      %959 = vmatmul.bf16.gmra.mxu0 %v884
      %v960 = vpop.f32.mrf.mxu0
      %v961 = vadd.f32 0.0, %v960
      %v962 = vpop.f32.mrf.mxu0
      %v963 = vadd.f32 0.0, %v962
      %964 = vmatmul.bf16.gmra.mxu0 %v887
      %v965 = vpop.f32.mrf.mxu0
      %v966 = vadd.f32 0.0, %v965
      %v967 = vpop.f32.mrf.mxu0
      %v968 = vadd.f32 0.0, %v967
      %969 = vmatmul.bf16.gmra.mxu0 %v890
      %v970 = vpop.f32.mrf.mxu0
      %v971 = vadd.f32 0.0, %v970
      %v972 = vpop.f32.mrf.mxu0
      %v973 = vadd.f32 0.0, %v972
      %974 = vmatmul.bf16.gmra.mxu0 %v893
      %v975 = vpop.f32.mrf.mxu0
      %v976 = vadd.f32 0.0, %v975
      %v977 = vpop.f32.mrf.mxu0
      %v978 = vadd.f32 0.0, %v977
      %979 = vmatmul.bf16.gmra.mxu0 %v896
      %v980 = vpop.f32.mrf.mxu0
      %v981 = vadd.f32 0.0, %v980
      %v982 = vpop.f32.mrf.mxu0
      %v983 = vadd.f32 0.0, %v982
      %984 = vmatmul.bf16.gmra.mxu0 %v899
      %v985 = vpop.f32.mrf.mxu0
      %v986 = vadd.f32 0.0, %v985
      %v987 = vpop.f32.mrf.mxu0
      %v988 = vadd.f32 0.0, %v987
      %989 = vmatmul.bf16.gmra.mxu0 %v902
      %v990 = vpop.f32.mrf.mxu0
      %v991 = vadd.f32 0.0, %v990
      %v992 = vpop.f32.mrf.mxu0
      %v993 = vadd.f32 0.0, %v992
      %994 = vmatmul.bf16.gmra.mxu0 %v905
      %v995 = vpop.f32.mrf.mxu0
      %v996 = vadd.f32 0.0, %v995
      %v997 = vpop.f32.mrf.mxu0
      %v998 = vadd.f32 0.0, %v997
      %999 = vmatmul.bf16.gmra.mxu0 %v908
      %v1000 = vpop.f32.mrf.mxu0
      %v1001 = vadd.f32 0.0, %v1000
      %v1002 = vpop.f32.mrf.mxu0
      %v1003 = vadd.f32 0.0, %v1002
      %1004 = vmatmul.bf16.gmra.mxu0 %v911
      %v1005 = vpop.f32.mrf.mxu0
      %v1006 = vadd.f32 0.0, %v1005
      %v1007 = vpop.f32.mrf.mxu0
      %v1008 = vadd.f32 0.0, %v1007
      %1009 = vmatmul.bf16.gmra.mxu0 %v914
      %v1010 = vpop.f32.mrf.mxu0
      %v1011 = vadd.f32 0.0, %v1010
      %v1012 = vpop.f32.mrf.mxu0
      %v1013 = vadd.f32 0.0, %v1012
      %1014 = vdwg.mxu0
      %v1015 = vadd.f32 %v702, %v926
      %v1016 = vadd.f32 %v704, %v928
      %v1017 = vadd.f32 %v707, %v931
      %v1018 = vadd.f32 %v709, %v933
      %v1019 = vadd.f32 %v712, %v936
      %v1020 = vadd.f32 %v714, %v938
      %v1021 = vadd.f32 %v717, %v941
      %v1022 = vadd.f32 %v719, %v943
      %v1023 = vadd.f32 %v722, %v946
      %v1024 = vadd.f32 %v724, %v948
      %v1025 = vadd.f32 %v727, %v951
      %v1026 = vadd.f32 %v729, %v953
      %v1027 = vadd.f32 %v732, %v956
      %v1028 = vadd.f32 %v734, %v958
      %v1029 = vadd.f32 %v737, %v961
      %v1030 = vadd.f32 %v739, %v963
      %v1031 = vadd.f32 %v742, %v966
      %v1032 = vadd.f32 %v744, %v968
      %v1033 = vadd.f32 %v747, %v971
      %v1034 = vadd.f32 %v749, %v973
      %v1035 = vadd.f32 %v752, %v976
      %v1036 = vadd.f32 %v754, %v978
      %v1037 = vadd.f32 %v757, %v981
      %v1038 = vadd.f32 %v759, %v983
      %v1039 = vadd.f32 %v762, %v986
      %v1040 = vadd.f32 %v764, %v988
      %v1041 = vadd.f32 %v767, %v991
      %v1042 = vadd.f32 %v769, %v993
      %v1043 = vadd.f32 %v772, %v996
      %v1044 = vadd.f32 %v774, %v998
      %v1045 = vadd.f32 %v777, %v1001
      %v1046 = vadd.f32 %v779, %v1003
      %v1047 = vadd.f32 %v782, %v1006
      %v1048 = vadd.f32 %v784, %v1008
      %v1049 = vadd.f32 %v787, %v1011
      %v1050 = vadd.f32 %v789, %v1013
      %v1051 = vld [vmem:[%s300 + $0x17] sm:$0xff]
      %v1052 = vld [vmem:[%s300 + $0x1f] sm:$0xff]
      %v1053 = vld [vmem:[%s300 + $0x27] sm:$0xff]
      %v1054 = vld [vmem:[%s300 + $0x2f] sm:$0xff]
      %v1055 = vld [vmem:[%s300 + $0x37] sm:$0xff]
      %v1056 = vld [vmem:[%s300 + $0x3f] sm:$0xff]
      %v1057 = vld [vmem:[%s300 + $0x47] sm:$0xff]
      %v1058 = vld [vmem:[%s300 + $0x4f] sm:$0xff]
      %v1059 = vld [vmem:[%s300 + $0x57] sm:$0xff]
      %v1060 = vld [vmem:[%s300 + $0x5f] sm:$0xff]
      %v1061 = vld [vmem:[%s300 + $0x67] sm:$0xff]
      %v1062 = vld [vmem:[%s300 + $0x6f] sm:$0xff]
      %v1063 = vld [vmem:[%s300 + $0x77] sm:$0xff]
      %v1064 = vld [vmem:[%s300 + $0x7f] sm:$0xff]
      %v1065 = vld [vmem:[%s300 + $0x87] sm:$0xff]
      %v1066 = vld [vmem:[%s300 + $0x8f] sm:$0xff]
      %v1067 = vld [vmem:[%s300 + $0x97] sm:$0xff]
      %v1068 = vld [vmem:[%s300 + $0x9f] sm:$0xff]
      %v1069 = vld [vmem:[%s300 + $0xa7] sm:$0xff]
      %v1070 = vld [vmem:[%s300 + $0xaf] sm:$0xff]
      %v1071 = vld [vmem:[%s300 + $0xb7] sm:$0xff]
      %v1072 = vld [vmem:[%s300 + $0xbf] sm:$0xff]
      %v1073 = vld [vmem:[%s300 + $0xc7] sm:$0xff]
      %v1074 = vld [vmem:[%s300 + $0xcf] sm:$0xff]
      %v1075 = vld [vmem:[%s300 + $0xd7] sm:$0xff]
      %v1076 = vld [vmem:[%s300 + $0xdf] sm:$0xff]
      %v1077 = vld [vmem:[%s300 + $0xe7] sm:$0xff]
      %v1078 = vld [vmem:[%s300 + $0xef] sm:$0xff]
      %v1079 = vld [vmem:[%s300 + $0xf7] sm:$0xff]
      %v1080 = vld [vmem:[%s300 + $0xff] sm:$0xff]
      %v1081 = vld [vmem:[%s300 + $0x107] sm:$0xff]
      %v1082 = vld [vmem:[%s300 + $0x10f] sm:$0xff]
      %v1083 = vld [vmem:[%s300 + $0x117] sm:$0xff]
      %v1084 = vld [vmem:[%s300 + $0x11f] sm:$0xff]
      %v1085 = vld [vmem:[%s300 + $0x127] sm:$0xff]
      %v1086 = vld [vmem:[%s300 + $0x12f] sm:$0xff]
      %v1087 = vpack.c.bf16 %v1052, %v1051
      %v1088 = vpack.c.bf16 %v1054, %v1053
      %v1089 = vpack.c.bf16 %v1056, %v1055
      %v1090 = vpack.c.bf16 %v1058, %v1057
      %v1091 = vpack.c.bf16 %v1060, %v1059
      %v1092 = vpack.c.bf16 %v1062, %v1061
      %v1093 = vpack.c.bf16 %v1064, %v1063
      %v1094 = vpack.c.bf16 %v1066, %v1065
      %v1095 = vpack.c.bf16 %v1068, %v1067
      %v1096 = vpack.c.bf16 %v1070, %v1069
      %v1097 = vpack.c.bf16 %v1072, %v1071
      %v1098 = vpack.c.bf16 %v1074, %v1073
      %v1099 = vpack.c.bf16 %v1076, %v1075
      %v1100 = vpack.c.bf16 %v1078, %v1077
      %v1101 = vpack.c.bf16 %v1080, %v1079
      %v1102 = vpack.c.bf16 %v1082, %v1081
      %v1103 = vpack.c.bf16 %v1084, %v1083
      %v1104 = vpack.c.bf16 %v1086, %v1085
      %s1105 = scalar_lea.vmem %s1, 48
      %v1106 = vld [vmem:[%s1105] sm:$0xf]
      %v1107 = vld [vmem:[%s1105 + $0x4] sm:$0xf]
      %v1108 = vld [vmem:[%s1105 + $0x8] sm:$0xf]
      %v1109 = vld [vmem:[%s1105 + $0xc] sm:$0xf]
      %v1114 = vunpack.c.l.b16 %v1106
      %v1115 = vunpack.c.l.b16 %v1107
      %v1116 = vunpack.c.l.b16 %v1108
      %v1117 = vunpack.c.l.b16 %v1109
      %v1118 = vpack.c.b16 %v1115, %v1114
      %v1119 = vpack.c.b16 %v1117, %v1116
      %v1123 = vsel %vm472, %v1087, 0
      %v1126 = vsel %vm472, %v1088, 0
      %v1129 = vsel %vm472, %v1089, 0
      %v1132 = vsel %vm472, %v1090, 0
      %v1135 = vsel %vm472, %v1091, 0
      %v1138 = vsel %vm472, %v1092, 0
      %v1141 = vsel %vm472, %v1093, 0
      %v1144 = vsel %vm472, %v1094, 0
      %v1147 = vsel %vm472, %v1095, 0
      %v1150 = vsel %vm472, %v1096, 0
      %v1153 = vsel %vm472, %v1097, 0
      %v1156 = vsel %vm472, %v1098, 0
      %v1159 = vsel %vm472, %v1099, 0
      %v1162 = vsel %vm472, %v1100, 0
      %v1165 = vsel %vm472, %v1101, 0
      %v1168 = vsel %vm472, %v1102, 0
      %v1171 = vsel %vm472, %v1103, 0
      %v1174 = vsel %vm472, %v1104, 0
      %1176 = vmatpush.bf16.msra.mxu0 0
      %1177 = vmatpush.bf16.msra.mxu0 0
      %1178 = vmatpush.bf16.msra.mxu0 0
      %1179 = vmatpush.bf16.msra.mxu0 0
      %1180 = vmatpush.bf16.msra.mxu0 0
      %1181 = vmatpush.bf16.msra.mxu0 0
      %1182 = vmatpush.bf16.msra.mxu0 %v1119
      %1183 = vmatpush.bf16.msra.mxu0 %v1118
      %1184 = vmatmul.bf16.gmra.mxu0 %v1123
      %v1185 = vpop.f32.mrf.mxu0
      %v1186 = vadd.f32 0.0, %v1185
      %v1187 = vpop.f32.mrf.mxu0
      %v1188 = vadd.f32 0.0, %v1187
      %1189 = vmatmul.bf16.gmra.mxu0 %v1126
      %v1190 = vpop.f32.mrf.mxu0
      %v1191 = vadd.f32 0.0, %v1190
      %v1192 = vpop.f32.mrf.mxu0
      %v1193 = vadd.f32 0.0, %v1192
      %1194 = vmatmul.bf16.gmra.mxu0 %v1129
      %v1195 = vpop.f32.mrf.mxu0
      %v1196 = vadd.f32 0.0, %v1195
      %v1197 = vpop.f32.mrf.mxu0
      %v1198 = vadd.f32 0.0, %v1197
      %1199 = vmatmul.bf16.gmra.mxu0 %v1132
      %v1200 = vpop.f32.mrf.mxu0
      %v1201 = vadd.f32 0.0, %v1200
      %v1202 = vpop.f32.mrf.mxu0
      %v1203 = vadd.f32 0.0, %v1202
      %1204 = vmatmul.bf16.gmra.mxu0 %v1135
      %v1205 = vpop.f32.mrf.mxu0
      %v1206 = vadd.f32 0.0, %v1205
      %v1207 = vpop.f32.mrf.mxu0
      %v1208 = vadd.f32 0.0, %v1207
      %1209 = vmatmul.bf16.gmra.mxu0 %v1138
      %v1210 = vpop.f32.mrf.mxu0
      %v1211 = vadd.f32 0.0, %v1210
      %v1212 = vpop.f32.mrf.mxu0
      %v1213 = vadd.f32 0.0, %v1212
      %1214 = vmatmul.bf16.gmra.mxu0 %v1141
      %v1215 = vpop.f32.mrf.mxu0
      %v1216 = vadd.f32 0.0, %v1215
      %v1217 = vpop.f32.mrf.mxu0
      %v1218 = vadd.f32 0.0, %v1217
      %1219 = vmatmul.bf16.gmra.mxu0 %v1144
      %v1220 = vpop.f32.mrf.mxu0
      %v1221 = vadd.f32 0.0, %v1220
      %v1222 = vpop.f32.mrf.mxu0
      %v1223 = vadd.f32 0.0, %v1222
      %1224 = vmatmul.bf16.gmra.mxu0 %v1147
      %v1225 = vpop.f32.mrf.mxu0
      %v1226 = vadd.f32 0.0, %v1225
      %v1227 = vpop.f32.mrf.mxu0
      %v1228 = vadd.f32 0.0, %v1227
      %1229 = vmatmul.bf16.gmra.mxu0 %v1150
      %v1230 = vpop.f32.mrf.mxu0
      %v1231 = vadd.f32 0.0, %v1230
      %v1232 = vpop.f32.mrf.mxu0
      %v1233 = vadd.f32 0.0, %v1232
      %1234 = vmatmul.bf16.gmra.mxu0 %v1153
      %v1235 = vpop.f32.mrf.mxu0
      %v1236 = vadd.f32 0.0, %v1235
      %v1237 = vpop.f32.mrf.mxu0
      %v1238 = vadd.f32 0.0, %v1237
      %1239 = vmatmul.bf16.gmra.mxu0 %v1156
      %v1240 = vpop.f32.mrf.mxu0
      %v1241 = vadd.f32 0.0, %v1240
      %v1242 = vpop.f32.mrf.mxu0
      %v1243 = vadd.f32 0.0, %v1242
      %1244 = vmatmul.bf16.gmra.mxu0 %v1159
      %v1245 = vpop.f32.mrf.mxu0
      %v1246 = vadd.f32 0.0, %v1245
      %v1247 = vpop.f32.mrf.mxu0
      %v1248 = vadd.f32 0.0, %v1247
      %1249 = vmatmul.bf16.gmra.mxu0 %v1162
      %v1250 = vpop.f32.mrf.mxu0
      %v1251 = vadd.f32 0.0, %v1250
      %v1252 = vpop.f32.mrf.mxu0
      %v1253 = vadd.f32 0.0, %v1252
      %1254 = vmatmul.bf16.gmra.mxu0 %v1165
      %v1255 = vpop.f32.mrf.mxu0
      %v1256 = vadd.f32 0.0, %v1255
      %v1257 = vpop.f32.mrf.mxu0
      %v1258 = vadd.f32 0.0, %v1257
      %1259 = vmatmul.bf16.gmra.mxu0 %v1168
      %v1260 = vpop.f32.mrf.mxu0
      %v1261 = vadd.f32 0.0, %v1260
      %v1262 = vpop.f32.mrf.mxu0
      %v1263 = vadd.f32 0.0, %v1262
      %1264 = vmatmul.bf16.gmra.mxu0 %v1171
      %v1265 = vpop.f32.mrf.mxu0
      %v1266 = vadd.f32 0.0, %v1265
      %v1267 = vpop.f32.mrf.mxu0
      %v1268 = vadd.f32 0.0, %v1267
      %1269 = vmatmul.bf16.gmra.mxu0 %v1174
      %v1270 = vpop.f32.mrf.mxu0
      %v1271 = vadd.f32 0.0, %v1270
      %v1272 = vpop.f32.mrf.mxu0
      %v1273 = vadd.f32 0.0, %v1272
      %1274 = vdwg.mxu0
      %v1275 = vadd.f32 %v1015, %v1186
      %v1276 = vadd.f32 %v1016, %v1188
      %v1277 = vadd.f32 %v1017, %v1191
      %v1278 = vadd.f32 %v1018, %v1193
      %v1279 = vadd.f32 %v1019, %v1196
      %v1280 = vadd.f32 %v1020, %v1198
      %v1281 = vadd.f32 %v1021, %v1201
      %v1282 = vadd.f32 %v1022, %v1203
      %v1283 = vadd.f32 %v1023, %v1206
      %v1284 = vadd.f32 %v1024, %v1208
      %v1285 = vadd.f32 %v1025, %v1211
      %v1286 = vadd.f32 %v1026, %v1213
      %v1287 = vadd.f32 %v1027, %v1216
      %v1288 = vadd.f32 %v1028, %v1218
      %v1289 = vadd.f32 %v1029, %v1221
      %v1290 = vadd.f32 %v1030, %v1223
      %v1291 = vadd.f32 %v1031, %v1226
      %v1292 = vadd.f32 %v1032, %v1228
      %v1293 = vadd.f32 %v1033, %v1231
      %v1294 = vadd.f32 %v1034, %v1233
      %v1295 = vadd.f32 %v1035, %v1236
      %v1296 = vadd.f32 %v1036, %v1238
      %v1297 = vadd.f32 %v1037, %v1241
      %v1298 = vadd.f32 %v1038, %v1243
      %v1299 = vadd.f32 %v1039, %v1246
      %v1300 = vadd.f32 %v1040, %v1248
      %v1301 = vadd.f32 %v1041, %v1251
      %v1302 = vadd.f32 %v1042, %v1253
      %v1303 = vadd.f32 %v1043, %v1256
      %v1304 = vadd.f32 %v1044, %v1258
      %v1305 = vadd.f32 %v1045, %v1261
      %v1306 = vadd.f32 %v1046, %v1263
      %v1307 = vadd.f32 %v1047, %v1266
      %v1308 = vadd.f32 %v1048, %v1268
      %v1309 = vadd.f32 %v1049, %v1271
      %v1310 = vadd.f32 %v1050, %v1273
      %v1311 = vld [vmem:[%s300 + $0x18] sm:$0xff]
      %v1312 = vld [vmem:[%s300 + $0x20] sm:$0xff]
      %v1313 = vld [vmem:[%s300 + $0x28] sm:$0xff]
      %v1314 = vld [vmem:[%s300 + $0x30] sm:$0xff]
      %v1315 = vld [vmem:[%s300 + $0x38] sm:$0xff]
      %v1316 = vld [vmem:[%s300 + $0x40] sm:$0xff]
      %v1317 = vld [vmem:[%s300 + $0x48] sm:$0xff]
      %v1318 = vld [vmem:[%s300 + $0x50] sm:$0xff]
      %v1319 = vld [vmem:[%s300 + $0x58] sm:$0xff]
      %v1320 = vld [vmem:[%s300 + $0x60] sm:$0xff]
      %v1321 = vld [vmem:[%s300 + $0x68] sm:$0xff]
      %v1322 = vld [vmem:[%s300 + $0x70] sm:$0xff]
      %v1323 = vld [vmem:[%s300 + $0x78] sm:$0xff]
      %v1324 = vld [vmem:[%s300 + $0x80] sm:$0xff]
      %v1325 = vld [vmem:[%s300 + $0x88] sm:$0xff]
      %v1326 = vld [vmem:[%s300 + $0x90] sm:$0xff]
      %v1327 = vld [vmem:[%s300 + $0x98] sm:$0xff]
      %v1328 = vld [vmem:[%s300 + $0xa0] sm:$0xff]
      %v1329 = vld [vmem:[%s300 + $0xa8] sm:$0xff]
      %v1330 = vld [vmem:[%s300 + $0xb0] sm:$0xff]
      %v1331 = vld [vmem:[%s300 + $0xb8] sm:$0xff]
      %v1332 = vld [vmem:[%s300 + $0xc0] sm:$0xff]
      %v1333 = vld [vmem:[%s300 + $0xc8] sm:$0xff]
      %v1334 = vld [vmem:[%s300 + $0xd0] sm:$0xff]
      %v1335 = vld [vmem:[%s300 + $0xd8] sm:$0xff]
      %v1336 = vld [vmem:[%s300 + $0xe0] sm:$0xff]
      %v1337 = vld [vmem:[%s300 + $0xe8] sm:$0xff]
      %v1338 = vld [vmem:[%s300 + $0xf0] sm:$0xff]
      %v1339 = vld [vmem:[%s300 + $0xf8] sm:$0xff]
      %v1340 = vld [vmem:[%s300 + $0x100] sm:$0xff]
      %v1341 = vld [vmem:[%s300 + $0x108] sm:$0xff]
      %v1342 = vld [vmem:[%s300 + $0x110] sm:$0xff]
      %v1343 = vld [vmem:[%s300 + $0x118] sm:$0xff]
      %v1344 = vld [vmem:[%s300 + $0x120] sm:$0xff]
      %v1345 = vld [vmem:[%s300 + $0x128] sm:$0xff]
      %v1346 = vld [vmem:[%s300 + $0x130] sm:$0xff]
      %v1347 = vpack.c.bf16 %v1312, %v1311
      %v1348 = vpack.c.bf16 %v1314, %v1313
      %v1349 = vpack.c.bf16 %v1316, %v1315
      %v1350 = vpack.c.bf16 %v1318, %v1317
      %v1351 = vpack.c.bf16 %v1320, %v1319
      %v1352 = vpack.c.bf16 %v1322, %v1321
      %v1353 = vpack.c.bf16 %v1324, %v1323
      %v1354 = vpack.c.bf16 %v1326, %v1325
      %v1355 = vpack.c.bf16 %v1328, %v1327
      %v1356 = vpack.c.bf16 %v1330, %v1329
      %v1357 = vpack.c.bf16 %v1332, %v1331
      %v1358 = vpack.c.bf16 %v1334, %v1333
      %v1359 = vpack.c.bf16 %v1336, %v1335
      %v1360 = vpack.c.bf16 %v1338, %v1337
      %v1361 = vpack.c.bf16 %v1340, %v1339
      %v1362 = vpack.c.bf16 %v1342, %v1341
      %v1363 = vpack.c.bf16 %v1344, %v1343
      %v1364 = vpack.c.bf16 %v1346, %v1345
      %s1365 = scalar_lea.vmem %s1, 64
      %v1366 = vld [vmem:[%s1365] sm:$0xf]
      %v1367 = vld [vmem:[%s1365 + $0x4] sm:$0xf]
      %v1368 = vld [vmem:[%s1365 + $0x8] sm:$0xf]
      %v1369 = vld [vmem:[%s1365 + $0xc] sm:$0xf]
      %v1374 = vunpack.c.l.b16 %v1366
      %v1375 = vunpack.c.l.b16 %v1367
      %v1376 = vunpack.c.l.b16 %v1368
      %v1377 = vunpack.c.l.b16 %v1369
      %v1378 = vpack.c.b16 %v1375, %v1374
      %v1379 = vpack.c.b16 %v1377, %v1376
      %v1383 = vsel %vm472, %v1347, 0
      %v1386 = vsel %vm472, %v1348, 0
      %v1389 = vsel %vm472, %v1349, 0
      %v1392 = vsel %vm472, %v1350, 0
      %v1395 = vsel %vm472, %v1351, 0
      %v1398 = vsel %vm472, %v1352, 0
      %v1401 = vsel %vm472, %v1353, 0
      %v1404 = vsel %vm472, %v1354, 0
      %v1407 = vsel %vm472, %v1355, 0
      %v1410 = vsel %vm472, %v1356, 0
      %v1413 = vsel %vm472, %v1357, 0
      %v1416 = vsel %vm472, %v1358, 0
      %v1419 = vsel %vm472, %v1359, 0
      %v1422 = vsel %vm472, %v1360, 0
      %v1425 = vsel %vm472, %v1361, 0
      %v1428 = vsel %vm472, %v1362, 0
      %v1431 = vsel %vm472, %v1363, 0
      %v1434 = vsel %vm472, %v1364, 0
      %1436 = vmatpush.bf16.msra.mxu0 0
      %1437 = vmatpush.bf16.msra.mxu0 0
      %1438 = vmatpush.bf16.msra.mxu0 0
      %1439 = vmatpush.bf16.msra.mxu0 0
      %1440 = vmatpush.bf16.msra.mxu0 0
      %1441 = vmatpush.bf16.msra.mxu0 0
      %1442 = vmatpush.bf16.msra.mxu0 %v1379
      %1443 = vmatpush.bf16.msra.mxu0 %v1378
      %1444 = vmatmul.bf16.gmra.mxu0 %v1383
      %v1445 = vpop.f32.mrf.mxu0
      %v1446 = vadd.f32 0.0, %v1445
      %v1447 = vpop.f32.mrf.mxu0
      %v1448 = vadd.f32 0.0, %v1447
      %1449 = vmatmul.bf16.gmra.mxu0 %v1386
      %v1450 = vpop.f32.mrf.mxu0
      %v1451 = vadd.f32 0.0, %v1450
      %v1452 = vpop.f32.mrf.mxu0
      %v1453 = vadd.f32 0.0, %v1452
      %1454 = vmatmul.bf16.gmra.mxu0 %v1389
      %v1455 = vpop.f32.mrf.mxu0
      %v1456 = vadd.f32 0.0, %v1455
      %v1457 = vpop.f32.mrf.mxu0
      %v1458 = vadd.f32 0.0, %v1457
      %1459 = vmatmul.bf16.gmra.mxu0 %v1392
      %v1460 = vpop.f32.mrf.mxu0
      %v1461 = vadd.f32 0.0, %v1460
      %v1462 = vpop.f32.mrf.mxu0
      %v1463 = vadd.f32 0.0, %v1462
      %1464 = vmatmul.bf16.gmra.mxu0 %v1395
      %v1465 = vpop.f32.mrf.mxu0
      %v1466 = vadd.f32 0.0, %v1465
      %v1467 = vpop.f32.mrf.mxu0
      %v1468 = vadd.f32 0.0, %v1467
      %1469 = vmatmul.bf16.gmra.mxu0 %v1398
      %v1470 = vpop.f32.mrf.mxu0
      %v1471 = vadd.f32 0.0, %v1470
      %v1472 = vpop.f32.mrf.mxu0
      %v1473 = vadd.f32 0.0, %v1472
      %1474 = vmatmul.bf16.gmra.mxu0 %v1401
      %v1475 = vpop.f32.mrf.mxu0
      %v1476 = vadd.f32 0.0, %v1475
      %v1477 = vpop.f32.mrf.mxu0
      %v1478 = vadd.f32 0.0, %v1477
      %1479 = vmatmul.bf16.gmra.mxu0 %v1404
      %v1480 = vpop.f32.mrf.mxu0
      %v1481 = vadd.f32 0.0, %v1480
      %v1482 = vpop.f32.mrf.mxu0
      %v1483 = vadd.f32 0.0, %v1482
      %1484 = vmatmul.bf16.gmra.mxu0 %v1407
      %v1485 = vpop.f32.mrf.mxu0
      %v1486 = vadd.f32 0.0, %v1485
      %v1487 = vpop.f32.mrf.mxu0
      %v1488 = vadd.f32 0.0, %v1487
      %1489 = vmatmul.bf16.gmra.mxu0 %v1410
      %v1490 = vpop.f32.mrf.mxu0
      %v1491 = vadd.f32 0.0, %v1490
      %v1492 = vpop.f32.mrf.mxu0
      %v1493 = vadd.f32 0.0, %v1492
      %1494 = vmatmul.bf16.gmra.mxu0 %v1413
      %v1495 = vpop.f32.mrf.mxu0
      %v1496 = vadd.f32 0.0, %v1495
      %v1497 = vpop.f32.mrf.mxu0
      %v1498 = vadd.f32 0.0, %v1497
      %1499 = vmatmul.bf16.gmra.mxu0 %v1416
      %v1500 = vpop.f32.mrf.mxu0
      %v1501 = vadd.f32 0.0, %v1500
      %v1502 = vpop.f32.mrf.mxu0
      %v1503 = vadd.f32 0.0, %v1502
      %1504 = vmatmul.bf16.gmra.mxu0 %v1419
      %v1505 = vpop.f32.mrf.mxu0
      %v1506 = vadd.f32 0.0, %v1505
      %v1507 = vpop.f32.mrf.mxu0
      %v1508 = vadd.f32 0.0, %v1507
      %1509 = vmatmul.bf16.gmra.mxu0 %v1422
      %v1510 = vpop.f32.mrf.mxu0
      %v1511 = vadd.f32 0.0, %v1510
      %v1512 = vpop.f32.mrf.mxu0
      %v1513 = vadd.f32 0.0, %v1512
      %1514 = vmatmul.bf16.gmra.mxu0 %v1425
      %v1515 = vpop.f32.mrf.mxu0
      %v1516 = vadd.f32 0.0, %v1515
      %v1517 = vpop.f32.mrf.mxu0
      %v1518 = vadd.f32 0.0, %v1517
      %1519 = vmatmul.bf16.gmra.mxu0 %v1428
      %v1520 = vpop.f32.mrf.mxu0
      %v1521 = vadd.f32 0.0, %v1520
      %v1522 = vpop.f32.mrf.mxu0
      %v1523 = vadd.f32 0.0, %v1522
      %1524 = vmatmul.bf16.gmra.mxu0 %v1431
      %v1525 = vpop.f32.mrf.mxu0
      %v1526 = vadd.f32 0.0, %v1525
      %v1527 = vpop.f32.mrf.mxu0
      %v1528 = vadd.f32 0.0, %v1527
      %1529 = vmatmul.bf16.gmra.mxu0 %v1434
      %v1530 = vpop.f32.mrf.mxu0
      %v1531 = vadd.f32 0.0, %v1530
      %v1532 = vpop.f32.mrf.mxu0
      %v1533 = vadd.f32 0.0, %v1532
      %1534 = vdwg.mxu0
      %v1535 = vadd.f32 %v1275, %v1446
      %v1536 = vadd.f32 %v1276, %v1448
      %v1537 = vadd.f32 %v1277, %v1451
      %v1538 = vadd.f32 %v1278, %v1453
      %v1539 = vadd.f32 %v1279, %v1456
      %v1540 = vadd.f32 %v1280, %v1458
      %v1541 = vadd.f32 %v1281, %v1461
      %v1542 = vadd.f32 %v1282, %v1463
      %v1543 = vadd.f32 %v1283, %v1466
      %v1544 = vadd.f32 %v1284, %v1468
      %v1545 = vadd.f32 %v1285, %v1471
      %v1546 = vadd.f32 %v1286, %v1473
      %v1547 = vadd.f32 %v1287, %v1476
      %v1548 = vadd.f32 %v1288, %v1478
      %v1549 = vadd.f32 %v1289, %v1481
      %v1550 = vadd.f32 %v1290, %v1483
      %v1551 = vadd.f32 %v1291, %v1486
      %v1552 = vadd.f32 %v1292, %v1488
      %v1553 = vadd.f32 %v1293, %v1491
      %v1554 = vadd.f32 %v1294, %v1493
      %v1555 = vadd.f32 %v1295, %v1496
      %v1556 = vadd.f32 %v1296, %v1498
      %v1557 = vadd.f32 %v1297, %v1501
      %v1558 = vadd.f32 %v1298, %v1503
      %v1559 = vadd.f32 %v1299, %v1506
      %v1560 = vadd.f32 %v1300, %v1508
      %v1561 = vadd.f32 %v1301, %v1511
      %v1562 = vadd.f32 %v1302, %v1513
      %v1563 = vadd.f32 %v1303, %v1516
      %v1564 = vadd.f32 %v1304, %v1518
      %v1565 = vadd.f32 %v1305, %v1521
      %v1566 = vadd.f32 %v1306, %v1523
      %v1567 = vadd.f32 %v1307, %v1526
      %v1568 = vadd.f32 %v1308, %v1528
      %v1569 = vadd.f32 %v1309, %v1531
      %v1570 = vadd.f32 %v1310, %v1533
      %v1571 = vld [vmem:[%s300 + $0x19] sm:$0xff]
      %v1572 = vld [vmem:[%s300 + $0x21] sm:$0xff]
      %v1573 = vld [vmem:[%s300 + $0x29] sm:$0xff]
      %v1574 = vld [vmem:[%s300 + $0x31] sm:$0xff]
      %v1575 = vld [vmem:[%s300 + $0x39] sm:$0xff]
      %v1576 = vld [vmem:[%s300 + $0x41] sm:$0xff]
      %v1577 = vld [vmem:[%s300 + $0x49] sm:$0xff]
      %v1578 = vld [vmem:[%s300 + $0x51] sm:$0xff]
      %v1579 = vld [vmem:[%s300 + $0x59] sm:$0xff]
      %v1580 = vld [vmem:[%s300 + $0x61] sm:$0xff]
      %v1581 = vld [vmem:[%s300 + $0x69] sm:$0xff]
      %v1582 = vld [vmem:[%s300 + $0x71] sm:$0xff]
      %v1583 = vld [vmem:[%s300 + $0x79] sm:$0xff]
      %v1584 = vld [vmem:[%s300 + $0x81] sm:$0xff]
      %v1585 = vld [vmem:[%s300 + $0x89] sm:$0xff]
      %v1586 = vld [vmem:[%s300 + $0x91] sm:$0xff]
      %v1587 = vld [vmem:[%s300 + $0x99] sm:$0xff]
      %v1588 = vld [vmem:[%s300 + $0xa1] sm:$0xff]
      %v1589 = vld [vmem:[%s300 + $0xa9] sm:$0xff]
      %v1590 = vld [vmem:[%s300 + $0xb1] sm:$0xff]
      %v1591 = vld [vmem:[%s300 + $0xb9] sm:$0xff]
      %v1592 = vld [vmem:[%s300 + $0xc1] sm:$0xff]
      %v1593 = vld [vmem:[%s300 + $0xc9] sm:$0xff]
      %v1594 = vld [vmem:[%s300 + $0xd1] sm:$0xff]
      %v1595 = vld [vmem:[%s300 + $0xd9] sm:$0xff]
      %v1596 = vld [vmem:[%s300 + $0xe1] sm:$0xff]
      %v1597 = vld [vmem:[%s300 + $0xe9] sm:$0xff]
      %v1598 = vld [vmem:[%s300 + $0xf1] sm:$0xff]
      %v1599 = vld [vmem:[%s300 + $0xf9] sm:$0xff]
      %v1600 = vld [vmem:[%s300 + $0x101] sm:$0xff]
      %v1601 = vld [vmem:[%s300 + $0x109] sm:$0xff]
      %v1602 = vld [vmem:[%s300 + $0x111] sm:$0xff]
      %v1603 = vld [vmem:[%s300 + $0x119] sm:$0xff]
      %v1604 = vld [vmem:[%s300 + $0x121] sm:$0xff]
      %v1605 = vld [vmem:[%s300 + $0x129] sm:$0xff]
      %v1606 = vld [vmem:[%s300 + $0x131] sm:$0xff]
      %v1607 = vpack.c.bf16 %v1572, %v1571
      %v1608 = vpack.c.bf16 %v1574, %v1573
      %v1609 = vpack.c.bf16 %v1576, %v1575
      %v1610 = vpack.c.bf16 %v1578, %v1577
      %v1611 = vpack.c.bf16 %v1580, %v1579
      %v1612 = vpack.c.bf16 %v1582, %v1581
      %v1613 = vpack.c.bf16 %v1584, %v1583
      %v1614 = vpack.c.bf16 %v1586, %v1585
      %v1615 = vpack.c.bf16 %v1588, %v1587
      %v1616 = vpack.c.bf16 %v1590, %v1589
      %v1617 = vpack.c.bf16 %v1592, %v1591
      %v1618 = vpack.c.bf16 %v1594, %v1593
      %v1619 = vpack.c.bf16 %v1596, %v1595
      %v1620 = vpack.c.bf16 %v1598, %v1597
      %v1621 = vpack.c.bf16 %v1600, %v1599
      %v1622 = vpack.c.bf16 %v1602, %v1601
      %v1623 = vpack.c.bf16 %v1604, %v1603
      %v1624 = vpack.c.bf16 %v1606, %v1605
      %s1625 = scalar_lea.vmem %s1, 80
      %v1626 = vld [vmem:[%s1625] sm:$0xf]
      %v1627 = vld [vmem:[%s1625 + $0x4] sm:$0xf]
      %v1628 = vld [vmem:[%s1625 + $0x8] sm:$0xf]
      %v1629 = vld [vmem:[%s1625 + $0xc] sm:$0xf]
      %v1634 = vunpack.c.l.b16 %v1626
      %v1635 = vunpack.c.l.b16 %v1627
      %v1636 = vunpack.c.l.b16 %v1628
      %v1637 = vunpack.c.l.b16 %v1629
      %v1638 = vpack.c.b16 %v1635, %v1634
      %v1639 = vpack.c.b16 %v1637, %v1636
      %v1643 = vsel %vm472, %v1607, 0
      %v1646 = vsel %vm472, %v1608, 0
      %v1649 = vsel %vm472, %v1609, 0
      %v1652 = vsel %vm472, %v1610, 0
      %v1655 = vsel %vm472, %v1611, 0
      %v1658 = vsel %vm472, %v1612, 0
      %v1661 = vsel %vm472, %v1613, 0
      %v1664 = vsel %vm472, %v1614, 0
      %v1667 = vsel %vm472, %v1615, 0
      %v1670 = vsel %vm472, %v1616, 0
      %v1673 = vsel %vm472, %v1617, 0
      %v1676 = vsel %vm472, %v1618, 0
      %v1679 = vsel %vm472, %v1619, 0
      %v1682 = vsel %vm472, %v1620, 0
      %v1685 = vsel %vm472, %v1621, 0
      %v1688 = vsel %vm472, %v1622, 0
      %v1691 = vsel %vm472, %v1623, 0
      %v1694 = vsel %vm472, %v1624, 0
      %1696 = vmatpush.bf16.msra.mxu0 0
      %1697 = vmatpush.bf16.msra.mxu0 0
      %1698 = vmatpush.bf16.msra.mxu0 0
      %1699 = vmatpush.bf16.msra.mxu0 0
      %1700 = vmatpush.bf16.msra.mxu0 0
      %1701 = vmatpush.bf16.msra.mxu0 0
      %1702 = vmatpush.bf16.msra.mxu0 %v1639
      %1703 = vmatpush.bf16.msra.mxu0 %v1638
      %1704 = vmatmul.bf16.gmra.mxu0 %v1643
      %v1705 = vpop.f32.mrf.mxu0
      %v1706 = vadd.f32 0.0, %v1705
      %v1707 = vpop.f32.mrf.mxu0
      %v1708 = vadd.f32 0.0, %v1707
      %1709 = vmatmul.bf16.gmra.mxu0 %v1646
      %v1710 = vpop.f32.mrf.mxu0
      %v1711 = vadd.f32 0.0, %v1710
      %v1712 = vpop.f32.mrf.mxu0
      %v1713 = vadd.f32 0.0, %v1712
      %1714 = vmatmul.bf16.gmra.mxu0 %v1649
      %v1715 = vpop.f32.mrf.mxu0
      %v1716 = vadd.f32 0.0, %v1715
      %v1717 = vpop.f32.mrf.mxu0
      %v1718 = vadd.f32 0.0, %v1717
      %1719 = vmatmul.bf16.gmra.mxu0 %v1652
      %v1720 = vpop.f32.mrf.mxu0
      %v1721 = vadd.f32 0.0, %v1720
      %v1722 = vpop.f32.mrf.mxu0
      %v1723 = vadd.f32 0.0, %v1722
      %1724 = vmatmul.bf16.gmra.mxu0 %v1655
      %v1725 = vpop.f32.mrf.mxu0
      %v1726 = vadd.f32 0.0, %v1725
      %v1727 = vpop.f32.mrf.mxu0
      %v1728 = vadd.f32 0.0, %v1727
      %1729 = vmatmul.bf16.gmra.mxu0 %v1658
      %v1730 = vpop.f32.mrf.mxu0
      %v1731 = vadd.f32 0.0, %v1730
      %v1732 = vpop.f32.mrf.mxu0
      %v1733 = vadd.f32 0.0, %v1732
      %1734 = vmatmul.bf16.gmra.mxu0 %v1661
      %v1735 = vpop.f32.mrf.mxu0
      %v1736 = vadd.f32 0.0, %v1735
      %v1737 = vpop.f32.mrf.mxu0
      %v1738 = vadd.f32 0.0, %v1737
      %1739 = vmatmul.bf16.gmra.mxu0 %v1664
      %v1740 = vpop.f32.mrf.mxu0
      %v1741 = vadd.f32 0.0, %v1740
      %v1742 = vpop.f32.mrf.mxu0
      %v1743 = vadd.f32 0.0, %v1742
      %1744 = vmatmul.bf16.gmra.mxu0 %v1667
      %v1745 = vpop.f32.mrf.mxu0
      %v1746 = vadd.f32 0.0, %v1745
      %v1747 = vpop.f32.mrf.mxu0
      %v1748 = vadd.f32 0.0, %v1747
      %1749 = vmatmul.bf16.gmra.mxu0 %v1670
      %v1750 = vpop.f32.mrf.mxu0
      %v1751 = vadd.f32 0.0, %v1750
      %v1752 = vpop.f32.mrf.mxu0
      %v1753 = vadd.f32 0.0, %v1752
      %1754 = vmatmul.bf16.gmra.mxu0 %v1673
      %v1755 = vpop.f32.mrf.mxu0
      %v1756 = vadd.f32 0.0, %v1755
      %v1757 = vpop.f32.mrf.mxu0
      %v1758 = vadd.f32 0.0, %v1757
      %1759 = vmatmul.bf16.gmra.mxu0 %v1676
      %v1760 = vpop.f32.mrf.mxu0
      %v1761 = vadd.f32 0.0, %v1760
      %v1762 = vpop.f32.mrf.mxu0
      %v1763 = vadd.f32 0.0, %v1762
      %1764 = vmatmul.bf16.gmra.mxu0 %v1679
      %v1765 = vpop.f32.mrf.mxu0
      %v1766 = vadd.f32 0.0, %v1765
      %v1767 = vpop.f32.mrf.mxu0
      %v1768 = vadd.f32 0.0, %v1767
      %1769 = vmatmul.bf16.gmra.mxu0 %v1682
      %v1770 = vpop.f32.mrf.mxu0
      %v1771 = vadd.f32 0.0, %v1770
      %v1772 = vpop.f32.mrf.mxu0
      %v1773 = vadd.f32 0.0, %v1772
      %1774 = vmatmul.bf16.gmra.mxu0 %v1685
      %v1775 = vpop.f32.mrf.mxu0
      %v1776 = vadd.f32 0.0, %v1775
      %v1777 = vpop.f32.mrf.mxu0
      %v1778 = vadd.f32 0.0, %v1777
      %1779 = vmatmul.bf16.gmra.mxu0 %v1688
      %v1780 = vpop.f32.mrf.mxu0
      %v1781 = vadd.f32 0.0, %v1780
      %v1782 = vpop.f32.mrf.mxu0
      %v1783 = vadd.f32 0.0, %v1782
      %1784 = vmatmul.bf16.gmra.mxu0 %v1691
      %v1785 = vpop.f32.mrf.mxu0
      %v1786 = vadd.f32 0.0, %v1785
      %v1787 = vpop.f32.mrf.mxu0
      %v1788 = vadd.f32 0.0, %v1787
      %1789 = vmatmul.bf16.gmra.mxu0 %v1694
      %v1790 = vpop.f32.mrf.mxu0
      %v1791 = vadd.f32 0.0, %v1790
      %v1792 = vpop.f32.mrf.mxu0
      %v1793 = vadd.f32 0.0, %v1792
      %1794 = vdwg.mxu0
      %v1795 = vadd.f32 %v1535, %v1706
      %v1796 = vadd.f32 %v1536, %v1708
      %v1797 = vadd.f32 %v1537, %v1711
      %v1798 = vadd.f32 %v1538, %v1713
      %v1799 = vadd.f32 %v1539, %v1716
      %v1800 = vadd.f32 %v1540, %v1718
      %v1801 = vadd.f32 %v1541, %v1721
      %v1802 = vadd.f32 %v1542, %v1723
      %v1803 = vadd.f32 %v1543, %v1726
      %v1804 = vadd.f32 %v1544, %v1728
      %v1805 = vadd.f32 %v1545, %v1731
      %v1806 = vadd.f32 %v1546, %v1733
      %v1807 = vadd.f32 %v1547, %v1736
      %v1808 = vadd.f32 %v1548, %v1738
      %v1809 = vadd.f32 %v1549, %v1741
      %v1810 = vadd.f32 %v1550, %v1743
      %v1811 = vadd.f32 %v1551, %v1746
      %v1812 = vadd.f32 %v1552, %v1748
      %v1813 = vadd.f32 %v1553, %v1751
      %v1814 = vadd.f32 %v1554, %v1753
      %v1815 = vadd.f32 %v1555, %v1756
      %v1816 = vadd.f32 %v1556, %v1758
      %v1817 = vadd.f32 %v1557, %v1761
      %v1818 = vadd.f32 %v1558, %v1763
      %v1819 = vadd.f32 %v1559, %v1766
      %v1820 = vadd.f32 %v1560, %v1768
      %v1821 = vadd.f32 %v1561, %v1771
      %v1822 = vadd.f32 %v1562, %v1773
      %v1823 = vadd.f32 %v1563, %v1776
      %v1824 = vadd.f32 %v1564, %v1778
      %v1825 = vadd.f32 %v1565, %v1781
      %v1826 = vadd.f32 %v1566, %v1783
      %v1827 = vadd.f32 %v1567, %v1786
      %v1828 = vadd.f32 %v1568, %v1788
      %v1829 = vadd.f32 %v1569, %v1791
      %v1830 = vadd.f32 %v1570, %v1793
      %v1831 = vld [vmem:[%s300 + $0x29] sm:$0xff]
      %v1832 = vld [vmem:[%s300 + $0x31] sm:$0xff]
      %v1833 = vld [vmem:[%s300 + $0x39] sm:$0xff]
      %v1834 = vld [vmem:[%s300 + $0x41] sm:$0xff]
      %v1835 = vld [vmem:[%s300 + $0x49] sm:$0xff]
      %v1836 = vld [vmem:[%s300 + $0x51] sm:$0xff]
      %v1837 = vld [vmem:[%s300 + $0x59] sm:$0xff]
      %v1838 = vld [vmem:[%s300 + $0x61] sm:$0xff]
      %v1839 = vld [vmem:[%s300 + $0x69] sm:$0xff]
      %v1840 = vld [vmem:[%s300 + $0x71] sm:$0xff]
      %v1841 = vld [vmem:[%s300 + $0x79] sm:$0xff]
      %v1842 = vld [vmem:[%s300 + $0x81] sm:$0xff]
      %v1843 = vld [vmem:[%s300 + $0x89] sm:$0xff]
      %v1844 = vld [vmem:[%s300 + $0x91] sm:$0xff]
      %v1845 = vld [vmem:[%s300 + $0x99] sm:$0xff]
      %v1846 = vld [vmem:[%s300 + $0xa1] sm:$0xff]
      %v1847 = vld [vmem:[%s300 + $0xa9] sm:$0xff]
      %v1848 = vld [vmem:[%s300 + $0xb1] sm:$0xff]
      %v1849 = vld [vmem:[%s300 + $0xb9] sm:$0xff]
      %v1850 = vld [vmem:[%s300 + $0xc1] sm:$0xff]
      %v1851 = vld [vmem:[%s300 + $0xc9] sm:$0xff]
      %v1852 = vld [vmem:[%s300 + $0xd1] sm:$0xff]
      %v1853 = vld [vmem:[%s300 + $0xd9] sm:$0xff]
      %v1854 = vld [vmem:[%s300 + $0xe1] sm:$0xff]
      %v1855 = vld [vmem:[%s300 + $0xe9] sm:$0xff]
      %v1856 = vld [vmem:[%s300 + $0xf1] sm:$0xff]
      %v1857 = vld [vmem:[%s300 + $0xf9] sm:$0xff]
      %v1858 = vld [vmem:[%s300 + $0x101] sm:$0xff]
      %v1859 = vld [vmem:[%s300 + $0x109] sm:$0xff]
      %v1860 = vld [vmem:[%s300 + $0x111] sm:$0xff]
      %v1861 = vld [vmem:[%s300 + $0x119] sm:$0xff]
      %v1862 = vld [vmem:[%s300 + $0x121] sm:$0xff]
      %v1863 = vld [vmem:[%s300 + $0x129] sm:$0xff]
      %v1864 = vld [vmem:[%s300 + $0x131] sm:$0xff]
      %v1865 = vld [vmem:[%s300 + $0x139] sm:$0xff]
      %v1866 = vld [vmem:[%s300 + $0x141] sm:$0xff]
      %v1867 = vpack.c.bf16 %v1832, %v1831
      %v1868 = vpack.c.bf16 %v1834, %v1833
      %v1869 = vpack.c.bf16 %v1836, %v1835
      %v1870 = vpack.c.bf16 %v1838, %v1837
      %v1871 = vpack.c.bf16 %v1840, %v1839
      %v1872 = vpack.c.bf16 %v1842, %v1841
      %v1873 = vpack.c.bf16 %v1844, %v1843
      %v1874 = vpack.c.bf16 %v1846, %v1845
      %v1875 = vpack.c.bf16 %v1848, %v1847
      %v1876 = vpack.c.bf16 %v1850, %v1849
      %v1877 = vpack.c.bf16 %v1852, %v1851
      %v1878 = vpack.c.bf16 %v1854, %v1853
      %v1879 = vpack.c.bf16 %v1856, %v1855
      %v1880 = vpack.c.bf16 %v1858, %v1857
      %v1881 = vpack.c.bf16 %v1860, %v1859
      %v1882 = vpack.c.bf16 %v1862, %v1861
      %v1883 = vpack.c.bf16 %v1864, %v1863
      %v1884 = vpack.c.bf16 %v1866, %v1865
      %s1885 = scalar_lea.vmem %s1, 96
      %v1886 = vld [vmem:[%s1885] sm:$0xf]
      %v1887 = vld [vmem:[%s1885 + $0x4] sm:$0xf]
      %v1888 = vld [vmem:[%s1885 + $0x8] sm:$0xf]
      %v1889 = vld [vmem:[%s1885 + $0xc] sm:$0xf]
      %v1894 = vunpack.c.l.b16 %v1886
      %v1895 = vunpack.c.l.b16 %v1887
      %v1896 = vunpack.c.l.b16 %v1888
      %v1897 = vunpack.c.l.b16 %v1889
      %v1898 = vpack.c.b16 %v1895, %v1894
      %v1899 = vpack.c.b16 %v1897, %v1896
      %v1903 = vsel %vm472, %v1867, 0
      %v1906 = vsel %vm472, %v1868, 0
      %v1909 = vsel %vm472, %v1869, 0
      %v1912 = vsel %vm472, %v1870, 0
      %v1915 = vsel %vm472, %v1871, 0
      %v1918 = vsel %vm472, %v1872, 0
      %v1921 = vsel %vm472, %v1873, 0
      %v1924 = vsel %vm472, %v1874, 0
      %v1927 = vsel %vm472, %v1875, 0
      %v1930 = vsel %vm472, %v1876, 0
      %v1933 = vsel %vm472, %v1877, 0
      %v1936 = vsel %vm472, %v1878, 0
      %v1939 = vsel %vm472, %v1879, 0
      %v1942 = vsel %vm472, %v1880, 0
      %v1945 = vsel %vm472, %v1881, 0
      %v1948 = vsel %vm472, %v1882, 0
      %v1951 = vsel %vm472, %v1883, 0
      %v1954 = vsel %vm472, %v1884, 0
      %1956 = vmatpush.bf16.msra.mxu0 0
      %1957 = vmatpush.bf16.msra.mxu0 0
      %1958 = vmatpush.bf16.msra.mxu0 0
      %1959 = vmatpush.bf16.msra.mxu0 0
      %1960 = vmatpush.bf16.msra.mxu0 0
      %1961 = vmatpush.bf16.msra.mxu0 0
      %1962 = vmatpush.bf16.msra.mxu0 %v1899
      %1963 = vmatpush.bf16.msra.mxu0 %v1898
      %1964 = vmatmul.bf16.gmra.mxu0 %v1903
      %v1965 = vpop.f32.mrf.mxu0
      %v1966 = vadd.f32 0.0, %v1965
      %v1967 = vpop.f32.mrf.mxu0
      %v1968 = vadd.f32 0.0, %v1967
      %1969 = vmatmul.bf16.gmra.mxu0 %v1906
      %v1970 = vpop.f32.mrf.mxu0
      %v1971 = vadd.f32 0.0, %v1970
      %v1972 = vpop.f32.mrf.mxu0
      %v1973 = vadd.f32 0.0, %v1972
      %1974 = vmatmul.bf16.gmra.mxu0 %v1909
      %v1975 = vpop.f32.mrf.mxu0
      %v1976 = vadd.f32 0.0, %v1975
      %v1977 = vpop.f32.mrf.mxu0
      %v1978 = vadd.f32 0.0, %v1977
      %1979 = vmatmul.bf16.gmra.mxu0 %v1912
      %v1980 = vpop.f32.mrf.mxu0
      %v1981 = vadd.f32 0.0, %v1980
      %v1982 = vpop.f32.mrf.mxu0
      %v1983 = vadd.f32 0.0, %v1982
      %1984 = vmatmul.bf16.gmra.mxu0 %v1915
      %v1985 = vpop.f32.mrf.mxu0
      %v1986 = vadd.f32 0.0, %v1985
      %v1987 = vpop.f32.mrf.mxu0
      %v1988 = vadd.f32 0.0, %v1987
      %1989 = vmatmul.bf16.gmra.mxu0 %v1918
      %v1990 = vpop.f32.mrf.mxu0
      %v1991 = vadd.f32 0.0, %v1990
      %v1992 = vpop.f32.mrf.mxu0
      %v1993 = vadd.f32 0.0, %v1992
      %1994 = vmatmul.bf16.gmra.mxu0 %v1921
      %v1995 = vpop.f32.mrf.mxu0
      %v1996 = vadd.f32 0.0, %v1995
      %v1997 = vpop.f32.mrf.mxu0
      %v1998 = vadd.f32 0.0, %v1997
      %1999 = vmatmul.bf16.gmra.mxu0 %v1924
      %v2000 = vpop.f32.mrf.mxu0
      %v2001 = vadd.f32 0.0, %v2000
      %v2002 = vpop.f32.mrf.mxu0
      %v2003 = vadd.f32 0.0, %v2002
      %2004 = vmatmul.bf16.gmra.mxu0 %v1927
      %v2005 = vpop.f32.mrf.mxu0
      %v2006 = vadd.f32 0.0, %v2005
      %v2007 = vpop.f32.mrf.mxu0
      %v2008 = vadd.f32 0.0, %v2007
      %2009 = vmatmul.bf16.gmra.mxu0 %v1930
      %v2010 = vpop.f32.mrf.mxu0
      %v2011 = vadd.f32 0.0, %v2010
      %v2012 = vpop.f32.mrf.mxu0
      %v2013 = vadd.f32 0.0, %v2012
      %2014 = vmatmul.bf16.gmra.mxu0 %v1933
      %v2015 = vpop.f32.mrf.mxu0
      %v2016 = vadd.f32 0.0, %v2015
      %v2017 = vpop.f32.mrf.mxu0
      %v2018 = vadd.f32 0.0, %v2017
      %2019 = vmatmul.bf16.gmra.mxu0 %v1936
      %v2020 = vpop.f32.mrf.mxu0
      %v2021 = vadd.f32 0.0, %v2020
      %v2022 = vpop.f32.mrf.mxu0
      %v2023 = vadd.f32 0.0, %v2022
      %2024 = vmatmul.bf16.gmra.mxu0 %v1939
      %v2025 = vpop.f32.mrf.mxu0
      %v2026 = vadd.f32 0.0, %v2025
      %v2027 = vpop.f32.mrf.mxu0
      %v2028 = vadd.f32 0.0, %v2027
      %2029 = vmatmul.bf16.gmra.mxu0 %v1942
      %v2030 = vpop.f32.mrf.mxu0
      %v2031 = vadd.f32 0.0, %v2030
      %v2032 = vpop.f32.mrf.mxu0
      %v2033 = vadd.f32 0.0, %v2032
      %2034 = vmatmul.bf16.gmra.mxu0 %v1945
      %v2035 = vpop.f32.mrf.mxu0
      %v2036 = vadd.f32 0.0, %v2035
      %v2037 = vpop.f32.mrf.mxu0
      %v2038 = vadd.f32 0.0, %v2037
      %2039 = vmatmul.bf16.gmra.mxu0 %v1948
      %v2040 = vpop.f32.mrf.mxu0
      %v2041 = vadd.f32 0.0, %v2040
      %v2042 = vpop.f32.mrf.mxu0
      %v2043 = vadd.f32 0.0, %v2042
      %2044 = vmatmul.bf16.gmra.mxu0 %v1951
      %v2045 = vpop.f32.mrf.mxu0
      %v2046 = vadd.f32 0.0, %v2045
      %v2047 = vpop.f32.mrf.mxu0
      %v2048 = vadd.f32 0.0, %v2047
      %2049 = vmatmul.bf16.gmra.mxu0 %v1954
      %v2050 = vpop.f32.mrf.mxu0
      %v2051 = vadd.f32 0.0, %v2050
      %v2052 = vpop.f32.mrf.mxu0
      %v2053 = vadd.f32 0.0, %v2052
      %2054 = vdwg.mxu0
      %v2055 = vadd.f32 %v1795, %v1966
      %v2056 = vadd.f32 %v1796, %v1968
      %v2057 = vadd.f32 %v1797, %v1971
      %v2058 = vadd.f32 %v1798, %v1973
      %v2059 = vadd.f32 %v1799, %v1976
      %v2060 = vadd.f32 %v1800, %v1978
      %v2061 = vadd.f32 %v1801, %v1981
      %v2062 = vadd.f32 %v1802, %v1983
      %v2063 = vadd.f32 %v1803, %v1986
      %v2064 = vadd.f32 %v1804, %v1988
      %v2065 = vadd.f32 %v1805, %v1991
      %v2066 = vadd.f32 %v1806, %v1993
      %v2067 = vadd.f32 %v1807, %v1996
      %v2068 = vadd.f32 %v1808, %v1998
      %v2069 = vadd.f32 %v1809, %v2001
      %v2070 = vadd.f32 %v1810, %v2003
      %v2071 = vadd.f32 %v1811, %v2006
      %v2072 = vadd.f32 %v1812, %v2008
      %v2073 = vadd.f32 %v1813, %v2011
      %v2074 = vadd.f32 %v1814, %v2013
      %v2075 = vadd.f32 %v1815, %v2016
      %v2076 = vadd.f32 %v1816, %v2018
      %v2077 = vadd.f32 %v1817, %v2021
      %v2078 = vadd.f32 %v1818, %v2023
      %v2079 = vadd.f32 %v1819, %v2026
      %v2080 = vadd.f32 %v1820, %v2028
      %v2081 = vadd.f32 %v1821, %v2031
      %v2082 = vadd.f32 %v1822, %v2033
      %v2083 = vadd.f32 %v1823, %v2036
      %v2084 = vadd.f32 %v1824, %v2038
      %v2085 = vadd.f32 %v1825, %v2041
      %v2086 = vadd.f32 %v1826, %v2043
      %v2087 = vadd.f32 %v1827, %v2046
      %v2088 = vadd.f32 %v1828, %v2048
      %v2089 = vadd.f32 %v1829, %v2051
      %v2090 = vadd.f32 %v1830, %v2053
      %v2091 = vld [vmem:[%s300 + $0x2a] sm:$0xff]
      %v2092 = vld [vmem:[%s300 + $0x32] sm:$0xff]
      %v2093 = vld [vmem:[%s300 + $0x3a] sm:$0xff]
      %v2094 = vld [vmem:[%s300 + $0x42] sm:$0xff]
      %v2095 = vld [vmem:[%s300 + $0x4a] sm:$0xff]
      %v2096 = vld [vmem:[%s300 + $0x52] sm:$0xff]
      %v2097 = vld [vmem:[%s300 + $0x5a] sm:$0xff]
      %v2098 = vld [vmem:[%s300 + $0x62] sm:$0xff]
      %v2099 = vld [vmem:[%s300 + $0x6a] sm:$0xff]
      %v2100 = vld [vmem:[%s300 + $0x72] sm:$0xff]
      %v2101 = vld [vmem:[%s300 + $0x7a] sm:$0xff]
      %v2102 = vld [vmem:[%s300 + $0x82] sm:$0xff]
      %v2103 = vld [vmem:[%s300 + $0x8a] sm:$0xff]
      %v2104 = vld [vmem:[%s300 + $0x92] sm:$0xff]
      %v2105 = vld [vmem:[%s300 + $0x9a] sm:$0xff]
      %v2106 = vld [vmem:[%s300 + $0xa2] sm:$0xff]
      %v2107 = vld [vmem:[%s300 + $0xaa] sm:$0xff]
      %v2108 = vld [vmem:[%s300 + $0xb2] sm:$0xff]
      %v2109 = vld [vmem:[%s300 + $0xba] sm:$0xff]
      %v2110 = vld [vmem:[%s300 + $0xc2] sm:$0xff]
      %v2111 = vld [vmem:[%s300 + $0xca] sm:$0xff]
      %v2112 = vld [vmem:[%s300 + $0xd2] sm:$0xff]
      %v2113 = vld [vmem:[%s300 + $0xda] sm:$0xff]
      %v2114 = vld [vmem:[%s300 + $0xe2] sm:$0xff]
      %v2115 = vld [vmem:[%s300 + $0xea] sm:$0xff]
      %v2116 = vld [vmem:[%s300 + $0xf2] sm:$0xff]
      %v2117 = vld [vmem:[%s300 + $0xfa] sm:$0xff]
      %v2118 = vld [vmem:[%s300 + $0x102] sm:$0xff]
      %v2119 = vld [vmem:[%s300 + $0x10a] sm:$0xff]
      %v2120 = vld [vmem:[%s300 + $0x112] sm:$0xff]
      %v2121 = vld [vmem:[%s300 + $0x11a] sm:$0xff]
      %v2122 = vld [vmem:[%s300 + $0x122] sm:$0xff]
      %v2123 = vld [vmem:[%s300 + $0x12a] sm:$0xff]
      %v2124 = vld [vmem:[%s300 + $0x132] sm:$0xff]
      %v2125 = vld [vmem:[%s300 + $0x13a] sm:$0xff]
      %v2126 = vld [vmem:[%s300 + $0x142] sm:$0xff]
      %v2127 = vpack.c.bf16 %v2092, %v2091
      %v2128 = vpack.c.bf16 %v2094, %v2093
      %v2129 = vpack.c.bf16 %v2096, %v2095
      %v2130 = vpack.c.bf16 %v2098, %v2097
      %v2131 = vpack.c.bf16 %v2100, %v2099
      %v2132 = vpack.c.bf16 %v2102, %v2101
      %v2133 = vpack.c.bf16 %v2104, %v2103
      %v2134 = vpack.c.bf16 %v2106, %v2105
      %v2135 = vpack.c.bf16 %v2108, %v2107
      %v2136 = vpack.c.bf16 %v2110, %v2109
      %v2137 = vpack.c.bf16 %v2112, %v2111
      %v2138 = vpack.c.bf16 %v2114, %v2113
      %v2139 = vpack.c.bf16 %v2116, %v2115
      %v2140 = vpack.c.bf16 %v2118, %v2117
      %v2141 = vpack.c.bf16 %v2120, %v2119
      %v2142 = vpack.c.bf16 %v2122, %v2121
      %v2143 = vpack.c.bf16 %v2124, %v2123
      %v2144 = vpack.c.bf16 %v2126, %v2125
      %s2145 = scalar_lea.vmem %s1, 112
      %v2146 = vld [vmem:[%s2145] sm:$0xf]
      %v2147 = vld [vmem:[%s2145 + $0x4] sm:$0xf]
      %v2148 = vld [vmem:[%s2145 + $0x8] sm:$0xf]
      %v2149 = vld [vmem:[%s2145 + $0xc] sm:$0xf]
      %v2154 = vunpack.c.l.b16 %v2146
      %v2155 = vunpack.c.l.b16 %v2147
      %v2156 = vunpack.c.l.b16 %v2148
      %v2157 = vunpack.c.l.b16 %v2149
      %v2158 = vpack.c.b16 %v2155, %v2154
      %v2159 = vpack.c.b16 %v2157, %v2156
      %v2163 = vsel %vm472, %v2127, 0
      %v2166 = vsel %vm472, %v2128, 0
      %v2169 = vsel %vm472, %v2129, 0
      %v2172 = vsel %vm472, %v2130, 0
      %v2175 = vsel %vm472, %v2131, 0
      %v2178 = vsel %vm472, %v2132, 0
      %v2181 = vsel %vm472, %v2133, 0
      %v2184 = vsel %vm472, %v2134, 0
      %v2187 = vsel %vm472, %v2135, 0
      %v2190 = vsel %vm472, %v2136, 0
      %v2193 = vsel %vm472, %v2137, 0
      %v2196 = vsel %vm472, %v2138, 0
      %v2199 = vsel %vm472, %v2139, 0
      %v2202 = vsel %vm472, %v2140, 0
      %v2205 = vsel %vm472, %v2141, 0
      %v2208 = vsel %vm472, %v2142, 0
      %v2211 = vsel %vm472, %v2143, 0
      %v2214 = vsel %vm472, %v2144, 0
      %2216 = vmatpush.bf16.msra.mxu0 0
      %2217 = vmatpush.bf16.msra.mxu0 0
      %2218 = vmatpush.bf16.msra.mxu0 0
      %2219 = vmatpush.bf16.msra.mxu0 0
      %2220 = vmatpush.bf16.msra.mxu0 0
      %2221 = vmatpush.bf16.msra.mxu0 0
      %2222 = vmatpush.bf16.msra.mxu0 %v2159
      %2223 = vmatpush.bf16.msra.mxu0 %v2158
      %2224 = vmatmul.bf16.gmra.mxu0 %v2163
      %v2225 = vpop.f32.mrf.mxu0
      %v2226 = vadd.f32 0.0, %v2225
      %v2227 = vpop.f32.mrf.mxu0
      %v2228 = vadd.f32 0.0, %v2227
      %2229 = vmatmul.bf16.gmra.mxu0 %v2166
      %v2230 = vpop.f32.mrf.mxu0
      %v2231 = vadd.f32 0.0, %v2230
      %v2232 = vpop.f32.mrf.mxu0
      %v2233 = vadd.f32 0.0, %v2232
      %2234 = vmatmul.bf16.gmra.mxu0 %v2169
      %v2235 = vpop.f32.mrf.mxu0
      %v2236 = vadd.f32 0.0, %v2235
      %v2237 = vpop.f32.mrf.mxu0
      %v2238 = vadd.f32 0.0, %v2237
      %2239 = vmatmul.bf16.gmra.mxu0 %v2172
      %v2240 = vpop.f32.mrf.mxu0
      %v2241 = vadd.f32 0.0, %v2240
      %v2242 = vpop.f32.mrf.mxu0
      %v2243 = vadd.f32 0.0, %v2242
      %2244 = vmatmul.bf16.gmra.mxu0 %v2175
      %v2245 = vpop.f32.mrf.mxu0
      %v2246 = vadd.f32 0.0, %v2245
      %v2247 = vpop.f32.mrf.mxu0
      %v2248 = vadd.f32 0.0, %v2247
      %2249 = vmatmul.bf16.gmra.mxu0 %v2178
      %v2250 = vpop.f32.mrf.mxu0
      %v2251 = vadd.f32 0.0, %v2250
      %v2252 = vpop.f32.mrf.mxu0
      %v2253 = vadd.f32 0.0, %v2252
      %2254 = vmatmul.bf16.gmra.mxu0 %v2181
      %v2255 = vpop.f32.mrf.mxu0
      %v2256 = vadd.f32 0.0, %v2255
      %v2257 = vpop.f32.mrf.mxu0
      %v2258 = vadd.f32 0.0, %v2257
      %2259 = vmatmul.bf16.gmra.mxu0 %v2184
      %v2260 = vpop.f32.mrf.mxu0
      %v2261 = vadd.f32 0.0, %v2260
      %v2262 = vpop.f32.mrf.mxu0
      %v2263 = vadd.f32 0.0, %v2262
      %2264 = vmatmul.bf16.gmra.mxu0 %v2187
      %v2265 = vpop.f32.mrf.mxu0
      %v2266 = vadd.f32 0.0, %v2265
      %v2267 = vpop.f32.mrf.mxu0
      %v2268 = vadd.f32 0.0, %v2267
      %2269 = vmatmul.bf16.gmra.mxu0 %v2190
      %v2270 = vpop.f32.mrf.mxu0
      %v2271 = vadd.f32 0.0, %v2270
      %v2272 = vpop.f32.mrf.mxu0
      %v2273 = vadd.f32 0.0, %v2272
      %2274 = vmatmul.bf16.gmra.mxu0 %v2193
      %v2275 = vpop.f32.mrf.mxu0
      %v2276 = vadd.f32 0.0, %v2275
      %v2277 = vpop.f32.mrf.mxu0
      %v2278 = vadd.f32 0.0, %v2277
      %2279 = vmatmul.bf16.gmra.mxu0 %v2196
      %v2280 = vpop.f32.mrf.mxu0
      %v2281 = vadd.f32 0.0, %v2280
      %v2282 = vpop.f32.mrf.mxu0
      %v2283 = vadd.f32 0.0, %v2282
      %2284 = vmatmul.bf16.gmra.mxu0 %v2199
      %v2285 = vpop.f32.mrf.mxu0
      %v2286 = vadd.f32 0.0, %v2285
      %v2287 = vpop.f32.mrf.mxu0
      %v2288 = vadd.f32 0.0, %v2287
      %2289 = vmatmul.bf16.gmra.mxu0 %v2202
      %v2290 = vpop.f32.mrf.mxu0
      %v2291 = vadd.f32 0.0, %v2290
      %v2292 = vpop.f32.mrf.mxu0
      %v2293 = vadd.f32 0.0, %v2292
      %2294 = vmatmul.bf16.gmra.mxu0 %v2205
      %v2295 = vpop.f32.mrf.mxu0
      %v2296 = vadd.f32 0.0, %v2295
      %v2297 = vpop.f32.mrf.mxu0
      %v2298 = vadd.f32 0.0, %v2297
      %2299 = vmatmul.bf16.gmra.mxu0 %v2208
      %v2300 = vpop.f32.mrf.mxu0
      %v2301 = vadd.f32 0.0, %v2300
      %v2302 = vpop.f32.mrf.mxu0
      %v2303 = vadd.f32 0.0, %v2302
      %2304 = vmatmul.bf16.gmra.mxu0 %v2211
      %v2305 = vpop.f32.mrf.mxu0
      %v2306 = vadd.f32 0.0, %v2305
      %v2307 = vpop.f32.mrf.mxu0
      %v2308 = vadd.f32 0.0, %v2307
      %2309 = vmatmul.bf16.gmra.mxu0 %v2214
      %v2310 = vpop.f32.mrf.mxu0
      %v2311 = vadd.f32 0.0, %v2310
      %v2312 = vpop.f32.mrf.mxu0
      %v2313 = vadd.f32 0.0, %v2312
      %2314 = vdwg.mxu0
      %v2315 = vadd.f32 %v2055, %v2226
      %v2316 = vadd.f32 %v2056, %v2228
      %v2317 = vadd.f32 %v2057, %v2231
      %v2318 = vadd.f32 %v2058, %v2233
      %v2319 = vadd.f32 %v2059, %v2236
      %v2320 = vadd.f32 %v2060, %v2238
      %v2321 = vadd.f32 %v2061, %v2241
      %v2322 = vadd.f32 %v2062, %v2243
      %v2323 = vadd.f32 %v2063, %v2246
      %v2324 = vadd.f32 %v2064, %v2248
      %v2325 = vadd.f32 %v2065, %v2251
      %v2326 = vadd.f32 %v2066, %v2253
      %v2327 = vadd.f32 %v2067, %v2256
      %v2328 = vadd.f32 %v2068, %v2258
      %v2329 = vadd.f32 %v2069, %v2261
      %v2330 = vadd.f32 %v2070, %v2263
      %v2331 = vadd.f32 %v2071, %v2266
      %v2332 = vadd.f32 %v2072, %v2268
      %v2333 = vadd.f32 %v2073, %v2271
      %v2334 = vadd.f32 %v2074, %v2273
      %v2335 = vadd.f32 %v2075, %v2276
      %v2336 = vadd.f32 %v2076, %v2278
      %v2337 = vadd.f32 %v2077, %v2281
      %v2338 = vadd.f32 %v2078, %v2283
      %v2339 = vadd.f32 %v2079, %v2286
      %v2340 = vadd.f32 %v2080, %v2288
      %v2341 = vadd.f32 %v2081, %v2291
      %v2342 = vadd.f32 %v2082, %v2293
      %v2343 = vadd.f32 %v2083, %v2296
      %v2344 = vadd.f32 %v2084, %v2298
      %v2345 = vadd.f32 %v2085, %v2301
      %v2346 = vadd.f32 %v2086, %v2303
      %v2347 = vadd.f32 %v2087, %v2306
      %v2348 = vadd.f32 %v2088, %v2308
      %v2349 = vadd.f32 %v2089, %v2311
      %v2350 = vadd.f32 %v2090, %v2313
      %v2351 = vld [vmem:[%s300 + $0x2b] sm:$0xff]
      %v2352 = vld [vmem:[%s300 + $0x33] sm:$0xff]
      %v2353 = vld [vmem:[%s300 + $0x3b] sm:$0xff]
      %v2354 = vld [vmem:[%s300 + $0x43] sm:$0xff]
      %v2355 = vld [vmem:[%s300 + $0x4b] sm:$0xff]
      %v2356 = vld [vmem:[%s300 + $0x53] sm:$0xff]
      %v2357 = vld [vmem:[%s300 + $0x5b] sm:$0xff]
      %v2358 = vld [vmem:[%s300 + $0x63] sm:$0xff]
      %v2359 = vld [vmem:[%s300 + $0x6b] sm:$0xff]
      %v2360 = vld [vmem:[%s300 + $0x73] sm:$0xff]
      %v2361 = vld [vmem:[%s300 + $0x7b] sm:$0xff]
      %v2362 = vld [vmem:[%s300 + $0x83] sm:$0xff]
      %v2363 = vld [vmem:[%s300 + $0x8b] sm:$0xff]
      %v2364 = vld [vmem:[%s300 + $0x93] sm:$0xff]
      %v2365 = vld [vmem:[%s300 + $0x9b] sm:$0xff]
      %v2366 = vld [vmem:[%s300 + $0xa3] sm:$0xff]
      %v2367 = vld [vmem:[%s300 + $0xab] sm:$0xff]
      %v2368 = vld [vmem:[%s300 + $0xb3] sm:$0xff]
      %v2369 = vld [vmem:[%s300 + $0xbb] sm:$0xff]
      %v2370 = vld [vmem:[%s300 + $0xc3] sm:$0xff]
      %v2371 = vld [vmem:[%s300 + $0xcb] sm:$0xff]
      %v2372 = vld [vmem:[%s300 + $0xd3] sm:$0xff]
      %v2373 = vld [vmem:[%s300 + $0xdb] sm:$0xff]
      %v2374 = vld [vmem:[%s300 + $0xe3] sm:$0xff]
      %v2375 = vld [vmem:[%s300 + $0xeb] sm:$0xff]
      %v2376 = vld [vmem:[%s300 + $0xf3] sm:$0xff]
      %v2377 = vld [vmem:[%s300 + $0xfb] sm:$0xff]
      %v2378 = vld [vmem:[%s300 + $0x103] sm:$0xff]
      %v2379 = vld [vmem:[%s300 + $0x10b] sm:$0xff]
      %v2380 = vld [vmem:[%s300 + $0x113] sm:$0xff]
      %v2381 = vld [vmem:[%s300 + $0x11b] sm:$0xff]
      %v2382 = vld [vmem:[%s300 + $0x123] sm:$0xff]
      %v2383 = vld [vmem:[%s300 + $0x12b] sm:$0xff]
      %v2384 = vld [vmem:[%s300 + $0x133] sm:$0xff]
      %v2385 = vld [vmem:[%s300 + $0x13b] sm:$0xff]
      %v2386 = vld [vmem:[%s300 + $0x143] sm:$0xff]
      %v2387 = vpack.c.bf16 %v2352, %v2351
      %v2388 = vpack.c.bf16 %v2354, %v2353
      %v2389 = vpack.c.bf16 %v2356, %v2355
      %v2390 = vpack.c.bf16 %v2358, %v2357
      %v2391 = vpack.c.bf16 %v2360, %v2359
      %v2392 = vpack.c.bf16 %v2362, %v2361
      %v2393 = vpack.c.bf16 %v2364, %v2363
      %v2394 = vpack.c.bf16 %v2366, %v2365
      %v2395 = vpack.c.bf16 %v2368, %v2367
      %v2396 = vpack.c.bf16 %v2370, %v2369
      %v2397 = vpack.c.bf16 %v2372, %v2371
      %v2398 = vpack.c.bf16 %v2374, %v2373
      %v2399 = vpack.c.bf16 %v2376, %v2375
      %v2400 = vpack.c.bf16 %v2378, %v2377
      %v2401 = vpack.c.bf16 %v2380, %v2379
      %v2402 = vpack.c.bf16 %v2382, %v2381
      %v2403 = vpack.c.bf16 %v2384, %v2383
      %v2404 = vpack.c.bf16 %v2386, %v2385
      %s2405 = scalar_lea.vmem %s1, 128
      %v2406 = vld [vmem:[%s2405] sm:$0xf]
      %v2407 = vld [vmem:[%s2405 + $0x4] sm:$0xf]
      %v2408 = vld [vmem:[%s2405 + $0x8] sm:$0xf]
      %v2409 = vld [vmem:[%s2405 + $0xc] sm:$0xf]
      %v2414 = vunpack.c.l.b16 %v2406
      %v2415 = vunpack.c.l.b16 %v2407
      %v2416 = vunpack.c.l.b16 %v2408
      %v2417 = vunpack.c.l.b16 %v2409
      %v2418 = vpack.c.b16 %v2415, %v2414
      %v2419 = vpack.c.b16 %v2417, %v2416
      %v2423 = vsel %vm472, %v2387, 0
      %v2426 = vsel %vm472, %v2388, 0
      %v2429 = vsel %vm472, %v2389, 0
      %v2432 = vsel %vm472, %v2390, 0
      %v2435 = vsel %vm472, %v2391, 0
      %v2438 = vsel %vm472, %v2392, 0
      %v2441 = vsel %vm472, %v2393, 0
      %v2444 = vsel %vm472, %v2394, 0
      %v2447 = vsel %vm472, %v2395, 0
      %v2450 = vsel %vm472, %v2396, 0
      %v2453 = vsel %vm472, %v2397, 0
      %v2456 = vsel %vm472, %v2398, 0
      %v2459 = vsel %vm472, %v2399, 0
      %v2462 = vsel %vm472, %v2400, 0
      %v2465 = vsel %vm472, %v2401, 0
      %v2468 = vsel %vm472, %v2402, 0
      %v2471 = vsel %vm472, %v2403, 0
      %v2474 = vsel %vm472, %v2404, 0
      %2476 = vmatpush.bf16.msra.mxu0 0
      %2477 = vmatpush.bf16.msra.mxu0 0
      %2478 = vmatpush.bf16.msra.mxu0 0
      %2479 = vmatpush.bf16.msra.mxu0 0
      %2480 = vmatpush.bf16.msra.mxu0 0
      %2481 = vmatpush.bf16.msra.mxu0 0
      %2482 = vmatpush.bf16.msra.mxu0 %v2419
      %2483 = vmatpush.bf16.msra.mxu0 %v2418
      %2484 = vmatmul.bf16.gmra.mxu0 %v2423
      %v2485 = vpop.f32.mrf.mxu0
      %v2486 = vadd.f32 0.0, %v2485
      %v2487 = vpop.f32.mrf.mxu0
      %v2488 = vadd.f32 0.0, %v2487
      %2489 = vmatmul.bf16.gmra.mxu0 %v2426
      %v2490 = vpop.f32.mrf.mxu0
      %v2491 = vadd.f32 0.0, %v2490
      %v2492 = vpop.f32.mrf.mxu0
      %v2493 = vadd.f32 0.0, %v2492
      %2494 = vmatmul.bf16.gmra.mxu0 %v2429
      %v2495 = vpop.f32.mrf.mxu0
      %v2496 = vadd.f32 0.0, %v2495
      %v2497 = vpop.f32.mrf.mxu0
      %v2498 = vadd.f32 0.0, %v2497
      %2499 = vmatmul.bf16.gmra.mxu0 %v2432
      %v2500 = vpop.f32.mrf.mxu0
      %v2501 = vadd.f32 0.0, %v2500
      %v2502 = vpop.f32.mrf.mxu0
      %v2503 = vadd.f32 0.0, %v2502
      %2504 = vmatmul.bf16.gmra.mxu0 %v2435
      %v2505 = vpop.f32.mrf.mxu0
      %v2506 = vadd.f32 0.0, %v2505
      %v2507 = vpop.f32.mrf.mxu0
      %v2508 = vadd.f32 0.0, %v2507
      %2509 = vmatmul.bf16.gmra.mxu0 %v2438
      %v2510 = vpop.f32.mrf.mxu0
      %v2511 = vadd.f32 0.0, %v2510
      %v2512 = vpop.f32.mrf.mxu0
      %v2513 = vadd.f32 0.0, %v2512
      %2514 = vmatmul.bf16.gmra.mxu0 %v2441
      %v2515 = vpop.f32.mrf.mxu0
      %v2516 = vadd.f32 0.0, %v2515
      %v2517 = vpop.f32.mrf.mxu0
      %v2518 = vadd.f32 0.0, %v2517
      %2519 = vmatmul.bf16.gmra.mxu0 %v2444
      %v2520 = vpop.f32.mrf.mxu0
      %v2521 = vadd.f32 0.0, %v2520
      %v2522 = vpop.f32.mrf.mxu0
      %v2523 = vadd.f32 0.0, %v2522
      %2524 = vmatmul.bf16.gmra.mxu0 %v2447
      %v2525 = vpop.f32.mrf.mxu0
      %v2526 = vadd.f32 0.0, %v2525
      %v2527 = vpop.f32.mrf.mxu0
      %v2528 = vadd.f32 0.0, %v2527
      %2529 = vmatmul.bf16.gmra.mxu0 %v2450
      %v2530 = vpop.f32.mrf.mxu0
      %v2531 = vadd.f32 0.0, %v2530
      %v2532 = vpop.f32.mrf.mxu0
      %v2533 = vadd.f32 0.0, %v2532
      %2534 = vmatmul.bf16.gmra.mxu0 %v2453
      %v2535 = vpop.f32.mrf.mxu0
      %v2536 = vadd.f32 0.0, %v2535
      %v2537 = vpop.f32.mrf.mxu0
      %v2538 = vadd.f32 0.0, %v2537
      %2539 = vmatmul.bf16.gmra.mxu0 %v2456
      %v2540 = vpop.f32.mrf.mxu0
      %v2541 = vadd.f32 0.0, %v2540
      %v2542 = vpop.f32.mrf.mxu0
      %v2543 = vadd.f32 0.0, %v2542
      %2544 = vmatmul.bf16.gmra.mxu0 %v2459
      %v2545 = vpop.f32.mrf.mxu0
      %v2546 = vadd.f32 0.0, %v2545
      %v2547 = vpop.f32.mrf.mxu0
      %v2548 = vadd.f32 0.0, %v2547
      %2549 = vmatmul.bf16.gmra.mxu0 %v2462
      %v2550 = vpop.f32.mrf.mxu0
      %v2551 = vadd.f32 0.0, %v2550
      %v2552 = vpop.f32.mrf.mxu0
      %v2553 = vadd.f32 0.0, %v2552
      %2554 = vmatmul.bf16.gmra.mxu0 %v2465
      %v2555 = vpop.f32.mrf.mxu0
      %v2556 = vadd.f32 0.0, %v2555
      %v2557 = vpop.f32.mrf.mxu0
      %v2558 = vadd.f32 0.0, %v2557
      %2559 = vmatmul.bf16.gmra.mxu0 %v2468
      %v2560 = vpop.f32.mrf.mxu0
      %v2561 = vadd.f32 0.0, %v2560
      %v2562 = vpop.f32.mrf.mxu0
      %v2563 = vadd.f32 0.0, %v2562
      %2564 = vmatmul.bf16.gmra.mxu0 %v2471
      %v2565 = vpop.f32.mrf.mxu0
      %v2566 = vadd.f32 0.0, %v2565
      %v2567 = vpop.f32.mrf.mxu0
      %v2568 = vadd.f32 0.0, %v2567
      %2569 = vmatmul.bf16.gmra.mxu0 %v2474
      %v2570 = vpop.f32.mrf.mxu0
      %v2571 = vadd.f32 0.0, %v2570
      %v2572 = vpop.f32.mrf.mxu0
      %v2573 = vadd.f32 0.0, %v2572
      %2574 = vdwg.mxu0
      %v2575 = vadd.f32 %v2315, %v2486
      %v2576 = vadd.f32 %v2316, %v2488
      %v2577 = vadd.f32 %v2317, %v2491
      %v2578 = vadd.f32 %v2318, %v2493
      %v2579 = vadd.f32 %v2319, %v2496
      %v2580 = vadd.f32 %v2320, %v2498
      %v2581 = vadd.f32 %v2321, %v2501
      %v2582 = vadd.f32 %v2322, %v2503
      %v2583 = vadd.f32 %v2323, %v2506
      %v2584 = vadd.f32 %v2324, %v2508
      %v2585 = vadd.f32 %v2325, %v2511
      %v2586 = vadd.f32 %v2326, %v2513
      %v2587 = vadd.f32 %v2327, %v2516
      %v2588 = vadd.f32 %v2328, %v2518
      %v2589 = vadd.f32 %v2329, %v2521
      %v2590 = vadd.f32 %v2330, %v2523
      %v2591 = vadd.f32 %v2331, %v2526
      %v2592 = vadd.f32 %v2332, %v2528
      %v2593 = vadd.f32 %v2333, %v2531
      %v2594 = vadd.f32 %v2334, %v2533
      %v2595 = vadd.f32 %v2335, %v2536
      %v2596 = vadd.f32 %v2336, %v2538
      %v2597 = vadd.f32 %v2337, %v2541
      %v2598 = vadd.f32 %v2338, %v2543
      %v2599 = vadd.f32 %v2339, %v2546
      %v2600 = vadd.f32 %v2340, %v2548
      %v2601 = vadd.f32 %v2341, %v2551
      %v2602 = vadd.f32 %v2342, %v2553
      %v2603 = vadd.f32 %v2343, %v2556
      %v2604 = vadd.f32 %v2344, %v2558
      %v2605 = vadd.f32 %v2345, %v2561
      %v2606 = vadd.f32 %v2346, %v2563
      %v2607 = vadd.f32 %v2347, %v2566
      %v2608 = vadd.f32 %v2348, %v2568
      %v2609 = vadd.f32 %v2349, %v2571
      %v2610 = vadd.f32 %v2350, %v2573
      %v2611 = vld [vmem:[%s2] sm:$0x1]
      %v2613 = vperm.slane %v2611, 0
      %v2615 = vadd.f32 %v2575, %v2613
      %v2616 = vadd.f32 %v2576, %v2613
      %v2617 = vadd.f32 %v2577, %v2613
      %v2618 = vadd.f32 %v2578, %v2613
      %v2619 = vadd.f32 %v2579, %v2613
      %v2620 = vadd.f32 %v2580, %v2613
      %v2621 = vadd.f32 %v2581, %v2613
      %v2622 = vadd.f32 %v2582, %v2613
      %v2623 = vadd.f32 %v2583, %v2613
      %v2624 = vadd.f32 %v2584, %v2613
      %v2625 = vadd.f32 %v2585, %v2613
      %v2626 = vadd.f32 %v2586, %v2613
      %v2627 = vadd.f32 %v2587, %v2613
      %v2628 = vadd.f32 %v2588, %v2613
      %v2629 = vadd.f32 %v2589, %v2613
      %v2630 = vadd.f32 %v2590, %v2613
      %v2631 = vadd.f32 %v2591, %v2613
      %v2632 = vadd.f32 %v2592, %v2613
      %v2633 = vadd.f32 %v2593, %v2613
      %v2634 = vadd.f32 %v2594, %v2613
      %v2635 = vadd.f32 %v2595, %v2613
      %v2636 = vadd.f32 %v2596, %v2613
      %v2637 = vadd.f32 %v2597, %v2613
      %v2638 = vadd.f32 %v2598, %v2613
      %v2639 = vadd.f32 %v2599, %v2613
      %v2640 = vadd.f32 %v2600, %v2613
      %v2641 = vadd.f32 %v2601, %v2613
      %v2642 = vadd.f32 %v2602, %v2613
      %v2643 = vadd.f32 %v2603, %v2613
      %v2644 = vadd.f32 %v2604, %v2613
      %v2645 = vadd.f32 %v2605, %v2613
      %v2646 = vadd.f32 %v2606, %v2613
      %v2647 = vadd.f32 %v2607, %v2613
      %v2648 = vadd.f32 %v2608, %v2613
      %v2649 = vadd.f32 %v2609, %v2613
      %v2650 = vadd.f32 %v2610, %v2613
      %v2651 = vmax.f32 %v2615, 0.0
      %v2652 = vmax.f32 %v2616, 0.0
      %v2653 = vmax.f32 %v2617, 0.0
      %v2654 = vmax.f32 %v2618, 0.0
      %v2655 = vmax.f32 %v2619, 0.0
      %v2656 = vmax.f32 %v2620, 0.0
      %v2657 = vmax.f32 %v2621, 0.0
      %v2658 = vmax.f32 %v2622, 0.0
      %v2659 = vmax.f32 %v2623, 0.0
      %v2660 = vmax.f32 %v2624, 0.0
      %v2661 = vmax.f32 %v2625, 0.0
      %v2662 = vmax.f32 %v2626, 0.0
      %v2663 = vmax.f32 %v2627, 0.0
      %v2664 = vmax.f32 %v2628, 0.0
      %v2665 = vmax.f32 %v2629, 0.0
      %v2666 = vmax.f32 %v2630, 0.0
      %v2667 = vmax.f32 %v2631, 0.0
      %v2668 = vmax.f32 %v2632, 0.0
      %v2669 = vmax.f32 %v2633, 0.0
      %v2670 = vmax.f32 %v2634, 0.0
      %v2671 = vmax.f32 %v2635, 0.0
      %v2672 = vmax.f32 %v2636, 0.0
      %v2673 = vmax.f32 %v2637, 0.0
      %v2674 = vmax.f32 %v2638, 0.0
      %v2675 = vmax.f32 %v2639, 0.0
      %v2676 = vmax.f32 %v2640, 0.0
      %v2677 = vmax.f32 %v2641, 0.0
      %v2678 = vmax.f32 %v2642, 0.0
      %v2679 = vmax.f32 %v2643, 0.0
      %v2680 = vmax.f32 %v2644, 0.0
      %v2681 = vmax.f32 %v2645, 0.0
      %v2682 = vmax.f32 %v2646, 0.0
      %v2683 = vmax.f32 %v2647, 0.0
      %v2684 = vmax.f32 %v2648, 0.0
      %v2685 = vmax.f32 %v2649, 0.0
      %v2686 = vmax.f32 %v2650, 0.0
      %2688 = vset.pattern.permute.xlu0 0
      %2689 = vperm.xlu0 %2688, %v307
      %v2690 = vpop.permute.xlu0 %2689
      %2693 = vset.pattern.permute.xlu0 0
      %2694 = vperm.xlu0 %2693, %v308
      %v2695 = vpop.permute.xlu0 %2694
      %2698 = vset.pattern.permute.xlu0 0
      %2699 = vperm.xlu0 %2698, %v309
      %v2700 = vpop.permute.xlu0 %2699
      %2703 = vset.pattern.permute.xlu0 0
      %2704 = vperm.xlu0 %2703, %v310
      %v2705 = vpop.permute.xlu0 %2704
      %2708 = vset.pattern.permute.xlu0 0
      %2709 = vperm.xlu0 %2708, %v311
      %v2710 = vpop.permute.xlu0 %2709
      %2713 = vset.pattern.permute.xlu0 0
      %2714 = vperm.xlu0 %2713, %v312
      %v2715 = vpop.permute.xlu0 %2714
      %2718 = vset.pattern.permute.xlu0 0
      %2719 = vperm.xlu0 %2718, %v313
      %v2720 = vpop.permute.xlu0 %2719
      %2723 = vset.pattern.permute.xlu0 0
      %2724 = vperm.xlu0 %2723, %v314
      %v2725 = vpop.permute.xlu0 %2724
      %2728 = vset.pattern.permute.xlu0 0
      %2729 = vperm.xlu0 %2728, %v315
      %v2730 = vpop.permute.xlu0 %2729
      %2733 = vset.pattern.permute.xlu0 0
      %2734 = vperm.xlu0 %2733, %v316
      %v2735 = vpop.permute.xlu0 %2734
      %2738 = vset.pattern.permute.xlu0 0
      %2739 = vperm.xlu0 %2738, %v317
      %v2740 = vpop.permute.xlu0 %2739
      %2743 = vset.pattern.permute.xlu0 0
      %2744 = vperm.xlu0 %2743, %v318
      %v2745 = vpop.permute.xlu0 %2744
      %2748 = vset.pattern.permute.xlu0 0
      %2749 = vperm.xlu0 %2748, %v319
      %v2750 = vpop.permute.xlu0 %2749
      %2753 = vset.pattern.permute.xlu0 0
      %2754 = vperm.xlu0 %2753, %v320
      %v2755 = vpop.permute.xlu0 %2754
      %2758 = vset.pattern.permute.xlu0 0
      %2759 = vperm.xlu0 %2758, %v321
      %v2760 = vpop.permute.xlu0 %2759
      %2763 = vset.pattern.permute.xlu0 0
      %2764 = vperm.xlu0 %2763, %v322
      %v2765 = vpop.permute.xlu0 %2764
      %2768 = vset.pattern.permute.xlu0 0
      %2769 = vperm.xlu0 %2768, %v323
      %v2770 = vpop.permute.xlu0 %2769
      %2773 = vset.pattern.permute.xlu0 0
      %2774 = vperm.xlu0 %2773, %v324
      %v2775 = vpop.permute.xlu0 %2774
      %2778 = vset.pattern.permute.xlu0 0
      %2779 = vperm.xlu0 %2778, %v325
      %v2780 = vpop.permute.xlu0 %2779
      %2783 = vset.pattern.permute.xlu0 0
      %2784 = vperm.xlu0 %2783, %v326
      %v2785 = vpop.permute.xlu0 %2784
      %2788 = vset.pattern.permute.xlu0 0
      %2789 = vperm.xlu0 %2788, %v327
      %v2790 = vpop.permute.xlu0 %2789
      %2793 = vset.pattern.permute.xlu0 0
      %2794 = vperm.xlu0 %2793, %v328
      %v2795 = vpop.permute.xlu0 %2794
      %2798 = vset.pattern.permute.xlu0 0
      %2799 = vperm.xlu0 %2798, %v329
      %v2800 = vpop.permute.xlu0 %2799
      %2803 = vset.pattern.permute.xlu0 0
      %2804 = vperm.xlu0 %2803, %v330
      %v2805 = vpop.permute.xlu0 %2804
      %2808 = vset.pattern.permute.xlu0 0
      %2809 = vperm.xlu0 %2808, %v331
      %v2810 = vpop.permute.xlu0 %2809
      %2813 = vset.pattern.permute.xlu0 0
      %2814 = vperm.xlu0 %2813, %v332
      %v2815 = vpop.permute.xlu0 %2814
      %2818 = vset.pattern.permute.xlu0 0
      %2819 = vperm.xlu0 %2818, %v333
      %v2820 = vpop.permute.xlu0 %2819
      %2823 = vset.pattern.permute.xlu0 0
      %2824 = vperm.xlu0 %2823, %v334
      %v2825 = vpop.permute.xlu0 %2824
      %2828 = vset.pattern.permute.xlu0 0
      %2829 = vperm.xlu0 %2828, %v335
      %v2830 = vpop.permute.xlu0 %2829
      %2833 = vset.pattern.permute.xlu0 0
      %2834 = vperm.xlu0 %2833, %v336
      %v2835 = vpop.permute.xlu0 %2834
      %2838 = vset.pattern.permute.xlu0 0
      %2839 = vperm.xlu0 %2838, %v337
      %v2840 = vpop.permute.xlu0 %2839
      %2843 = vset.pattern.permute.xlu0 0
      %2844 = vperm.xlu0 %2843, %v338
      %v2845 = vpop.permute.xlu0 %2844
      %2848 = vset.pattern.permute.xlu0 0
      %2849 = vperm.xlu0 %2848, %v339
      %v2850 = vpop.permute.xlu0 %2849
      %2853 = vset.pattern.permute.xlu0 0
      %2854 = vperm.xlu0 %2853, %v340
      %v2855 = vpop.permute.xlu0 %2854
      %2858 = vset.pattern.permute.xlu0 0
      %2859 = vperm.xlu0 %2858, %v341
      %v2860 = vpop.permute.xlu0 %2859
      %2863 = vset.pattern.permute.xlu0 0
      %2864 = vperm.xlu0 %2863, %v342
      %v2865 = vpop.permute.xlu0 %2864
      %v2867 = vmul.f32 %v2651, %v2690
      %v2868 = vmul.f32 %v2652, %v2695
      %v2869 = vmul.f32 %v2653, %v2700
      %v2870 = vmul.f32 %v2654, %v2705
      %v2871 = vmul.f32 %v2655, %v2710
      %v2872 = vmul.f32 %v2656, %v2715
      %v2873 = vmul.f32 %v2657, %v2720
      %v2874 = vmul.f32 %v2658, %v2725
      %v2875 = vmul.f32 %v2659, %v2730
      %v2876 = vmul.f32 %v2660, %v2735
      %v2877 = vmul.f32 %v2661, %v2740
      %v2878 = vmul.f32 %v2662, %v2745
      %v2879 = vmul.f32 %v2663, %v2750
      %v2880 = vmul.f32 %v2664, %v2755
      %v2881 = vmul.f32 %v2665, %v2760
      %v2882 = vmul.f32 %v2666, %v2765
      %v2883 = vmul.f32 %v2667, %v2770
      %v2884 = vmul.f32 %v2668, %v2775
      %v2885 = vmul.f32 %v2669, %v2780
      %v2886 = vmul.f32 %v2670, %v2785
      %v2887 = vmul.f32 %v2671, %v2790
      %v2888 = vmul.f32 %v2672, %v2795
      %v2889 = vmul.f32 %v2673, %v2800
      %v2890 = vmul.f32 %v2674, %v2805
      %v2891 = vmul.f32 %v2675, %v2810
      %v2892 = vmul.f32 %v2676, %v2815
      %v2893 = vmul.f32 %v2677, %v2820
      %v2894 = vmul.f32 %v2678, %v2825
      %v2895 = vmul.f32 %v2679, %v2830
      %v2896 = vmul.f32 %v2680, %v2835
      %v2897 = vmul.f32 %v2681, %v2840
      %v2898 = vmul.f32 %v2682, %v2845
      %v2899 = vmul.f32 %v2683, %v2850
      %v2900 = vmul.f32 %v2684, %v2855
      %v2901 = vmul.f32 %v2685, %v2860
      %v2902 = vmul.f32 %v2686, %v2865
      %2903 = vst.msk [vmem:[#allocation2] sm:$0xff] %vm472, 0.0
      %2904 = vst.msk [vmem:[#allocation2 + $0x8] sm:$0xff] %vm472, 0.0
      %2905 = vst.msk [vmem:[#allocation2 + $0x10] sm:$0xff] %vm472, 0.0
      %2906 = vst.msk [vmem:[#allocation2 + $0x18] sm:$0xff] %vm472, 0.0
      %2907 = vst.msk [vmem:[#allocation2 + $0x20] sm:$0xff] %vm472, 0.0
      %2908 = vst.msk [vmem:[#allocation2 + $0x28] sm:$0xff] %vm472, 0.0
      %2909 = vst.msk [vmem:[#allocation2 + $0x30] sm:$0xff] %vm472, 0.0
      %2910 = vst.msk [vmem:[#allocation2 + $0x38] sm:$0xff] %vm472, 0.0
      %2911 = vst.msk [vmem:[#allocation2 + $0x40] sm:$0xff] %vm472, 0.0
      %2912 = vst.msk [vmem:[#allocation2 + $0x48] sm:$0xff] %vm472, 0.0
      %2913 = vst.msk [vmem:[#allocation2 + $0x50] sm:$0xff] %vm472, 0.0
      %2914 = vst.msk [vmem:[#allocation2 + $0x58] sm:$0xff] %vm472, 0.0
      %2915 = vst.msk [vmem:[#allocation2 + $0x60] sm:$0xff] %vm472, 0.0
      %2916 = vst.msk [vmem:[#allocation2 + $0x68] sm:$0xff] %vm472, 0.0
      %2917 = vst.msk [vmem:[#allocation2 + $0x70] sm:$0xff] %vm472, 0.0
      %2918 = vst.msk [vmem:[#allocation2 + $0x78] sm:$0xff] %vm472, 0.0
      %2919 = vst.msk [vmem:[#allocation2 + $0x80] sm:$0xff] %vm472, 0.0
      %2920 = vst.msk [vmem:[#allocation2 + $0x88] sm:$0xff] %vm472, 0.0
      %2921 = vst.msk [vmem:[#allocation2 + $0x90] sm:$0xff] %vm472, 0.0
      %2922 = vst.msk [vmem:[#allocation2 + $0x98] sm:$0xff] %vm472, 0.0
      %2923 = vst.msk [vmem:[#allocation2 + $0xa0] sm:$0xff] %vm472, 0.0
      %2924 = vst.msk [vmem:[#allocation2 + $0xa8] sm:$0xff] %vm472, 0.0
      %2925 = vst.msk [vmem:[#allocation2 + $0xb0] sm:$0xff] %vm472, 0.0
      %2926 = vst.msk [vmem:[#allocation2 + $0xb8] sm:$0xff] %vm472, 0.0
      %2927 = vst.msk [vmem:[#allocation2 + $0xc0] sm:$0xff] %vm472, 0.0
      %2928 = vst.msk [vmem:[#allocation2 + $0xc8] sm:$0xff] %vm472, 0.0
      %2929 = vst.msk [vmem:[#allocation2 + $0xd0] sm:$0xff] %vm472, 0.0
      %2930 = vst.msk [vmem:[#allocation2 + $0xd8] sm:$0xff] %vm472, 0.0
      %2931 = vst.msk [vmem:[#allocation2 + $0xe0] sm:$0xff] %vm472, 0.0
      %2932 = vst.msk [vmem:[#allocation2 + $0xe8] sm:$0xff] %vm472, 0.0
      %2933 = vst.msk [vmem:[#allocation2 + $0xf0] sm:$0xff] %vm472, 0.0
      %2934 = vst.msk [vmem:[#allocation2 + $0xf8] sm:$0xff] %vm472, 0.0
      %2935 = vst.msk [vmem:[#allocation2 + $0x100] sm:$0xff] %vm472, 0.0
      %2936 = vst.msk [vmem:[#allocation2 + $0x108] sm:$0xff] %vm472, 0.0
      %2937 = vst.msk [vmem:[#allocation2 + $0x110] sm:$0xff] %vm472, 0.0
      %2938 = vst.msk [vmem:[#allocation2 + $0x118] sm:$0xff] %vm472, 0.0
      %2939 = vst.msk [vmem:[#allocation2 + $0x120] sm:$0xff] %vm472, 0.0
      %2940 = vst.msk [vmem:[#allocation2 + $0x128] sm:$0xff] %vm472, 0.0
      %2941 = vst.msk [vmem:[#allocation2 + $0x130] sm:$0xff] %vm472, 0.0
      %2942 = vst.msk [vmem:[#allocation2 + $0x138] sm:$0xff] %vm472, 0.0
      %2943 = vst.msk [vmem:[#allocation2 + $0x140] sm:$0xff] %vm472, 0.0
      %2944 = vst.msk [vmem:[#allocation2 + $0x148] sm:$0xff] %vm472, 0.0
      %vm2945 = vcmask 254976
      %2946 = vst.msk [vmem:[#allocation2 + $0x150] sm:$0x3] %vm2945, 0.0
      %2947 = vst.msk [vmem:[#allocation2 + $0x18] sm:$0xff] %vm472, %v2867
      %2948 = vst.msk [vmem:[#allocation2 + $0x20] sm:$0xff] %vm472, %v2868
      %2949 = vst.msk [vmem:[#allocation2 + $0x28] sm:$0xff] %vm472, %v2869
      %2950 = vst.msk [vmem:[#allocation2 + $0x30] sm:$0xff] %vm472, %v2870
      %2951 = vst.msk [vmem:[#allocation2 + $0x38] sm:$0xff] %vm472, %v2871
      %2952 = vst.msk [vmem:[#allocation2 + $0x40] sm:$0xff] %vm472, %v2872
      %2953 = vst.msk [vmem:[#allocation2 + $0x48] sm:$0xff] %vm472, %v2873
      %2954 = vst.msk [vmem:[#allocation2 + $0x50] sm:$0xff] %vm472, %v2874
      %2955 = vst.msk [vmem:[#allocation2 + $0x58] sm:$0xff] %vm472, %v2875
      %2956 = vst.msk [vmem:[#allocation2 + $0x60] sm:$0xff] %vm472, %v2876
      %2957 = vst.msk [vmem:[#allocation2 + $0x68] sm:$0xff] %vm472, %v2877
      %2958 = vst.msk [vmem:[#allocation2 + $0x70] sm:$0xff] %vm472, %v2878
      %2959 = vst.msk [vmem:[#allocation2 + $0x78] sm:$0xff] %vm472, %v2879
      %2960 = vst.msk [vmem:[#allocation2 + $0x80] sm:$0xff] %vm472, %v2880
      %2961 = vst.msk [vmem:[#allocation2 + $0x88] sm:$0xff] %vm472, %v2881
      %2962 = vst.msk [vmem:[#allocation2 + $0x90] sm:$0xff] %vm472, %v2882
      %2963 = vst.msk [vmem:[#allocation2 + $0x98] sm:$0xff] %vm472, %v2883
      %2964 = vst.msk [vmem:[#allocation2 + $0xa0] sm:$0xff] %vm472, %v2884
      %2965 = vst.msk [vmem:[#allocation2 + $0xa8] sm:$0xff] %vm472, %v2885
      %2966 = vst.msk [vmem:[#allocation2 + $0xb0] sm:$0xff] %vm472, %v2886
      %2967 = vst.msk [vmem:[#allocation2 + $0xb8] sm:$0xff] %vm472, %v2887
      %2968 = vst.msk [vmem:[#allocation2 + $0xc0] sm:$0xff] %vm472, %v2888
      %2969 = vst.msk [vmem:[#allocation2 + $0xc8] sm:$0xff] %vm472, %v2889
      %2970 = vst.msk [vmem:[#allocation2 + $0xd0] sm:$0xff] %vm472, %v2890
      %2971 = vst.msk [vmem:[#allocation2 + $0xd8] sm:$0xff] %vm472, %v2891
      %2972 = vst.msk [vmem:[#allocation2 + $0xe0] sm:$0xff] %vm472, %v2892
      %2973 = vst.msk [vmem:[#allocation2 + $0xe8] sm:$0xff] %vm472, %v2893
      %2974 = vst.msk [vmem:[#allocation2 + $0xf0] sm:$0xff] %vm472, %v2894
      %2975 = vst.msk [vmem:[#allocation2 + $0xf8] sm:$0xff] %vm472, %v2895
      %2976 = vst.msk [vmem:[#allocation2 + $0x100] sm:$0xff] %vm472, %v2896
      %2977 = vst.msk [vmem:[#allocation2 + $0x108] sm:$0xff] %vm472, %v2897
      %2978 = vst.msk [vmem:[#allocation2 + $0x110] sm:$0xff] %vm472, %v2898
      %2979 = vst.msk [vmem:[#allocation2 + $0x118] sm:$0xff] %vm472, %v2899
      %2980 = vst.msk [vmem:[#allocation2 + $0x120] sm:$0xff] %vm472, %v2900
      %2981 = vst.msk [vmem:[#allocation2 + $0x128] sm:$0xff] %vm472, %v2901
      %2982 = vst.msk [vmem:[#allocation2 + $0x130] sm:$0xff] %vm472, %v2902
      %v2983 = vld [vmem:[#allocation2 + $0x5] sm:$0xff]
      %v2984 = vld [vmem:[#allocation2 + $0xd] sm:$0xff]
      %v2985 = vld [vmem:[#allocation2 + $0x15] sm:$0xff]
      %v2986 = vld [vmem:[#allocation2 + $0x1d] sm:$0xff]
      %v2987 = vld [vmem:[#allocation2 + $0x25] sm:$0xff]
      %v2988 = vld [vmem:[#allocation2 + $0x2d] sm:$0xff]
      %v2989 = vld [vmem:[#allocation2 + $0x35] sm:$0xff]
      %v2990 = vld [vmem:[#allocation2 + $0x3d] sm:$0xff]
      %v2991 = vld [vmem:[#allocation2 + $0x45] sm:$0xff]
      %v2992 = vld [vmem:[#allocation2 + $0x4d] sm:$0xff]
      %v2993 = vld [vmem:[#allocation2 + $0x55] sm:$0xff]
      %v2994 = vld [vmem:[#allocation2 + $0x5d] sm:$0xff]
      %v2995 = vld [vmem:[#allocation2 + $0x65] sm:$0xff]
      %v2996 = vld [vmem:[#allocation2 + $0x6d] sm:$0xff]
      %v2997 = vld [vmem:[#allocation2 + $0x75] sm:$0xff]
      %v2998 = vld [vmem:[#allocation2 + $0x7d] sm:$0xff]
      %v2999 = vld [vmem:[#allocation2 + $0x85] sm:$0xff]
      %v3000 = vld [vmem:[#allocation2 + $0x8d] sm:$0xff]
      %v3001 = vld [vmem:[#allocation2 + $0x95] sm:$0xff]
      %v3002 = vld [vmem:[#allocation2 + $0x9d] sm:$0xff]
      %v3003 = vld [vmem:[#allocation2 + $0xa5] sm:$0xff]
      %v3004 = vld [vmem:[#allocation2 + $0xad] sm:$0xff]
      %v3005 = vld [vmem:[#allocation2 + $0xb5] sm:$0xff]
      %v3006 = vld [vmem:[#allocation2 + $0xbd] sm:$0xff]
      %v3007 = vld [vmem:[#allocation2 + $0xc5] sm:$0xff]
      %v3008 = vld [vmem:[#allocation2 + $0xcd] sm:$0xff]
      %v3009 = vld [vmem:[#allocation2 + $0xd5] sm:$0xff]
      %v3010 = vld [vmem:[#allocation2 + $0xdd] sm:$0xff]
      %v3011 = vld [vmem:[#allocation2 + $0xe5] sm:$0xff]
      %v3012 = vld [vmem:[#allocation2 + $0xed] sm:$0xff]
      %v3013 = vld [vmem:[#allocation2 + $0xf5] sm:$0xff]
      %v3014 = vld [vmem:[#allocation2 + $0xfd] sm:$0xff]
      %v3015 = vld [vmem:[#allocation2 + $0x105] sm:$0xff]
      %v3016 = vld [vmem:[#allocation2 + $0x10d] sm:$0xff]
      %v3017 = vld [vmem:[#allocation2 + $0x115] sm:$0xff]
      %v3018 = vld [vmem:[#allocation2 + $0x11d] sm:$0xff]
      %v3019 = vpack.c.bf16 %v2984, %v2983
      %v3020 = vpack.c.bf16 %v2986, %v2985
      %v3021 = vpack.c.bf16 %v2988, %v2987
      %v3022 = vpack.c.bf16 %v2990, %v2989
      %v3023 = vpack.c.bf16 %v2992, %v2991
      %v3024 = vpack.c.bf16 %v2994, %v2993
      %v3025 = vpack.c.bf16 %v2996, %v2995
      %v3026 = vpack.c.bf16 %v2998, %v2997
      %v3027 = vpack.c.bf16 %v3000, %v2999
      %v3028 = vpack.c.bf16 %v3002, %v3001
      %v3029 = vpack.c.bf16 %v3004, %v3003
      %v3030 = vpack.c.bf16 %v3006, %v3005
      %v3031 = vpack.c.bf16 %v3008, %v3007
      %v3032 = vpack.c.bf16 %v3010, %v3009
      %v3033 = vpack.c.bf16 %v3012, %v3011
      %v3034 = vpack.c.bf16 %v3014, %v3013
      %v3035 = vpack.c.bf16 %v3016, %v3015
      %v3036 = vpack.c.bf16 %v3018, %v3017
      %v3037 = vld [vmem:[%s3] sm:$0xf]
      %v3038 = vld [vmem:[%s3 + $0x4] sm:$0xf]
      %v3039 = vld [vmem:[%s3 + $0x8] sm:$0xf]
      %v3040 = vld [vmem:[%s3 + $0xc] sm:$0xf]
      %v3041 = vld [vmem:[#allocation2 + $0x6] sm:$0xff]
      %v3042 = vld [vmem:[#allocation2 + $0xe] sm:$0xff]
      %v3043 = vld [vmem:[#allocation2 + $0x16] sm:$0xff]
      %v3044 = vld [vmem:[#allocation2 + $0x1e] sm:$0xff]
      %v3045 = vld [vmem:[#allocation2 + $0x26] sm:$0xff]
      %v3046 = vld [vmem:[#allocation2 + $0x2e] sm:$0xff]
      %v3047 = vld [vmem:[#allocation2 + $0x36] sm:$0xff]
      %v3048 = vld [vmem:[#allocation2 + $0x3e] sm:$0xff]
      %v3049 = vld [vmem:[#allocation2 + $0x46] sm:$0xff]
      %v3050 = vld [vmem:[#allocation2 + $0x4e] sm:$0xff]
      %v3051 = vld [vmem:[#allocation2 + $0x56] sm:$0xff]
      %v3052 = vld [vmem:[#allocation2 + $0x5e] sm:$0xff]
      %v3053 = vld [vmem:[#allocation2 + $0x66] sm:$0xff]
      %v3054 = vld [vmem:[#allocation2 + $0x6e] sm:$0xff]
      %v3055 = vld [vmem:[#allocation2 + $0x76] sm:$0xff]
      %v3056 = vld [vmem:[#allocation2 + $0x7e] sm:$0xff]
      %v3057 = vld [vmem:[#allocation2 + $0x86] sm:$0xff]
      %v3058 = vld [vmem:[#allocation2 + $0x8e] sm:$0xff]
      %v3059 = vld [vmem:[#allocation2 + $0x96] sm:$0xff]
      %v3060 = vld [vmem:[#allocation2 + $0x9e] sm:$0xff]
      %v3061 = vld [vmem:[#allocation2 + $0xa6] sm:$0xff]
      %v3062 = vld [vmem:[#allocation2 + $0xae] sm:$0xff]
      %v3063 = vld [vmem:[#allocation2 + $0xb6] sm:$0xff]
      %v3064 = vld [vmem:[#allocation2 + $0xbe] sm:$0xff]
      %v3065 = vld [vmem:[#allocation2 + $0xc6] sm:$0xff]
      %v3066 = vld [vmem:[#allocation2 + $0xce] sm:$0xff]
      %v3067 = vld [vmem:[#allocation2 + $0xd6] sm:$0xff]
      %v3068 = vld [vmem:[#allocation2 + $0xde] sm:$0xff]
      %v3069 = vld [vmem:[#allocation2 + $0xe6] sm:$0xff]
      %v3070 = vld [vmem:[#allocation2 + $0xee] sm:$0xff]
      %v3071 = vld [vmem:[#allocation2 + $0xf6] sm:$0xff]
      %v3072 = vld [vmem:[#allocation2 + $0xfe] sm:$0xff]
      %v3073 = vld [vmem:[#allocation2 + $0x106] sm:$0xff]
      %v3074 = vld [vmem:[#allocation2 + $0x10e] sm:$0xff]
      %v3075 = vld [vmem:[#allocation2 + $0x116] sm:$0xff]
      %v3076 = vld [vmem:[#allocation2 + $0x11e] sm:$0xff]
      %v3077 = vpack.c.bf16 %v3042, %v3041
      %v3078 = vpack.c.bf16 %v3044, %v3043
      %v3079 = vpack.c.bf16 %v3046, %v3045
      %v3080 = vpack.c.bf16 %v3048, %v3047
      %v3081 = vpack.c.bf16 %v3050, %v3049
      %v3082 = vpack.c.bf16 %v3052, %v3051
      %v3083 = vpack.c.bf16 %v3054, %v3053
      %v3084 = vpack.c.bf16 %v3056, %v3055
      %v3085 = vpack.c.bf16 %v3058, %v3057
      %v3086 = vpack.c.bf16 %v3060, %v3059
      %v3087 = vpack.c.bf16 %v3062, %v3061
      %v3088 = vpack.c.bf16 %v3064, %v3063
      %v3089 = vpack.c.bf16 %v3066, %v3065
      %v3090 = vpack.c.bf16 %v3068, %v3067
      %v3091 = vpack.c.bf16 %v3070, %v3069
      %v3092 = vpack.c.bf16 %v3072, %v3071
      %v3093 = vpack.c.bf16 %v3074, %v3073
      %v3094 = vpack.c.bf16 %v3076, %v3075
      %s3095 = scalar_lea.vmem %s3, 16
      %v3096 = vld [vmem:[%s3095] sm:$0xf]
      %v3097 = vld [vmem:[%s3095 + $0x4] sm:$0xf]
      %v3098 = vld [vmem:[%s3095 + $0x8] sm:$0xf]
      %v3099 = vld [vmem:[%s3095 + $0xc] sm:$0xf]
      %v3104 = vunpack.c.l.b16 %v3096
      %v3105 = vunpack.c.l.b16 %v3097
      %v3106 = vunpack.c.l.b16 %v3098
      %v3107 = vunpack.c.l.b16 %v3099
      %v3108 = vpack.c.b16 %v3105, %v3104
      %v3109 = vpack.c.b16 %v3107, %v3106
      %v3113 = vsel %vm472, %v3077, 0
      %v3116 = vsel %vm472, %v3078, 0
      %v3119 = vsel %vm472, %v3079, 0
      %v3122 = vsel %vm472, %v3080, 0
      %v3125 = vsel %vm472, %v3081, 0
      %v3128 = vsel %vm472, %v3082, 0
      %v3131 = vsel %vm472, %v3083, 0
      %v3134 = vsel %vm472, %v3084, 0
      %v3137 = vsel %vm472, %v3085, 0
      %v3140 = vsel %vm472, %v3086, 0
      %v3143 = vsel %vm472, %v3087, 0
      %v3146 = vsel %vm472, %v3088, 0
      %v3149 = vsel %vm472, %v3089, 0
      %v3152 = vsel %vm472, %v3090, 0
      %v3155 = vsel %vm472, %v3091, 0
      %v3158 = vsel %vm472, %v3092, 0
      %v3161 = vsel %vm472, %v3093, 0
      %v3164 = vsel %vm472, %v3094, 0
      %3166 = vmatpush.bf16.msra.mxu0 0
      %3167 = vmatpush.bf16.msra.mxu0 0
      %3168 = vmatpush.bf16.msra.mxu0 0
      %3169 = vmatpush.bf16.msra.mxu0 0
      %3170 = vmatpush.bf16.msra.mxu0 0
      %3171 = vmatpush.bf16.msra.mxu0 0
      %3172 = vmatpush.bf16.msra.mxu0 %v3109
      %3173 = vmatpush.bf16.msra.mxu0 %v3108
      %3174 = vmatmul.bf16.gmra.mxu0 %v3113
      %v3175 = vpop.f32.mrf.mxu0
      %v3176 = vadd.f32 0.0, %v3175
      %v3177 = vpop.f32.mrf.mxu0
      %v3178 = vadd.f32 0.0, %v3177
      %3179 = vmatmul.bf16.gmra.mxu0 %v3116
      %v3180 = vpop.f32.mrf.mxu0
      %v3181 = vadd.f32 0.0, %v3180
      %v3182 = vpop.f32.mrf.mxu0
      %v3183 = vadd.f32 0.0, %v3182
      %3184 = vmatmul.bf16.gmra.mxu0 %v3119
      %v3185 = vpop.f32.mrf.mxu0
      %v3186 = vadd.f32 0.0, %v3185
      %v3187 = vpop.f32.mrf.mxu0
      %v3188 = vadd.f32 0.0, %v3187
      %3189 = vmatmul.bf16.gmra.mxu0 %v3122
      %v3190 = vpop.f32.mrf.mxu0
      %v3191 = vadd.f32 0.0, %v3190
      %v3192 = vpop.f32.mrf.mxu0
      %v3193 = vadd.f32 0.0, %v3192
      %3194 = vmatmul.bf16.gmra.mxu0 %v3125
      %v3195 = vpop.f32.mrf.mxu0
      %v3196 = vadd.f32 0.0, %v3195
      %v3197 = vpop.f32.mrf.mxu0
      %v3198 = vadd.f32 0.0, %v3197
      %3199 = vmatmul.bf16.gmra.mxu0 %v3128
      %v3200 = vpop.f32.mrf.mxu0
      %v3201 = vadd.f32 0.0, %v3200
      %v3202 = vpop.f32.mrf.mxu0
      %v3203 = vadd.f32 0.0, %v3202
      %3204 = vmatmul.bf16.gmra.mxu0 %v3131
      %v3205 = vpop.f32.mrf.mxu0
      %v3206 = vadd.f32 0.0, %v3205
      %v3207 = vpop.f32.mrf.mxu0
      %v3208 = vadd.f32 0.0, %v3207
      %3209 = vmatmul.bf16.gmra.mxu0 %v3134
      %v3210 = vpop.f32.mrf.mxu0
      %v3211 = vadd.f32 0.0, %v3210
      %v3212 = vpop.f32.mrf.mxu0
      %v3213 = vadd.f32 0.0, %v3212
      %3214 = vmatmul.bf16.gmra.mxu0 %v3137
      %v3215 = vpop.f32.mrf.mxu0
      %v3216 = vadd.f32 0.0, %v3215
      %v3217 = vpop.f32.mrf.mxu0
      %v3218 = vadd.f32 0.0, %v3217
      %3219 = vmatmul.bf16.gmra.mxu0 %v3140
      %v3220 = vpop.f32.mrf.mxu0
      %v3221 = vadd.f32 0.0, %v3220
      %v3222 = vpop.f32.mrf.mxu0
      %v3223 = vadd.f32 0.0, %v3222
      %3224 = vmatmul.bf16.gmra.mxu0 %v3143
      %v3225 = vpop.f32.mrf.mxu0
      %v3226 = vadd.f32 0.0, %v3225
      %v3227 = vpop.f32.mrf.mxu0
      %v3228 = vadd.f32 0.0, %v3227
      %3229 = vmatmul.bf16.gmra.mxu0 %v3146
      %v3230 = vpop.f32.mrf.mxu0
      %v3231 = vadd.f32 0.0, %v3230
      %v3232 = vpop.f32.mrf.mxu0
      %v3233 = vadd.f32 0.0, %v3232
      %3234 = vmatmul.bf16.gmra.mxu0 %v3149
      %v3235 = vpop.f32.mrf.mxu0
      %v3236 = vadd.f32 0.0, %v3235
      %v3237 = vpop.f32.mrf.mxu0
      %v3238 = vadd.f32 0.0, %v3237
      %3239 = vmatmul.bf16.gmra.mxu0 %v3152
      %v3240 = vpop.f32.mrf.mxu0
      %v3241 = vadd.f32 0.0, %v3240
      %v3242 = vpop.f32.mrf.mxu0
      %v3243 = vadd.f32 0.0, %v3242
      %3244 = vmatmul.bf16.gmra.mxu0 %v3155
      %v3245 = vpop.f32.mrf.mxu0
      %v3246 = vadd.f32 0.0, %v3245
      %v3247 = vpop.f32.mrf.mxu0
      %v3248 = vadd.f32 0.0, %v3247
      %3249 = vmatmul.bf16.gmra.mxu0 %v3158
      %v3250 = vpop.f32.mrf.mxu0
      %v3251 = vadd.f32 0.0, %v3250
      %v3252 = vpop.f32.mrf.mxu0
      %v3253 = vadd.f32 0.0, %v3252
      %3254 = vmatmul.bf16.gmra.mxu0 %v3161
      %v3255 = vpop.f32.mrf.mxu0
      %v3256 = vadd.f32 0.0, %v3255
      %v3257 = vpop.f32.mrf.mxu0
      %v3258 = vadd.f32 0.0, %v3257
      %3259 = vmatmul.bf16.gmra.mxu0 %v3164
      %v3260 = vpop.f32.mrf.mxu0
      %v3261 = vadd.f32 0.0, %v3260
      %v3262 = vpop.f32.mrf.mxu0
      %v3263 = vadd.f32 0.0, %v3262
      %3264 = vdwg.mxu0
      %v3269 = vunpack.c.l.b16 %v3037
      %v3270 = vunpack.c.l.b16 %v3038
      %v3271 = vunpack.c.l.b16 %v3039
      %v3272 = vunpack.c.l.b16 %v3040
      %v3273 = vpack.c.b16 %v3270, %v3269
      %v3274 = vpack.c.b16 %v3272, %v3271
      %v3278 = vsel %vm472, %v3019, 0
      %v3281 = vsel %vm472, %v3020, 0
      %v3284 = vsel %vm472, %v3021, 0
      %v3287 = vsel %vm472, %v3022, 0
      %v3290 = vsel %vm472, %v3023, 0
      %v3293 = vsel %vm472, %v3024, 0
      %v3296 = vsel %vm472, %v3025, 0
      %v3299 = vsel %vm472, %v3026, 0
      %v3302 = vsel %vm472, %v3027, 0
      %v3305 = vsel %vm472, %v3028, 0
      %v3308 = vsel %vm472, %v3029, 0
      %v3311 = vsel %vm472, %v3030, 0
      %v3314 = vsel %vm472, %v3031, 0
      %v3317 = vsel %vm472, %v3032, 0
      %v3320 = vsel %vm472, %v3033, 0
      %v3323 = vsel %vm472, %v3034, 0
      %v3326 = vsel %vm472, %v3035, 0
      %v3329 = vsel %vm472, %v3036, 0
      %3331 = vmatpush.bf16.msra.mxu0 0
      %3332 = vmatpush.bf16.msra.mxu0 0
      %3333 = vmatpush.bf16.msra.mxu0 0
      %3334 = vmatpush.bf16.msra.mxu0 0
      %3335 = vmatpush.bf16.msra.mxu0 0
      %3336 = vmatpush.bf16.msra.mxu0 0
      %3337 = vmatpush.bf16.msra.mxu0 %v3274
      %3338 = vmatpush.bf16.msra.mxu0 %v3273
      %3339 = vmatmul.bf16.gmra.mxu0 %v3278
      %v3340 = vpop.f32.mrf.mxu0
      %v3341 = vadd.f32 %v3176, %v3340
      %v3342 = vpop.f32.mrf.mxu0
      %v3343 = vadd.f32 %v3178, %v3342
      %3344 = vmatmul.bf16.gmra.mxu0 %v3281
      %v3345 = vpop.f32.mrf.mxu0
      %v3346 = vadd.f32 %v3181, %v3345
      %v3347 = vpop.f32.mrf.mxu0
      %v3348 = vadd.f32 %v3183, %v3347
      %3349 = vmatmul.bf16.gmra.mxu0 %v3284
      %v3350 = vpop.f32.mrf.mxu0
      %v3351 = vadd.f32 %v3186, %v3350
      %v3352 = vpop.f32.mrf.mxu0
      %v3353 = vadd.f32 %v3188, %v3352
      %3354 = vmatmul.bf16.gmra.mxu0 %v3287
      %v3355 = vpop.f32.mrf.mxu0
      %v3356 = vadd.f32 %v3191, %v3355
      %v3357 = vpop.f32.mrf.mxu0
      %v3358 = vadd.f32 %v3193, %v3357
      %3359 = vmatmul.bf16.gmra.mxu0 %v3290
      %v3360 = vpop.f32.mrf.mxu0
      %v3361 = vadd.f32 %v3196, %v3360
      %v3362 = vpop.f32.mrf.mxu0
      %v3363 = vadd.f32 %v3198, %v3362
      %3364 = vmatmul.bf16.gmra.mxu0 %v3293
      %v3365 = vpop.f32.mrf.mxu0
      %v3366 = vadd.f32 %v3201, %v3365
      %v3367 = vpop.f32.mrf.mxu0
      %v3368 = vadd.f32 %v3203, %v3367
      %3369 = vmatmul.bf16.gmra.mxu0 %v3296
      %v3370 = vpop.f32.mrf.mxu0
      %v3371 = vadd.f32 %v3206, %v3370
      %v3372 = vpop.f32.mrf.mxu0
      %v3373 = vadd.f32 %v3208, %v3372
      %3374 = vmatmul.bf16.gmra.mxu0 %v3299
      %v3375 = vpop.f32.mrf.mxu0
      %v3376 = vadd.f32 %v3211, %v3375
      %v3377 = vpop.f32.mrf.mxu0
      %v3378 = vadd.f32 %v3213, %v3377
      %3379 = vmatmul.bf16.gmra.mxu0 %v3302
      %v3380 = vpop.f32.mrf.mxu0
      %v3381 = vadd.f32 %v3216, %v3380
      %v3382 = vpop.f32.mrf.mxu0
      %v3383 = vadd.f32 %v3218, %v3382
      %3384 = vmatmul.bf16.gmra.mxu0 %v3305
      %v3385 = vpop.f32.mrf.mxu0
      %v3386 = vadd.f32 %v3221, %v3385
      %v3387 = vpop.f32.mrf.mxu0
      %v3388 = vadd.f32 %v3223, %v3387
      %3389 = vmatmul.bf16.gmra.mxu0 %v3308
      %v3390 = vpop.f32.mrf.mxu0
      %v3391 = vadd.f32 %v3226, %v3390
      %v3392 = vpop.f32.mrf.mxu0
      %v3393 = vadd.f32 %v3228, %v3392
      %3394 = vmatmul.bf16.gmra.mxu0 %v3311
      %v3395 = vpop.f32.mrf.mxu0
      %v3396 = vadd.f32 %v3231, %v3395
      %v3397 = vpop.f32.mrf.mxu0
      %v3398 = vadd.f32 %v3233, %v3397
      %3399 = vmatmul.bf16.gmra.mxu0 %v3314
      %v3400 = vpop.f32.mrf.mxu0
      %v3401 = vadd.f32 %v3236, %v3400
      %v3402 = vpop.f32.mrf.mxu0
      %v3403 = vadd.f32 %v3238, %v3402
      %3404 = vmatmul.bf16.gmra.mxu0 %v3317
      %v3405 = vpop.f32.mrf.mxu0
      %v3406 = vadd.f32 %v3241, %v3405
      %v3407 = vpop.f32.mrf.mxu0
      %v3408 = vadd.f32 %v3243, %v3407
      %3409 = vmatmul.bf16.gmra.mxu0 %v3320
      %v3410 = vpop.f32.mrf.mxu0
      %v3411 = vadd.f32 %v3246, %v3410
      %v3412 = vpop.f32.mrf.mxu0
      %v3413 = vadd.f32 %v3248, %v3412
      %3414 = vmatmul.bf16.gmra.mxu0 %v3323
      %v3415 = vpop.f32.mrf.mxu0
      %v3416 = vadd.f32 %v3251, %v3415
      %v3417 = vpop.f32.mrf.mxu0
      %v3418 = vadd.f32 %v3253, %v3417
      %3419 = vmatmul.bf16.gmra.mxu0 %v3326
      %v3420 = vpop.f32.mrf.mxu0
      %v3421 = vadd.f32 %v3256, %v3420
      %v3422 = vpop.f32.mrf.mxu0
      %v3423 = vadd.f32 %v3258, %v3422
      %3424 = vmatmul.bf16.gmra.mxu0 %v3329
      %v3425 = vpop.f32.mrf.mxu0
      %v3426 = vadd.f32 %v3261, %v3425
      %v3427 = vpop.f32.mrf.mxu0
      %v3428 = vadd.f32 %v3263, %v3427
      %3429 = vdwg.mxu0
      %v3430 = vld [vmem:[#allocation2 + $0x7] sm:$0xff]
      %v3431 = vld [vmem:[#allocation2 + $0xf] sm:$0xff]
      %v3432 = vld [vmem:[#allocation2 + $0x17] sm:$0xff]
      %v3433 = vld [vmem:[#allocation2 + $0x1f] sm:$0xff]
      %v3434 = vld [vmem:[#allocation2 + $0x27] sm:$0xff]
      %v3435 = vld [vmem:[#allocation2 + $0x2f] sm:$0xff]
      %v3436 = vld [vmem:[#allocation2 + $0x37] sm:$0xff]
      %v3437 = vld [vmem:[#allocation2 + $0x3f] sm:$0xff]
      %v3438 = vld [vmem:[#allocation2 + $0x47] sm:$0xff]
      %v3439 = vld [vmem:[#allocation2 + $0x4f] sm:$0xff]
      %v3440 = vld [vmem:[#allocation2 + $0x57] sm:$0xff]
      %v3441 = vld [vmem:[#allocation2 + $0x5f] sm:$0xff]
      %v3442 = vld [vmem:[#allocation2 + $0x67] sm:$0xff]
      %v3443 = vld [vmem:[#allocation2 + $0x6f] sm:$0xff]
      %v3444 = vld [vmem:[#allocation2 + $0x77] sm:$0xff]
      %v3445 = vld [vmem:[#allocation2 + $0x7f] sm:$0xff]
      %v3446 = vld [vmem:[#allocation2 + $0x87] sm:$0xff]
      %v3447 = vld [vmem:[#allocation2 + $0x8f] sm:$0xff]
      %v3448 = vld [vmem:[#allocation2 + $0x97] sm:$0xff]
      %v3449 = vld [vmem:[#allocation2 + $0x9f] sm:$0xff]
      %v3450 = vld [vmem:[#allocation2 + $0xa7] sm:$0xff]
      %v3451 = vld [vmem:[#allocation2 + $0xaf] sm:$0xff]
      %v3452 = vld [vmem:[#allocation2 + $0xb7] sm:$0xff]
      %v3453 = vld [vmem:[#allocation2 + $0xbf] sm:$0xff]
      %v3454 = vld [vmem:[#allocation2 + $0xc7] sm:$0xff]
      %v3455 = vld [vmem:[#allocation2 + $0xcf] sm:$0xff]
      %v3456 = vld [vmem:[#allocation2 + $0xd7] sm:$0xff]
      %v3457 = vld [vmem:[#allocation2 + $0xdf] sm:$0xff]
      %v3458 = vld [vmem:[#allocation2 + $0xe7] sm:$0xff]
      %v3459 = vld [vmem:[#allocation2 + $0xef] sm:$0xff]
      %v3460 = vld [vmem:[#allocation2 + $0xf7] sm:$0xff]
      %v3461 = vld [vmem:[#allocation2 + $0xff] sm:$0xff]
      %v3462 = vld [vmem:[#allocation2 + $0x107] sm:$0xff]
      %v3463 = vld [vmem:[#allocation2 + $0x10f] sm:$0xff]
      %v3464 = vld [vmem:[#allocation2 + $0x117] sm:$0xff]
      %v3465 = vld [vmem:[#allocation2 + $0x11f] sm:$0xff]
      %v3466 = vpack.c.bf16 %v3431, %v3430
      %v3467 = vpack.c.bf16 %v3433, %v3432
      %v3468 = vpack.c.bf16 %v3435, %v3434
      %v3469 = vpack.c.bf16 %v3437, %v3436
      %v3470 = vpack.c.bf16 %v3439, %v3438
      %v3471 = vpack.c.bf16 %v3441, %v3440
      %v3472 = vpack.c.bf16 %v3443, %v3442
      %v3473 = vpack.c.bf16 %v3445, %v3444
      %v3474 = vpack.c.bf16 %v3447, %v3446
      %v3475 = vpack.c.bf16 %v3449, %v3448
      %v3476 = vpack.c.bf16 %v3451, %v3450
      %v3477 = vpack.c.bf16 %v3453, %v3452
      %v3478 = vpack.c.bf16 %v3455, %v3454
      %v3479 = vpack.c.bf16 %v3457, %v3456
      %v3480 = vpack.c.bf16 %v3459, %v3458
      %v3481 = vpack.c.bf16 %v3461, %v3460
      %v3482 = vpack.c.bf16 %v3463, %v3462
      %v3483 = vpack.c.bf16 %v3465, %v3464
      %s3484 = scalar_lea.vmem %s3, 32
      %v3485 = vld [vmem:[%s3484] sm:$0xf]
      %v3486 = vld [vmem:[%s3484 + $0x4] sm:$0xf]
      %v3487 = vld [vmem:[%s3484 + $0x8] sm:$0xf]
      %v3488 = vld [vmem:[%s3484 + $0xc] sm:$0xf]
      %v3493 = vunpack.c.l.b16 %v3485
      %v3494 = vunpack.c.l.b16 %v3486
      %v3495 = vunpack.c.l.b16 %v3487
      %v3496 = vunpack.c.l.b16 %v3488
      %v3497 = vpack.c.b16 %v3494, %v3493
      %v3498 = vpack.c.b16 %v3496, %v3495
      %v3502 = vsel %vm472, %v3466, 0
      %v3505 = vsel %vm472, %v3467, 0
      %v3508 = vsel %vm472, %v3468, 0
      %v3511 = vsel %vm472, %v3469, 0
      %v3514 = vsel %vm472, %v3470, 0
      %v3517 = vsel %vm472, %v3471, 0
      %v3520 = vsel %vm472, %v3472, 0
      %v3523 = vsel %vm472, %v3473, 0
      %v3526 = vsel %vm472, %v3474, 0
      %v3529 = vsel %vm472, %v3475, 0
      %v3532 = vsel %vm472, %v3476, 0
      %v3535 = vsel %vm472, %v3477, 0
      %v3538 = vsel %vm472, %v3478, 0
      %v3541 = vsel %vm472, %v3479, 0
      %v3544 = vsel %vm472, %v3480, 0
      %v3547 = vsel %vm472, %v3481, 0
      %v3550 = vsel %vm472, %v3482, 0
      %v3553 = vsel %vm472, %v3483, 0
      %3555 = vmatpush.bf16.msra.mxu0 0
      %3556 = vmatpush.bf16.msra.mxu0 0
      %3557 = vmatpush.bf16.msra.mxu0 0
      %3558 = vmatpush.bf16.msra.mxu0 0
      %3559 = vmatpush.bf16.msra.mxu0 0
      %3560 = vmatpush.bf16.msra.mxu0 0
      %3561 = vmatpush.bf16.msra.mxu0 %v3498
      %3562 = vmatpush.bf16.msra.mxu0 %v3497
      %3563 = vmatmul.bf16.gmra.mxu0 %v3502
      %v3564 = vpop.f32.mrf.mxu0
      %v3565 = vadd.f32 0.0, %v3564
      %v3566 = vpop.f32.mrf.mxu0
      %v3567 = vadd.f32 0.0, %v3566
      %3568 = vmatmul.bf16.gmra.mxu0 %v3505
      %v3569 = vpop.f32.mrf.mxu0
      %v3570 = vadd.f32 0.0, %v3569
      %v3571 = vpop.f32.mrf.mxu0
      %v3572 = vadd.f32 0.0, %v3571
      %3573 = vmatmul.bf16.gmra.mxu0 %v3508
      %v3574 = vpop.f32.mrf.mxu0
      %v3575 = vadd.f32 0.0, %v3574
      %v3576 = vpop.f32.mrf.mxu0
      %v3577 = vadd.f32 0.0, %v3576
      %3578 = vmatmul.bf16.gmra.mxu0 %v3511
      %v3579 = vpop.f32.mrf.mxu0
      %v3580 = vadd.f32 0.0, %v3579
      %v3581 = vpop.f32.mrf.mxu0
      %v3582 = vadd.f32 0.0, %v3581
      %3583 = vmatmul.bf16.gmra.mxu0 %v3514
      %v3584 = vpop.f32.mrf.mxu0
      %v3585 = vadd.f32 0.0, %v3584
      %v3586 = vpop.f32.mrf.mxu0
      %v3587 = vadd.f32 0.0, %v3586
      %3588 = vmatmul.bf16.gmra.mxu0 %v3517
      %v3589 = vpop.f32.mrf.mxu0
      %v3590 = vadd.f32 0.0, %v3589
      %v3591 = vpop.f32.mrf.mxu0
      %v3592 = vadd.f32 0.0, %v3591
      %3593 = vmatmul.bf16.gmra.mxu0 %v3520
      %v3594 = vpop.f32.mrf.mxu0
      %v3595 = vadd.f32 0.0, %v3594
      %v3596 = vpop.f32.mrf.mxu0
      %v3597 = vadd.f32 0.0, %v3596
      %3598 = vmatmul.bf16.gmra.mxu0 %v3523
      %v3599 = vpop.f32.mrf.mxu0
      %v3600 = vadd.f32 0.0, %v3599
      %v3601 = vpop.f32.mrf.mxu0
      %v3602 = vadd.f32 0.0, %v3601
      %3603 = vmatmul.bf16.gmra.mxu0 %v3526
      %v3604 = vpop.f32.mrf.mxu0
      %v3605 = vadd.f32 0.0, %v3604
      %v3606 = vpop.f32.mrf.mxu0
      %v3607 = vadd.f32 0.0, %v3606
      %3608 = vmatmul.bf16.gmra.mxu0 %v3529
      %v3609 = vpop.f32.mrf.mxu0
      %v3610 = vadd.f32 0.0, %v3609
      %v3611 = vpop.f32.mrf.mxu0
      %v3612 = vadd.f32 0.0, %v3611
      %3613 = vmatmul.bf16.gmra.mxu0 %v3532
      %v3614 = vpop.f32.mrf.mxu0
      %v3615 = vadd.f32 0.0, %v3614
      %v3616 = vpop.f32.mrf.mxu0
      %v3617 = vadd.f32 0.0, %v3616
      %3618 = vmatmul.bf16.gmra.mxu0 %v3535
      %v3619 = vpop.f32.mrf.mxu0
      %v3620 = vadd.f32 0.0, %v3619
      %v3621 = vpop.f32.mrf.mxu0
      %v3622 = vadd.f32 0.0, %v3621
      %3623 = vmatmul.bf16.gmra.mxu0 %v3538
      %v3624 = vpop.f32.mrf.mxu0
      %v3625 = vadd.f32 0.0, %v3624
      %v3626 = vpop.f32.mrf.mxu0
      %v3627 = vadd.f32 0.0, %v3626
      %3628 = vmatmul.bf16.gmra.mxu0 %v3541
      %v3629 = vpop.f32.mrf.mxu0
      %v3630 = vadd.f32 0.0, %v3629
      %v3631 = vpop.f32.mrf.mxu0
      %v3632 = vadd.f32 0.0, %v3631
      %3633 = vmatmul.bf16.gmra.mxu0 %v3544
      %v3634 = vpop.f32.mrf.mxu0
      %v3635 = vadd.f32 0.0, %v3634
      %v3636 = vpop.f32.mrf.mxu0
      %v3637 = vadd.f32 0.0, %v3636
      %3638 = vmatmul.bf16.gmra.mxu0 %v3547
      %v3639 = vpop.f32.mrf.mxu0
      %v3640 = vadd.f32 0.0, %v3639
      %v3641 = vpop.f32.mrf.mxu0
      %v3642 = vadd.f32 0.0, %v3641
      %3643 = vmatmul.bf16.gmra.mxu0 %v3550
      %v3644 = vpop.f32.mrf.mxu0
      %v3645 = vadd.f32 0.0, %v3644
      %v3646 = vpop.f32.mrf.mxu0
      %v3647 = vadd.f32 0.0, %v3646
      %3648 = vmatmul.bf16.gmra.mxu0 %v3553
      %v3649 = vpop.f32.mrf.mxu0
      %v3650 = vadd.f32 0.0, %v3649
      %v3651 = vpop.f32.mrf.mxu0
      %v3652 = vadd.f32 0.0, %v3651
      %3653 = vdwg.mxu0
      %v3654 = vadd.f32 %v3341, %v3565
      %v3655 = vadd.f32 %v3343, %v3567
      %v3656 = vadd.f32 %v3346, %v3570
      %v3657 = vadd.f32 %v3348, %v3572
      %v3658 = vadd.f32 %v3351, %v3575
      %v3659 = vadd.f32 %v3353, %v3577
      %v3660 = vadd.f32 %v3356, %v3580
      %v3661 = vadd.f32 %v3358, %v3582
      %v3662 = vadd.f32 %v3361, %v3585
      %v3663 = vadd.f32 %v3363, %v3587
      %v3664 = vadd.f32 %v3366, %v3590
      %v3665 = vadd.f32 %v3368, %v3592
      %v3666 = vadd.f32 %v3371, %v3595
      %v3667 = vadd.f32 %v3373, %v3597
      %v3668 = vadd.f32 %v3376, %v3600
      %v3669 = vadd.f32 %v3378, %v3602
      %v3670 = vadd.f32 %v3381, %v3605
      %v3671 = vadd.f32 %v3383, %v3607
      %v3672 = vadd.f32 %v3386, %v3610
      %v3673 = vadd.f32 %v3388, %v3612
      %v3674 = vadd.f32 %v3391, %v3615
      %v3675 = vadd.f32 %v3393, %v3617
      %v3676 = vadd.f32 %v3396, %v3620
      %v3677 = vadd.f32 %v3398, %v3622
      %v3678 = vadd.f32 %v3401, %v3625
      %v3679 = vadd.f32 %v3403, %v3627
      %v3680 = vadd.f32 %v3406, %v3630
      %v3681 = vadd.f32 %v3408, %v3632
      %v3682 = vadd.f32 %v3411, %v3635
      %v3683 = vadd.f32 %v3413, %v3637
      %v3684 = vadd.f32 %v3416, %v3640
      %v3685 = vadd.f32 %v3418, %v3642
      %v3686 = vadd.f32 %v3421, %v3645
      %v3687 = vadd.f32 %v3423, %v3647
      %v3688 = vadd.f32 %v3426, %v3650
      %v3689 = vadd.f32 %v3428, %v3652
      %v3690 = vld [vmem:[#allocation2 + $0x17] sm:$0xff]
      %v3691 = vld [vmem:[#allocation2 + $0x1f] sm:$0xff]
      %v3692 = vld [vmem:[#allocation2 + $0x27] sm:$0xff]
      %v3693 = vld [vmem:[#allocation2 + $0x2f] sm:$0xff]
      %v3694 = vld [vmem:[#allocation2 + $0x37] sm:$0xff]
      %v3695 = vld [vmem:[#allocation2 + $0x3f] sm:$0xff]
      %v3696 = vld [vmem:[#allocation2 + $0x47] sm:$0xff]
      %v3697 = vld [vmem:[#allocation2 + $0x4f] sm:$0xff]
      %v3698 = vld [vmem:[#allocation2 + $0x57] sm:$0xff]
      %v3699 = vld [vmem:[#allocation2 + $0x5f] sm:$0xff]
      %v3700 = vld [vmem:[#allocation2 + $0x67] sm:$0xff]
      %v3701 = vld [vmem:[#allocation2 + $0x6f] sm:$0xff]
      %v3702 = vld [vmem:[#allocation2 + $0x77] sm:$0xff]
      %v3703 = vld [vmem:[#allocation2 + $0x7f] sm:$0xff]
      %v3704 = vld [vmem:[#allocation2 + $0x87] sm:$0xff]
      %v3705 = vld [vmem:[#allocation2 + $0x8f] sm:$0xff]
      %v3706 = vld [vmem:[#allocation2 + $0x97] sm:$0xff]
      %v3707 = vld [vmem:[#allocation2 + $0x9f] sm:$0xff]
      %v3708 = vld [vmem:[#allocation2 + $0xa7] sm:$0xff]
      %v3709 = vld [vmem:[#allocation2 + $0xaf] sm:$0xff]
      %v3710 = vld [vmem:[#allocation2 + $0xb7] sm:$0xff]
      %v3711 = vld [vmem:[#allocation2 + $0xbf] sm:$0xff]
      %v3712 = vld [vmem:[#allocation2 + $0xc7] sm:$0xff]
      %v3713 = vld [vmem:[#allocation2 + $0xcf] sm:$0xff]
      %v3714 = vld [vmem:[#allocation2 + $0xd7] sm:$0xff]
      %v3715 = vld [vmem:[#allocation2 + $0xdf] sm:$0xff]
      %v3716 = vld [vmem:[#allocation2 + $0xe7] sm:$0xff]
      %v3717 = vld [vmem:[#allocation2 + $0xef] sm:$0xff]
      %v3718 = vld [vmem:[#allocation2 + $0xf7] sm:$0xff]
      %v3719 = vld [vmem:[#allocation2 + $0xff] sm:$0xff]
      %v3720 = vld [vmem:[#allocation2 + $0x107] sm:$0xff]
      %v3721 = vld [vmem:[#allocation2 + $0x10f] sm:$0xff]
      %v3722 = vld [vmem:[#allocation2 + $0x117] sm:$0xff]
      %v3723 = vld [vmem:[#allocation2 + $0x11f] sm:$0xff]
      %v3724 = vld [vmem:[#allocation2 + $0x127] sm:$0xff]
      %v3725 = vld [vmem:[#allocation2 + $0x12f] sm:$0xff]
      %v3726 = vpack.c.bf16 %v3691, %v3690
      %v3727 = vpack.c.bf16 %v3693, %v3692
      %v3728 = vpack.c.bf16 %v3695, %v3694
      %v3729 = vpack.c.bf16 %v3697, %v3696
      %v3730 = vpack.c.bf16 %v3699, %v3698
      %v3731 = vpack.c.bf16 %v3701, %v3700
      %v3732 = vpack.c.bf16 %v3703, %v3702
      %v3733 = vpack.c.bf16 %v3705, %v3704
      %v3734 = vpack.c.bf16 %v3707, %v3706
      %v3735 = vpack.c.bf16 %v3709, %v3708
      %v3736 = vpack.c.bf16 %v3711, %v3710
      %v3737 = vpack.c.bf16 %v3713, %v3712
      %v3738 = vpack.c.bf16 %v3715, %v3714
      %v3739 = vpack.c.bf16 %v3717, %v3716
      %v3740 = vpack.c.bf16 %v3719, %v3718
      %v3741 = vpack.c.bf16 %v3721, %v3720
      %v3742 = vpack.c.bf16 %v3723, %v3722
      %v3743 = vpack.c.bf16 %v3725, %v3724
      %s3744 = scalar_lea.vmem %s3, 48
      %v3745 = vld [vmem:[%s3744] sm:$0xf]
      %v3746 = vld [vmem:[%s3744 + $0x4] sm:$0xf]
      %v3747 = vld [vmem:[%s3744 + $0x8] sm:$0xf]
      %v3748 = vld [vmem:[%s3744 + $0xc] sm:$0xf]
      %v3753 = vunpack.c.l.b16 %v3745
      %v3754 = vunpack.c.l.b16 %v3746
      %v3755 = vunpack.c.l.b16 %v3747
      %v3756 = vunpack.c.l.b16 %v3748
      %v3757 = vpack.c.b16 %v3754, %v3753
      %v3758 = vpack.c.b16 %v3756, %v3755
      %v3762 = vsel %vm472, %v3726, 0
      %v3765 = vsel %vm472, %v3727, 0
      %v3768 = vsel %vm472, %v3728, 0
      %v3771 = vsel %vm472, %v3729, 0
      %v3774 = vsel %vm472, %v3730, 0
      %v3777 = vsel %vm472, %v3731, 0
      %v3780 = vsel %vm472, %v3732, 0
      %v3783 = vsel %vm472, %v3733, 0
      %v3786 = vsel %vm472, %v3734, 0
      %v3789 = vsel %vm472, %v3735, 0
      %v3792 = vsel %vm472, %v3736, 0
      %v3795 = vsel %vm472, %v3737, 0
      %v3798 = vsel %vm472, %v3738, 0
      %v3801 = vsel %vm472, %v3739, 0
      %v3804 = vsel %vm472, %v3740, 0
      %v3807 = vsel %vm472, %v3741, 0
      %v3810 = vsel %vm472, %v3742, 0
      %v3813 = vsel %vm472, %v3743, 0
      %3815 = vmatpush.bf16.msra.mxu0 0
      %3816 = vmatpush.bf16.msra.mxu0 0
      %3817 = vmatpush.bf16.msra.mxu0 0
      %3818 = vmatpush.bf16.msra.mxu0 0
      %3819 = vmatpush.bf16.msra.mxu0 0
      %3820 = vmatpush.bf16.msra.mxu0 0
      %3821 = vmatpush.bf16.msra.mxu0 %v3758
      %3822 = vmatpush.bf16.msra.mxu0 %v3757
      %3823 = vmatmul.bf16.gmra.mxu0 %v3762
      %v3824 = vpop.f32.mrf.mxu0
      %v3825 = vadd.f32 0.0, %v3824
      %v3826 = vpop.f32.mrf.mxu0
      %v3827 = vadd.f32 0.0, %v3826
      %3828 = vmatmul.bf16.gmra.mxu0 %v3765
      %v3829 = vpop.f32.mrf.mxu0
      %v3830 = vadd.f32 0.0, %v3829
      %v3831 = vpop.f32.mrf.mxu0
      %v3832 = vadd.f32 0.0, %v3831
      %3833 = vmatmul.bf16.gmra.mxu0 %v3768
      %v3834 = vpop.f32.mrf.mxu0
      %v3835 = vadd.f32 0.0, %v3834
      %v3836 = vpop.f32.mrf.mxu0
      %v3837 = vadd.f32 0.0, %v3836
      %3838 = vmatmul.bf16.gmra.mxu0 %v3771
      %v3839 = vpop.f32.mrf.mxu0
      %v3840 = vadd.f32 0.0, %v3839
      %v3841 = vpop.f32.mrf.mxu0
      %v3842 = vadd.f32 0.0, %v3841
      %3843 = vmatmul.bf16.gmra.mxu0 %v3774
      %v3844 = vpop.f32.mrf.mxu0
      %v3845 = vadd.f32 0.0, %v3844
      %v3846 = vpop.f32.mrf.mxu0
      %v3847 = vadd.f32 0.0, %v3846
      %3848 = vmatmul.bf16.gmra.mxu0 %v3777
      %v3849 = vpop.f32.mrf.mxu0
      %v3850 = vadd.f32 0.0, %v3849
      %v3851 = vpop.f32.mrf.mxu0
      %v3852 = vadd.f32 0.0, %v3851
      %3853 = vmatmul.bf16.gmra.mxu0 %v3780
      %v3854 = vpop.f32.mrf.mxu0
      %v3855 = vadd.f32 0.0, %v3854
      %v3856 = vpop.f32.mrf.mxu0
      %v3857 = vadd.f32 0.0, %v3856
      %3858 = vmatmul.bf16.gmra.mxu0 %v3783
      %v3859 = vpop.f32.mrf.mxu0
      %v3860 = vadd.f32 0.0, %v3859
      %v3861 = vpop.f32.mrf.mxu0
      %v3862 = vadd.f32 0.0, %v3861
      %3863 = vmatmul.bf16.gmra.mxu0 %v3786
      %v3864 = vpop.f32.mrf.mxu0
      %v3865 = vadd.f32 0.0, %v3864
      %v3866 = vpop.f32.mrf.mxu0
      %v3867 = vadd.f32 0.0, %v3866
      %3868 = vmatmul.bf16.gmra.mxu0 %v3789
      %v3869 = vpop.f32.mrf.mxu0
      %v3870 = vadd.f32 0.0, %v3869
      %v3871 = vpop.f32.mrf.mxu0
      %v3872 = vadd.f32 0.0, %v3871
      %3873 = vmatmul.bf16.gmra.mxu0 %v3792
      %v3874 = vpop.f32.mrf.mxu0
      %v3875 = vadd.f32 0.0, %v3874
      %v3876 = vpop.f32.mrf.mxu0
      %v3877 = vadd.f32 0.0, %v3876
      %3878 = vmatmul.bf16.gmra.mxu0 %v3795
      %v3879 = vpop.f32.mrf.mxu0
      %v3880 = vadd.f32 0.0, %v3879
      %v3881 = vpop.f32.mrf.mxu0
      %v3882 = vadd.f32 0.0, %v3881
      %3883 = vmatmul.bf16.gmra.mxu0 %v3798
      %v3884 = vpop.f32.mrf.mxu0
      %v3885 = vadd.f32 0.0, %v3884
      %v3886 = vpop.f32.mrf.mxu0
      %v3887 = vadd.f32 0.0, %v3886
      %3888 = vmatmul.bf16.gmra.mxu0 %v3801
      %v3889 = vpop.f32.mrf.mxu0
      %v3890 = vadd.f32 0.0, %v3889
      %v3891 = vpop.f32.mrf.mxu0
      %v3892 = vadd.f32 0.0, %v3891
      %3893 = vmatmul.bf16.gmra.mxu0 %v3804
      %v3894 = vpop.f32.mrf.mxu0
      %v3895 = vadd.f32 0.0, %v3894
      %v3896 = vpop.f32.mrf.mxu0
      %v3897 = vadd.f32 0.0, %v3896
      %3898 = vmatmul.bf16.gmra.mxu0 %v3807
      %v3899 = vpop.f32.mrf.mxu0
      %v3900 = vadd.f32 0.0, %v3899
      %v3901 = vpop.f32.mrf.mxu0
      %v3902 = vadd.f32 0.0, %v3901
      %3903 = vmatmul.bf16.gmra.mxu0 %v3810
      %v3904 = vpop.f32.mrf.mxu0
      %v3905 = vadd.f32 0.0, %v3904
      %v3906 = vpop.f32.mrf.mxu0
      %v3907 = vadd.f32 0.0, %v3906
      %3908 = vmatmul.bf16.gmra.mxu0 %v3813
      %v3909 = vpop.f32.mrf.mxu0
      %v3910 = vadd.f32 0.0, %v3909
      %v3911 = vpop.f32.mrf.mxu0
      %v3912 = vadd.f32 0.0, %v3911
      %3913 = vdwg.mxu0
      %v3914 = vadd.f32 %v3654, %v3825
      %v3915 = vadd.f32 %v3655, %v3827
      %v3916 = vadd.f32 %v3656, %v3830
      %v3917 = vadd.f32 %v3657, %v3832
      %v3918 = vadd.f32 %v3658, %v3835
      %v3919 = vadd.f32 %v3659, %v3837
      %v3920 = vadd.f32 %v3660, %v3840
      %v3921 = vadd.f32 %v3661, %v3842
      %v3922 = vadd.f32 %v3662, %v3845
      %v3923 = vadd.f32 %v3663, %v3847
      %v3924 = vadd.f32 %v3664, %v3850
      %v3925 = vadd.f32 %v3665, %v3852
      %v3926 = vadd.f32 %v3666, %v3855
      %v3927 = vadd.f32 %v3667, %v3857
      %v3928 = vadd.f32 %v3668, %v3860
      %v3929 = vadd.f32 %v3669, %v3862
      %v3930 = vadd.f32 %v3670, %v3865
      %v3931 = vadd.f32 %v3671, %v3867
      %v3932 = vadd.f32 %v3672, %v3870
      %v3933 = vadd.f32 %v3673, %v3872
      %v3934 = vadd.f32 %v3674, %v3875
      %v3935 = vadd.f32 %v3675, %v3877
      %v3936 = vadd.f32 %v3676, %v3880
      %v3937 = vadd.f32 %v3677, %v3882
      %v3938 = vadd.f32 %v3678, %v3885
      %v3939 = vadd.f32 %v3679, %v3887
      %v3940 = vadd.f32 %v3680, %v3890
      %v3941 = vadd.f32 %v3681, %v3892
      %v3942 = vadd.f32 %v3682, %v3895
      %v3943 = vadd.f32 %v3683, %v3897
      %v3944 = vadd.f32 %v3684, %v3900
      %v3945 = vadd.f32 %v3685, %v3902
      %v3946 = vadd.f32 %v3686, %v3905
      %v3947 = vadd.f32 %v3687, %v3907
      %v3948 = vadd.f32 %v3688, %v3910
      %v3949 = vadd.f32 %v3689, %v3912
      %v3950 = vld [vmem:[#allocation2 + $0x18] sm:$0xff]
      %v3951 = vld [vmem:[#allocation2 + $0x20] sm:$0xff]
      %v3952 = vld [vmem:[#allocation2 + $0x28] sm:$0xff]
      %v3953 = vld [vmem:[#allocation2 + $0x30] sm:$0xff]
      %v3954 = vld [vmem:[#allocation2 + $0x38] sm:$0xff]
      %v3955 = vld [vmem:[#allocation2 + $0x40] sm:$0xff]
      %v3956 = vld [vmem:[#allocation2 + $0x48] sm:$0xff]
      %v3957 = vld [vmem:[#allocation2 + $0x50] sm:$0xff]
      %v3958 = vld [vmem:[#allocation2 + $0x58] sm:$0xff]
      %v3959 = vld [vmem:[#allocation2 + $0x60] sm:$0xff]
      %v3960 = vld [vmem:[#allocation2 + $0x68] sm:$0xff]
      %v3961 = vld [vmem:[#allocation2 + $0x70] sm:$0xff]
      %v3962 = vld [vmem:[#allocation2 + $0x78] sm:$0xff]
      %v3963 = vld [vmem:[#allocation2 + $0x80] sm:$0xff]
      %v3964 = vld [vmem:[#allocation2 + $0x88] sm:$0xff]
      %v3965 = vld [vmem:[#allocation2 + $0x90] sm:$0xff]
      %v3966 = vld [vmem:[#allocation2 + $0x98] sm:$0xff]
      %v3967 = vld [vmem:[#allocation2 + $0xa0] sm:$0xff]
      %v3968 = vld [vmem:[#allocation2 + $0xa8] sm:$0xff]
      %v3969 = vld [vmem:[#allocation2 + $0xb0] sm:$0xff]
      %v3970 = vld [vmem:[#allocation2 + $0xb8] sm:$0xff]
      %v3971 = vld [vmem:[#allocation2 + $0xc0] sm:$0xff]
      %v3972 = vld [vmem:[#allocation2 + $0xc8] sm:$0xff]
      %v3973 = vld [vmem:[#allocation2 + $0xd0] sm:$0xff]
      %v3974 = vld [vmem:[#allocation2 + $0xd8] sm:$0xff]
      %v3975 = vld [vmem:[#allocation2 + $0xe0] sm:$0xff]
      %v3976 = vld [vmem:[#allocation2 + $0xe8] sm:$0xff]
      %v3977 = vld [vmem:[#allocation2 + $0xf0] sm:$0xff]
      %v3978 = vld [vmem:[#allocation2 + $0xf8] sm:$0xff]
      %v3979 = vld [vmem:[#allocation2 + $0x100] sm:$0xff]
      %v3980 = vld [vmem:[#allocation2 + $0x108] sm:$0xff]
      %v3981 = vld [vmem:[#allocation2 + $0x110] sm:$0xff]
      %v3982 = vld [vmem:[#allocation2 + $0x118] sm:$0xff]
      %v3983 = vld [vmem:[#allocation2 + $0x120] sm:$0xff]
      %v3984 = vld [vmem:[#allocation2 + $0x128] sm:$0xff]
      %v3985 = vld [vmem:[#allocation2 + $0x130] sm:$0xff]
      %v3986 = vpack.c.bf16 %v3951, %v3950
      %v3987 = vpack.c.bf16 %v3953, %v3952
      %v3988 = vpack.c.bf16 %v3955, %v3954
      %v3989 = vpack.c.bf16 %v3957, %v3956
      %v3990 = vpack.c.bf16 %v3959, %v3958
      %v3991 = vpack.c.bf16 %v3961, %v3960
      %v3992 = vpack.c.bf16 %v3963, %v3962
      %v3993 = vpack.c.bf16 %v3965, %v3964
      %v3994 = vpack.c.bf16 %v3967, %v3966
      %v3995 = vpack.c.bf16 %v3969, %v3968
      %v3996 = vpack.c.bf16 %v3971, %v3970
      %v3997 = vpack.c.bf16 %v3973, %v3972
      %v3998 = vpack.c.bf16 %v3975, %v3974
      %v3999 = vpack.c.bf16 %v3977, %v3976
      %v4000 = vpack.c.bf16 %v3979, %v3978
      %v4001 = vpack.c.bf16 %v3981, %v3980
      %v4002 = vpack.c.bf16 %v3983, %v3982
      %v4003 = vpack.c.bf16 %v3985, %v3984
      %s4004 = scalar_lea.vmem %s3, 64
      %v4005 = vld [vmem:[%s4004] sm:$0xf]
      %v4006 = vld [vmem:[%s4004 + $0x4] sm:$0xf]
      %v4007 = vld [vmem:[%s4004 + $0x8] sm:$0xf]
      %v4008 = vld [vmem:[%s4004 + $0xc] sm:$0xf]
      %v4013 = vunpack.c.l.b16 %v4005
      %v4014 = vunpack.c.l.b16 %v4006
      %v4015 = vunpack.c.l.b16 %v4007
      %v4016 = vunpack.c.l.b16 %v4008
      %v4017 = vpack.c.b16 %v4014, %v4013
      %v4018 = vpack.c.b16 %v4016, %v4015
      %v4022 = vsel %vm472, %v3986, 0
      %v4025 = vsel %vm472, %v3987, 0
      %v4028 = vsel %vm472, %v3988, 0
      %v4031 = vsel %vm472, %v3989, 0
      %v4034 = vsel %vm472, %v3990, 0
      %v4037 = vsel %vm472, %v3991, 0
      %v4040 = vsel %vm472, %v3992, 0
      %v4043 = vsel %vm472, %v3993, 0
      %v4046 = vsel %vm472, %v3994, 0
      %v4049 = vsel %vm472, %v3995, 0
      %v4052 = vsel %vm472, %v3996, 0
      %v4055 = vsel %vm472, %v3997, 0
      %v4058 = vsel %vm472, %v3998, 0
      %v4061 = vsel %vm472, %v3999, 0
      %v4064 = vsel %vm472, %v4000, 0
      %v4067 = vsel %vm472, %v4001, 0
      %v4070 = vsel %vm472, %v4002, 0
      %v4073 = vsel %vm472, %v4003, 0
      %4075 = vmatpush.bf16.msra.mxu0 0
      %4076 = vmatpush.bf16.msra.mxu0 0
      %4077 = vmatpush.bf16.msra.mxu0 0
      %4078 = vmatpush.bf16.msra.mxu0 0
      %4079 = vmatpush.bf16.msra.mxu0 0
      %4080 = vmatpush.bf16.msra.mxu0 0
      %4081 = vmatpush.bf16.msra.mxu0 %v4018
      %4082 = vmatpush.bf16.msra.mxu0 %v4017
      %4083 = vmatmul.bf16.gmra.mxu0 %v4022
      %v4084 = vpop.f32.mrf.mxu0
      %v4085 = vadd.f32 0.0, %v4084
      %v4086 = vpop.f32.mrf.mxu0
      %v4087 = vadd.f32 0.0, %v4086
      %4088 = vmatmul.bf16.gmra.mxu0 %v4025
      %v4089 = vpop.f32.mrf.mxu0
      %v4090 = vadd.f32 0.0, %v4089
      %v4091 = vpop.f32.mrf.mxu0
      %v4092 = vadd.f32 0.0, %v4091
      %4093 = vmatmul.bf16.gmra.mxu0 %v4028
      %v4094 = vpop.f32.mrf.mxu0
      %v4095 = vadd.f32 0.0, %v4094
      %v4096 = vpop.f32.mrf.mxu0
      %v4097 = vadd.f32 0.0, %v4096
      %4098 = vmatmul.bf16.gmra.mxu0 %v4031
      %v4099 = vpop.f32.mrf.mxu0
      %v4100 = vadd.f32 0.0, %v4099
      %v4101 = vpop.f32.mrf.mxu0
      %v4102 = vadd.f32 0.0, %v4101
      %4103 = vmatmul.bf16.gmra.mxu0 %v4034
      %v4104 = vpop.f32.mrf.mxu0
      %v4105 = vadd.f32 0.0, %v4104
      %v4106 = vpop.f32.mrf.mxu0
      %v4107 = vadd.f32 0.0, %v4106
      %4108 = vmatmul.bf16.gmra.mxu0 %v4037
      %v4109 = vpop.f32.mrf.mxu0
      %v4110 = vadd.f32 0.0, %v4109
      %v4111 = vpop.f32.mrf.mxu0
      %v4112 = vadd.f32 0.0, %v4111
      %4113 = vmatmul.bf16.gmra.mxu0 %v4040
      %v4114 = vpop.f32.mrf.mxu0
      %v4115 = vadd.f32 0.0, %v4114
      %v4116 = vpop.f32.mrf.mxu0
      %v4117 = vadd.f32 0.0, %v4116
      %4118 = vmatmul.bf16.gmra.mxu0 %v4043
      %v4119 = vpop.f32.mrf.mxu0
      %v4120 = vadd.f32 0.0, %v4119
      %v4121 = vpop.f32.mrf.mxu0
      %v4122 = vadd.f32 0.0, %v4121
      %4123 = vmatmul.bf16.gmra.mxu0 %v4046
      %v4124 = vpop.f32.mrf.mxu0
      %v4125 = vadd.f32 0.0, %v4124
      %v4126 = vpop.f32.mrf.mxu0
      %v4127 = vadd.f32 0.0, %v4126
      %4128 = vmatmul.bf16.gmra.mxu0 %v4049
      %v4129 = vpop.f32.mrf.mxu0
      %v4130 = vadd.f32 0.0, %v4129
      %v4131 = vpop.f32.mrf.mxu0
      %v4132 = vadd.f32 0.0, %v4131
      %4133 = vmatmul.bf16.gmra.mxu0 %v4052
      %v4134 = vpop.f32.mrf.mxu0
      %v4135 = vadd.f32 0.0, %v4134
      %v4136 = vpop.f32.mrf.mxu0
      %v4137 = vadd.f32 0.0, %v4136
      %4138 = vmatmul.bf16.gmra.mxu0 %v4055
      %v4139 = vpop.f32.mrf.mxu0
      %v4140 = vadd.f32 0.0, %v4139
      %v4141 = vpop.f32.mrf.mxu0
      %v4142 = vadd.f32 0.0, %v4141
      %4143 = vmatmul.bf16.gmra.mxu0 %v4058
      %v4144 = vpop.f32.mrf.mxu0
      %v4145 = vadd.f32 0.0, %v4144
      %v4146 = vpop.f32.mrf.mxu0
      %v4147 = vadd.f32 0.0, %v4146
      %4148 = vmatmul.bf16.gmra.mxu0 %v4061
      %v4149 = vpop.f32.mrf.mxu0
      %v4150 = vadd.f32 0.0, %v4149
      %v4151 = vpop.f32.mrf.mxu0
      %v4152 = vadd.f32 0.0, %v4151
      %4153 = vmatmul.bf16.gmra.mxu0 %v4064
      %v4154 = vpop.f32.mrf.mxu0
      %v4155 = vadd.f32 0.0, %v4154
      %v4156 = vpop.f32.mrf.mxu0
      %v4157 = vadd.f32 0.0, %v4156
      %4158 = vmatmul.bf16.gmra.mxu0 %v4067
      %v4159 = vpop.f32.mrf.mxu0
      %v4160 = vadd.f32 0.0, %v4159
      %v4161 = vpop.f32.mrf.mxu0
      %v4162 = vadd.f32 0.0, %v4161
      %4163 = vmatmul.bf16.gmra.mxu0 %v4070
      %v4164 = vpop.f32.mrf.mxu0
      %v4165 = vadd.f32 0.0, %v4164
      %v4166 = vpop.f32.mrf.mxu0
      %v4167 = vadd.f32 0.0, %v4166
      %4168 = vmatmul.bf16.gmra.mxu0 %v4073
      %v4169 = vpop.f32.mrf.mxu0
      %v4170 = vadd.f32 0.0, %v4169
      %v4171 = vpop.f32.mrf.mxu0
      %v4172 = vadd.f32 0.0, %v4171
      %4173 = vdwg.mxu0
      %v4174 = vadd.f32 %v3914, %v4085
      %v4175 = vadd.f32 %v3915, %v4087
      %v4176 = vadd.f32 %v3916, %v4090
      %v4177 = vadd.f32 %v3917, %v4092
      %v4178 = vadd.f32 %v3918, %v4095
      %v4179 = vadd.f32 %v3919, %v4097
      %v4180 = vadd.f32 %v3920, %v4100
      %v4181 = vadd.f32 %v3921, %v4102
      %v4182 = vadd.f32 %v3922, %v4105
      %v4183 = vadd.f32 %v3923, %v4107
      %v4184 = vadd.f32 %v3924, %v4110
      %v4185 = vadd.f32 %v3925, %v4112
      %v4186 = vadd.f32 %v3926, %v4115
      %v4187 = vadd.f32 %v3927, %v4117
      %v4188 = vadd.f32 %v3928, %v4120
      %v4189 = vadd.f32 %v3929, %v4122
      %v4190 = vadd.f32 %v3930, %v4125
      %v4191 = vadd.f32 %v3931, %v4127
      %v4192 = vadd.f32 %v3932, %v4130
      %v4193 = vadd.f32 %v3933, %v4132
      %v4194 = vadd.f32 %v3934, %v4135
      %v4195 = vadd.f32 %v3935, %v4137
      %v4196 = vadd.f32 %v3936, %v4140
      %v4197 = vadd.f32 %v3937, %v4142
      %v4198 = vadd.f32 %v3938, %v4145
      %v4199 = vadd.f32 %v3939, %v4147
      %v4200 = vadd.f32 %v3940, %v4150
      %v4201 = vadd.f32 %v3941, %v4152
      %v4202 = vadd.f32 %v3942, %v4155
      %v4203 = vadd.f32 %v3943, %v4157
      %v4204 = vadd.f32 %v3944, %v4160
      %v4205 = vadd.f32 %v3945, %v4162
      %v4206 = vadd.f32 %v3946, %v4165
      %v4207 = vadd.f32 %v3947, %v4167
      %v4208 = vadd.f32 %v3948, %v4170
      %v4209 = vadd.f32 %v3949, %v4172
      %v4210 = vld [vmem:[#allocation2 + $0x19] sm:$0xff]
      %v4211 = vld [vmem:[#allocation2 + $0x21] sm:$0xff]
      %v4212 = vld [vmem:[#allocation2 + $0x29] sm:$0xff]
      %v4213 = vld [vmem:[#allocation2 + $0x31] sm:$0xff]
      %v4214 = vld [vmem:[#allocation2 + $0x39] sm:$0xff]
      %v4215 = vld [vmem:[#allocation2 + $0x41] sm:$0xff]
      %v4216 = vld [vmem:[#allocation2 + $0x49] sm:$0xff]
      %v4217 = vld [vmem:[#allocation2 + $0x51] sm:$0xff]
      %v4218 = vld [vmem:[#allocation2 + $0x59] sm:$0xff]
      %v4219 = vld [vmem:[#allocation2 + $0x61] sm:$0xff]
      %v4220 = vld [vmem:[#allocation2 + $0x69] sm:$0xff]
      %v4221 = vld [vmem:[#allocation2 + $0x71] sm:$0xff]
      %v4222 = vld [vmem:[#allocation2 + $0x79] sm:$0xff]
      %v4223 = vld [vmem:[#allocation2 + $0x81] sm:$0xff]
      %v4224 = vld [vmem:[#allocation2 + $0x89] sm:$0xff]
      %v4225 = vld [vmem:[#allocation2 + $0x91] sm:$0xff]
      %v4226 = vld [vmem:[#allocation2 + $0x99] sm:$0xff]
      %v4227 = vld [vmem:[#allocation2 + $0xa1] sm:$0xff]
      %v4228 = vld [vmem:[#allocation2 + $0xa9] sm:$0xff]
      %v4229 = vld [vmem:[#allocation2 + $0xb1] sm:$0xff]
      %v4230 = vld [vmem:[#allocation2 + $0xb9] sm:$0xff]
      %v4231 = vld [vmem:[#allocation2 + $0xc1] sm:$0xff]
      %v4232 = vld [vmem:[#allocation2 + $0xc9] sm:$0xff]
      %v4233 = vld [vmem:[#allocation2 + $0xd1] sm:$0xff]
      %v4234 = vld [vmem:[#allocation2 + $0xd9] sm:$0xff]
      %v4235 = vld [vmem:[#allocation2 + $0xe1] sm:$0xff]
      %v4236 = vld [vmem:[#allocation2 + $0xe9] sm:$0xff]
      %v4237 = vld [vmem:[#allocation2 + $0xf1] sm:$0xff]
      %v4238 = vld [vmem:[#allocation2 + $0xf9] sm:$0xff]
      %v4239 = vld [vmem:[#allocation2 + $0x101] sm:$0xff]
      %v4240 = vld [vmem:[#allocation2 + $0x109] sm:$0xff]
      %v4241 = vld [vmem:[#allocation2 + $0x111] sm:$0xff]
      %v4242 = vld [vmem:[#allocation2 + $0x119] sm:$0xff]
      %v4243 = vld [vmem:[#allocation2 + $0x121] sm:$0xff]
      %v4244 = vld [vmem:[#allocation2 + $0x129] sm:$0xff]
      %v4245 = vld [vmem:[#allocation2 + $0x131] sm:$0xff]
      %v4246 = vpack.c.bf16 %v4211, %v4210
      %v4247 = vpack.c.bf16 %v4213, %v4212
      %v4248 = vpack.c.bf16 %v4215, %v4214
      %v4249 = vpack.c.bf16 %v4217, %v4216
      %v4250 = vpack.c.bf16 %v4219, %v4218
      %v4251 = vpack.c.bf16 %v4221, %v4220
      %v4252 = vpack.c.bf16 %v4223, %v4222
      %v4253 = vpack.c.bf16 %v4225, %v4224
      %v4254 = vpack.c.bf16 %v4227, %v4226
      %v4255 = vpack.c.bf16 %v4229, %v4228
      %v4256 = vpack.c.bf16 %v4231, %v4230
      %v4257 = vpack.c.bf16 %v4233, %v4232
      %v4258 = vpack.c.bf16 %v4235, %v4234
      %v4259 = vpack.c.bf16 %v4237, %v4236
      %v4260 = vpack.c.bf16 %v4239, %v4238
      %v4261 = vpack.c.bf16 %v4241, %v4240
      %v4262 = vpack.c.bf16 %v4243, %v4242
      %v4263 = vpack.c.bf16 %v4245, %v4244
      %s4264 = scalar_lea.vmem %s3, 80
      %v4265 = vld [vmem:[%s4264] sm:$0xf]
      %v4266 = vld [vmem:[%s4264 + $0x4] sm:$0xf]
      %v4267 = vld [vmem:[%s4264 + $0x8] sm:$0xf]
      %v4268 = vld [vmem:[%s4264 + $0xc] sm:$0xf]
      %v4273 = vunpack.c.l.b16 %v4265
      %v4274 = vunpack.c.l.b16 %v4266
      %v4275 = vunpack.c.l.b16 %v4267
      %v4276 = vunpack.c.l.b16 %v4268
      %v4277 = vpack.c.b16 %v4274, %v4273
      %v4278 = vpack.c.b16 %v4276, %v4275
      %v4282 = vsel %vm472, %v4246, 0
      %v4285 = vsel %vm472, %v4247, 0
      %v4288 = vsel %vm472, %v4248, 0
      %v4291 = vsel %vm472, %v4249, 0
      %v4294 = vsel %vm472, %v4250, 0
      %v4297 = vsel %vm472, %v4251, 0
      %v4300 = vsel %vm472, %v4252, 0
      %v4303 = vsel %vm472, %v4253, 0
      %v4306 = vsel %vm472, %v4254, 0
      %v4309 = vsel %vm472, %v4255, 0
      %v4312 = vsel %vm472, %v4256, 0
      %v4315 = vsel %vm472, %v4257, 0
      %v4318 = vsel %vm472, %v4258, 0
      %v4321 = vsel %vm472, %v4259, 0
      %v4324 = vsel %vm472, %v4260, 0
      %v4327 = vsel %vm472, %v4261, 0
      %v4330 = vsel %vm472, %v4262, 0
      %v4333 = vsel %vm472, %v4263, 0
      %4335 = vmatpush.bf16.msra.mxu0 0
      %4336 = vmatpush.bf16.msra.mxu0 0
      %4337 = vmatpush.bf16.msra.mxu0 0
      %4338 = vmatpush.bf16.msra.mxu0 0
      %4339 = vmatpush.bf16.msra.mxu0 0
      %4340 = vmatpush.bf16.msra.mxu0 0
      %4341 = vmatpush.bf16.msra.mxu0 %v4278
      %4342 = vmatpush.bf16.msra.mxu0 %v4277
      %4343 = vmatmul.bf16.gmra.mxu0 %v4282
      %v4344 = vpop.f32.mrf.mxu0
      %v4345 = vadd.f32 0.0, %v4344
      %v4346 = vpop.f32.mrf.mxu0
      %v4347 = vadd.f32 0.0, %v4346
      %4348 = vmatmul.bf16.gmra.mxu0 %v4285
      %v4349 = vpop.f32.mrf.mxu0
      %v4350 = vadd.f32 0.0, %v4349
      %v4351 = vpop.f32.mrf.mxu0
      %v4352 = vadd.f32 0.0, %v4351
      %4353 = vmatmul.bf16.gmra.mxu0 %v4288
      %v4354 = vpop.f32.mrf.mxu0
      %v4355 = vadd.f32 0.0, %v4354
      %v4356 = vpop.f32.mrf.mxu0
      %v4357 = vadd.f32 0.0, %v4356
      %4358 = vmatmul.bf16.gmra.mxu0 %v4291
      %v4359 = vpop.f32.mrf.mxu0
      %v4360 = vadd.f32 0.0, %v4359
      %v4361 = vpop.f32.mrf.mxu0
      %v4362 = vadd.f32 0.0, %v4361
      %4363 = vmatmul.bf16.gmra.mxu0 %v4294
      %v4364 = vpop.f32.mrf.mxu0
      %v4365 = vadd.f32 0.0, %v4364
      %v4366 = vpop.f32.mrf.mxu0
      %v4367 = vadd.f32 0.0, %v4366
      %4368 = vmatmul.bf16.gmra.mxu0 %v4297
      %v4369 = vpop.f32.mrf.mxu0
      %v4370 = vadd.f32 0.0, %v4369
      %v4371 = vpop.f32.mrf.mxu0
      %v4372 = vadd.f32 0.0, %v4371
      %4373 = vmatmul.bf16.gmra.mxu0 %v4300
      %v4374 = vpop.f32.mrf.mxu0
      %v4375 = vadd.f32 0.0, %v4374
      %v4376 = vpop.f32.mrf.mxu0
      %v4377 = vadd.f32 0.0, %v4376
      %4378 = vmatmul.bf16.gmra.mxu0 %v4303
      %v4379 = vpop.f32.mrf.mxu0
      %v4380 = vadd.f32 0.0, %v4379
      %v4381 = vpop.f32.mrf.mxu0
      %v4382 = vadd.f32 0.0, %v4381
      %4383 = vmatmul.bf16.gmra.mxu0 %v4306
      %v4384 = vpop.f32.mrf.mxu0
      %v4385 = vadd.f32 0.0, %v4384
      %v4386 = vpop.f32.mrf.mxu0
      %v4387 = vadd.f32 0.0, %v4386
      %4388 = vmatmul.bf16.gmra.mxu0 %v4309
      %v4389 = vpop.f32.mrf.mxu0
      %v4390 = vadd.f32 0.0, %v4389
      %v4391 = vpop.f32.mrf.mxu0
      %v4392 = vadd.f32 0.0, %v4391
      %4393 = vmatmul.bf16.gmra.mxu0 %v4312
      %v4394 = vpop.f32.mrf.mxu0
      %v4395 = vadd.f32 0.0, %v4394
      %v4396 = vpop.f32.mrf.mxu0
      %v4397 = vadd.f32 0.0, %v4396
      %4398 = vmatmul.bf16.gmra.mxu0 %v4315
      %v4399 = vpop.f32.mrf.mxu0
      %v4400 = vadd.f32 0.0, %v4399
      %v4401 = vpop.f32.mrf.mxu0
      %v4402 = vadd.f32 0.0, %v4401
      %4403 = vmatmul.bf16.gmra.mxu0 %v4318
      %v4404 = vpop.f32.mrf.mxu0
      %v4405 = vadd.f32 0.0, %v4404
      %v4406 = vpop.f32.mrf.mxu0
      %v4407 = vadd.f32 0.0, %v4406
      %4408 = vmatmul.bf16.gmra.mxu0 %v4321
      %v4409 = vpop.f32.mrf.mxu0
      %v4410 = vadd.f32 0.0, %v4409
      %v4411 = vpop.f32.mrf.mxu0
      %v4412 = vadd.f32 0.0, %v4411
      %4413 = vmatmul.bf16.gmra.mxu0 %v4324
      %v4414 = vpop.f32.mrf.mxu0
      %v4415 = vadd.f32 0.0, %v4414
      %v4416 = vpop.f32.mrf.mxu0
      %v4417 = vadd.f32 0.0, %v4416
      %4418 = vmatmul.bf16.gmra.mxu0 %v4327
      %v4419 = vpop.f32.mrf.mxu0
      %v4420 = vadd.f32 0.0, %v4419
      %v4421 = vpop.f32.mrf.mxu0
      %v4422 = vadd.f32 0.0, %v4421
      %4423 = vmatmul.bf16.gmra.mxu0 %v4330
      %v4424 = vpop.f32.mrf.mxu0
      %v4425 = vadd.f32 0.0, %v4424
      %v4426 = vpop.f32.mrf.mxu0
      %v4427 = vadd.f32 0.0, %v4426
      %4428 = vmatmul.bf16.gmra.mxu0 %v4333
      %v4429 = vpop.f32.mrf.mxu0
      %v4430 = vadd.f32 0.0, %v4429
      %v4431 = vpop.f32.mrf.mxu0
      %v4432 = vadd.f32 0.0, %v4431
      %4433 = vdwg.mxu0
      %v4434 = vadd.f32 %v4174, %v4345
      %v4435 = vadd.f32 %v4175, %v4347
      %v4436 = vadd.f32 %v4176, %v4350
      %v4437 = vadd.f32 %v4177, %v4352
      %v4438 = vadd.f32 %v4178, %v4355
      %v4439 = vadd.f32 %v4179, %v4357
      %v4440 = vadd.f32 %v4180, %v4360
      %v4441 = vadd.f32 %v4181, %v4362
      %v4442 = vadd.f32 %v4182, %v4365
      %v4443 = vadd.f32 %v4183, %v4367
      %v4444 = vadd.f32 %v4184, %v4370
      %v4445 = vadd.f32 %v4185, %v4372
      %v4446 = vadd.f32 %v4186, %v4375
      %v4447 = vadd.f32 %v4187, %v4377
      %v4448 = vadd.f32 %v4188, %v4380
      %v4449 = vadd.f32 %v4189, %v4382
      %v4450 = vadd.f32 %v4190, %v4385
      %v4451 = vadd.f32 %v4191, %v4387
      %v4452 = vadd.f32 %v4192, %v4390
      %v4453 = vadd.f32 %v4193, %v4392
      %v4454 = vadd.f32 %v4194, %v4395
      %v4455 = vadd.f32 %v4195, %v4397
      %v4456 = vadd.f32 %v4196, %v4400
      %v4457 = vadd.f32 %v4197, %v4402
      %v4458 = vadd.f32 %v4198, %v4405
      %v4459 = vadd.f32 %v4199, %v4407
      %v4460 = vadd.f32 %v4200, %v4410
      %v4461 = vadd.f32 %v4201, %v4412
      %v4462 = vadd.f32 %v4202, %v4415
      %v4463 = vadd.f32 %v4203, %v4417
      %v4464 = vadd.f32 %v4204, %v4420
      %v4465 = vadd.f32 %v4205, %v4422
      %v4466 = vadd.f32 %v4206, %v4425
      %v4467 = vadd.f32 %v4207, %v4427
      %v4468 = vadd.f32 %v4208, %v4430
      %v4469 = vadd.f32 %v4209, %v4432
      %v4470 = vld [vmem:[#allocation2 + $0x29] sm:$0xff]
      %v4471 = vld [vmem:[#allocation2 + $0x31] sm:$0xff]
      %v4472 = vld [vmem:[#allocation2 + $0x39] sm:$0xff]
      %v4473 = vld [vmem:[#allocation2 + $0x41] sm:$0xff]
      %v4474 = vld [vmem:[#allocation2 + $0x49] sm:$0xff]
      %v4475 = vld [vmem:[#allocation2 + $0x51] sm:$0xff]
      %v4476 = vld [vmem:[#allocation2 + $0x59] sm:$0xff]
      %v4477 = vld [vmem:[#allocation2 + $0x61] sm:$0xff]
      %v4478 = vld [vmem:[#allocation2 + $0x69] sm:$0xff]
      %v4479 = vld [vmem:[#allocation2 + $0x71] sm:$0xff]
      %v4480 = vld [vmem:[#allocation2 + $0x79] sm:$0xff]
      %v4481 = vld [vmem:[#allocation2 + $0x81] sm:$0xff]
      %v4482 = vld [vmem:[#allocation2 + $0x89] sm:$0xff]
      %v4483 = vld [vmem:[#allocation2 + $0x91] sm:$0xff]
      %v4484 = vld [vmem:[#allocation2 + $0x99] sm:$0xff]
      %v4485 = vld [vmem:[#allocation2 + $0xa1] sm:$0xff]
      %v4486 = vld [vmem:[#allocation2 + $0xa9] sm:$0xff]
      %v4487 = vld [vmem:[#allocation2 + $0xb1] sm:$0xff]
      %v4488 = vld [vmem:[#allocation2 + $0xb9] sm:$0xff]
      %v4489 = vld [vmem:[#allocation2 + $0xc1] sm:$0xff]
      %v4490 = vld [vmem:[#allocation2 + $0xc9] sm:$0xff]
      %v4491 = vld [vmem:[#allocation2 + $0xd1] sm:$0xff]
      %v4492 = vld [vmem:[#allocation2 + $0xd9] sm:$0xff]
      %v4493 = vld [vmem:[#allocation2 + $0xe1] sm:$0xff]
      %v4494 = vld [vmem:[#allocation2 + $0xe9] sm:$0xff]
      %v4495 = vld [vmem:[#allocation2 + $0xf1] sm:$0xff]
      %v4496 = vld [vmem:[#allocation2 + $0xf9] sm:$0xff]
      %v4497 = vld [vmem:[#allocation2 + $0x101] sm:$0xff]
      %v4498 = vld [vmem:[#allocation2 + $0x109] sm:$0xff]
      %v4499 = vld [vmem:[#allocation2 + $0x111] sm:$0xff]
      %v4500 = vld [vmem:[#allocation2 + $0x119] sm:$0xff]
      %v4501 = vld [vmem:[#allocation2 + $0x121] sm:$0xff]
      %v4502 = vld [vmem:[#allocation2 + $0x129] sm:$0xff]
      %v4503 = vld [vmem:[#allocation2 + $0x131] sm:$0xff]
      %v4504 = vld [vmem:[#allocation2 + $0x139] sm:$0xff]
      %v4505 = vld [vmem:[#allocation2 + $0x141] sm:$0xff]
      %v4506 = vpack.c.bf16 %v4471, %v4470
      %v4507 = vpack.c.bf16 %v4473, %v4472
      %v4508 = vpack.c.bf16 %v4475, %v4474
      %v4509 = vpack.c.bf16 %v4477, %v4476
      %v4510 = vpack.c.bf16 %v4479, %v4478
      %v4511 = vpack.c.bf16 %v4481, %v4480
      %v4512 = vpack.c.bf16 %v4483, %v4482
      %v4513 = vpack.c.bf16 %v4485, %v4484
      %v4514 = vpack.c.bf16 %v4487, %v4486
      %v4515 = vpack.c.bf16 %v4489, %v4488
      %v4516 = vpack.c.bf16 %v4491, %v4490
      %v4517 = vpack.c.bf16 %v4493, %v4492
      %v4518 = vpack.c.bf16 %v4495, %v4494
      %v4519 = vpack.c.bf16 %v4497, %v4496
      %v4520 = vpack.c.bf16 %v4499, %v4498
      %v4521 = vpack.c.bf16 %v4501, %v4500
      %v4522 = vpack.c.bf16 %v4503, %v4502
      %v4523 = vpack.c.bf16 %v4505, %v4504
      %s4524 = scalar_lea.vmem %s3, 96
      %v4525 = vld [vmem:[%s4524] sm:$0xf]
      %v4526 = vld [vmem:[%s4524 + $0x4] sm:$0xf]
      %v4527 = vld [vmem:[%s4524 + $0x8] sm:$0xf]
      %v4528 = vld [vmem:[%s4524 + $0xc] sm:$0xf]
      %v4533 = vunpack.c.l.b16 %v4525
      %v4534 = vunpack.c.l.b16 %v4526
      %v4535 = vunpack.c.l.b16 %v4527
      %v4536 = vunpack.c.l.b16 %v4528
      %v4537 = vpack.c.b16 %v4534, %v4533
      %v4538 = vpack.c.b16 %v4536, %v4535
      %v4542 = vsel %vm472, %v4506, 0
      %v4545 = vsel %vm472, %v4507, 0
      %v4548 = vsel %vm472, %v4508, 0
      %v4551 = vsel %vm472, %v4509, 0
      %v4554 = vsel %vm472, %v4510, 0
      %v4557 = vsel %vm472, %v4511, 0
      %v4560 = vsel %vm472, %v4512, 0
      %v4563 = vsel %vm472, %v4513, 0
      %v4566 = vsel %vm472, %v4514, 0
      %v4569 = vsel %vm472, %v4515, 0
      %v4572 = vsel %vm472, %v4516, 0
      %v4575 = vsel %vm472, %v4517, 0
      %v4578 = vsel %vm472, %v4518, 0
      %v4581 = vsel %vm472, %v4519, 0
      %v4584 = vsel %vm472, %v4520, 0
      %v4587 = vsel %vm472, %v4521, 0
      %v4590 = vsel %vm472, %v4522, 0
      %v4593 = vsel %vm472, %v4523, 0
      %4595 = vmatpush.bf16.msra.mxu0 0
      %4596 = vmatpush.bf16.msra.mxu0 0
      %4597 = vmatpush.bf16.msra.mxu0 0
      %4598 = vmatpush.bf16.msra.mxu0 0
      %4599 = vmatpush.bf16.msra.mxu0 0
      %4600 = vmatpush.bf16.msra.mxu0 0
      %4601 = vmatpush.bf16.msra.mxu0 %v4538
      %4602 = vmatpush.bf16.msra.mxu0 %v4537
      %4603 = vmatmul.bf16.gmra.mxu0 %v4542
      %v4604 = vpop.f32.mrf.mxu0
      %v4605 = vadd.f32 0.0, %v4604
      %v4606 = vpop.f32.mrf.mxu0
      %v4607 = vadd.f32 0.0, %v4606
      %4608 = vmatmul.bf16.gmra.mxu0 %v4545
      %v4609 = vpop.f32.mrf.mxu0
      %v4610 = vadd.f32 0.0, %v4609
      %v4611 = vpop.f32.mrf.mxu0
      %v4612 = vadd.f32 0.0, %v4611
      %4613 = vmatmul.bf16.gmra.mxu0 %v4548
      %v4614 = vpop.f32.mrf.mxu0
      %v4615 = vadd.f32 0.0, %v4614
      %v4616 = vpop.f32.mrf.mxu0
      %v4617 = vadd.f32 0.0, %v4616
      %4618 = vmatmul.bf16.gmra.mxu0 %v4551
      %v4619 = vpop.f32.mrf.mxu0
      %v4620 = vadd.f32 0.0, %v4619
      %v4621 = vpop.f32.mrf.mxu0
      %v4622 = vadd.f32 0.0, %v4621
      %4623 = vmatmul.bf16.gmra.mxu0 %v4554
      %v4624 = vpop.f32.mrf.mxu0
      %v4625 = vadd.f32 0.0, %v4624
      %v4626 = vpop.f32.mrf.mxu0
      %v4627 = vadd.f32 0.0, %v4626
      %4628 = vmatmul.bf16.gmra.mxu0 %v4557
      %v4629 = vpop.f32.mrf.mxu0
      %v4630 = vadd.f32 0.0, %v4629
      %v4631 = vpop.f32.mrf.mxu0
      %v4632 = vadd.f32 0.0, %v4631
      %4633 = vmatmul.bf16.gmra.mxu0 %v4560
      %v4634 = vpop.f32.mrf.mxu0
      %v4635 = vadd.f32 0.0, %v4634
      %v4636 = vpop.f32.mrf.mxu0
      %v4637 = vadd.f32 0.0, %v4636
      %4638 = vmatmul.bf16.gmra.mxu0 %v4563
      %v4639 = vpop.f32.mrf.mxu0
      %v4640 = vadd.f32 0.0, %v4639
      %v4641 = vpop.f32.mrf.mxu0
      %v4642 = vadd.f32 0.0, %v4641
      %4643 = vmatmul.bf16.gmra.mxu0 %v4566
      %v4644 = vpop.f32.mrf.mxu0
      %v4645 = vadd.f32 0.0, %v4644
      %v4646 = vpop.f32.mrf.mxu0
      %v4647 = vadd.f32 0.0, %v4646
      %4648 = vmatmul.bf16.gmra.mxu0 %v4569
      %v4649 = vpop.f32.mrf.mxu0
      %v4650 = vadd.f32 0.0, %v4649
      %v4651 = vpop.f32.mrf.mxu0
      %v4652 = vadd.f32 0.0, %v4651
      %4653 = vmatmul.bf16.gmra.mxu0 %v4572
      %v4654 = vpop.f32.mrf.mxu0
      %v4655 = vadd.f32 0.0, %v4654
      %v4656 = vpop.f32.mrf.mxu0
      %v4657 = vadd.f32 0.0, %v4656
      %4658 = vmatmul.bf16.gmra.mxu0 %v4575
      %v4659 = vpop.f32.mrf.mxu0
      %v4660 = vadd.f32 0.0, %v4659
      %v4661 = vpop.f32.mrf.mxu0
      %v4662 = vadd.f32 0.0, %v4661
      %4663 = vmatmul.bf16.gmra.mxu0 %v4578
      %v4664 = vpop.f32.mrf.mxu0
      %v4665 = vadd.f32 0.0, %v4664
      %v4666 = vpop.f32.mrf.mxu0
      %v4667 = vadd.f32 0.0, %v4666
      %4668 = vmatmul.bf16.gmra.mxu0 %v4581
      %v4669 = vpop.f32.mrf.mxu0
      %v4670 = vadd.f32 0.0, %v4669
      %v4671 = vpop.f32.mrf.mxu0
      %v4672 = vadd.f32 0.0, %v4671
      %4673 = vmatmul.bf16.gmra.mxu0 %v4584
      %v4674 = vpop.f32.mrf.mxu0
      %v4675 = vadd.f32 0.0, %v4674
      %v4676 = vpop.f32.mrf.mxu0
      %v4677 = vadd.f32 0.0, %v4676
      %4678 = vmatmul.bf16.gmra.mxu0 %v4587
      %v4679 = vpop.f32.mrf.mxu0
      %v4680 = vadd.f32 0.0, %v4679
      %v4681 = vpop.f32.mrf.mxu0
      %v4682 = vadd.f32 0.0, %v4681
      %4683 = vmatmul.bf16.gmra.mxu0 %v4590
      %v4684 = vpop.f32.mrf.mxu0
      %v4685 = vadd.f32 0.0, %v4684
      %v4686 = vpop.f32.mrf.mxu0
      %v4687 = vadd.f32 0.0, %v4686
      %4688 = vmatmul.bf16.gmra.mxu0 %v4593
      %v4689 = vpop.f32.mrf.mxu0
      %v4690 = vadd.f32 0.0, %v4689
      %v4691 = vpop.f32.mrf.mxu0
      %v4692 = vadd.f32 0.0, %v4691
      %4693 = vdwg.mxu0
      %v4694 = vadd.f32 %v4434, %v4605
      %v4695 = vadd.f32 %v4435, %v4607
      %v4696 = vadd.f32 %v4436, %v4610
      %v4697 = vadd.f32 %v4437, %v4612
      %v4698 = vadd.f32 %v4438, %v4615
      %v4699 = vadd.f32 %v4439, %v4617
      %v4700 = vadd.f32 %v4440, %v4620
      %v4701 = vadd.f32 %v4441, %v4622
      %v4702 = vadd.f32 %v4442, %v4625
      %v4703 = vadd.f32 %v4443, %v4627
      %v4704 = vadd.f32 %v4444, %v4630
      %v4705 = vadd.f32 %v4445, %v4632
      %v4706 = vadd.f32 %v4446, %v4635
      %v4707 = vadd.f32 %v4447, %v4637
      %v4708 = vadd.f32 %v4448, %v4640
      %v4709 = vadd.f32 %v4449, %v4642
      %v4710 = vadd.f32 %v4450, %v4645
      %v4711 = vadd.f32 %v4451, %v4647
      %v4712 = vadd.f32 %v4452, %v4650
      %v4713 = vadd.f32 %v4453, %v4652
      %v4714 = vadd.f32 %v4454, %v4655
      %v4715 = vadd.f32 %v4455, %v4657
      %v4716 = vadd.f32 %v4456, %v4660
      %v4717 = vadd.f32 %v4457, %v4662
      %v4718 = vadd.f32 %v4458, %v4665
      %v4719 = vadd.f32 %v4459, %v4667
      %v4720 = vadd.f32 %v4460, %v4670
      %v4721 = vadd.f32 %v4461, %v4672
      %v4722 = vadd.f32 %v4462, %v4675
      %v4723 = vadd.f32 %v4463, %v4677
      %v4724 = vadd.f32 %v4464, %v4680
      %v4725 = vadd.f32 %v4465, %v4682
      %v4726 = vadd.f32 %v4466, %v4685
      %v4727 = vadd.f32 %v4467, %v4687
      %v4728 = vadd.f32 %v4468, %v4690
      %v4729 = vadd.f32 %v4469, %v4692
      %v4730 = vld [vmem:[#allocation2 + $0x2a] sm:$0xff]
      %v4731 = vld [vmem:[#allocation2 + $0x32] sm:$0xff]
      %v4732 = vld [vmem:[#allocation2 + $0x3a] sm:$0xff]
      %v4733 = vld [vmem:[#allocation2 + $0x42] sm:$0xff]
      %v4734 = vld [vmem:[#allocation2 + $0x4a] sm:$0xff]
      %v4735 = vld [vmem:[#allocation2 + $0x52] sm:$0xff]
      %v4736 = vld [vmem:[#allocation2 + $0x5a] sm:$0xff]
      %v4737 = vld [vmem:[#allocation2 + $0x62] sm:$0xff]
      %v4738 = vld [vmem:[#allocation2 + $0x6a] sm:$0xff]
      %v4739 = vld [vmem:[#allocation2 + $0x72] sm:$0xff]
      %v4740 = vld [vmem:[#allocation2 + $0x7a] sm:$0xff]
      %v4741 = vld [vmem:[#allocation2 + $0x82] sm:$0xff]
      %v4742 = vld [vmem:[#allocation2 + $0x8a] sm:$0xff]
      %v4743 = vld [vmem:[#allocation2 + $0x92] sm:$0xff]
      %v4744 = vld [vmem:[#allocation2 + $0x9a] sm:$0xff]
      %v4745 = vld [vmem:[#allocation2 + $0xa2] sm:$0xff]
      %v4746 = vld [vmem:[#allocation2 + $0xaa] sm:$0xff]
      %v4747 = vld [vmem:[#allocation2 + $0xb2] sm:$0xff]
      %v4748 = vld [vmem:[#allocation2 + $0xba] sm:$0xff]
      %v4749 = vld [vmem:[#allocation2 + $0xc2] sm:$0xff]
      %v4750 = vld [vmem:[#allocation2 + $0xca] sm:$0xff]
      %v4751 = vld [vmem:[#allocation2 + $0xd2] sm:$0xff]
      %v4752 = vld [vmem:[#allocation2 + $0xda] sm:$0xff]
      %v4753 = vld [vmem:[#allocation2 + $0xe2] sm:$0xff]
      %v4754 = vld [vmem:[#allocation2 + $0xea] sm:$0xff]
      %v4755 = vld [vmem:[#allocation2 + $0xf2] sm:$0xff]
      %v4756 = vld [vmem:[#allocation2 + $0xfa] sm:$0xff]
      %v4757 = vld [vmem:[#allocation2 + $0x102] sm:$0xff]
      %v4758 = vld [vmem:[#allocation2 + $0x10a] sm:$0xff]
      %v4759 = vld [vmem:[#allocation2 + $0x112] sm:$0xff]
      %v4760 = vld [vmem:[#allocation2 + $0x11a] sm:$0xff]
      %v4761 = vld [vmem:[#allocation2 + $0x122] sm:$0xff]
      %v4762 = vld [vmem:[#allocation2 + $0x12a] sm:$0xff]
      %v4763 = vld [vmem:[#allocation2 + $0x132] sm:$0xff]
      %v4764 = vld [vmem:[#allocation2 + $0x13a] sm:$0xff]
      %v4765 = vld [vmem:[#allocation2 + $0x142] sm:$0xff]
      %v4766 = vpack.c.bf16 %v4731, %v4730
      %v4767 = vpack.c.bf16 %v4733, %v4732
      %v4768 = vpack.c.bf16 %v4735, %v4734
      %v4769 = vpack.c.bf16 %v4737, %v4736
      %v4770 = vpack.c.bf16 %v4739, %v4738
      %v4771 = vpack.c.bf16 %v4741, %v4740
      %v4772 = vpack.c.bf16 %v4743, %v4742
      %v4773 = vpack.c.bf16 %v4745, %v4744
      %v4774 = vpack.c.bf16 %v4747, %v4746
      %v4775 = vpack.c.bf16 %v4749, %v4748
      %v4776 = vpack.c.bf16 %v4751, %v4750
      %v4777 = vpack.c.bf16 %v4753, %v4752
      %v4778 = vpack.c.bf16 %v4755, %v4754
      %v4779 = vpack.c.bf16 %v4757, %v4756
      %v4780 = vpack.c.bf16 %v4759, %v4758
      %v4781 = vpack.c.bf16 %v4761, %v4760
      %v4782 = vpack.c.bf16 %v4763, %v4762
      %v4783 = vpack.c.bf16 %v4765, %v4764
      %s4784 = scalar_lea.vmem %s3, 112
      %v4785 = vld [vmem:[%s4784] sm:$0xf]
      %v4786 = vld [vmem:[%s4784 + $0x4] sm:$0xf]
      %v4787 = vld [vmem:[%s4784 + $0x8] sm:$0xf]
      %v4788 = vld [vmem:[%s4784 + $0xc] sm:$0xf]
      %v4793 = vunpack.c.l.b16 %v4785
      %v4794 = vunpack.c.l.b16 %v4786
      %v4795 = vunpack.c.l.b16 %v4787
      %v4796 = vunpack.c.l.b16 %v4788
      %v4797 = vpack.c.b16 %v4794, %v4793
      %v4798 = vpack.c.b16 %v4796, %v4795
      %v4802 = vsel %vm472, %v4766, 0
      %v4805 = vsel %vm472, %v4767, 0
      %v4808 = vsel %vm472, %v4768, 0
      %v4811 = vsel %vm472, %v4769, 0
      %v4814 = vsel %vm472, %v4770, 0
      %v4817 = vsel %vm472, %v4771, 0
      %v4820 = vsel %vm472, %v4772, 0
      %v4823 = vsel %vm472, %v4773, 0
      %v4826 = vsel %vm472, %v4774, 0
      %v4829 = vsel %vm472, %v4775, 0
      %v4832 = vsel %vm472, %v4776, 0
      %v4835 = vsel %vm472, %v4777, 0
      %v4838 = vsel %vm472, %v4778, 0
      %v4841 = vsel %vm472, %v4779, 0
      %v4844 = vsel %vm472, %v4780, 0
      %v4847 = vsel %vm472, %v4781, 0
      %v4850 = vsel %vm472, %v4782, 0
      %v4853 = vsel %vm472, %v4783, 0
      %4855 = vmatpush.bf16.msra.mxu0 0
      %4856 = vmatpush.bf16.msra.mxu0 0
      %4857 = vmatpush.bf16.msra.mxu0 0
      %4858 = vmatpush.bf16.msra.mxu0 0
      %4859 = vmatpush.bf16.msra.mxu0 0
      %4860 = vmatpush.bf16.msra.mxu0 0
      %4861 = vmatpush.bf16.msra.mxu0 %v4798
      %4862 = vmatpush.bf16.msra.mxu0 %v4797
      %4863 = vmatmul.bf16.gmra.mxu0 %v4802
      %v4864 = vpop.f32.mrf.mxu0
      %v4865 = vadd.f32 0.0, %v4864
      %v4866 = vpop.f32.mrf.mxu0
      %v4867 = vadd.f32 0.0, %v4866
      %4868 = vmatmul.bf16.gmra.mxu0 %v4805
      %v4869 = vpop.f32.mrf.mxu0
      %v4870 = vadd.f32 0.0, %v4869
      %v4871 = vpop.f32.mrf.mxu0
      %v4872 = vadd.f32 0.0, %v4871
      %4873 = vmatmul.bf16.gmra.mxu0 %v4808
      %v4874 = vpop.f32.mrf.mxu0
      %v4875 = vadd.f32 0.0, %v4874
      %v4876 = vpop.f32.mrf.mxu0
      %v4877 = vadd.f32 0.0, %v4876
      %4878 = vmatmul.bf16.gmra.mxu0 %v4811
      %v4879 = vpop.f32.mrf.mxu0
      %v4880 = vadd.f32 0.0, %v4879
      %v4881 = vpop.f32.mrf.mxu0
      %v4882 = vadd.f32 0.0, %v4881
      %4883 = vmatmul.bf16.gmra.mxu0 %v4814
      %v4884 = vpop.f32.mrf.mxu0
      %v4885 = vadd.f32 0.0, %v4884
      %v4886 = vpop.f32.mrf.mxu0
      %v4887 = vadd.f32 0.0, %v4886
      %4888 = vmatmul.bf16.gmra.mxu0 %v4817
      %v4889 = vpop.f32.mrf.mxu0
      %v4890 = vadd.f32 0.0, %v4889
      %v4891 = vpop.f32.mrf.mxu0
      %v4892 = vadd.f32 0.0, %v4891
      %4893 = vmatmul.bf16.gmra.mxu0 %v4820
      %v4894 = vpop.f32.mrf.mxu0
      %v4895 = vadd.f32 0.0, %v4894
      %v4896 = vpop.f32.mrf.mxu0
      %v4897 = vadd.f32 0.0, %v4896
      %4898 = vmatmul.bf16.gmra.mxu0 %v4823
      %v4899 = vpop.f32.mrf.mxu0
      %v4900 = vadd.f32 0.0, %v4899
      %v4901 = vpop.f32.mrf.mxu0
      %v4902 = vadd.f32 0.0, %v4901
      %4903 = vmatmul.bf16.gmra.mxu0 %v4826
      %v4904 = vpop.f32.mrf.mxu0
      %v4905 = vadd.f32 0.0, %v4904
      %v4906 = vpop.f32.mrf.mxu0
      %v4907 = vadd.f32 0.0, %v4906
      %4908 = vmatmul.bf16.gmra.mxu0 %v4829
      %v4909 = vpop.f32.mrf.mxu0
      %v4910 = vadd.f32 0.0, %v4909
      %v4911 = vpop.f32.mrf.mxu0
      %v4912 = vadd.f32 0.0, %v4911
      %4913 = vmatmul.bf16.gmra.mxu0 %v4832
      %v4914 = vpop.f32.mrf.mxu0
      %v4915 = vadd.f32 0.0, %v4914
      %v4916 = vpop.f32.mrf.mxu0
      %v4917 = vadd.f32 0.0, %v4916
      %4918 = vmatmul.bf16.gmra.mxu0 %v4835
      %v4919 = vpop.f32.mrf.mxu0
      %v4920 = vadd.f32 0.0, %v4919
      %v4921 = vpop.f32.mrf.mxu0
      %v4922 = vadd.f32 0.0, %v4921
      %4923 = vmatmul.bf16.gmra.mxu0 %v4838
      %v4924 = vpop.f32.mrf.mxu0
      %v4925 = vadd.f32 0.0, %v4924
      %v4926 = vpop.f32.mrf.mxu0
      %v4927 = vadd.f32 0.0, %v4926
      %4928 = vmatmul.bf16.gmra.mxu0 %v4841
      %v4929 = vpop.f32.mrf.mxu0
      %v4930 = vadd.f32 0.0, %v4929
      %v4931 = vpop.f32.mrf.mxu0
      %v4932 = vadd.f32 0.0, %v4931
      %4933 = vmatmul.bf16.gmra.mxu0 %v4844
      %v4934 = vpop.f32.mrf.mxu0
      %v4935 = vadd.f32 0.0, %v4934
      %v4936 = vpop.f32.mrf.mxu0
      %v4937 = vadd.f32 0.0, %v4936
      %4938 = vmatmul.bf16.gmra.mxu0 %v4847
      %v4939 = vpop.f32.mrf.mxu0
      %v4940 = vadd.f32 0.0, %v4939
      %v4941 = vpop.f32.mrf.mxu0
      %v4942 = vadd.f32 0.0, %v4941
      %4943 = vmatmul.bf16.gmra.mxu0 %v4850
      %v4944 = vpop.f32.mrf.mxu0
      %v4945 = vadd.f32 0.0, %v4944
      %v4946 = vpop.f32.mrf.mxu0
      %v4947 = vadd.f32 0.0, %v4946
      %4948 = vmatmul.bf16.gmra.mxu0 %v4853
      %v4949 = vpop.f32.mrf.mxu0
      %v4950 = vadd.f32 0.0, %v4949
      %v4951 = vpop.f32.mrf.mxu0
      %v4952 = vadd.f32 0.0, %v4951
      %4953 = vdwg.mxu0
      %v4954 = vadd.f32 %v4694, %v4865
      %v4955 = vadd.f32 %v4695, %v4867
      %v4956 = vadd.f32 %v4696, %v4870
      %v4957 = vadd.f32 %v4697, %v4872
      %v4958 = vadd.f32 %v4698, %v4875
      %v4959 = vadd.f32 %v4699, %v4877
      %v4960 = vadd.f32 %v4700, %v4880
      %v4961 = vadd.f32 %v4701, %v4882
      %v4962 = vadd.f32 %v4702, %v4885
      %v4963 = vadd.f32 %v4703, %v4887
      %v4964 = vadd.f32 %v4704, %v4890
      %v4965 = vadd.f32 %v4705, %v4892
      %v4966 = vadd.f32 %v4706, %v4895
      %v4967 = vadd.f32 %v4707, %v4897
      %v4968 = vadd.f32 %v4708, %v4900
      %v4969 = vadd.f32 %v4709, %v4902
      %v4970 = vadd.f32 %v4710, %v4905
      %v4971 = vadd.f32 %v4711, %v4907
      %v4972 = vadd.f32 %v4712, %v4910
      %v4973 = vadd.f32 %v4713, %v4912
      %v4974 = vadd.f32 %v4714, %v4915
      %v4975 = vadd.f32 %v4715, %v4917
      %v4976 = vadd.f32 %v4716, %v4920
      %v4977 = vadd.f32 %v4717, %v4922
      %v4978 = vadd.f32 %v4718, %v4925
      %v4979 = vadd.f32 %v4719, %v4927
      %v4980 = vadd.f32 %v4720, %v4930
      %v4981 = vadd.f32 %v4721, %v4932
      %v4982 = vadd.f32 %v4722, %v4935
      %v4983 = vadd.f32 %v4723, %v4937
      %v4984 = vadd.f32 %v4724, %v4940
      %v4985 = vadd.f32 %v4725, %v4942
      %v4986 = vadd.f32 %v4726, %v4945
      %v4987 = vadd.f32 %v4727, %v4947
      %v4988 = vadd.f32 %v4728, %v4950
      %v4989 = vadd.f32 %v4729, %v4952
      %v4990 = vld [vmem:[#allocation2 + $0x2b] sm:$0xff]
      %v4991 = vld [vmem:[#allocation2 + $0x33] sm:$0xff]
      %v4992 = vld [vmem:[#allocation2 + $0x3b] sm:$0xff]
      %v4993 = vld [vmem:[#allocation2 + $0x43] sm:$0xff]
      %v4994 = vld [vmem:[#allocation2 + $0x4b] sm:$0xff]
      %v4995 = vld [vmem:[#allocation2 + $0x53] sm:$0xff]
      %v4996 = vld [vmem:[#allocation2 + $0x5b] sm:$0xff]
      %v4997 = vld [vmem:[#allocation2 + $0x63] sm:$0xff]
      %v4998 = vld [vmem:[#allocation2 + $0x6b] sm:$0xff]
      %v4999 = vld [vmem:[#allocation2 + $0x73] sm:$0xff]
      %v5000 = vld [vmem:[#allocation2 + $0x7b] sm:$0xff]
      %v5001 = vld [vmem:[#allocation2 + $0x83] sm:$0xff]
      %v5002 = vld [vmem:[#allocation2 + $0x8b] sm:$0xff]
      %v5003 = vld [vmem:[#allocation2 + $0x93] sm:$0xff]
      %v5004 = vld [vmem:[#allocation2 + $0x9b] sm:$0xff]
      %v5005 = vld [vmem:[#allocation2 + $0xa3] sm:$0xff]
      %v5006 = vld [vmem:[#allocation2 + $0xab] sm:$0xff]
      %v5007 = vld [vmem:[#allocation2 + $0xb3] sm:$0xff]
      %v5008 = vld [vmem:[#allocation2 + $0xbb] sm:$0xff]
      %v5009 = vld [vmem:[#allocation2 + $0xc3] sm:$0xff]
      %v5010 = vld [vmem:[#allocation2 + $0xcb] sm:$0xff]
      %v5011 = vld [vmem:[#allocation2 + $0xd3] sm:$0xff]
      %v5012 = vld [vmem:[#allocation2 + $0xdb] sm:$0xff]
      %v5013 = vld [vmem:[#allocation2 + $0xe3] sm:$0xff]
      %v5014 = vld [vmem:[#allocation2 + $0xeb] sm:$0xff]
      %v5015 = vld [vmem:[#allocation2 + $0xf3] sm:$0xff]
      %v5016 = vld [vmem:[#allocation2 + $0xfb] sm:$0xff]
      %v5017 = vld [vmem:[#allocation2 + $0x103] sm:$0xff]
      %v5018 = vld [vmem:[#allocation2 + $0x10b] sm:$0xff]
      %v5019 = vld [vmem:[#allocation2 + $0x113] sm:$0xff]
      %v5020 = vld [vmem:[#allocation2 + $0x11b] sm:$0xff]
      %v5021 = vld [vmem:[#allocation2 + $0x123] sm:$0xff]
      %v5022 = vld [vmem:[#allocation2 + $0x12b] sm:$0xff]
      %v5023 = vld [vmem:[#allocation2 + $0x133] sm:$0xff]
      %v5024 = vld [vmem:[#allocation2 + $0x13b] sm:$0xff]
      %v5025 = vld [vmem:[#allocation2 + $0x143] sm:$0xff]
      %v5026 = vpack.c.bf16 %v4991, %v4990
      %v5027 = vpack.c.bf16 %v4993, %v4992
      %v5028 = vpack.c.bf16 %v4995, %v4994
      %v5029 = vpack.c.bf16 %v4997, %v4996
      %v5030 = vpack.c.bf16 %v4999, %v4998
      %v5031 = vpack.c.bf16 %v5001, %v5000
      %v5032 = vpack.c.bf16 %v5003, %v5002
      %v5033 = vpack.c.bf16 %v5005, %v5004
      %v5034 = vpack.c.bf16 %v5007, %v5006
      %v5035 = vpack.c.bf16 %v5009, %v5008
      %v5036 = vpack.c.bf16 %v5011, %v5010
      %v5037 = vpack.c.bf16 %v5013, %v5012
      %v5038 = vpack.c.bf16 %v5015, %v5014
      %v5039 = vpack.c.bf16 %v5017, %v5016
      %v5040 = vpack.c.bf16 %v5019, %v5018
      %v5041 = vpack.c.bf16 %v5021, %v5020
      %v5042 = vpack.c.bf16 %v5023, %v5022
      %v5043 = vpack.c.bf16 %v5025, %v5024
      %s5044 = scalar_lea.vmem %s3, 128
      %v5045 = vld [vmem:[%s5044] sm:$0xf]
      %v5046 = vld [vmem:[%s5044 + $0x4] sm:$0xf]
      %v5047 = vld [vmem:[%s5044 + $0x8] sm:$0xf]
      %v5048 = vld [vmem:[%s5044 + $0xc] sm:$0xf]
      %v5053 = vunpack.c.l.b16 %v5045
      %v5054 = vunpack.c.l.b16 %v5046
      %v5055 = vunpack.c.l.b16 %v5047
      %v5056 = vunpack.c.l.b16 %v5048
      %v5057 = vpack.c.b16 %v5054, %v5053
      %v5058 = vpack.c.b16 %v5056, %v5055
      %v5062 = vsel %vm472, %v5026, 0
      %v5065 = vsel %vm472, %v5027, 0
      %v5068 = vsel %vm472, %v5028, 0
      %v5071 = vsel %vm472, %v5029, 0
      %v5074 = vsel %vm472, %v5030, 0
      %v5077 = vsel %vm472, %v5031, 0
      %v5080 = vsel %vm472, %v5032, 0
      %v5083 = vsel %vm472, %v5033, 0
      %v5086 = vsel %vm472, %v5034, 0
      %v5089 = vsel %vm472, %v5035, 0
      %v5092 = vsel %vm472, %v5036, 0
      %v5095 = vsel %vm472, %v5037, 0
      %v5098 = vsel %vm472, %v5038, 0
      %v5101 = vsel %vm472, %v5039, 0
      %v5104 = vsel %vm472, %v5040, 0
      %v5107 = vsel %vm472, %v5041, 0
      %v5110 = vsel %vm472, %v5042, 0
      %v5113 = vsel %vm472, %v5043, 0
      %5115 = vmatpush.bf16.msra.mxu0 0
      %5116 = vmatpush.bf16.msra.mxu0 0
      %5117 = vmatpush.bf16.msra.mxu0 0
      %5118 = vmatpush.bf16.msra.mxu0 0
      %5119 = vmatpush.bf16.msra.mxu0 0
      %5120 = vmatpush.bf16.msra.mxu0 0
      %5121 = vmatpush.bf16.msra.mxu0 %v5058
      %5122 = vmatpush.bf16.msra.mxu0 %v5057
      %5123 = vmatmul.bf16.gmra.mxu0 %v5062
      %v5124 = vpop.f32.mrf.mxu0
      %v5125 = vadd.f32 0.0, %v5124
      %v5126 = vpop.f32.mrf.mxu0
      %v5127 = vadd.f32 0.0, %v5126
      %5128 = vmatmul.bf16.gmra.mxu0 %v5065
      %v5129 = vpop.f32.mrf.mxu0
      %v5130 = vadd.f32 0.0, %v5129
      %v5131 = vpop.f32.mrf.mxu0
      %v5132 = vadd.f32 0.0, %v5131
      %5133 = vmatmul.bf16.gmra.mxu0 %v5068
      %v5134 = vpop.f32.mrf.mxu0
      %v5135 = vadd.f32 0.0, %v5134
      %v5136 = vpop.f32.mrf.mxu0
      %v5137 = vadd.f32 0.0, %v5136
      %5138 = vmatmul.bf16.gmra.mxu0 %v5071
      %v5139 = vpop.f32.mrf.mxu0
      %v5140 = vadd.f32 0.0, %v5139
      %v5141 = vpop.f32.mrf.mxu0
      %v5142 = vadd.f32 0.0, %v5141
      %5143 = vmatmul.bf16.gmra.mxu0 %v5074
      %v5144 = vpop.f32.mrf.mxu0
      %v5145 = vadd.f32 0.0, %v5144
      %v5146 = vpop.f32.mrf.mxu0
      %v5147 = vadd.f32 0.0, %v5146
      %5148 = vmatmul.bf16.gmra.mxu0 %v5077
      %v5149 = vpop.f32.mrf.mxu0
      %v5150 = vadd.f32 0.0, %v5149
      %v5151 = vpop.f32.mrf.mxu0
      %v5152 = vadd.f32 0.0, %v5151
      %5153 = vmatmul.bf16.gmra.mxu0 %v5080
      %v5154 = vpop.f32.mrf.mxu0
      %v5155 = vadd.f32 0.0, %v5154
      %v5156 = vpop.f32.mrf.mxu0
      %v5157 = vadd.f32 0.0, %v5156
      %5158 = vmatmul.bf16.gmra.mxu0 %v5083
      %v5159 = vpop.f32.mrf.mxu0
      %v5160 = vadd.f32 0.0, %v5159
      %v5161 = vpop.f32.mrf.mxu0
      %v5162 = vadd.f32 0.0, %v5161
      %5163 = vmatmul.bf16.gmra.mxu0 %v5086
      %v5164 = vpop.f32.mrf.mxu0
      %v5165 = vadd.f32 0.0, %v5164
      %v5166 = vpop.f32.mrf.mxu0
      %v5167 = vadd.f32 0.0, %v5166
      %5168 = vmatmul.bf16.gmra.mxu0 %v5089
      %v5169 = vpop.f32.mrf.mxu0
      %v5170 = vadd.f32 0.0, %v5169
      %v5171 = vpop.f32.mrf.mxu0
      %v5172 = vadd.f32 0.0, %v5171
      %5173 = vmatmul.bf16.gmra.mxu0 %v5092
      %v5174 = vpop.f32.mrf.mxu0
      %v5175 = vadd.f32 0.0, %v5174
      %v5176 = vpop.f32.mrf.mxu0
      %v5177 = vadd.f32 0.0, %v5176
      %5178 = vmatmul.bf16.gmra.mxu0 %v5095
      %v5179 = vpop.f32.mrf.mxu0
      %v5180 = vadd.f32 0.0, %v5179
      %v5181 = vpop.f32.mrf.mxu0
      %v5182 = vadd.f32 0.0, %v5181
      %5183 = vmatmul.bf16.gmra.mxu0 %v5098
      %v5184 = vpop.f32.mrf.mxu0
      %v5185 = vadd.f32 0.0, %v5184
      %v5186 = vpop.f32.mrf.mxu0
      %v5187 = vadd.f32 0.0, %v5186
      %5188 = vmatmul.bf16.gmra.mxu0 %v5101
      %v5189 = vpop.f32.mrf.mxu0
      %v5190 = vadd.f32 0.0, %v5189
      %v5191 = vpop.f32.mrf.mxu0
      %v5192 = vadd.f32 0.0, %v5191
      %5193 = vmatmul.bf16.gmra.mxu0 %v5104
      %v5194 = vpop.f32.mrf.mxu0
      %v5195 = vadd.f32 0.0, %v5194
      %v5196 = vpop.f32.mrf.mxu0
      %v5197 = vadd.f32 0.0, %v5196
      %5198 = vmatmul.bf16.gmra.mxu0 %v5107
      %v5199 = vpop.f32.mrf.mxu0
      %v5200 = vadd.f32 0.0, %v5199
      %v5201 = vpop.f32.mrf.mxu0
      %v5202 = vadd.f32 0.0, %v5201
      %5203 = vmatmul.bf16.gmra.mxu0 %v5110
      %v5204 = vpop.f32.mrf.mxu0
      %v5205 = vadd.f32 0.0, %v5204
      %v5206 = vpop.f32.mrf.mxu0
      %v5207 = vadd.f32 0.0, %v5206
      %5208 = vmatmul.bf16.gmra.mxu0 %v5113
      %v5209 = vpop.f32.mrf.mxu0
      %v5210 = vadd.f32 0.0, %v5209
      %v5211 = vpop.f32.mrf.mxu0
      %v5212 = vadd.f32 0.0, %v5211
      %5213 = vdwg.mxu0
      %v5214 = vadd.f32 %v4954, %v5125
      %v5215 = vadd.f32 %v4955, %v5127
      %v5216 = vadd.f32 %v4956, %v5130
      %v5217 = vadd.f32 %v4957, %v5132
      %v5218 = vadd.f32 %v4958, %v5135
      %v5219 = vadd.f32 %v4959, %v5137
      %v5220 = vadd.f32 %v4960, %v5140
      %v5221 = vadd.f32 %v4961, %v5142
      %v5222 = vadd.f32 %v4962, %v5145
      %v5223 = vadd.f32 %v4963, %v5147
      %v5224 = vadd.f32 %v4964, %v5150
      %v5225 = vadd.f32 %v4965, %v5152
      %v5226 = vadd.f32 %v4966, %v5155
      %v5227 = vadd.f32 %v4967, %v5157
      %v5228 = vadd.f32 %v4968, %v5160
      %v5229 = vadd.f32 %v4969, %v5162
      %v5230 = vadd.f32 %v4970, %v5165
      %v5231 = vadd.f32 %v4971, %v5167
      %v5232 = vadd.f32 %v4972, %v5170
      %v5233 = vadd.f32 %v4973, %v5172
      %v5234 = vadd.f32 %v4974, %v5175
      %v5235 = vadd.f32 %v4975, %v5177
      %v5236 = vadd.f32 %v4976, %v5180
      %v5237 = vadd.f32 %v4977, %v5182
      %v5238 = vadd.f32 %v4978, %v5185
      %v5239 = vadd.f32 %v4979, %v5187
      %v5240 = vadd.f32 %v4980, %v5190
      %v5241 = vadd.f32 %v4981, %v5192
      %v5242 = vadd.f32 %v4982, %v5195
      %v5243 = vadd.f32 %v4983, %v5197
      %v5244 = vadd.f32 %v4984, %v5200
      %v5245 = vadd.f32 %v4985, %v5202
      %v5246 = vadd.f32 %v4986, %v5205
      %v5247 = vadd.f32 %v4987, %v5207
      %v5248 = vadd.f32 %v4988, %v5210
      %v5249 = vadd.f32 %v4989, %v5212
      %v5250 = vld [vmem:[%s4] sm:$0x1]
      %v5252 = vperm.slane %v5250, 0
      %v5254 = vadd.f32 %v5214, %v5252
      %v5255 = vadd.f32 %v5215, %v5252
      %v5256 = vadd.f32 %v5216, %v5252
      %v5257 = vadd.f32 %v5217, %v5252
      %v5258 = vadd.f32 %v5218, %v5252
      %v5259 = vadd.f32 %v5219, %v5252
      %v5260 = vadd.f32 %v5220, %v5252
      %v5261 = vadd.f32 %v5221, %v5252
      %v5262 = vadd.f32 %v5222, %v5252
      %v5263 = vadd.f32 %v5223, %v5252
      %v5264 = vadd.f32 %v5224, %v5252
      %v5265 = vadd.f32 %v5225, %v5252
      %v5266 = vadd.f32 %v5226, %v5252
      %v5267 = vadd.f32 %v5227, %v5252
      %v5268 = vadd.f32 %v5228, %v5252
      %v5269 = vadd.f32 %v5229, %v5252
      %v5270 = vadd.f32 %v5230, %v5252
      %v5271 = vadd.f32 %v5231, %v5252
      %v5272 = vadd.f32 %v5232, %v5252
      %v5273 = vadd.f32 %v5233, %v5252
      %v5274 = vadd.f32 %v5234, %v5252
      %v5275 = vadd.f32 %v5235, %v5252
      %v5276 = vadd.f32 %v5236, %v5252
      %v5277 = vadd.f32 %v5237, %v5252
      %v5278 = vadd.f32 %v5238, %v5252
      %v5279 = vadd.f32 %v5239, %v5252
      %v5280 = vadd.f32 %v5240, %v5252
      %v5281 = vadd.f32 %v5241, %v5252
      %v5282 = vadd.f32 %v5242, %v5252
      %v5283 = vadd.f32 %v5243, %v5252
      %v5284 = vadd.f32 %v5244, %v5252
      %v5285 = vadd.f32 %v5245, %v5252
      %v5286 = vadd.f32 %v5246, %v5252
      %v5287 = vadd.f32 %v5247, %v5252
      %v5288 = vadd.f32 %v5248, %v5252
      %v5289 = vadd.f32 %v5249, %v5252
      %v5290 = vmax.f32 %v5254, 0.0
      %v5291 = vmax.f32 %v5255, 0.0
      %v5292 = vmax.f32 %v5256, 0.0
      %v5293 = vmax.f32 %v5257, 0.0
      %v5294 = vmax.f32 %v5258, 0.0
      %v5295 = vmax.f32 %v5259, 0.0
      %v5296 = vmax.f32 %v5260, 0.0
      %v5297 = vmax.f32 %v5261, 0.0
      %v5298 = vmax.f32 %v5262, 0.0
      %v5299 = vmax.f32 %v5263, 0.0
      %v5300 = vmax.f32 %v5264, 0.0
      %v5301 = vmax.f32 %v5265, 0.0
      %v5302 = vmax.f32 %v5266, 0.0
      %v5303 = vmax.f32 %v5267, 0.0
      %v5304 = vmax.f32 %v5268, 0.0
      %v5305 = vmax.f32 %v5269, 0.0
      %v5306 = vmax.f32 %v5270, 0.0
      %v5307 = vmax.f32 %v5271, 0.0
      %v5308 = vmax.f32 %v5272, 0.0
      %v5309 = vmax.f32 %v5273, 0.0
      %v5310 = vmax.f32 %v5274, 0.0
      %v5311 = vmax.f32 %v5275, 0.0
      %v5312 = vmax.f32 %v5276, 0.0
      %v5313 = vmax.f32 %v5277, 0.0
      %v5314 = vmax.f32 %v5278, 0.0
      %v5315 = vmax.f32 %v5279, 0.0
      %v5316 = vmax.f32 %v5280, 0.0
      %v5317 = vmax.f32 %v5281, 0.0
      %v5318 = vmax.f32 %v5282, 0.0
      %v5319 = vmax.f32 %v5283, 0.0
      %v5320 = vmax.f32 %v5284, 0.0
      %v5321 = vmax.f32 %v5285, 0.0
      %v5322 = vmax.f32 %v5286, 0.0
      %v5323 = vmax.f32 %v5287, 0.0
      %v5324 = vmax.f32 %v5288, 0.0
      %v5325 = vmax.f32 %v5289, 0.0
      %v5326 = vmul.f32 %v5290, %v2690
      %v5327 = vmul.f32 %v5291, %v2695
      %v5328 = vmul.f32 %v5292, %v2700
      %v5329 = vmul.f32 %v5293, %v2705
      %v5330 = vmul.f32 %v5294, %v2710
      %v5331 = vmul.f32 %v5295, %v2715
      %v5332 = vmul.f32 %v5296, %v2720
      %v5333 = vmul.f32 %v5297, %v2725
      %v5334 = vmul.f32 %v5298, %v2730
      %v5335 = vmul.f32 %v5299, %v2735
      %v5336 = vmul.f32 %v5300, %v2740
      %v5337 = vmul.f32 %v5301, %v2745
      %v5338 = vmul.f32 %v5302, %v2750
      %v5339 = vmul.f32 %v5303, %v2755
      %v5340 = vmul.f32 %v5304, %v2760
      %v5341 = vmul.f32 %v5305, %v2765
      %v5342 = vmul.f32 %v5306, %v2770
      %v5343 = vmul.f32 %v5307, %v2775
      %v5344 = vmul.f32 %v5308, %v2780
      %v5345 = vmul.f32 %v5309, %v2785
      %v5346 = vmul.f32 %v5310, %v2790
      %v5347 = vmul.f32 %v5311, %v2795
      %v5348 = vmul.f32 %v5312, %v2800
      %v5349 = vmul.f32 %v5313, %v2805
      %v5350 = vmul.f32 %v5314, %v2810
      %v5351 = vmul.f32 %v5315, %v2815
      %v5352 = vmul.f32 %v5316, %v2820
      %v5353 = vmul.f32 %v5317, %v2825
      %v5354 = vmul.f32 %v5318, %v2830
      %v5355 = vmul.f32 %v5319, %v2835
      %v5356 = vmul.f32 %v5320, %v2840
      %v5357 = vmul.f32 %v5321, %v2845
      %v5358 = vmul.f32 %v5322, %v2850
      %v5359 = vmul.f32 %v5323, %v2855
      %v5360 = vmul.f32 %v5324, %v2860
      %v5361 = vmul.f32 %v5325, %v2865
      %5362 = vst.msk [vmem:[#allocation3] sm:$0xff] %vm472, 0.0
      %5363 = vst.msk [vmem:[#allocation3 + $0x8] sm:$0xff] %vm472, 0.0
      %5364 = vst.msk [vmem:[#allocation3 + $0x10] sm:$0xff] %vm472, 0.0
      %5365 = vst.msk [vmem:[#allocation3 + $0x18] sm:$0xff] %vm472, 0.0
      %5366 = vst.msk [vmem:[#allocation3 + $0x20] sm:$0xff] %vm472, 0.0
      %5367 = vst.msk [vmem:[#allocation3 + $0x28] sm:$0xff] %vm472, 0.0
      %5368 = vst.msk [vmem:[#allocation3 + $0x30] sm:$0xff] %vm472, 0.0
      %5369 = vst.msk [vmem:[#allocation3 + $0x38] sm:$0xff] %vm472, 0.0
      %5370 = vst.msk [vmem:[#allocation3 + $0x40] sm:$0xff] %vm472, 0.0
      %5371 = vst.msk [vmem:[#allocation3 + $0x48] sm:$0xff] %vm472, 0.0
      %5372 = vst.msk [vmem:[#allocation3 + $0x50] sm:$0xff] %vm472, 0.0
      %5373 = vst.msk [vmem:[#allocation3 + $0x58] sm:$0xff] %vm472, 0.0
      %5374 = vst.msk [vmem:[#allocation3 + $0x60] sm:$0xff] %vm472, 0.0
      %5375 = vst.msk [vmem:[#allocation3 + $0x68] sm:$0xff] %vm472, 0.0
      %5376 = vst.msk [vmem:[#allocation3 + $0x70] sm:$0xff] %vm472, 0.0
      %5377 = vst.msk [vmem:[#allocation3 + $0x78] sm:$0xff] %vm472, 0.0
      %5378 = vst.msk [vmem:[#allocation3 + $0x80] sm:$0xff] %vm472, 0.0
      %5379 = vst.msk [vmem:[#allocation3 + $0x88] sm:$0xff] %vm472, 0.0
      %5380 = vst.msk [vmem:[#allocation3 + $0x90] sm:$0xff] %vm472, 0.0
      %5381 = vst.msk [vmem:[#allocation3 + $0x98] sm:$0xff] %vm472, 0.0
      %5382 = vst.msk [vmem:[#allocation3 + $0xa0] sm:$0xff] %vm472, 0.0
      %5383 = vst.msk [vmem:[#allocation3 + $0xa8] sm:$0xff] %vm472, 0.0
      %5384 = vst.msk [vmem:[#allocation3 + $0xb0] sm:$0xff] %vm472, 0.0
      %5385 = vst.msk [vmem:[#allocation3 + $0xb8] sm:$0xff] %vm472, 0.0
      %5386 = vst.msk [vmem:[#allocation3 + $0xc0] sm:$0xff] %vm472, 0.0
      %5387 = vst.msk [vmem:[#allocation3 + $0xc8] sm:$0xff] %vm472, 0.0
      %5388 = vst.msk [vmem:[#allocation3 + $0xd0] sm:$0xff] %vm472, 0.0
      %5389 = vst.msk [vmem:[#allocation3 + $0xd8] sm:$0xff] %vm472, 0.0
      %5390 = vst.msk [vmem:[#allocation3 + $0xe0] sm:$0xff] %vm472, 0.0
      %5391 = vst.msk [vmem:[#allocation3 + $0xe8] sm:$0xff] %vm472, 0.0
      %5392 = vst.msk [vmem:[#allocation3 + $0xf0] sm:$0xff] %vm472, 0.0
      %5393 = vst.msk [vmem:[#allocation3 + $0xf8] sm:$0xff] %vm472, 0.0
      %5394 = vst.msk [vmem:[#allocation3 + $0x100] sm:$0xff] %vm472, 0.0
      %5395 = vst.msk [vmem:[#allocation3 + $0x108] sm:$0xff] %vm472, 0.0
      %5396 = vst.msk [vmem:[#allocation3 + $0x110] sm:$0xff] %vm472, 0.0
      %5397 = vst.msk [vmem:[#allocation3 + $0x118] sm:$0xff] %vm472, 0.0
      %5398 = vst.msk [vmem:[#allocation3 + $0x120] sm:$0xff] %vm472, 0.0
      %5399 = vst.msk [vmem:[#allocation3 + $0x128] sm:$0xff] %vm472, 0.0
      %5400 = vst.msk [vmem:[#allocation3 + $0x130] sm:$0xff] %vm472, 0.0
      %5401 = vst.msk [vmem:[#allocation3 + $0x138] sm:$0xff] %vm472, 0.0
      %5402 = vst.msk [vmem:[#allocation3 + $0x140] sm:$0xff] %vm472, 0.0
      %5403 = vst.msk [vmem:[#allocation3 + $0x148] sm:$0xff] %vm472, 0.0
      %5404 = vst.msk [vmem:[#allocation3 + $0x150] sm:$0x3] %vm2945, 0.0
      %5405 = vst.msk [vmem:[#allocation3 + $0x18] sm:$0xff] %vm472, %v5326
      %5406 = vst.msk [vmem:[#allocation3 + $0x20] sm:$0xff] %vm472, %v5327
      %5407 = vst.msk [vmem:[#allocation3 + $0x28] sm:$0xff] %vm472, %v5328
      %5408 = vst.msk [vmem:[#allocation3 + $0x30] sm:$0xff] %vm472, %v5329
      %5409 = vst.msk [vmem:[#allocation3 + $0x38] sm:$0xff] %vm472, %v5330
      %5410 = vst.msk [vmem:[#allocation3 + $0x40] sm:$0xff] %vm472, %v5331
      %5411 = vst.msk [vmem:[#allocation3 + $0x48] sm:$0xff] %vm472, %v5332
      %5412 = vst.msk [vmem:[#allocation3 + $0x50] sm:$0xff] %vm472, %v5333
      %5413 = vst.msk [vmem:[#allocation3 + $0x58] sm:$0xff] %vm472, %v5334
      %5414 = vst.msk [vmem:[#allocation3 + $0x60] sm:$0xff] %vm472, %v5335
      %5415 = vst.msk [vmem:[#allocation3 + $0x68] sm:$0xff] %vm472, %v5336
      %5416 = vst.msk [vmem:[#allocation3 + $0x70] sm:$0xff] %vm472, %v5337
      %5417 = vst.msk [vmem:[#allocation3 + $0x78] sm:$0xff] %vm472, %v5338
      %5418 = vst.msk [vmem:[#allocation3 + $0x80] sm:$0xff] %vm472, %v5339
      %5419 = vst.msk [vmem:[#allocation3 + $0x88] sm:$0xff] %vm472, %v5340
      %5420 = vst.msk [vmem:[#allocation3 + $0x90] sm:$0xff] %vm472, %v5341
      %5421 = vst.msk [vmem:[#allocation3 + $0x98] sm:$0xff] %vm472, %v5342
      %5422 = vst.msk [vmem:[#allocation3 + $0xa0] sm:$0xff] %vm472, %v5343
      %5423 = vst.msk [vmem:[#allocation3 + $0xa8] sm:$0xff] %vm472, %v5344
      %5424 = vst.msk [vmem:[#allocation3 + $0xb0] sm:$0xff] %vm472, %v5345
      %5425 = vst.msk [vmem:[#allocation3 + $0xb8] sm:$0xff] %vm472, %v5346
      %5426 = vst.msk [vmem:[#allocation3 + $0xc0] sm:$0xff] %vm472, %v5347
      %5427 = vst.msk [vmem:[#allocation3 + $0xc8] sm:$0xff] %vm472, %v5348
      %5428 = vst.msk [vmem:[#allocation3 + $0xd0] sm:$0xff] %vm472, %v5349
      %5429 = vst.msk [vmem:[#allocation3 + $0xd8] sm:$0xff] %vm472, %v5350
      %5430 = vst.msk [vmem:[#allocation3 + $0xe0] sm:$0xff] %vm472, %v5351
      %5431 = vst.msk [vmem:[#allocation3 + $0xe8] sm:$0xff] %vm472, %v5352
      %5432 = vst.msk [vmem:[#allocation3 + $0xf0] sm:$0xff] %vm472, %v5353
      %5433 = vst.msk [vmem:[#allocation3 + $0xf8] sm:$0xff] %vm472, %v5354
      %5434 = vst.msk [vmem:[#allocation3 + $0x100] sm:$0xff] %vm472, %v5355
      %5435 = vst.msk [vmem:[#allocation3 + $0x108] sm:$0xff] %vm472, %v5356
      %5436 = vst.msk [vmem:[#allocation3 + $0x110] sm:$0xff] %vm472, %v5357
      %5437 = vst.msk [vmem:[#allocation3 + $0x118] sm:$0xff] %vm472, %v5358
      %5438 = vst.msk [vmem:[#allocation3 + $0x120] sm:$0xff] %vm472, %v5359
      %5439 = vst.msk [vmem:[#allocation3 + $0x128] sm:$0xff] %vm472, %v5360
      %5440 = vst.msk [vmem:[#allocation3 + $0x130] sm:$0xff] %vm472, %v5361
      %v5441 = vld [vmem:[#allocation3 + $0x5] sm:$0xff]
      %v5442 = vld [vmem:[#allocation3 + $0xd] sm:$0xff]
      %v5443 = vld [vmem:[#allocation3 + $0x15] sm:$0xff]
      %v5444 = vld [vmem:[#allocation3 + $0x1d] sm:$0xff]
      %v5445 = vld [vmem:[#allocation3 + $0x25] sm:$0xff]
      %v5446 = vld [vmem:[#allocation3 + $0x2d] sm:$0xff]
      %v5447 = vld [vmem:[#allocation3 + $0x35] sm:$0xff]
      %v5448 = vld [vmem:[#allocation3 + $0x3d] sm:$0xff]
      %v5449 = vld [vmem:[#allocation3 + $0x45] sm:$0xff]
      %v5450 = vld [vmem:[#allocation3 + $0x4d] sm:$0xff]
      %v5451 = vld [vmem:[#allocation3 + $0x55] sm:$0xff]
      %v5452 = vld [vmem:[#allocation3 + $0x5d] sm:$0xff]
      %v5453 = vld [vmem:[#allocation3 + $0x65] sm:$0xff]
      %v5454 = vld [vmem:[#allocation3 + $0x6d] sm:$0xff]
      %v5455 = vld [vmem:[#allocation3 + $0x75] sm:$0xff]
      %v5456 = vld [vmem:[#allocation3 + $0x7d] sm:$0xff]
      %v5457 = vld [vmem:[#allocation3 + $0x85] sm:$0xff]
      %v5458 = vld [vmem:[#allocation3 + $0x8d] sm:$0xff]
      %v5459 = vld [vmem:[#allocation3 + $0x95] sm:$0xff]
      %v5460 = vld [vmem:[#allocation3 + $0x9d] sm:$0xff]
      %v5461 = vld [vmem:[#allocation3 + $0xa5] sm:$0xff]
      %v5462 = vld [vmem:[#allocation3 + $0xad] sm:$0xff]
      %v5463 = vld [vmem:[#allocation3 + $0xb5] sm:$0xff]
      %v5464 = vld [vmem:[#allocation3 + $0xbd] sm:$0xff]
      %v5465 = vld [vmem:[#allocation3 + $0xc5] sm:$0xff]
      %v5466 = vld [vmem:[#allocation3 + $0xcd] sm:$0xff]
      %v5467 = vld [vmem:[#allocation3 + $0xd5] sm:$0xff]
      %v5468 = vld [vmem:[#allocation3 + $0xdd] sm:$0xff]
      %v5469 = vld [vmem:[#allocation3 + $0xe5] sm:$0xff]
      %v5470 = vld [vmem:[#allocation3 + $0xed] sm:$0xff]
      %v5471 = vld [vmem:[#allocation3 + $0xf5] sm:$0xff]
      %v5472 = vld [vmem:[#allocation3 + $0xfd] sm:$0xff]
      %v5473 = vld [vmem:[#allocation3 + $0x105] sm:$0xff]
      %v5474 = vld [vmem:[#allocation3 + $0x10d] sm:$0xff]
      %v5475 = vld [vmem:[#allocation3 + $0x115] sm:$0xff]
      %v5476 = vld [vmem:[#allocation3 + $0x11d] sm:$0xff]
      %v5477 = vpack.c.bf16 %v5442, %v5441
      %v5478 = vpack.c.bf16 %v5444, %v5443
      %v5479 = vpack.c.bf16 %v5446, %v5445
      %v5480 = vpack.c.bf16 %v5448, %v5447
      %v5481 = vpack.c.bf16 %v5450, %v5449
      %v5482 = vpack.c.bf16 %v5452, %v5451
      %v5483 = vpack.c.bf16 %v5454, %v5453
      %v5484 = vpack.c.bf16 %v5456, %v5455
      %v5485 = vpack.c.bf16 %v5458, %v5457
      %v5486 = vpack.c.bf16 %v5460, %v5459
      %v5487 = vpack.c.bf16 %v5462, %v5461
      %v5488 = vpack.c.bf16 %v5464, %v5463
      %v5489 = vpack.c.bf16 %v5466, %v5465
      %v5490 = vpack.c.bf16 %v5468, %v5467
      %v5491 = vpack.c.bf16 %v5470, %v5469
      %v5492 = vpack.c.bf16 %v5472, %v5471
      %v5493 = vpack.c.bf16 %v5474, %v5473
      %v5494 = vpack.c.bf16 %v5476, %v5475
      %v5495 = vld [vmem:[%s5] sm:$0xf]
      %v5496 = vld [vmem:[%s5 + $0x4] sm:$0xf]
      %v5497 = vld [vmem:[%s5 + $0x8] sm:$0xf]
      %v5498 = vld [vmem:[%s5 + $0xc] sm:$0xf]
      %v5499 = vld [vmem:[#allocation3 + $0x6] sm:$0xff]
      %v5500 = vld [vmem:[#allocation3 + $0xe] sm:$0xff]
      %v5501 = vld [vmem:[#allocation3 + $0x16] sm:$0xff]
      %v5502 = vld [vmem:[#allocation3 + $0x1e] sm:$0xff]
      %v5503 = vld [vmem:[#allocation3 + $0x26] sm:$0xff]
      %v5504 = vld [vmem:[#allocation3 + $0x2e] sm:$0xff]
      %v5505 = vld [vmem:[#allocation3 + $0x36] sm:$0xff]
      %v5506 = vld [vmem:[#allocation3 + $0x3e] sm:$0xff]
      %v5507 = vld [vmem:[#allocation3 + $0x46] sm:$0xff]
      %v5508 = vld [vmem:[#allocation3 + $0x4e] sm:$0xff]
      %v5509 = vld [vmem:[#allocation3 + $0x56] sm:$0xff]
      %v5510 = vld [vmem:[#allocation3 + $0x5e] sm:$0xff]
      %v5511 = vld [vmem:[#allocation3 + $0x66] sm:$0xff]
      %v5512 = vld [vmem:[#allocation3 + $0x6e] sm:$0xff]
      %v5513 = vld [vmem:[#allocation3 + $0x76] sm:$0xff]
      %v5514 = vld [vmem:[#allocation3 + $0x7e] sm:$0xff]
      %v5515 = vld [vmem:[#allocation3 + $0x86] sm:$0xff]
      %v5516 = vld [vmem:[#allocation3 + $0x8e] sm:$0xff]
      %v5517 = vld [vmem:[#allocation3 + $0x96] sm:$0xff]
      %v5518 = vld [vmem:[#allocation3 + $0x9e] sm:$0xff]
      %v5519 = vld [vmem:[#allocation3 + $0xa6] sm:$0xff]
      %v5520 = vld [vmem:[#allocation3 + $0xae] sm:$0xff]
      %v5521 = vld [vmem:[#allocation3 + $0xb6] sm:$0xff]
      %v5522 = vld [vmem:[#allocation3 + $0xbe] sm:$0xff]
      %v5523 = vld [vmem:[#allocation3 + $0xc6] sm:$0xff]
      %v5524 = vld [vmem:[#allocation3 + $0xce] sm:$0xff]
      %v5525 = vld [vmem:[#allocation3 + $0xd6] sm:$0xff]
      %v5526 = vld [vmem:[#allocation3 + $0xde] sm:$0xff]
      %v5527 = vld [vmem:[#allocation3 + $0xe6] sm:$0xff]
      %v5528 = vld [vmem:[#allocation3 + $0xee] sm:$0xff]
      %v5529 = vld [vmem:[#allocation3 + $0xf6] sm:$0xff]
      %v5530 = vld [vmem:[#allocation3 + $0xfe] sm:$0xff]
      %v5531 = vld [vmem:[#allocation3 + $0x106] sm:$0xff]
      %v5532 = vld [vmem:[#allocation3 + $0x10e] sm:$0xff]
      %v5533 = vld [vmem:[#allocation3 + $0x116] sm:$0xff]
      %v5534 = vld [vmem:[#allocation3 + $0x11e] sm:$0xff]
      %v5535 = vpack.c.bf16 %v5500, %v5499
      %v5536 = vpack.c.bf16 %v5502, %v5501
      %v5537 = vpack.c.bf16 %v5504, %v5503
      %v5538 = vpack.c.bf16 %v5506, %v5505
      %v5539 = vpack.c.bf16 %v5508, %v5507
      %v5540 = vpack.c.bf16 %v5510, %v5509
      %v5541 = vpack.c.bf16 %v5512, %v5511
      %v5542 = vpack.c.bf16 %v5514, %v5513
      %v5543 = vpack.c.bf16 %v5516, %v5515
      %v5544 = vpack.c.bf16 %v5518, %v5517
      %v5545 = vpack.c.bf16 %v5520, %v5519
      %v5546 = vpack.c.bf16 %v5522, %v5521
      %v5547 = vpack.c.bf16 %v5524, %v5523
      %v5548 = vpack.c.bf16 %v5526, %v5525
      %v5549 = vpack.c.bf16 %v5528, %v5527
      %v5550 = vpack.c.bf16 %v5530, %v5529
      %v5551 = vpack.c.bf16 %v5532, %v5531
      %v5552 = vpack.c.bf16 %v5534, %v5533
      %s5553 = scalar_lea.vmem %s5, 16
      %v5554 = vld [vmem:[%s5553] sm:$0xf]
      %v5555 = vld [vmem:[%s5553 + $0x4] sm:$0xf]
      %v5556 = vld [vmem:[%s5553 + $0x8] sm:$0xf]
      %v5557 = vld [vmem:[%s5553 + $0xc] sm:$0xf]
      %v5562 = vunpack.c.l.b16 %v5554
      %v5563 = vunpack.c.l.b16 %v5555
      %v5564 = vunpack.c.l.b16 %v5556
      %v5565 = vunpack.c.l.b16 %v5557
      %v5566 = vpack.c.b16 %v5563, %v5562
      %v5567 = vpack.c.b16 %v5565, %v5564
      %v5571 = vsel %vm472, %v5535, 0
      %v5574 = vsel %vm472, %v5536, 0
      %v5577 = vsel %vm472, %v5537, 0
      %v5580 = vsel %vm472, %v5538, 0
      %v5583 = vsel %vm472, %v5539, 0
      %v5586 = vsel %vm472, %v5540, 0
      %v5589 = vsel %vm472, %v5541, 0
      %v5592 = vsel %vm472, %v5542, 0
      %v5595 = vsel %vm472, %v5543, 0
      %v5598 = vsel %vm472, %v5544, 0
      %v5601 = vsel %vm472, %v5545, 0
      %v5604 = vsel %vm472, %v5546, 0
      %v5607 = vsel %vm472, %v5547, 0
      %v5610 = vsel %vm472, %v5548, 0
      %v5613 = vsel %vm472, %v5549, 0
      %v5616 = vsel %vm472, %v5550, 0
      %v5619 = vsel %vm472, %v5551, 0
      %v5622 = vsel %vm472, %v5552, 0
      %5624 = vmatpush.bf16.msra.mxu0 0
      %5625 = vmatpush.bf16.msra.mxu0 0
      %5626 = vmatpush.bf16.msra.mxu0 0
      %5627 = vmatpush.bf16.msra.mxu0 0
      %5628 = vmatpush.bf16.msra.mxu0 0
      %5629 = vmatpush.bf16.msra.mxu0 0
      %5630 = vmatpush.bf16.msra.mxu0 %v5567
      %5631 = vmatpush.bf16.msra.mxu0 %v5566
      %5632 = vmatmul.bf16.gmra.mxu0 %v5571
      %v5633 = vpop.f32.mrf.mxu0
      %v5634 = vadd.f32 0.0, %v5633
      %v5635 = vpop.f32.mrf.mxu0
      %v5636 = vadd.f32 0.0, %v5635
      %5637 = vmatmul.bf16.gmra.mxu0 %v5574
      %v5638 = vpop.f32.mrf.mxu0
      %v5639 = vadd.f32 0.0, %v5638
      %v5640 = vpop.f32.mrf.mxu0
      %v5641 = vadd.f32 0.0, %v5640
      %5642 = vmatmul.bf16.gmra.mxu0 %v5577
      %v5643 = vpop.f32.mrf.mxu0
      %v5644 = vadd.f32 0.0, %v5643
      %v5645 = vpop.f32.mrf.mxu0
      %v5646 = vadd.f32 0.0, %v5645
      %5647 = vmatmul.bf16.gmra.mxu0 %v5580
      %v5648 = vpop.f32.mrf.mxu0
      %v5649 = vadd.f32 0.0, %v5648
      %v5650 = vpop.f32.mrf.mxu0
      %v5651 = vadd.f32 0.0, %v5650
      %5652 = vmatmul.bf16.gmra.mxu0 %v5583
      %v5653 = vpop.f32.mrf.mxu0
      %v5654 = vadd.f32 0.0, %v5653
      %v5655 = vpop.f32.mrf.mxu0
      %v5656 = vadd.f32 0.0, %v5655
      %5657 = vmatmul.bf16.gmra.mxu0 %v5586
      %v5658 = vpop.f32.mrf.mxu0
      %v5659 = vadd.f32 0.0, %v5658
      %v5660 = vpop.f32.mrf.mxu0
      %v5661 = vadd.f32 0.0, %v5660
      %5662 = vmatmul.bf16.gmra.mxu0 %v5589
      %v5663 = vpop.f32.mrf.mxu0
      %v5664 = vadd.f32 0.0, %v5663
      %v5665 = vpop.f32.mrf.mxu0
      %v5666 = vadd.f32 0.0, %v5665
      %5667 = vmatmul.bf16.gmra.mxu0 %v5592
      %v5668 = vpop.f32.mrf.mxu0
      %v5669 = vadd.f32 0.0, %v5668
      %v5670 = vpop.f32.mrf.mxu0
      %v5671 = vadd.f32 0.0, %v5670
      %5672 = vmatmul.bf16.gmra.mxu0 %v5595
      %v5673 = vpop.f32.mrf.mxu0
      %v5674 = vadd.f32 0.0, %v5673
      %v5675 = vpop.f32.mrf.mxu0
      %v5676 = vadd.f32 0.0, %v5675
      %5677 = vmatmul.bf16.gmra.mxu0 %v5598
      %v5678 = vpop.f32.mrf.mxu0
      %v5679 = vadd.f32 0.0, %v5678
      %v5680 = vpop.f32.mrf.mxu0
      %v5681 = vadd.f32 0.0, %v5680
      %5682 = vmatmul.bf16.gmra.mxu0 %v5601
      %v5683 = vpop.f32.mrf.mxu0
      %v5684 = vadd.f32 0.0, %v5683
      %v5685 = vpop.f32.mrf.mxu0
      %v5686 = vadd.f32 0.0, %v5685
      %5687 = vmatmul.bf16.gmra.mxu0 %v5604
      %v5688 = vpop.f32.mrf.mxu0
      %v5689 = vadd.f32 0.0, %v5688
      %v5690 = vpop.f32.mrf.mxu0
      %v5691 = vadd.f32 0.0, %v5690
      %5692 = vmatmul.bf16.gmra.mxu0 %v5607
      %v5693 = vpop.f32.mrf.mxu0
      %v5694 = vadd.f32 0.0, %v5693
      %v5695 = vpop.f32.mrf.mxu0
      %v5696 = vadd.f32 0.0, %v5695
      %5697 = vmatmul.bf16.gmra.mxu0 %v5610
      %v5698 = vpop.f32.mrf.mxu0
      %v5699 = vadd.f32 0.0, %v5698
      %v5700 = vpop.f32.mrf.mxu0
      %v5701 = vadd.f32 0.0, %v5700
      %5702 = vmatmul.bf16.gmra.mxu0 %v5613
      %v5703 = vpop.f32.mrf.mxu0
      %v5704 = vadd.f32 0.0, %v5703
      %v5705 = vpop.f32.mrf.mxu0
      %v5706 = vadd.f32 0.0, %v5705
      %5707 = vmatmul.bf16.gmra.mxu0 %v5616
      %v5708 = vpop.f32.mrf.mxu0
      %v5709 = vadd.f32 0.0, %v5708
      %v5710 = vpop.f32.mrf.mxu0
      %v5711 = vadd.f32 0.0, %v5710
      %5712 = vmatmul.bf16.gmra.mxu0 %v5619
      %v5713 = vpop.f32.mrf.mxu0
      %v5714 = vadd.f32 0.0, %v5713
      %v5715 = vpop.f32.mrf.mxu0
      %v5716 = vadd.f32 0.0, %v5715
      %5717 = vmatmul.bf16.gmra.mxu0 %v5622
      %v5718 = vpop.f32.mrf.mxu0
      %v5719 = vadd.f32 0.0, %v5718
      %v5720 = vpop.f32.mrf.mxu0
      %v5721 = vadd.f32 0.0, %v5720
      %5722 = vdwg.mxu0
      %v5727 = vunpack.c.l.b16 %v5495
      %v5728 = vunpack.c.l.b16 %v5496
      %v5729 = vunpack.c.l.b16 %v5497
      %v5730 = vunpack.c.l.b16 %v5498
      %v5731 = vpack.c.b16 %v5728, %v5727
      %v5732 = vpack.c.b16 %v5730, %v5729
      %v5736 = vsel %vm472, %v5477, 0
      %v5739 = vsel %vm472, %v5478, 0
      %v5742 = vsel %vm472, %v5479, 0
      %v5745 = vsel %vm472, %v5480, 0
      %v5748 = vsel %vm472, %v5481, 0
      %v5751 = vsel %vm472, %v5482, 0
      %v5754 = vsel %vm472, %v5483, 0
      %v5757 = vsel %vm472, %v5484, 0
      %v5760 = vsel %vm472, %v5485, 0
      %v5763 = vsel %vm472, %v5486, 0
      %v5766 = vsel %vm472, %v5487, 0
      %v5769 = vsel %vm472, %v5488, 0
      %v5772 = vsel %vm472, %v5489, 0
      %v5775 = vsel %vm472, %v5490, 0
      %v5778 = vsel %vm472, %v5491, 0
      %v5781 = vsel %vm472, %v5492, 0
      %v5784 = vsel %vm472, %v5493, 0
      %v5787 = vsel %vm472, %v5494, 0
      %5789 = vmatpush.bf16.msra.mxu0 0
      %5790 = vmatpush.bf16.msra.mxu0 0
      %5791 = vmatpush.bf16.msra.mxu0 0
      %5792 = vmatpush.bf16.msra.mxu0 0
      %5793 = vmatpush.bf16.msra.mxu0 0
      %5794 = vmatpush.bf16.msra.mxu0 0
      %5795 = vmatpush.bf16.msra.mxu0 %v5732
      %5796 = vmatpush.bf16.msra.mxu0 %v5731
      %5797 = vmatmul.bf16.gmra.mxu0 %v5736
      %v5798 = vpop.f32.mrf.mxu0
      %v5799 = vadd.f32 %v5634, %v5798
      %v5800 = vpop.f32.mrf.mxu0
      %v5801 = vadd.f32 %v5636, %v5800
      %5802 = vmatmul.bf16.gmra.mxu0 %v5739
      %v5803 = vpop.f32.mrf.mxu0
      %v5804 = vadd.f32 %v5639, %v5803
      %v5805 = vpop.f32.mrf.mxu0
      %v5806 = vadd.f32 %v5641, %v5805
      %5807 = vmatmul.bf16.gmra.mxu0 %v5742
      %v5808 = vpop.f32.mrf.mxu0
      %v5809 = vadd.f32 %v5644, %v5808
      %v5810 = vpop.f32.mrf.mxu0
      %v5811 = vadd.f32 %v5646, %v5810
      %5812 = vmatmul.bf16.gmra.mxu0 %v5745
      %v5813 = vpop.f32.mrf.mxu0
      %v5814 = vadd.f32 %v5649, %v5813
      %v5815 = vpop.f32.mrf.mxu0
      %v5816 = vadd.f32 %v5651, %v5815
      %5817 = vmatmul.bf16.gmra.mxu0 %v5748
      %v5818 = vpop.f32.mrf.mxu0
      %v5819 = vadd.f32 %v5654, %v5818
      %v5820 = vpop.f32.mrf.mxu0
      %v5821 = vadd.f32 %v5656, %v5820
      %5822 = vmatmul.bf16.gmra.mxu0 %v5751
      %v5823 = vpop.f32.mrf.mxu0
      %v5824 = vadd.f32 %v5659, %v5823
      %v5825 = vpop.f32.mrf.mxu0
      %v5826 = vadd.f32 %v5661, %v5825
      %5827 = vmatmul.bf16.gmra.mxu0 %v5754
      %v5828 = vpop.f32.mrf.mxu0
      %v5829 = vadd.f32 %v5664, %v5828
      %v5830 = vpop.f32.mrf.mxu0
      %v5831 = vadd.f32 %v5666, %v5830
      %5832 = vmatmul.bf16.gmra.mxu0 %v5757
      %v5833 = vpop.f32.mrf.mxu0
      %v5834 = vadd.f32 %v5669, %v5833
      %v5835 = vpop.f32.mrf.mxu0
      %v5836 = vadd.f32 %v5671, %v5835
      %5837 = vmatmul.bf16.gmra.mxu0 %v5760
      %v5838 = vpop.f32.mrf.mxu0
      %v5839 = vadd.f32 %v5674, %v5838
      %v5840 = vpop.f32.mrf.mxu0
      %v5841 = vadd.f32 %v5676, %v5840
      %5842 = vmatmul.bf16.gmra.mxu0 %v5763
      %v5843 = vpop.f32.mrf.mxu0
      %v5844 = vadd.f32 %v5679, %v5843
      %v5845 = vpop.f32.mrf.mxu0
      %v5846 = vadd.f32 %v5681, %v5845
      %5847 = vmatmul.bf16.gmra.mxu0 %v5766
      %v5848 = vpop.f32.mrf.mxu0
      %v5849 = vadd.f32 %v5684, %v5848
      %v5850 = vpop.f32.mrf.mxu0
      %v5851 = vadd.f32 %v5686, %v5850
      %5852 = vmatmul.bf16.gmra.mxu0 %v5769
      %v5853 = vpop.f32.mrf.mxu0
      %v5854 = vadd.f32 %v5689, %v5853
      %v5855 = vpop.f32.mrf.mxu0
      %v5856 = vadd.f32 %v5691, %v5855
      %5857 = vmatmul.bf16.gmra.mxu0 %v5772
      %v5858 = vpop.f32.mrf.mxu0
      %v5859 = vadd.f32 %v5694, %v5858
      %v5860 = vpop.f32.mrf.mxu0
      %v5861 = vadd.f32 %v5696, %v5860
      %5862 = vmatmul.bf16.gmra.mxu0 %v5775
      %v5863 = vpop.f32.mrf.mxu0
      %v5864 = vadd.f32 %v5699, %v5863
      %v5865 = vpop.f32.mrf.mxu0
      %v5866 = vadd.f32 %v5701, %v5865
      %5867 = vmatmul.bf16.gmra.mxu0 %v5778
      %v5868 = vpop.f32.mrf.mxu0
      %v5869 = vadd.f32 %v5704, %v5868
      %v5870 = vpop.f32.mrf.mxu0
      %v5871 = vadd.f32 %v5706, %v5870
      %5872 = vmatmul.bf16.gmra.mxu0 %v5781
      %v5873 = vpop.f32.mrf.mxu0
      %v5874 = vadd.f32 %v5709, %v5873
      %v5875 = vpop.f32.mrf.mxu0
      %v5876 = vadd.f32 %v5711, %v5875
      %5877 = vmatmul.bf16.gmra.mxu0 %v5784
      %v5878 = vpop.f32.mrf.mxu0
      %v5879 = vadd.f32 %v5714, %v5878
      %v5880 = vpop.f32.mrf.mxu0
      %v5881 = vadd.f32 %v5716, %v5880
      %5882 = vmatmul.bf16.gmra.mxu0 %v5787
      %v5883 = vpop.f32.mrf.mxu0
      %v5884 = vadd.f32 %v5719, %v5883
      %v5885 = vpop.f32.mrf.mxu0
      %v5886 = vadd.f32 %v5721, %v5885
      %5887 = vdwg.mxu0
      %v5888 = vld [vmem:[#allocation3 + $0x7] sm:$0xff]
      %v5889 = vld [vmem:[#allocation3 + $0xf] sm:$0xff]
      %v5890 = vld [vmem:[#allocation3 + $0x17] sm:$0xff]
      %v5891 = vld [vmem:[#allocation3 + $0x1f] sm:$0xff]
      %v5892 = vld [vmem:[#allocation3 + $0x27] sm:$0xff]
      %v5893 = vld [vmem:[#allocation3 + $0x2f] sm:$0xff]
      %v5894 = vld [vmem:[#allocation3 + $0x37] sm:$0xff]
      %v5895 = vld [vmem:[#allocation3 + $0x3f] sm:$0xff]
      %v5896 = vld [vmem:[#allocation3 + $0x47] sm:$0xff]
      %v5897 = vld [vmem:[#allocation3 + $0x4f] sm:$0xff]
      %v5898 = vld [vmem:[#allocation3 + $0x57] sm:$0xff]
      %v5899 = vld [vmem:[#allocation3 + $0x5f] sm:$0xff]
      %v5900 = vld [vmem:[#allocation3 + $0x67] sm:$0xff]
      %v5901 = vld [vmem:[#allocation3 + $0x6f] sm:$0xff]
      %v5902 = vld [vmem:[#allocation3 + $0x77] sm:$0xff]
      %v5903 = vld [vmem:[#allocation3 + $0x7f] sm:$0xff]
      %v5904 = vld [vmem:[#allocation3 + $0x87] sm:$0xff]
      %v5905 = vld [vmem:[#allocation3 + $0x8f] sm:$0xff]
      %v5906 = vld [vmem:[#allocation3 + $0x97] sm:$0xff]
      %v5907 = vld [vmem:[#allocation3 + $0x9f] sm:$0xff]
      %v5908 = vld [vmem:[#allocation3 + $0xa7] sm:$0xff]
      %v5909 = vld [vmem:[#allocation3 + $0xaf] sm:$0xff]
      %v5910 = vld [vmem:[#allocation3 + $0xb7] sm:$0xff]
      %v5911 = vld [vmem:[#allocation3 + $0xbf] sm:$0xff]
      %v5912 = vld [vmem:[#allocation3 + $0xc7] sm:$0xff]
      %v5913 = vld [vmem:[#allocation3 + $0xcf] sm:$0xff]
      %v5914 = vld [vmem:[#allocation3 + $0xd7] sm:$0xff]
      %v5915 = vld [vmem:[#allocation3 + $0xdf] sm:$0xff]
      %v5916 = vld [vmem:[#allocation3 + $0xe7] sm:$0xff]
      %v5917 = vld [vmem:[#allocation3 + $0xef] sm:$0xff]
      %v5918 = vld [vmem:[#allocation3 + $0xf7] sm:$0xff]
      %v5919 = vld [vmem:[#allocation3 + $0xff] sm:$0xff]
      %v5920 = vld [vmem:[#allocation3 + $0x107] sm:$0xff]
      %v5921 = vld [vmem:[#allocation3 + $0x10f] sm:$0xff]
      %v5922 = vld [vmem:[#allocation3 + $0x117] sm:$0xff]
      %v5923 = vld [vmem:[#allocation3 + $0x11f] sm:$0xff]
      %v5924 = vpack.c.bf16 %v5889, %v5888
      %v5925 = vpack.c.bf16 %v5891, %v5890
      %v5926 = vpack.c.bf16 %v5893, %v5892
      %v5927 = vpack.c.bf16 %v5895, %v5894
      %v5928 = vpack.c.bf16 %v5897, %v5896
      %v5929 = vpack.c.bf16 %v5899, %v5898
      %v5930 = vpack.c.bf16 %v5901, %v5900
      %v5931 = vpack.c.bf16 %v5903, %v5902
      %v5932 = vpack.c.bf16 %v5905, %v5904
      %v5933 = vpack.c.bf16 %v5907, %v5906
      %v5934 = vpack.c.bf16 %v5909, %v5908
      %v5935 = vpack.c.bf16 %v5911, %v5910
      %v5936 = vpack.c.bf16 %v5913, %v5912
      %v5937 = vpack.c.bf16 %v5915, %v5914
      %v5938 = vpack.c.bf16 %v5917, %v5916
      %v5939 = vpack.c.bf16 %v5919, %v5918
      %v5940 = vpack.c.bf16 %v5921, %v5920
      %v5941 = vpack.c.bf16 %v5923, %v5922
      %s5942 = scalar_lea.vmem %s5, 32
      %v5943 = vld [vmem:[%s5942] sm:$0xf]
      %v5944 = vld [vmem:[%s5942 + $0x4] sm:$0xf]
      %v5945 = vld [vmem:[%s5942 + $0x8] sm:$0xf]
      %v5946 = vld [vmem:[%s5942 + $0xc] sm:$0xf]
      %v5951 = vunpack.c.l.b16 %v5943
      %v5952 = vunpack.c.l.b16 %v5944
      %v5953 = vunpack.c.l.b16 %v5945
      %v5954 = vunpack.c.l.b16 %v5946
      %v5955 = vpack.c.b16 %v5952, %v5951
      %v5956 = vpack.c.b16 %v5954, %v5953
      %v5960 = vsel %vm472, %v5924, 0
      %v5963 = vsel %vm472, %v5925, 0
      %v5966 = vsel %vm472, %v5926, 0
      %v5969 = vsel %vm472, %v5927, 0
      %v5972 = vsel %vm472, %v5928, 0
      %v5975 = vsel %vm472, %v5929, 0
      %v5978 = vsel %vm472, %v5930, 0
      %v5981 = vsel %vm472, %v5931, 0
      %v5984 = vsel %vm472, %v5932, 0
      %v5987 = vsel %vm472, %v5933, 0
      %v5990 = vsel %vm472, %v5934, 0
      %v5993 = vsel %vm472, %v5935, 0
      %v5996 = vsel %vm472, %v5936, 0
      %v5999 = vsel %vm472, %v5937, 0
      %v6002 = vsel %vm472, %v5938, 0
      %v6005 = vsel %vm472, %v5939, 0
      %v6008 = vsel %vm472, %v5940, 0
      %v6011 = vsel %vm472, %v5941, 0
      %6013 = vmatpush.bf16.msra.mxu0 0
      %6014 = vmatpush.bf16.msra.mxu0 0
      %6015 = vmatpush.bf16.msra.mxu0 0
      %6016 = vmatpush.bf16.msra.mxu0 0
      %6017 = vmatpush.bf16.msra.mxu0 0
      %6018 = vmatpush.bf16.msra.mxu0 0
      %6019 = vmatpush.bf16.msra.mxu0 %v5956
      %6020 = vmatpush.bf16.msra.mxu0 %v5955
      %6021 = vmatmul.bf16.gmra.mxu0 %v5960
      %v6022 = vpop.f32.mrf.mxu0
      %v6023 = vadd.f32 0.0, %v6022
      %v6024 = vpop.f32.mrf.mxu0
      %v6025 = vadd.f32 0.0, %v6024
      %6026 = vmatmul.bf16.gmra.mxu0 %v5963
      %v6027 = vpop.f32.mrf.mxu0
      %v6028 = vadd.f32 0.0, %v6027
      %v6029 = vpop.f32.mrf.mxu0
      %v6030 = vadd.f32 0.0, %v6029
      %6031 = vmatmul.bf16.gmra.mxu0 %v5966
      %v6032 = vpop.f32.mrf.mxu0
      %v6033 = vadd.f32 0.0, %v6032
      %v6034 = vpop.f32.mrf.mxu0
      %v6035 = vadd.f32 0.0, %v6034
      %6036 = vmatmul.bf16.gmra.mxu0 %v5969
      %v6037 = vpop.f32.mrf.mxu0
      %v6038 = vadd.f32 0.0, %v6037
      %v6039 = vpop.f32.mrf.mxu0
      %v6040 = vadd.f32 0.0, %v6039
      %6041 = vmatmul.bf16.gmra.mxu0 %v5972
      %v6042 = vpop.f32.mrf.mxu0
      %v6043 = vadd.f32 0.0, %v6042
      %v6044 = vpop.f32.mrf.mxu0
      %v6045 = vadd.f32 0.0, %v6044
      %6046 = vmatmul.bf16.gmra.mxu0 %v5975
      %v6047 = vpop.f32.mrf.mxu0
      %v6048 = vadd.f32 0.0, %v6047
      %v6049 = vpop.f32.mrf.mxu0
      %v6050 = vadd.f32 0.0, %v6049
      %6051 = vmatmul.bf16.gmra.mxu0 %v5978
      %v6052 = vpop.f32.mrf.mxu0
      %v6053 = vadd.f32 0.0, %v6052
      %v6054 = vpop.f32.mrf.mxu0
      %v6055 = vadd.f32 0.0, %v6054
      %6056 = vmatmul.bf16.gmra.mxu0 %v5981
      %v6057 = vpop.f32.mrf.mxu0
      %v6058 = vadd.f32 0.0, %v6057
      %v6059 = vpop.f32.mrf.mxu0
      %v6060 = vadd.f32 0.0, %v6059
      %6061 = vmatmul.bf16.gmra.mxu0 %v5984
      %v6062 = vpop.f32.mrf.mxu0
      %v6063 = vadd.f32 0.0, %v6062
      %v6064 = vpop.f32.mrf.mxu0
      %v6065 = vadd.f32 0.0, %v6064
      %6066 = vmatmul.bf16.gmra.mxu0 %v5987
      %v6067 = vpop.f32.mrf.mxu0
      %v6068 = vadd.f32 0.0, %v6067
      %v6069 = vpop.f32.mrf.mxu0
      %v6070 = vadd.f32 0.0, %v6069
      %6071 = vmatmul.bf16.gmra.mxu0 %v5990
      %v6072 = vpop.f32.mrf.mxu0
      %v6073 = vadd.f32 0.0, %v6072
      %v6074 = vpop.f32.mrf.mxu0
      %v6075 = vadd.f32 0.0, %v6074
      %6076 = vmatmul.bf16.gmra.mxu0 %v5993
      %v6077 = vpop.f32.mrf.mxu0
      %v6078 = vadd.f32 0.0, %v6077
      %v6079 = vpop.f32.mrf.mxu0
      %v6080 = vadd.f32 0.0, %v6079
      %6081 = vmatmul.bf16.gmra.mxu0 %v5996
      %v6082 = vpop.f32.mrf.mxu0
      %v6083 = vadd.f32 0.0, %v6082
      %v6084 = vpop.f32.mrf.mxu0
      %v6085 = vadd.f32 0.0, %v6084
      %6086 = vmatmul.bf16.gmra.mxu0 %v5999
      %v6087 = vpop.f32.mrf.mxu0
      %v6088 = vadd.f32 0.0, %v6087
      %v6089 = vpop.f32.mrf.mxu0
      %v6090 = vadd.f32 0.0, %v6089
      %6091 = vmatmul.bf16.gmra.mxu0 %v6002
      %v6092 = vpop.f32.mrf.mxu0
      %v6093 = vadd.f32 0.0, %v6092
      %v6094 = vpop.f32.mrf.mxu0
      %v6095 = vadd.f32 0.0, %v6094
      %6096 = vmatmul.bf16.gmra.mxu0 %v6005
      %v6097 = vpop.f32.mrf.mxu0
      %v6098 = vadd.f32 0.0, %v6097
      %v6099 = vpop.f32.mrf.mxu0
      %v6100 = vadd.f32 0.0, %v6099
      %6101 = vmatmul.bf16.gmra.mxu0 %v6008
      %v6102 = vpop.f32.mrf.mxu0
      %v6103 = vadd.f32 0.0, %v6102
      %v6104 = vpop.f32.mrf.mxu0
      %v6105 = vadd.f32 0.0, %v6104
      %6106 = vmatmul.bf16.gmra.mxu0 %v6011
      %v6107 = vpop.f32.mrf.mxu0
      %v6108 = vadd.f32 0.0, %v6107
      %v6109 = vpop.f32.mrf.mxu0
      %v6110 = vadd.f32 0.0, %v6109
      %6111 = vdwg.mxu0
      %v6112 = vadd.f32 %v5799, %v6023
      %v6113 = vadd.f32 %v5801, %v6025
      %v6114 = vadd.f32 %v5804, %v6028
      %v6115 = vadd.f32 %v5806, %v6030
      %v6116 = vadd.f32 %v5809, %v6033
      %v6117 = vadd.f32 %v5811, %v6035
      %v6118 = vadd.f32 %v5814, %v6038
      %v6119 = vadd.f32 %v5816, %v6040
      %v6120 = vadd.f32 %v5819, %v6043
      %v6121 = vadd.f32 %v5821, %v6045
      %v6122 = vadd.f32 %v5824, %v6048
      %v6123 = vadd.f32 %v5826, %v6050
      %v6124 = vadd.f32 %v5829, %v6053
      %v6125 = vadd.f32 %v5831, %v6055
      %v6126 = vadd.f32 %v5834, %v6058
      %v6127 = vadd.f32 %v5836, %v6060
      %v6128 = vadd.f32 %v5839, %v6063
      %v6129 = vadd.f32 %v5841, %v6065
      %v6130 = vadd.f32 %v5844, %v6068
      %v6131 = vadd.f32 %v5846, %v6070
      %v6132 = vadd.f32 %v5849, %v6073
      %v6133 = vadd.f32 %v5851, %v6075
      %v6134 = vadd.f32 %v5854, %v6078
      %v6135 = vadd.f32 %v5856, %v6080
      %v6136 = vadd.f32 %v5859, %v6083
      %v6137 = vadd.f32 %v5861, %v6085
      %v6138 = vadd.f32 %v5864, %v6088
      %v6139 = vadd.f32 %v5866, %v6090
      %v6140 = vadd.f32 %v5869, %v6093
      %v6141 = vadd.f32 %v5871, %v6095
      %v6142 = vadd.f32 %v5874, %v6098
      %v6143 = vadd.f32 %v5876, %v6100
      %v6144 = vadd.f32 %v5879, %v6103
      %v6145 = vadd.f32 %v5881, %v6105
      %v6146 = vadd.f32 %v5884, %v6108
      %v6147 = vadd.f32 %v5886, %v6110
      %v6148 = vld [vmem:[#allocation3 + $0x17] sm:$0xff]
      %v6149 = vld [vmem:[#allocation3 + $0x1f] sm:$0xff]
      %v6150 = vld [vmem:[#allocation3 + $0x27] sm:$0xff]
      %v6151 = vld [vmem:[#allocation3 + $0x2f] sm:$0xff]
      %v6152 = vld [vmem:[#allocation3 + $0x37] sm:$0xff]
      %v6153 = vld [vmem:[#allocation3 + $0x3f] sm:$0xff]
      %v6154 = vld [vmem:[#allocation3 + $0x47] sm:$0xff]
      %v6155 = vld [vmem:[#allocation3 + $0x4f] sm:$0xff]
      %v6156 = vld [vmem:[#allocation3 + $0x57] sm:$0xff]
      %v6157 = vld [vmem:[#allocation3 + $0x5f] sm:$0xff]
      %v6158 = vld [vmem:[#allocation3 + $0x67] sm:$0xff]
      %v6159 = vld [vmem:[#allocation3 + $0x6f] sm:$0xff]
      %v6160 = vld [vmem:[#allocation3 + $0x77] sm:$0xff]
      %v6161 = vld [vmem:[#allocation3 + $0x7f] sm:$0xff]
      %v6162 = vld [vmem:[#allocation3 + $0x87] sm:$0xff]
      %v6163 = vld [vmem:[#allocation3 + $0x8f] sm:$0xff]
      %v6164 = vld [vmem:[#allocation3 + $0x97] sm:$0xff]
      %v6165 = vld [vmem:[#allocation3 + $0x9f] sm:$0xff]
      %v6166 = vld [vmem:[#allocation3 + $0xa7] sm:$0xff]
      %v6167 = vld [vmem:[#allocation3 + $0xaf] sm:$0xff]
      %v6168 = vld [vmem:[#allocation3 + $0xb7] sm:$0xff]
      %v6169 = vld [vmem:[#allocation3 + $0xbf] sm:$0xff]
      %v6170 = vld [vmem:[#allocation3 + $0xc7] sm:$0xff]
      %v6171 = vld [vmem:[#allocation3 + $0xcf] sm:$0xff]
      %v6172 = vld [vmem:[#allocation3 + $0xd7] sm:$0xff]
      %v6173 = vld [vmem:[#allocation3 + $0xdf] sm:$0xff]
      %v6174 = vld [vmem:[#allocation3 + $0xe7] sm:$0xff]
      %v6175 = vld [vmem:[#allocation3 + $0xef] sm:$0xff]
      %v6176 = vld [vmem:[#allocation3 + $0xf7] sm:$0xff]
      %v6177 = vld [vmem:[#allocation3 + $0xff] sm:$0xff]
      %v6178 = vld [vmem:[#allocation3 + $0x107] sm:$0xff]
      %v6179 = vld [vmem:[#allocation3 + $0x10f] sm:$0xff]
      %v6180 = vld [vmem:[#allocation3 + $0x117] sm:$0xff]
      %v6181 = vld [vmem:[#allocation3 + $0x11f] sm:$0xff]
      %v6182 = vld [vmem:[#allocation3 + $0x127] sm:$0xff]
      %v6183 = vld [vmem:[#allocation3 + $0x12f] sm:$0xff]
      %v6184 = vpack.c.bf16 %v6149, %v6148
      %v6185 = vpack.c.bf16 %v6151, %v6150
      %v6186 = vpack.c.bf16 %v6153, %v6152
      %v6187 = vpack.c.bf16 %v6155, %v6154
      %v6188 = vpack.c.bf16 %v6157, %v6156
      %v6189 = vpack.c.bf16 %v6159, %v6158
      %v6190 = vpack.c.bf16 %v6161, %v6160
      %v6191 = vpack.c.bf16 %v6163, %v6162
      %v6192 = vpack.c.bf16 %v6165, %v6164
      %v6193 = vpack.c.bf16 %v6167, %v6166
      %v6194 = vpack.c.bf16 %v6169, %v6168
      %v6195 = vpack.c.bf16 %v6171, %v6170
      %v6196 = vpack.c.bf16 %v6173, %v6172
      %v6197 = vpack.c.bf16 %v6175, %v6174
      %v6198 = vpack.c.bf16 %v6177, %v6176
      %v6199 = vpack.c.bf16 %v6179, %v6178
      %v6200 = vpack.c.bf16 %v6181, %v6180
      %v6201 = vpack.c.bf16 %v6183, %v6182
      %s6202 = scalar_lea.vmem %s5, 48
      %v6203 = vld [vmem:[%s6202] sm:$0xf]
      %v6204 = vld [vmem:[%s6202 + $0x4] sm:$0xf]
      %v6205 = vld [vmem:[%s6202 + $0x8] sm:$0xf]
      %v6206 = vld [vmem:[%s6202 + $0xc] sm:$0xf]
      %v6211 = vunpack.c.l.b16 %v6203
      %v6212 = vunpack.c.l.b16 %v6204
      %v6213 = vunpack.c.l.b16 %v6205
      %v6214 = vunpack.c.l.b16 %v6206
      %v6215 = vpack.c.b16 %v6212, %v6211
      %v6216 = vpack.c.b16 %v6214, %v6213
      %v6220 = vsel %vm472, %v6184, 0
      %v6223 = vsel %vm472, %v6185, 0
      %v6226 = vsel %vm472, %v6186, 0
      %v6229 = vsel %vm472, %v6187, 0
      %v6232 = vsel %vm472, %v6188, 0
      %v6235 = vsel %vm472, %v6189, 0
      %v6238 = vsel %vm472, %v6190, 0
      %v6241 = vsel %vm472, %v6191, 0
      %v6244 = vsel %vm472, %v6192, 0
      %v6247 = vsel %vm472, %v6193, 0
      %v6250 = vsel %vm472, %v6194, 0
      %v6253 = vsel %vm472, %v6195, 0
      %v6256 = vsel %vm472, %v6196, 0
      %v6259 = vsel %vm472, %v6197, 0
      %v6262 = vsel %vm472, %v6198, 0
      %v6265 = vsel %vm472, %v6199, 0
      %v6268 = vsel %vm472, %v6200, 0
      %v6271 = vsel %vm472, %v6201, 0
      %6273 = vmatpush.bf16.msra.mxu0 0
      %6274 = vmatpush.bf16.msra.mxu0 0
      %6275 = vmatpush.bf16.msra.mxu0 0
      %6276 = vmatpush.bf16.msra.mxu0 0
      %6277 = vmatpush.bf16.msra.mxu0 0
      %6278 = vmatpush.bf16.msra.mxu0 0
      %6279 = vmatpush.bf16.msra.mxu0 %v6216
      %6280 = vmatpush.bf16.msra.mxu0 %v6215
      %6281 = vmatmul.bf16.gmra.mxu0 %v6220
      %v6282 = vpop.f32.mrf.mxu0
      %v6283 = vadd.f32 0.0, %v6282
      %v6284 = vpop.f32.mrf.mxu0
      %v6285 = vadd.f32 0.0, %v6284
      %6286 = vmatmul.bf16.gmra.mxu0 %v6223
      %v6287 = vpop.f32.mrf.mxu0
      %v6288 = vadd.f32 0.0, %v6287
      %v6289 = vpop.f32.mrf.mxu0
      %v6290 = vadd.f32 0.0, %v6289
      %6291 = vmatmul.bf16.gmra.mxu0 %v6226
      %v6292 = vpop.f32.mrf.mxu0
      %v6293 = vadd.f32 0.0, %v6292
      %v6294 = vpop.f32.mrf.mxu0
      %v6295 = vadd.f32 0.0, %v6294
      %6296 = vmatmul.bf16.gmra.mxu0 %v6229
      %v6297 = vpop.f32.mrf.mxu0
      %v6298 = vadd.f32 0.0, %v6297
      %v6299 = vpop.f32.mrf.mxu0
      %v6300 = vadd.f32 0.0, %v6299
      %6301 = vmatmul.bf16.gmra.mxu0 %v6232
      %v6302 = vpop.f32.mrf.mxu0
      %v6303 = vadd.f32 0.0, %v6302
      %v6304 = vpop.f32.mrf.mxu0
      %v6305 = vadd.f32 0.0, %v6304
      %6306 = vmatmul.bf16.gmra.mxu0 %v6235
      %v6307 = vpop.f32.mrf.mxu0
      %v6308 = vadd.f32 0.0, %v6307
      %v6309 = vpop.f32.mrf.mxu0
      %v6310 = vadd.f32 0.0, %v6309
      %6311 = vmatmul.bf16.gmra.mxu0 %v6238
      %v6312 = vpop.f32.mrf.mxu0
      %v6313 = vadd.f32 0.0, %v6312
      %v6314 = vpop.f32.mrf.mxu0
      %v6315 = vadd.f32 0.0, %v6314
      %6316 = vmatmul.bf16.gmra.mxu0 %v6241
      %v6317 = vpop.f32.mrf.mxu0
      %v6318 = vadd.f32 0.0, %v6317
      %v6319 = vpop.f32.mrf.mxu0
      %v6320 = vadd.f32 0.0, %v6319
      %6321 = vmatmul.bf16.gmra.mxu0 %v6244
      %v6322 = vpop.f32.mrf.mxu0
      %v6323 = vadd.f32 0.0, %v6322
      %v6324 = vpop.f32.mrf.mxu0
      %v6325 = vadd.f32 0.0, %v6324
      %6326 = vmatmul.bf16.gmra.mxu0 %v6247
      %v6327 = vpop.f32.mrf.mxu0
      %v6328 = vadd.f32 0.0, %v6327
      %v6329 = vpop.f32.mrf.mxu0
      %v6330 = vadd.f32 0.0, %v6329
      %6331 = vmatmul.bf16.gmra.mxu0 %v6250
      %v6332 = vpop.f32.mrf.mxu0
      %v6333 = vadd.f32 0.0, %v6332
      %v6334 = vpop.f32.mrf.mxu0
      %v6335 = vadd.f32 0.0, %v6334
      %6336 = vmatmul.bf16.gmra.mxu0 %v6253
      %v6337 = vpop.f32.mrf.mxu0
      %v6338 = vadd.f32 0.0, %v6337
      %v6339 = vpop.f32.mrf.mxu0
      %v6340 = vadd.f32 0.0, %v6339
      %6341 = vmatmul.bf16.gmra.mxu0 %v6256
      %v6342 = vpop.f32.mrf.mxu0
      %v6343 = vadd.f32 0.0, %v6342
      %v6344 = vpop.f32.mrf.mxu0
      %v6345 = vadd.f32 0.0, %v6344
      %6346 = vmatmul.bf16.gmra.mxu0 %v6259
      %v6347 = vpop.f32.mrf.mxu0
      %v6348 = vadd.f32 0.0, %v6347
      %v6349 = vpop.f32.mrf.mxu0
      %v6350 = vadd.f32 0.0, %v6349
      %6351 = vmatmul.bf16.gmra.mxu0 %v6262
      %v6352 = vpop.f32.mrf.mxu0
      %v6353 = vadd.f32 0.0, %v6352
      %v6354 = vpop.f32.mrf.mxu0
      %v6355 = vadd.f32 0.0, %v6354
      %6356 = vmatmul.bf16.gmra.mxu0 %v6265
      %v6357 = vpop.f32.mrf.mxu0
      %v6358 = vadd.f32 0.0, %v6357
      %v6359 = vpop.f32.mrf.mxu0
      %v6360 = vadd.f32 0.0, %v6359
      %6361 = vmatmul.bf16.gmra.mxu0 %v6268
      %v6362 = vpop.f32.mrf.mxu0
      %v6363 = vadd.f32 0.0, %v6362
      %v6364 = vpop.f32.mrf.mxu0
      %v6365 = vadd.f32 0.0, %v6364
      %6366 = vmatmul.bf16.gmra.mxu0 %v6271
      %v6367 = vpop.f32.mrf.mxu0
      %v6368 = vadd.f32 0.0, %v6367
      %v6369 = vpop.f32.mrf.mxu0
      %v6370 = vadd.f32 0.0, %v6369
      %6371 = vdwg.mxu0
      %v6372 = vadd.f32 %v6112, %v6283
      %v6373 = vadd.f32 %v6113, %v6285
      %v6374 = vadd.f32 %v6114, %v6288
      %v6375 = vadd.f32 %v6115, %v6290
      %v6376 = vadd.f32 %v6116, %v6293
      %v6377 = vadd.f32 %v6117, %v6295
      %v6378 = vadd.f32 %v6118, %v6298
      %v6379 = vadd.f32 %v6119, %v6300
      %v6380 = vadd.f32 %v6120, %v6303
      %v6381 = vadd.f32 %v6121, %v6305
      %v6382 = vadd.f32 %v6122, %v6308
      %v6383 = vadd.f32 %v6123, %v6310
      %v6384 = vadd.f32 %v6124, %v6313
      %v6385 = vadd.f32 %v6125, %v6315
      %v6386 = vadd.f32 %v6126, %v6318
      %v6387 = vadd.f32 %v6127, %v6320
      %v6388 = vadd.f32 %v6128, %v6323
      %v6389 = vadd.f32 %v6129, %v6325
      %v6390 = vadd.f32 %v6130, %v6328
      %v6391 = vadd.f32 %v6131, %v6330
      %v6392 = vadd.f32 %v6132, %v6333
      %v6393 = vadd.f32 %v6133, %v6335
      %v6394 = vadd.f32 %v6134, %v6338
      %v6395 = vadd.f32 %v6135, %v6340
      %v6396 = vadd.f32 %v6136, %v6343
      %v6397 = vadd.f32 %v6137, %v6345
      %v6398 = vadd.f32 %v6138, %v6348
      %v6399 = vadd.f32 %v6139, %v6350
      %v6400 = vadd.f32 %v6140, %v6353
      %v6401 = vadd.f32 %v6141, %v6355
      %v6402 = vadd.f32 %v6142, %v6358
      %v6403 = vadd.f32 %v6143, %v6360
      %v6404 = vadd.f32 %v6144, %v6363
      %v6405 = vadd.f32 %v6145, %v6365
      %v6406 = vadd.f32 %v6146, %v6368
      %v6407 = vadd.f32 %v6147, %v6370
      %v6408 = vld [vmem:[#allocation3 + $0x18] sm:$0xff]
      %v6409 = vld [vmem:[#allocation3 + $0x20] sm:$0xff]
      %v6410 = vld [vmem:[#allocation3 + $0x28] sm:$0xff]
      %v6411 = vld [vmem:[#allocation3 + $0x30] sm:$0xff]
      %v6412 = vld [vmem:[#allocation3 + $0x38] sm:$0xff]
      %v6413 = vld [vmem:[#allocation3 + $0x40] sm:$0xff]
      %v6414 = vld [vmem:[#allocation3 + $0x48] sm:$0xff]
      %v6415 = vld [vmem:[#allocation3 + $0x50] sm:$0xff]
      %v6416 = vld [vmem:[#allocation3 + $0x58] sm:$0xff]
      %v6417 = vld [vmem:[#allocation3 + $0x60] sm:$0xff]
      %v6418 = vld [vmem:[#allocation3 + $0x68] sm:$0xff]
      %v6419 = vld [vmem:[#allocation3 + $0x70] sm:$0xff]
      %v6420 = vld [vmem:[#allocation3 + $0x78] sm:$0xff]
      %v6421 = vld [vmem:[#allocation3 + $0x80] sm:$0xff]
      %v6422 = vld [vmem:[#allocation3 + $0x88] sm:$0xff]
      %v6423 = vld [vmem:[#allocation3 + $0x90] sm:$0xff]
      %v6424 = vld [vmem:[#allocation3 + $0x98] sm:$0xff]
      %v6425 = vld [vmem:[#allocation3 + $0xa0] sm:$0xff]
      %v6426 = vld [vmem:[#allocation3 + $0xa8] sm:$0xff]
      %v6427 = vld [vmem:[#allocation3 + $0xb0] sm:$0xff]
      %v6428 = vld [vmem:[#allocation3 + $0xb8] sm:$0xff]
      %v6429 = vld [vmem:[#allocation3 + $0xc0] sm:$0xff]
      %v6430 = vld [vmem:[#allocation3 + $0xc8] sm:$0xff]
      %v6431 = vld [vmem:[#allocation3 + $0xd0] sm:$0xff]
      %v6432 = vld [vmem:[#allocation3 + $0xd8] sm:$0xff]
      %v6433 = vld [vmem:[#allocation3 + $0xe0] sm:$0xff]
      %v6434 = vld [vmem:[#allocation3 + $0xe8] sm:$0xff]
      %v6435 = vld [vmem:[#allocation3 + $0xf0] sm:$0xff]
      %v6436 = vld [vmem:[#allocation3 + $0xf8] sm:$0xff]
      %v6437 = vld [vmem:[#allocation3 + $0x100] sm:$0xff]
      %v6438 = vld [vmem:[#allocation3 + $0x108] sm:$0xff]
      %v6439 = vld [vmem:[#allocation3 + $0x110] sm:$0xff]
      %v6440 = vld [vmem:[#allocation3 + $0x118] sm:$0xff]
      %v6441 = vld [vmem:[#allocation3 + $0x120] sm:$0xff]
      %v6442 = vld [vmem:[#allocation3 + $0x128] sm:$0xff]
      %v6443 = vld [vmem:[#allocation3 + $0x130] sm:$0xff]
      %v6444 = vpack.c.bf16 %v6409, %v6408
      %v6445 = vpack.c.bf16 %v6411, %v6410
      %v6446 = vpack.c.bf16 %v6413, %v6412
      %v6447 = vpack.c.bf16 %v6415, %v6414
      %v6448 = vpack.c.bf16 %v6417, %v6416
      %v6449 = vpack.c.bf16 %v6419, %v6418
      %v6450 = vpack.c.bf16 %v6421, %v6420
      %v6451 = vpack.c.bf16 %v6423, %v6422
      %v6452 = vpack.c.bf16 %v6425, %v6424
      %v6453 = vpack.c.bf16 %v6427, %v6426
      %v6454 = vpack.c.bf16 %v6429, %v6428
      %v6455 = vpack.c.bf16 %v6431, %v6430
      %v6456 = vpack.c.bf16 %v6433, %v6432
      %v6457 = vpack.c.bf16 %v6435, %v6434
      %v6458 = vpack.c.bf16 %v6437, %v6436
      %v6459 = vpack.c.bf16 %v6439, %v6438
      %v6460 = vpack.c.bf16 %v6441, %v6440
      %v6461 = vpack.c.bf16 %v6443, %v6442
      %s6462 = scalar_lea.vmem %s5, 64
      %v6463 = vld [vmem:[%s6462] sm:$0xf]
      %v6464 = vld [vmem:[%s6462 + $0x4] sm:$0xf]
      %v6465 = vld [vmem:[%s6462 + $0x8] sm:$0xf]
      %v6466 = vld [vmem:[%s6462 + $0xc] sm:$0xf]
      %v6471 = vunpack.c.l.b16 %v6463
      %v6472 = vunpack.c.l.b16 %v6464
      %v6473 = vunpack.c.l.b16 %v6465
      %v6474 = vunpack.c.l.b16 %v6466
      %v6475 = vpack.c.b16 %v6472, %v6471
      %v6476 = vpack.c.b16 %v6474, %v6473
      %v6480 = vsel %vm472, %v6444, 0
      %v6483 = vsel %vm472, %v6445, 0
      %v6486 = vsel %vm472, %v6446, 0
      %v6489 = vsel %vm472, %v6447, 0
      %v6492 = vsel %vm472, %v6448, 0
      %v6495 = vsel %vm472, %v6449, 0
      %v6498 = vsel %vm472, %v6450, 0
      %v6501 = vsel %vm472, %v6451, 0
      %v6504 = vsel %vm472, %v6452, 0
      %v6507 = vsel %vm472, %v6453, 0
      %v6510 = vsel %vm472, %v6454, 0
      %v6513 = vsel %vm472, %v6455, 0
      %v6516 = vsel %vm472, %v6456, 0
      %v6519 = vsel %vm472, %v6457, 0
      %v6522 = vsel %vm472, %v6458, 0
      %v6525 = vsel %vm472, %v6459, 0
      %v6528 = vsel %vm472, %v6460, 0
      %v6531 = vsel %vm472, %v6461, 0
      %6533 = vmatpush.bf16.msra.mxu0 0
      %6534 = vmatpush.bf16.msra.mxu0 0
      %6535 = vmatpush.bf16.msra.mxu0 0
      %6536 = vmatpush.bf16.msra.mxu0 0
      %6537 = vmatpush.bf16.msra.mxu0 0
      %6538 = vmatpush.bf16.msra.mxu0 0
      %6539 = vmatpush.bf16.msra.mxu0 %v6476
      %6540 = vmatpush.bf16.msra.mxu0 %v6475
      %6541 = vmatmul.bf16.gmra.mxu0 %v6480
      %v6542 = vpop.f32.mrf.mxu0
      %v6543 = vadd.f32 0.0, %v6542
      %v6544 = vpop.f32.mrf.mxu0
      %v6545 = vadd.f32 0.0, %v6544
      %6546 = vmatmul.bf16.gmra.mxu0 %v6483
      %v6547 = vpop.f32.mrf.mxu0
      %v6548 = vadd.f32 0.0, %v6547
      %v6549 = vpop.f32.mrf.mxu0
      %v6550 = vadd.f32 0.0, %v6549
      %6551 = vmatmul.bf16.gmra.mxu0 %v6486
      %v6552 = vpop.f32.mrf.mxu0
      %v6553 = vadd.f32 0.0, %v6552
      %v6554 = vpop.f32.mrf.mxu0
      %v6555 = vadd.f32 0.0, %v6554
      %6556 = vmatmul.bf16.gmra.mxu0 %v6489
      %v6557 = vpop.f32.mrf.mxu0
      %v6558 = vadd.f32 0.0, %v6557
      %v6559 = vpop.f32.mrf.mxu0
      %v6560 = vadd.f32 0.0, %v6559
      %6561 = vmatmul.bf16.gmra.mxu0 %v6492
      %v6562 = vpop.f32.mrf.mxu0
      %v6563 = vadd.f32 0.0, %v6562
      %v6564 = vpop.f32.mrf.mxu0
      %v6565 = vadd.f32 0.0, %v6564
      %6566 = vmatmul.bf16.gmra.mxu0 %v6495
      %v6567 = vpop.f32.mrf.mxu0
      %v6568 = vadd.f32 0.0, %v6567
      %v6569 = vpop.f32.mrf.mxu0
      %v6570 = vadd.f32 0.0, %v6569
      %6571 = vmatmul.bf16.gmra.mxu0 %v6498
      %v6572 = vpop.f32.mrf.mxu0
      %v6573 = vadd.f32 0.0, %v6572
      %v6574 = vpop.f32.mrf.mxu0
      %v6575 = vadd.f32 0.0, %v6574
      %6576 = vmatmul.bf16.gmra.mxu0 %v6501
      %v6577 = vpop.f32.mrf.mxu0
      %v6578 = vadd.f32 0.0, %v6577
      %v6579 = vpop.f32.mrf.mxu0
      %v6580 = vadd.f32 0.0, %v6579
      %6581 = vmatmul.bf16.gmra.mxu0 %v6504
      %v6582 = vpop.f32.mrf.mxu0
      %v6583 = vadd.f32 0.0, %v6582
      %v6584 = vpop.f32.mrf.mxu0
      %v6585 = vadd.f32 0.0, %v6584
      %6586 = vmatmul.bf16.gmra.mxu0 %v6507
      %v6587 = vpop.f32.mrf.mxu0
      %v6588 = vadd.f32 0.0, %v6587
      %v6589 = vpop.f32.mrf.mxu0
      %v6590 = vadd.f32 0.0, %v6589
      %6591 = vmatmul.bf16.gmra.mxu0 %v6510
      %v6592 = vpop.f32.mrf.mxu0
      %v6593 = vadd.f32 0.0, %v6592
      %v6594 = vpop.f32.mrf.mxu0
      %v6595 = vadd.f32 0.0, %v6594
      %6596 = vmatmul.bf16.gmra.mxu0 %v6513
      %v6597 = vpop.f32.mrf.mxu0
      %v6598 = vadd.f32 0.0, %v6597
      %v6599 = vpop.f32.mrf.mxu0
      %v6600 = vadd.f32 0.0, %v6599
      %6601 = vmatmul.bf16.gmra.mxu0 %v6516
      %v6602 = vpop.f32.mrf.mxu0
      %v6603 = vadd.f32 0.0, %v6602
      %v6604 = vpop.f32.mrf.mxu0
      %v6605 = vadd.f32 0.0, %v6604
      %6606 = vmatmul.bf16.gmra.mxu0 %v6519
      %v6607 = vpop.f32.mrf.mxu0
      %v6608 = vadd.f32 0.0, %v6607
      %v6609 = vpop.f32.mrf.mxu0
      %v6610 = vadd.f32 0.0, %v6609
      %6611 = vmatmul.bf16.gmra.mxu0 %v6522
      %v6612 = vpop.f32.mrf.mxu0
      %v6613 = vadd.f32 0.0, %v6612
      %v6614 = vpop.f32.mrf.mxu0
      %v6615 = vadd.f32 0.0, %v6614
      %6616 = vmatmul.bf16.gmra.mxu0 %v6525
      %v6617 = vpop.f32.mrf.mxu0
      %v6618 = vadd.f32 0.0, %v6617
      %v6619 = vpop.f32.mrf.mxu0
      %v6620 = vadd.f32 0.0, %v6619
      %6621 = vmatmul.bf16.gmra.mxu0 %v6528
      %v6622 = vpop.f32.mrf.mxu0
      %v6623 = vadd.f32 0.0, %v6622
      %v6624 = vpop.f32.mrf.mxu0
      %v6625 = vadd.f32 0.0, %v6624
      %6626 = vmatmul.bf16.gmra.mxu0 %v6531
      %v6627 = vpop.f32.mrf.mxu0
      %v6628 = vadd.f32 0.0, %v6627
      %v6629 = vpop.f32.mrf.mxu0
      %v6630 = vadd.f32 0.0, %v6629
      %6631 = vdwg.mxu0
      %v6632 = vadd.f32 %v6372, %v6543
      %v6633 = vadd.f32 %v6373, %v6545
      %v6634 = vadd.f32 %v6374, %v6548
      %v6635 = vadd.f32 %v6375, %v6550
      %v6636 = vadd.f32 %v6376, %v6553
      %v6637 = vadd.f32 %v6377, %v6555
      %v6638 = vadd.f32 %v6378, %v6558
      %v6639 = vadd.f32 %v6379, %v6560
      %v6640 = vadd.f32 %v6380, %v6563
      %v6641 = vadd.f32 %v6381, %v6565
      %v6642 = vadd.f32 %v6382, %v6568
      %v6643 = vadd.f32 %v6383, %v6570
      %v6644 = vadd.f32 %v6384, %v6573
      %v6645 = vadd.f32 %v6385, %v6575
      %v6646 = vadd.f32 %v6386, %v6578
      %v6647 = vadd.f32 %v6387, %v6580
      %v6648 = vadd.f32 %v6388, %v6583
      %v6649 = vadd.f32 %v6389, %v6585
      %v6650 = vadd.f32 %v6390, %v6588
      %v6651 = vadd.f32 %v6391, %v6590
      %v6652 = vadd.f32 %v6392, %v6593
      %v6653 = vadd.f32 %v6393, %v6595
      %v6654 = vadd.f32 %v6394, %v6598
      %v6655 = vadd.f32 %v6395, %v6600
      %v6656 = vadd.f32 %v6396, %v6603
      %v6657 = vadd.f32 %v6397, %v6605
      %v6658 = vadd.f32 %v6398, %v6608
      %v6659 = vadd.f32 %v6399, %v6610
      %v6660 = vadd.f32 %v6400, %v6613
      %v6661 = vadd.f32 %v6401, %v6615
      %v6662 = vadd.f32 %v6402, %v6618
      %v6663 = vadd.f32 %v6403, %v6620
      %v6664 = vadd.f32 %v6404, %v6623
      %v6665 = vadd.f32 %v6405, %v6625
      %v6666 = vadd.f32 %v6406, %v6628
      %v6667 = vadd.f32 %v6407, %v6630
      %v6668 = vld [vmem:[#allocation3 + $0x19] sm:$0xff]
      %v6669 = vld [vmem:[#allocation3 + $0x21] sm:$0xff]
      %v6670 = vld [vmem:[#allocation3 + $0x29] sm:$0xff]
      %v6671 = vld [vmem:[#allocation3 + $0x31] sm:$0xff]
      %v6672 = vld [vmem:[#allocation3 + $0x39] sm:$0xff]
      %v6673 = vld [vmem:[#allocation3 + $0x41] sm:$0xff]
      %v6674 = vld [vmem:[#allocation3 + $0x49] sm:$0xff]
      %v6675 = vld [vmem:[#allocation3 + $0x51] sm:$0xff]
      %v6676 = vld [vmem:[#allocation3 + $0x59] sm:$0xff]
      %v6677 = vld [vmem:[#allocation3 + $0x61] sm:$0xff]
      %v6678 = vld [vmem:[#allocation3 + $0x69] sm:$0xff]
      %v6679 = vld [vmem:[#allocation3 + $0x71] sm:$0xff]
      %v6680 = vld [vmem:[#allocation3 + $0x79] sm:$0xff]
      %v6681 = vld [vmem:[#allocation3 + $0x81] sm:$0xff]
      %v6682 = vld [vmem:[#allocation3 + $0x89] sm:$0xff]
      %v6683 = vld [vmem:[#allocation3 + $0x91] sm:$0xff]
      %v6684 = vld [vmem:[#allocation3 + $0x99] sm:$0xff]
      %v6685 = vld [vmem:[#allocation3 + $0xa1] sm:$0xff]
      %v6686 = vld [vmem:[#allocation3 + $0xa9] sm:$0xff]
      %v6687 = vld [vmem:[#allocation3 + $0xb1] sm:$0xff]
      %v6688 = vld [vmem:[#allocation3 + $0xb9] sm:$0xff]
      %v6689 = vld [vmem:[#allocation3 + $0xc1] sm:$0xff]
      %v6690 = vld [vmem:[#allocation3 + $0xc9] sm:$0xff]
      %v6691 = vld [vmem:[#allocation3 + $0xd1] sm:$0xff]
      %v6692 = vld [vmem:[#allocation3 + $0xd9] sm:$0xff]
      %v6693 = vld [vmem:[#allocation3 + $0xe1] sm:$0xff]
      %v6694 = vld [vmem:[#allocation3 + $0xe9] sm:$0xff]
      %v6695 = vld [vmem:[#allocation3 + $0xf1] sm:$0xff]
      %v6696 = vld [vmem:[#allocation3 + $0xf9] sm:$0xff]
      %v6697 = vld [vmem:[#allocation3 + $0x101] sm:$0xff]
      %v6698 = vld [vmem:[#allocation3 + $0x109] sm:$0xff]
      %v6699 = vld [vmem:[#allocation3 + $0x111] sm:$0xff]
      %v6700 = vld [vmem:[#allocation3 + $0x119] sm:$0xff]
      %v6701 = vld [vmem:[#allocation3 + $0x121] sm:$0xff]
      %v6702 = vld [vmem:[#allocation3 + $0x129] sm:$0xff]
      %v6703 = vld [vmem:[#allocation3 + $0x131] sm:$0xff]
      %v6704 = vpack.c.bf16 %v6669, %v6668
      %v6705 = vpack.c.bf16 %v6671, %v6670
      %v6706 = vpack.c.bf16 %v6673, %v6672
      %v6707 = vpack.c.bf16 %v6675, %v6674
      %v6708 = vpack.c.bf16 %v6677, %v6676
      %v6709 = vpack.c.bf16 %v6679, %v6678
      %v6710 = vpack.c.bf16 %v6681, %v6680
      %v6711 = vpack.c.bf16 %v6683, %v6682
      %v6712 = vpack.c.bf16 %v6685, %v6684
      %v6713 = vpack.c.bf16 %v6687, %v6686
      %v6714 = vpack.c.bf16 %v6689, %v6688
      %v6715 = vpack.c.bf16 %v6691, %v6690
      %v6716 = vpack.c.bf16 %v6693, %v6692
      %v6717 = vpack.c.bf16 %v6695, %v6694
      %v6718 = vpack.c.bf16 %v6697, %v6696
      %v6719 = vpack.c.bf16 %v6699, %v6698
      %v6720 = vpack.c.bf16 %v6701, %v6700
      %v6721 = vpack.c.bf16 %v6703, %v6702
      %s6722 = scalar_lea.vmem %s5, 80
      %v6723 = vld [vmem:[%s6722] sm:$0xf]
      %v6724 = vld [vmem:[%s6722 + $0x4] sm:$0xf]
      %v6725 = vld [vmem:[%s6722 + $0x8] sm:$0xf]
      %v6726 = vld [vmem:[%s6722 + $0xc] sm:$0xf]
      %v6731 = vunpack.c.l.b16 %v6723
      %v6732 = vunpack.c.l.b16 %v6724
      %v6733 = vunpack.c.l.b16 %v6725
      %v6734 = vunpack.c.l.b16 %v6726
      %v6735 = vpack.c.b16 %v6732, %v6731
      %v6736 = vpack.c.b16 %v6734, %v6733
      %v6740 = vsel %vm472, %v6704, 0
      %v6743 = vsel %vm472, %v6705, 0
      %v6746 = vsel %vm472, %v6706, 0
      %v6749 = vsel %vm472, %v6707, 0
      %v6752 = vsel %vm472, %v6708, 0
      %v6755 = vsel %vm472, %v6709, 0
      %v6758 = vsel %vm472, %v6710, 0
      %v6761 = vsel %vm472, %v6711, 0
      %v6764 = vsel %vm472, %v6712, 0
      %v6767 = vsel %vm472, %v6713, 0
      %v6770 = vsel %vm472, %v6714, 0
      %v6773 = vsel %vm472, %v6715, 0
      %v6776 = vsel %vm472, %v6716, 0
      %v6779 = vsel %vm472, %v6717, 0
      %v6782 = vsel %vm472, %v6718, 0
      %v6785 = vsel %vm472, %v6719, 0
      %v6788 = vsel %vm472, %v6720, 0
      %v6791 = vsel %vm472, %v6721, 0
      %6793 = vmatpush.bf16.msra.mxu0 0
      %6794 = vmatpush.bf16.msra.mxu0 0
      %6795 = vmatpush.bf16.msra.mxu0 0
      %6796 = vmatpush.bf16.msra.mxu0 0
      %6797 = vmatpush.bf16.msra.mxu0 0
      %6798 = vmatpush.bf16.msra.mxu0 0
      %6799 = vmatpush.bf16.msra.mxu0 %v6736
      %6800 = vmatpush.bf16.msra.mxu0 %v6735
      %6801 = vmatmul.bf16.gmra.mxu0 %v6740
      %v6802 = vpop.f32.mrf.mxu0
      %v6803 = vadd.f32 0.0, %v6802
      %v6804 = vpop.f32.mrf.mxu0
      %v6805 = vadd.f32 0.0, %v6804
      %6806 = vmatmul.bf16.gmra.mxu0 %v6743
      %v6807 = vpop.f32.mrf.mxu0
      %v6808 = vadd.f32 0.0, %v6807
      %v6809 = vpop.f32.mrf.mxu0
      %v6810 = vadd.f32 0.0, %v6809
      %6811 = vmatmul.bf16.gmra.mxu0 %v6746
      %v6812 = vpop.f32.mrf.mxu0
      %v6813 = vadd.f32 0.0, %v6812
      %v6814 = vpop.f32.mrf.mxu0
      %v6815 = vadd.f32 0.0, %v6814
      %6816 = vmatmul.bf16.gmra.mxu0 %v6749
      %v6817 = vpop.f32.mrf.mxu0
      %v6818 = vadd.f32 0.0, %v6817
      %v6819 = vpop.f32.mrf.mxu0
      %v6820 = vadd.f32 0.0, %v6819
      %6821 = vmatmul.bf16.gmra.mxu0 %v6752
      %v6822 = vpop.f32.mrf.mxu0
      %v6823 = vadd.f32 0.0, %v6822
      %v6824 = vpop.f32.mrf.mxu0
      %v6825 = vadd.f32 0.0, %v6824
      %6826 = vmatmul.bf16.gmra.mxu0 %v6755
      %v6827 = vpop.f32.mrf.mxu0
      %v6828 = vadd.f32 0.0, %v6827
      %v6829 = vpop.f32.mrf.mxu0
      %v6830 = vadd.f32 0.0, %v6829
      %6831 = vmatmul.bf16.gmra.mxu0 %v6758
      %v6832 = vpop.f32.mrf.mxu0
      %v6833 = vadd.f32 0.0, %v6832
      %v6834 = vpop.f32.mrf.mxu0
      %v6835 = vadd.f32 0.0, %v6834
      %6836 = vmatmul.bf16.gmra.mxu0 %v6761
      %v6837 = vpop.f32.mrf.mxu0
      %v6838 = vadd.f32 0.0, %v6837
      %v6839 = vpop.f32.mrf.mxu0
      %v6840 = vadd.f32 0.0, %v6839
      %6841 = vmatmul.bf16.gmra.mxu0 %v6764
      %v6842 = vpop.f32.mrf.mxu0
      %v6843 = vadd.f32 0.0, %v6842
      %v6844 = vpop.f32.mrf.mxu0
      %v6845 = vadd.f32 0.0, %v6844
      %6846 = vmatmul.bf16.gmra.mxu0 %v6767
      %v6847 = vpop.f32.mrf.mxu0
      %v6848 = vadd.f32 0.0, %v6847
      %v6849 = vpop.f32.mrf.mxu0
      %v6850 = vadd.f32 0.0, %v6849
      %6851 = vmatmul.bf16.gmra.mxu0 %v6770
      %v6852 = vpop.f32.mrf.mxu0
      %v6853 = vadd.f32 0.0, %v6852
      %v6854 = vpop.f32.mrf.mxu0
      %v6855 = vadd.f32 0.0, %v6854
      %6856 = vmatmul.bf16.gmra.mxu0 %v6773
      %v6857 = vpop.f32.mrf.mxu0
      %v6858 = vadd.f32 0.0, %v6857
      %v6859 = vpop.f32.mrf.mxu0
      %v6860 = vadd.f32 0.0, %v6859
      %6861 = vmatmul.bf16.gmra.mxu0 %v6776
      %v6862 = vpop.f32.mrf.mxu0
      %v6863 = vadd.f32 0.0, %v6862
      %v6864 = vpop.f32.mrf.mxu0
      %v6865 = vadd.f32 0.0, %v6864
      %6866 = vmatmul.bf16.gmra.mxu0 %v6779
      %v6867 = vpop.f32.mrf.mxu0
      %v6868 = vadd.f32 0.0, %v6867
      %v6869 = vpop.f32.mrf.mxu0
      %v6870 = vadd.f32 0.0, %v6869
      %6871 = vmatmul.bf16.gmra.mxu0 %v6782
      %v6872 = vpop.f32.mrf.mxu0
      %v6873 = vadd.f32 0.0, %v6872
      %v6874 = vpop.f32.mrf.mxu0
      %v6875 = vadd.f32 0.0, %v6874
      %6876 = vmatmul.bf16.gmra.mxu0 %v6785
      %v6877 = vpop.f32.mrf.mxu0
      %v6878 = vadd.f32 0.0, %v6877
      %v6879 = vpop.f32.mrf.mxu0
      %v6880 = vadd.f32 0.0, %v6879
      %6881 = vmatmul.bf16.gmra.mxu0 %v6788
      %v6882 = vpop.f32.mrf.mxu0
      %v6883 = vadd.f32 0.0, %v6882
      %v6884 = vpop.f32.mrf.mxu0
      %v6885 = vadd.f32 0.0, %v6884
      %6886 = vmatmul.bf16.gmra.mxu0 %v6791
      %v6887 = vpop.f32.mrf.mxu0
      %v6888 = vadd.f32 0.0, %v6887
      %v6889 = vpop.f32.mrf.mxu0
      %v6890 = vadd.f32 0.0, %v6889
      %6891 = vdwg.mxu0
      %v6892 = vadd.f32 %v6632, %v6803
      %v6893 = vadd.f32 %v6633, %v6805
      %v6894 = vadd.f32 %v6634, %v6808
      %v6895 = vadd.f32 %v6635, %v6810
      %v6896 = vadd.f32 %v6636, %v6813
      %v6897 = vadd.f32 %v6637, %v6815
      %v6898 = vadd.f32 %v6638, %v6818
      %v6899 = vadd.f32 %v6639, %v6820
      %v6900 = vadd.f32 %v6640, %v6823
      %v6901 = vadd.f32 %v6641, %v6825
      %v6902 = vadd.f32 %v6642, %v6828
      %v6903 = vadd.f32 %v6643, %v6830
      %v6904 = vadd.f32 %v6644, %v6833
      %v6905 = vadd.f32 %v6645, %v6835
      %v6906 = vadd.f32 %v6646, %v6838
      %v6907 = vadd.f32 %v6647, %v6840
      %v6908 = vadd.f32 %v6648, %v6843
      %v6909 = vadd.f32 %v6649, %v6845
      %v6910 = vadd.f32 %v6650, %v6848
      %v6911 = vadd.f32 %v6651, %v6850
      %v6912 = vadd.f32 %v6652, %v6853
      %v6913 = vadd.f32 %v6653, %v6855
      %v6914 = vadd.f32 %v6654, %v6858
      %v6915 = vadd.f32 %v6655, %v6860
      %v6916 = vadd.f32 %v6656, %v6863
      %v6917 = vadd.f32 %v6657, %v6865
      %v6918 = vadd.f32 %v6658, %v6868
      %v6919 = vadd.f32 %v6659, %v6870
      %v6920 = vadd.f32 %v6660, %v6873
      %v6921 = vadd.f32 %v6661, %v6875
      %v6922 = vadd.f32 %v6662, %v6878
      %v6923 = vadd.f32 %v6663, %v6880
      %v6924 = vadd.f32 %v6664, %v6883
      %v6925 = vadd.f32 %v6665, %v6885
      %v6926 = vadd.f32 %v6666, %v6888
      %v6927 = vadd.f32 %v6667, %v6890
      %v6928 = vld [vmem:[#allocation3 + $0x29] sm:$0xff]
      %v6929 = vld [vmem:[#allocation3 + $0x31] sm:$0xff]
      %v6930 = vld [vmem:[#allocation3 + $0x39] sm:$0xff]
      %v6931 = vld [vmem:[#allocation3 + $0x41] sm:$0xff]
      %v6932 = vld [vmem:[#allocation3 + $0x49] sm:$0xff]
      %v6933 = vld [vmem:[#allocation3 + $0x51] sm:$0xff]
      %v6934 = vld [vmem:[#allocation3 + $0x59] sm:$0xff]
      %v6935 = vld [vmem:[#allocation3 + $0x61] sm:$0xff]
      %v6936 = vld [vmem:[#allocation3 + $0x69] sm:$0xff]
      %v6937 = vld [vmem:[#allocation3 + $0x71] sm:$0xff]
      %v6938 = vld [vmem:[#allocation3 + $0x79] sm:$0xff]
      %v6939 = vld [vmem:[#allocation3 + $0x81] sm:$0xff]
      %v6940 = vld [vmem:[#allocation3 + $0x89] sm:$0xff]
      %v6941 = vld [vmem:[#allocation3 + $0x91] sm:$0xff]
      %v6942 = vld [vmem:[#allocation3 + $0x99] sm:$0xff]
      %v6943 = vld [vmem:[#allocation3 + $0xa1] sm:$0xff]
      %v6944 = vld [vmem:[#allocation3 + $0xa9] sm:$0xff]
      %v6945 = vld [vmem:[#allocation3 + $0xb1] sm:$0xff]
      %v6946 = vld [vmem:[#allocation3 + $0xb9] sm:$0xff]
      %v6947 = vld [vmem:[#allocation3 + $0xc1] sm:$0xff]
      %v6948 = vld [vmem:[#allocation3 + $0xc9] sm:$0xff]
      %v6949 = vld [vmem:[#allocation3 + $0xd1] sm:$0xff]
      %v6950 = vld [vmem:[#allocation3 + $0xd9] sm:$0xff]
      %v6951 = vld [vmem:[#allocation3 + $0xe1] sm:$0xff]
      %v6952 = vld [vmem:[#allocation3 + $0xe9] sm:$0xff]
      %v6953 = vld [vmem:[#allocation3 + $0xf1] sm:$0xff]
      %v6954 = vld [vmem:[#allocation3 + $0xf9] sm:$0xff]
      %v6955 = vld [vmem:[#allocation3 + $0x101] sm:$0xff]
      %v6956 = vld [vmem:[#allocation3 + $0x109] sm:$0xff]
      %v6957 = vld [vmem:[#allocation3 + $0x111] sm:$0xff]
      %v6958 = vld [vmem:[#allocation3 + $0x119] sm:$0xff]
      %v6959 = vld [vmem:[#allocation3 + $0x121] sm:$0xff]
      %v6960 = vld [vmem:[#allocation3 + $0x129] sm:$0xff]
      %v6961 = vld [vmem:[#allocation3 + $0x131] sm:$0xff]
      %v6962 = vld [vmem:[#allocation3 + $0x139] sm:$0xff]
      %v6963 = vld [vmem:[#allocation3 + $0x141] sm:$0xff]
      %v6964 = vpack.c.bf16 %v6929, %v6928
      %v6965 = vpack.c.bf16 %v6931, %v6930
      %v6966 = vpack.c.bf16 %v6933, %v6932
      %v6967 = vpack.c.bf16 %v6935, %v6934
      %v6968 = vpack.c.bf16 %v6937, %v6936
      %v6969 = vpack.c.bf16 %v6939, %v6938
      %v6970 = vpack.c.bf16 %v6941, %v6940
      %v6971 = vpack.c.bf16 %v6943, %v6942
      %v6972 = vpack.c.bf16 %v6945, %v6944
      %v6973 = vpack.c.bf16 %v6947, %v6946
      %v6974 = vpack.c.bf16 %v6949, %v6948
      %v6975 = vpack.c.bf16 %v6951, %v6950
      %v6976 = vpack.c.bf16 %v6953, %v6952
      %v6977 = vpack.c.bf16 %v6955, %v6954
      %v6978 = vpack.c.bf16 %v6957, %v6956
      %v6979 = vpack.c.bf16 %v6959, %v6958
      %v6980 = vpack.c.bf16 %v6961, %v6960
      %v6981 = vpack.c.bf16 %v6963, %v6962
      %s6982 = scalar_lea.vmem %s5, 96
      %v6983 = vld [vmem:[%s6982] sm:$0xf]
      %v6984 = vld [vmem:[%s6982 + $0x4] sm:$0xf]
      %v6985 = vld [vmem:[%s6982 + $0x8] sm:$0xf]
      %v6986 = vld [vmem:[%s6982 + $0xc] sm:$0xf]
      %v6991 = vunpack.c.l.b16 %v6983
      %v6992 = vunpack.c.l.b16 %v6984
      %v6993 = vunpack.c.l.b16 %v6985
      %v6994 = vunpack.c.l.b16 %v6986
      %v6995 = vpack.c.b16 %v6992, %v6991
      %v6996 = vpack.c.b16 %v6994, %v6993
      %v7000 = vsel %vm472, %v6964, 0
      %v7003 = vsel %vm472, %v6965, 0
      %v7006 = vsel %vm472, %v6966, 0
      %v7009 = vsel %vm472, %v6967, 0
      %v7012 = vsel %vm472, %v6968, 0
      %v7015 = vsel %vm472, %v6969, 0
      %v7018 = vsel %vm472, %v6970, 0
      %v7021 = vsel %vm472, %v6971, 0
      %v7024 = vsel %vm472, %v6972, 0
      %v7027 = vsel %vm472, %v6973, 0
      %v7030 = vsel %vm472, %v6974, 0
      %v7033 = vsel %vm472, %v6975, 0
      %v7036 = vsel %vm472, %v6976, 0
      %v7039 = vsel %vm472, %v6977, 0
      %v7042 = vsel %vm472, %v6978, 0
      %v7045 = vsel %vm472, %v6979, 0
      %v7048 = vsel %vm472, %v6980, 0
      %v7051 = vsel %vm472, %v6981, 0
      %7053 = vmatpush.bf16.msra.mxu0 0
      %7054 = vmatpush.bf16.msra.mxu0 0
      %7055 = vmatpush.bf16.msra.mxu0 0
      %7056 = vmatpush.bf16.msra.mxu0 0
      %7057 = vmatpush.bf16.msra.mxu0 0
      %7058 = vmatpush.bf16.msra.mxu0 0
      %7059 = vmatpush.bf16.msra.mxu0 %v6996
      %7060 = vmatpush.bf16.msra.mxu0 %v6995
      %7061 = vmatmul.bf16.gmra.mxu0 %v7000
      %v7062 = vpop.f32.mrf.mxu0
      %v7063 = vadd.f32 0.0, %v7062
      %v7064 = vpop.f32.mrf.mxu0
      %v7065 = vadd.f32 0.0, %v7064
      %7066 = vmatmul.bf16.gmra.mxu0 %v7003
      %v7067 = vpop.f32.mrf.mxu0
      %v7068 = vadd.f32 0.0, %v7067
      %v7069 = vpop.f32.mrf.mxu0
      %v7070 = vadd.f32 0.0, %v7069
      %7071 = vmatmul.bf16.gmra.mxu0 %v7006
      %v7072 = vpop.f32.mrf.mxu0
      %v7073 = vadd.f32 0.0, %v7072
      %v7074 = vpop.f32.mrf.mxu0
      %v7075 = vadd.f32 0.0, %v7074
      %7076 = vmatmul.bf16.gmra.mxu0 %v7009
      %v7077 = vpop.f32.mrf.mxu0
      %v7078 = vadd.f32 0.0, %v7077
      %v7079 = vpop.f32.mrf.mxu0
      %v7080 = vadd.f32 0.0, %v7079
      %7081 = vmatmul.bf16.gmra.mxu0 %v7012
      %v7082 = vpop.f32.mrf.mxu0
      %v7083 = vadd.f32 0.0, %v7082
      %v7084 = vpop.f32.mrf.mxu0
      %v7085 = vadd.f32 0.0, %v7084
      %7086 = vmatmul.bf16.gmra.mxu0 %v7015
      %v7087 = vpop.f32.mrf.mxu0
      %v7088 = vadd.f32 0.0, %v7087
      %v7089 = vpop.f32.mrf.mxu0
      %v7090 = vadd.f32 0.0, %v7089
      %7091 = vmatmul.bf16.gmra.mxu0 %v7018
      %v7092 = vpop.f32.mrf.mxu0
      %v7093 = vadd.f32 0.0, %v7092
      %v7094 = vpop.f32.mrf.mxu0
      %v7095 = vadd.f32 0.0, %v7094
      %7096 = vmatmul.bf16.gmra.mxu0 %v7021
      %v7097 = vpop.f32.mrf.mxu0
      %v7098 = vadd.f32 0.0, %v7097
      %v7099 = vpop.f32.mrf.mxu0
      %v7100 = vadd.f32 0.0, %v7099
      %7101 = vmatmul.bf16.gmra.mxu0 %v7024
      %v7102 = vpop.f32.mrf.mxu0
      %v7103 = vadd.f32 0.0, %v7102
      %v7104 = vpop.f32.mrf.mxu0
      %v7105 = vadd.f32 0.0, %v7104
      %7106 = vmatmul.bf16.gmra.mxu0 %v7027
      %v7107 = vpop.f32.mrf.mxu0
      %v7108 = vadd.f32 0.0, %v7107
      %v7109 = vpop.f32.mrf.mxu0
      %v7110 = vadd.f32 0.0, %v7109
      %7111 = vmatmul.bf16.gmra.mxu0 %v7030
      %v7112 = vpop.f32.mrf.mxu0
      %v7113 = vadd.f32 0.0, %v7112
      %v7114 = vpop.f32.mrf.mxu0
      %v7115 = vadd.f32 0.0, %v7114
      %7116 = vmatmul.bf16.gmra.mxu0 %v7033
      %v7117 = vpop.f32.mrf.mxu0
      %v7118 = vadd.f32 0.0, %v7117
      %v7119 = vpop.f32.mrf.mxu0
      %v7120 = vadd.f32 0.0, %v7119
      %7121 = vmatmul.bf16.gmra.mxu0 %v7036
      %v7122 = vpop.f32.mrf.mxu0
      %v7123 = vadd.f32 0.0, %v7122
      %v7124 = vpop.f32.mrf.mxu0
      %v7125 = vadd.f32 0.0, %v7124
      %7126 = vmatmul.bf16.gmra.mxu0 %v7039
      %v7127 = vpop.f32.mrf.mxu0
      %v7128 = vadd.f32 0.0, %v7127
      %v7129 = vpop.f32.mrf.mxu0
      %v7130 = vadd.f32 0.0, %v7129
      %7131 = vmatmul.bf16.gmra.mxu0 %v7042
      %v7132 = vpop.f32.mrf.mxu0
      %v7133 = vadd.f32 0.0, %v7132
      %v7134 = vpop.f32.mrf.mxu0
      %v7135 = vadd.f32 0.0, %v7134
      %7136 = vmatmul.bf16.gmra.mxu0 %v7045
      %v7137 = vpop.f32.mrf.mxu0
      %v7138 = vadd.f32 0.0, %v7137
      %v7139 = vpop.f32.mrf.mxu0
      %v7140 = vadd.f32 0.0, %v7139
      %7141 = vmatmul.bf16.gmra.mxu0 %v7048
      %v7142 = vpop.f32.mrf.mxu0
      %v7143 = vadd.f32 0.0, %v7142
      %v7144 = vpop.f32.mrf.mxu0
      %v7145 = vadd.f32 0.0, %v7144
      %7146 = vmatmul.bf16.gmra.mxu0 %v7051
      %v7147 = vpop.f32.mrf.mxu0
      %v7148 = vadd.f32 0.0, %v7147
      %v7149 = vpop.f32.mrf.mxu0
      %v7150 = vadd.f32 0.0, %v7149
      %7151 = vdwg.mxu0
      %v7152 = vadd.f32 %v6892, %v7063
      %v7153 = vadd.f32 %v6893, %v7065
      %v7154 = vadd.f32 %v6894, %v7068
      %v7155 = vadd.f32 %v6895, %v7070
      %v7156 = vadd.f32 %v6896, %v7073
      %v7157 = vadd.f32 %v6897, %v7075
      %v7158 = vadd.f32 %v6898, %v7078
      %v7159 = vadd.f32 %v6899, %v7080
      %v7160 = vadd.f32 %v6900, %v7083
      %v7161 = vadd.f32 %v6901, %v7085
      %v7162 = vadd.f32 %v6902, %v7088
      %v7163 = vadd.f32 %v6903, %v7090
      %v7164 = vadd.f32 %v6904, %v7093
      %v7165 = vadd.f32 %v6905, %v7095
      %v7166 = vadd.f32 %v6906, %v7098
      %v7167 = vadd.f32 %v6907, %v7100
      %v7168 = vadd.f32 %v6908, %v7103
      %v7169 = vadd.f32 %v6909, %v7105
      %v7170 = vadd.f32 %v6910, %v7108
      %v7171 = vadd.f32 %v6911, %v7110
      %v7172 = vadd.f32 %v6912, %v7113
      %v7173 = vadd.f32 %v6913, %v7115
      %v7174 = vadd.f32 %v6914, %v7118
      %v7175 = vadd.f32 %v6915, %v7120
      %v7176 = vadd.f32 %v6916, %v7123
      %v7177 = vadd.f32 %v6917, %v7125
      %v7178 = vadd.f32 %v6918, %v7128
      %v7179 = vadd.f32 %v6919, %v7130
      %v7180 = vadd.f32 %v6920, %v7133
      %v7181 = vadd.f32 %v6921, %v7135
      %v7182 = vadd.f32 %v6922, %v7138
      %v7183 = vadd.f32 %v6923, %v7140
      %v7184 = vadd.f32 %v6924, %v7143
      %v7185 = vadd.f32 %v6925, %v7145
      %v7186 = vadd.f32 %v6926, %v7148
      %v7187 = vadd.f32 %v6927, %v7150
      %v7188 = vld [vmem:[#allocation3 + $0x2a] sm:$0xff]
      %v7189 = vld [vmem:[#allocation3 + $0x32] sm:$0xff]
      %v7190 = vld [vmem:[#allocation3 + $0x3a] sm:$0xff]
      %v7191 = vld [vmem:[#allocation3 + $0x42] sm:$0xff]
      %v7192 = vld [vmem:[#allocation3 + $0x4a] sm:$0xff]
      %v7193 = vld [vmem:[#allocation3 + $0x52] sm:$0xff]
      %v7194 = vld [vmem:[#allocation3 + $0x5a] sm:$0xff]
      %v7195 = vld [vmem:[#allocation3 + $0x62] sm:$0xff]
      %v7196 = vld [vmem:[#allocation3 + $0x6a] sm:$0xff]
      %v7197 = vld [vmem:[#allocation3 + $0x72] sm:$0xff]
      %v7198 = vld [vmem:[#allocation3 + $0x7a] sm:$0xff]
      %v7199 = vld [vmem:[#allocation3 + $0x82] sm:$0xff]
      %v7200 = vld [vmem:[#allocation3 + $0x8a] sm:$0xff]
      %v7201 = vld [vmem:[#allocation3 + $0x92] sm:$0xff]
      %v7202 = vld [vmem:[#allocation3 + $0x9a] sm:$0xff]
      %v7203 = vld [vmem:[#allocation3 + $0xa2] sm:$0xff]
      %v7204 = vld [vmem:[#allocation3 + $0xaa] sm:$0xff]
      %v7205 = vld [vmem:[#allocation3 + $0xb2] sm:$0xff]
      %v7206 = vld [vmem:[#allocation3 + $0xba] sm:$0xff]
      %v7207 = vld [vmem:[#allocation3 + $0xc2] sm:$0xff]
      %v7208 = vld [vmem:[#allocation3 + $0xca] sm:$0xff]
      %v7209 = vld [vmem:[#allocation3 + $0xd2] sm:$0xff]
      %v7210 = vld [vmem:[#allocation3 + $0xda] sm:$0xff]
      %v7211 = vld [vmem:[#allocation3 + $0xe2] sm:$0xff]
      %v7212 = vld [vmem:[#allocation3 + $0xea] sm:$0xff]
      %v7213 = vld [vmem:[#allocation3 + $0xf2] sm:$0xff]
      %v7214 = vld [vmem:[#allocation3 + $0xfa] sm:$0xff]
      %v7215 = vld [vmem:[#allocation3 + $0x102] sm:$0xff]
      %v7216 = vld [vmem:[#allocation3 + $0x10a] sm:$0xff]
      %v7217 = vld [vmem:[#allocation3 + $0x112] sm:$0xff]
      %v7218 = vld [vmem:[#allocation3 + $0x11a] sm:$0xff]
      %v7219 = vld [vmem:[#allocation3 + $0x122] sm:$0xff]
      %v7220 = vld [vmem:[#allocation3 + $0x12a] sm:$0xff]
      %v7221 = vld [vmem:[#allocation3 + $0x132] sm:$0xff]
      %v7222 = vld [vmem:[#allocation3 + $0x13a] sm:$0xff]
      %v7223 = vld [vmem:[#allocation3 + $0x142] sm:$0xff]
      %v7224 = vpack.c.bf16 %v7189, %v7188
      %v7225 = vpack.c.bf16 %v7191, %v7190
      %v7226 = vpack.c.bf16 %v7193, %v7192
      %v7227 = vpack.c.bf16 %v7195, %v7194
      %v7228 = vpack.c.bf16 %v7197, %v7196
      %v7229 = vpack.c.bf16 %v7199, %v7198
      %v7230 = vpack.c.bf16 %v7201, %v7200
      %v7231 = vpack.c.bf16 %v7203, %v7202
      %v7232 = vpack.c.bf16 %v7205, %v7204
      %v7233 = vpack.c.bf16 %v7207, %v7206
      %v7234 = vpack.c.bf16 %v7209, %v7208
      %v7235 = vpack.c.bf16 %v7211, %v7210
      %v7236 = vpack.c.bf16 %v7213, %v7212
      %v7237 = vpack.c.bf16 %v7215, %v7214
      %v7238 = vpack.c.bf16 %v7217, %v7216
      %v7239 = vpack.c.bf16 %v7219, %v7218
      %v7240 = vpack.c.bf16 %v7221, %v7220
      %v7241 = vpack.c.bf16 %v7223, %v7222
      %s7242 = scalar_lea.vmem %s5, 112
      %v7243 = vld [vmem:[%s7242] sm:$0xf]
      %v7244 = vld [vmem:[%s7242 + $0x4] sm:$0xf]
      %v7245 = vld [vmem:[%s7242 + $0x8] sm:$0xf]
      %v7246 = vld [vmem:[%s7242 + $0xc] sm:$0xf]
      %v7251 = vunpack.c.l.b16 %v7243
      %v7252 = vunpack.c.l.b16 %v7244
      %v7253 = vunpack.c.l.b16 %v7245
      %v7254 = vunpack.c.l.b16 %v7246
      %v7255 = vpack.c.b16 %v7252, %v7251
      %v7256 = vpack.c.b16 %v7254, %v7253
      %v7260 = vsel %vm472, %v7224, 0
      %v7263 = vsel %vm472, %v7225, 0
      %v7266 = vsel %vm472, %v7226, 0
      %v7269 = vsel %vm472, %v7227, 0
      %v7272 = vsel %vm472, %v7228, 0
      %v7275 = vsel %vm472, %v7229, 0
      %v7278 = vsel %vm472, %v7230, 0
      %v7281 = vsel %vm472, %v7231, 0
      %v7284 = vsel %vm472, %v7232, 0
      %v7287 = vsel %vm472, %v7233, 0
      %v7290 = vsel %vm472, %v7234, 0
      %v7293 = vsel %vm472, %v7235, 0
      %v7296 = vsel %vm472, %v7236, 0
      %v7299 = vsel %vm472, %v7237, 0
      %v7302 = vsel %vm472, %v7238, 0
      %v7305 = vsel %vm472, %v7239, 0
      %v7308 = vsel %vm472, %v7240, 0
      %v7311 = vsel %vm472, %v7241, 0
      %7313 = vmatpush.bf16.msra.mxu0 0
      %7314 = vmatpush.bf16.msra.mxu0 0
      %7315 = vmatpush.bf16.msra.mxu0 0
      %7316 = vmatpush.bf16.msra.mxu0 0
      %7317 = vmatpush.bf16.msra.mxu0 0
      %7318 = vmatpush.bf16.msra.mxu0 0
      %7319 = vmatpush.bf16.msra.mxu0 %v7256
      %7320 = vmatpush.bf16.msra.mxu0 %v7255
      %7321 = vmatmul.bf16.gmra.mxu0 %v7260
      %v7322 = vpop.f32.mrf.mxu0
      %v7323 = vadd.f32 0.0, %v7322
      %v7324 = vpop.f32.mrf.mxu0
      %v7325 = vadd.f32 0.0, %v7324
      %7326 = vmatmul.bf16.gmra.mxu0 %v7263
      %v7327 = vpop.f32.mrf.mxu0
      %v7328 = vadd.f32 0.0, %v7327
      %v7329 = vpop.f32.mrf.mxu0
      %v7330 = vadd.f32 0.0, %v7329
      %7331 = vmatmul.bf16.gmra.mxu0 %v7266
      %v7332 = vpop.f32.mrf.mxu0
      %v7333 = vadd.f32 0.0, %v7332
      %v7334 = vpop.f32.mrf.mxu0
      %v7335 = vadd.f32 0.0, %v7334
      %7336 = vmatmul.bf16.gmra.mxu0 %v7269
      %v7337 = vpop.f32.mrf.mxu0
      %v7338 = vadd.f32 0.0, %v7337
      %v7339 = vpop.f32.mrf.mxu0
      %v7340 = vadd.f32 0.0, %v7339
      %7341 = vmatmul.bf16.gmra.mxu0 %v7272
      %v7342 = vpop.f32.mrf.mxu0
      %v7343 = vadd.f32 0.0, %v7342
      %v7344 = vpop.f32.mrf.mxu0
      %v7345 = vadd.f32 0.0, %v7344
      %7346 = vmatmul.bf16.gmra.mxu0 %v7275
      %v7347 = vpop.f32.mrf.mxu0
      %v7348 = vadd.f32 0.0, %v7347
      %v7349 = vpop.f32.mrf.mxu0
      %v7350 = vadd.f32 0.0, %v7349
      %7351 = vmatmul.bf16.gmra.mxu0 %v7278
      %v7352 = vpop.f32.mrf.mxu0
      %v7353 = vadd.f32 0.0, %v7352
      %v7354 = vpop.f32.mrf.mxu0
      %v7355 = vadd.f32 0.0, %v7354
      %7356 = vmatmul.bf16.gmra.mxu0 %v7281
      %v7357 = vpop.f32.mrf.mxu0
      %v7358 = vadd.f32 0.0, %v7357
      %v7359 = vpop.f32.mrf.mxu0
      %v7360 = vadd.f32 0.0, %v7359
      %7361 = vmatmul.bf16.gmra.mxu0 %v7284
      %v7362 = vpop.f32.mrf.mxu0
      %v7363 = vadd.f32 0.0, %v7362
      %v7364 = vpop.f32.mrf.mxu0
      %v7365 = vadd.f32 0.0, %v7364
      %7366 = vmatmul.bf16.gmra.mxu0 %v7287
      %v7367 = vpop.f32.mrf.mxu0
      %v7368 = vadd.f32 0.0, %v7367
      %v7369 = vpop.f32.mrf.mxu0
      %v7370 = vadd.f32 0.0, %v7369
      %7371 = vmatmul.bf16.gmra.mxu0 %v7290
      %v7372 = vpop.f32.mrf.mxu0
      %v7373 = vadd.f32 0.0, %v7372
      %v7374 = vpop.f32.mrf.mxu0
      %v7375 = vadd.f32 0.0, %v7374
      %7376 = vmatmul.bf16.gmra.mxu0 %v7293
      %v7377 = vpop.f32.mrf.mxu0
      %v7378 = vadd.f32 0.0, %v7377
      %v7379 = vpop.f32.mrf.mxu0
      %v7380 = vadd.f32 0.0, %v7379
      %7381 = vmatmul.bf16.gmra.mxu0 %v7296
      %v7382 = vpop.f32.mrf.mxu0
      %v7383 = vadd.f32 0.0, %v7382
      %v7384 = vpop.f32.mrf.mxu0
      %v7385 = vadd.f32 0.0, %v7384
      %7386 = vmatmul.bf16.gmra.mxu0 %v7299
      %v7387 = vpop.f32.mrf.mxu0
      %v7388 = vadd.f32 0.0, %v7387
      %v7389 = vpop.f32.mrf.mxu0
      %v7390 = vadd.f32 0.0, %v7389
      %7391 = vmatmul.bf16.gmra.mxu0 %v7302
      %v7392 = vpop.f32.mrf.mxu0
      %v7393 = vadd.f32 0.0, %v7392
      %v7394 = vpop.f32.mrf.mxu0
      %v7395 = vadd.f32 0.0, %v7394
      %7396 = vmatmul.bf16.gmra.mxu0 %v7305
      %v7397 = vpop.f32.mrf.mxu0
      %v7398 = vadd.f32 0.0, %v7397
      %v7399 = vpop.f32.mrf.mxu0
      %v7400 = vadd.f32 0.0, %v7399
      %7401 = vmatmul.bf16.gmra.mxu0 %v7308
      %v7402 = vpop.f32.mrf.mxu0
      %v7403 = vadd.f32 0.0, %v7402
      %v7404 = vpop.f32.mrf.mxu0
      %v7405 = vadd.f32 0.0, %v7404
      %7406 = vmatmul.bf16.gmra.mxu0 %v7311
      %v7407 = vpop.f32.mrf.mxu0
      %v7408 = vadd.f32 0.0, %v7407
      %v7409 = vpop.f32.mrf.mxu0
      %v7410 = vadd.f32 0.0, %v7409
      %7411 = vdwg.mxu0
      %v7412 = vadd.f32 %v7152, %v7323
      %v7413 = vadd.f32 %v7153, %v7325
      %v7414 = vadd.f32 %v7154, %v7328
      %v7415 = vadd.f32 %v7155, %v7330
      %v7416 = vadd.f32 %v7156, %v7333
      %v7417 = vadd.f32 %v7157, %v7335
      %v7418 = vadd.f32 %v7158, %v7338
      %v7419 = vadd.f32 %v7159, %v7340
      %v7420 = vadd.f32 %v7160, %v7343
      %v7421 = vadd.f32 %v7161, %v7345
      %v7422 = vadd.f32 %v7162, %v7348
      %v7423 = vadd.f32 %v7163, %v7350
      %v7424 = vadd.f32 %v7164, %v7353
      %v7425 = vadd.f32 %v7165, %v7355
      %v7426 = vadd.f32 %v7166, %v7358
      %v7427 = vadd.f32 %v7167, %v7360
      %v7428 = vadd.f32 %v7168, %v7363
      %v7429 = vadd.f32 %v7169, %v7365
      %v7430 = vadd.f32 %v7170, %v7368
      %v7431 = vadd.f32 %v7171, %v7370
      %v7432 = vadd.f32 %v7172, %v7373
      %v7433 = vadd.f32 %v7173, %v7375
      %v7434 = vadd.f32 %v7174, %v7378
      %v7435 = vadd.f32 %v7175, %v7380
      %v7436 = vadd.f32 %v7176, %v7383
      %v7437 = vadd.f32 %v7177, %v7385
      %v7438 = vadd.f32 %v7178, %v7388
      %v7439 = vadd.f32 %v7179, %v7390
      %v7440 = vadd.f32 %v7180, %v7393
      %v7441 = vadd.f32 %v7181, %v7395
      %v7442 = vadd.f32 %v7182, %v7398
      %v7443 = vadd.f32 %v7183, %v7400
      %v7444 = vadd.f32 %v7184, %v7403
      %v7445 = vadd.f32 %v7185, %v7405
      %v7446 = vadd.f32 %v7186, %v7408
      %v7447 = vadd.f32 %v7187, %v7410
      %v7448 = vld [vmem:[#allocation3 + $0x2b] sm:$0xff]
      %v7449 = vld [vmem:[#allocation3 + $0x33] sm:$0xff]
      %v7450 = vld [vmem:[#allocation3 + $0x3b] sm:$0xff]
      %v7451 = vld [vmem:[#allocation3 + $0x43] sm:$0xff]
      %v7452 = vld [vmem:[#allocation3 + $0x4b] sm:$0xff]
      %v7453 = vld [vmem:[#allocation3 + $0x53] sm:$0xff]
      %v7454 = vld [vmem:[#allocation3 + $0x5b] sm:$0xff]
      %v7455 = vld [vmem:[#allocation3 + $0x63] sm:$0xff]
      %v7456 = vld [vmem:[#allocation3 + $0x6b] sm:$0xff]
      %v7457 = vld [vmem:[#allocation3 + $0x73] sm:$0xff]
      %v7458 = vld [vmem:[#allocation3 + $0x7b] sm:$0xff]
      %v7459 = vld [vmem:[#allocation3 + $0x83] sm:$0xff]
      %v7460 = vld [vmem:[#allocation3 + $0x8b] sm:$0xff]
      %v7461 = vld [vmem:[#allocation3 + $0x93] sm:$0xff]
      %v7462 = vld [vmem:[#allocation3 + $0x9b] sm:$0xff]
      %v7463 = vld [vmem:[#allocation3 + $0xa3] sm:$0xff]
      %v7464 = vld [vmem:[#allocation3 + $0xab] sm:$0xff]
      %v7465 = vld [vmem:[#allocation3 + $0xb3] sm:$0xff]
      %v7466 = vld [vmem:[#allocation3 + $0xbb] sm:$0xff]
      %v7467 = vld [vmem:[#allocation3 + $0xc3] sm:$0xff]
      %v7468 = vld [vmem:[#allocation3 + $0xcb] sm:$0xff]
      %v7469 = vld [vmem:[#allocation3 + $0xd3] sm:$0xff]
      %v7470 = vld [vmem:[#allocation3 + $0xdb] sm:$0xff]
      %v7471 = vld [vmem:[#allocation3 + $0xe3] sm:$0xff]
      %v7472 = vld [vmem:[#allocation3 + $0xeb] sm:$0xff]
      %v7473 = vld [vmem:[#allocation3 + $0xf3] sm:$0xff]
      %v7474 = vld [vmem:[#allocation3 + $0xfb] sm:$0xff]
      %v7475 = vld [vmem:[#allocation3 + $0x103] sm:$0xff]
      %v7476 = vld [vmem:[#allocation3 + $0x10b] sm:$0xff]
      %v7477 = vld [vmem:[#allocation3 + $0x113] sm:$0xff]
      %v7478 = vld [vmem:[#allocation3 + $0x11b] sm:$0xff]
      %v7479 = vld [vmem:[#allocation3 + $0x123] sm:$0xff]
      %v7480 = vld [vmem:[#allocation3 + $0x12b] sm:$0xff]
      %v7481 = vld [vmem:[#allocation3 + $0x133] sm:$0xff]
      %v7482 = vld [vmem:[#allocation3 + $0x13b] sm:$0xff]
      %v7483 = vld [vmem:[#allocation3 + $0x143] sm:$0xff]
      %v7484 = vpack.c.bf16 %v7449, %v7448
      %v7485 = vpack.c.bf16 %v7451, %v7450
      %v7486 = vpack.c.bf16 %v7453, %v7452
      %v7487 = vpack.c.bf16 %v7455, %v7454
      %v7488 = vpack.c.bf16 %v7457, %v7456
      %v7489 = vpack.c.bf16 %v7459, %v7458
      %v7490 = vpack.c.bf16 %v7461, %v7460
      %v7491 = vpack.c.bf16 %v7463, %v7462
      %v7492 = vpack.c.bf16 %v7465, %v7464
      %v7493 = vpack.c.bf16 %v7467, %v7466
      %v7494 = vpack.c.bf16 %v7469, %v7468
      %v7495 = vpack.c.bf16 %v7471, %v7470
      %v7496 = vpack.c.bf16 %v7473, %v7472
      %v7497 = vpack.c.bf16 %v7475, %v7474
      %v7498 = vpack.c.bf16 %v7477, %v7476
      %v7499 = vpack.c.bf16 %v7479, %v7478
      %v7500 = vpack.c.bf16 %v7481, %v7480
      %v7501 = vpack.c.bf16 %v7483, %v7482
      %s7502 = scalar_lea.vmem %s5, 128
      %v7503 = vld [vmem:[%s7502] sm:$0xf]
      %v7504 = vld [vmem:[%s7502 + $0x4] sm:$0xf]
      %v7505 = vld [vmem:[%s7502 + $0x8] sm:$0xf]
      %v7506 = vld [vmem:[%s7502 + $0xc] sm:$0xf]
      %v7511 = vunpack.c.l.b16 %v7503
      %v7512 = vunpack.c.l.b16 %v7504
      %v7513 = vunpack.c.l.b16 %v7505
      %v7514 = vunpack.c.l.b16 %v7506
      %v7515 = vpack.c.b16 %v7512, %v7511
      %v7516 = vpack.c.b16 %v7514, %v7513
      %v7520 = vsel %vm472, %v7484, 0
      %v7523 = vsel %vm472, %v7485, 0
      %v7526 = vsel %vm472, %v7486, 0
      %v7529 = vsel %vm472, %v7487, 0
      %v7532 = vsel %vm472, %v7488, 0
      %v7535 = vsel %vm472, %v7489, 0
      %v7538 = vsel %vm472, %v7490, 0
      %v7541 = vsel %vm472, %v7491, 0
      %v7544 = vsel %vm472, %v7492, 0
      %v7547 = vsel %vm472, %v7493, 0
      %v7550 = vsel %vm472, %v7494, 0
      %v7553 = vsel %vm472, %v7495, 0
      %v7556 = vsel %vm472, %v7496, 0
      %v7559 = vsel %vm472, %v7497, 0
      %v7562 = vsel %vm472, %v7498, 0
      %v7565 = vsel %vm472, %v7499, 0
      %v7568 = vsel %vm472, %v7500, 0
      %v7571 = vsel %vm472, %v7501, 0
      %7573 = vmatpush.bf16.msra.mxu0 0
      %7574 = vmatpush.bf16.msra.mxu0 0
      %7575 = vmatpush.bf16.msra.mxu0 0
      %7576 = vmatpush.bf16.msra.mxu0 0
      %7577 = vmatpush.bf16.msra.mxu0 0
      %7578 = vmatpush.bf16.msra.mxu0 0
      %7579 = vmatpush.bf16.msra.mxu0 %v7516
      %7580 = vmatpush.bf16.msra.mxu0 %v7515
      %7581 = vmatmul.bf16.gmra.mxu0 %v7520
      %v7582 = vpop.f32.mrf.mxu0
      %v7583 = vadd.f32 0.0, %v7582
      %v7584 = vpop.f32.mrf.mxu0
      %v7585 = vadd.f32 0.0, %v7584
      %7586 = vmatmul.bf16.gmra.mxu0 %v7523
      %v7587 = vpop.f32.mrf.mxu0
      %v7588 = vadd.f32 0.0, %v7587
      %v7589 = vpop.f32.mrf.mxu0
      %v7590 = vadd.f32 0.0, %v7589
      %7591 = vmatmul.bf16.gmra.mxu0 %v7526
      %v7592 = vpop.f32.mrf.mxu0
      %v7593 = vadd.f32 0.0, %v7592
      %v7594 = vpop.f32.mrf.mxu0
      %v7595 = vadd.f32 0.0, %v7594
      %7596 = vmatmul.bf16.gmra.mxu0 %v7529
      %v7597 = vpop.f32.mrf.mxu0
      %v7598 = vadd.f32 0.0, %v7597
      %v7599 = vpop.f32.mrf.mxu0
      %v7600 = vadd.f32 0.0, %v7599
      %7601 = vmatmul.bf16.gmra.mxu0 %v7532
      %v7602 = vpop.f32.mrf.mxu0
      %v7603 = vadd.f32 0.0, %v7602
      %v7604 = vpop.f32.mrf.mxu0
      %v7605 = vadd.f32 0.0, %v7604
      %7606 = vmatmul.bf16.gmra.mxu0 %v7535
      %v7607 = vpop.f32.mrf.mxu0
      %v7608 = vadd.f32 0.0, %v7607
      %v7609 = vpop.f32.mrf.mxu0
      %v7610 = vadd.f32 0.0, %v7609
      %7611 = vmatmul.bf16.gmra.mxu0 %v7538
      %v7612 = vpop.f32.mrf.mxu0
      %v7613 = vadd.f32 0.0, %v7612
      %v7614 = vpop.f32.mrf.mxu0
      %v7615 = vadd.f32 0.0, %v7614
      %7616 = vmatmul.bf16.gmra.mxu0 %v7541
      %v7617 = vpop.f32.mrf.mxu0
      %v7618 = vadd.f32 0.0, %v7617
      %v7619 = vpop.f32.mrf.mxu0
      %v7620 = vadd.f32 0.0, %v7619
      %7621 = vmatmul.bf16.gmra.mxu0 %v7544
      %v7622 = vpop.f32.mrf.mxu0
      %v7623 = vadd.f32 0.0, %v7622
      %v7624 = vpop.f32.mrf.mxu0
      %v7625 = vadd.f32 0.0, %v7624
      %7626 = vmatmul.bf16.gmra.mxu0 %v7547
      %v7627 = vpop.f32.mrf.mxu0
      %v7628 = vadd.f32 0.0, %v7627
      %v7629 = vpop.f32.mrf.mxu0
      %v7630 = vadd.f32 0.0, %v7629
      %7631 = vmatmul.bf16.gmra.mxu0 %v7550
      %v7632 = vpop.f32.mrf.mxu0
      %v7633 = vadd.f32 0.0, %v7632
      %v7634 = vpop.f32.mrf.mxu0
      %v7635 = vadd.f32 0.0, %v7634
      %7636 = vmatmul.bf16.gmra.mxu0 %v7553
      %v7637 = vpop.f32.mrf.mxu0
      %v7638 = vadd.f32 0.0, %v7637
      %v7639 = vpop.f32.mrf.mxu0
      %v7640 = vadd.f32 0.0, %v7639
      %7641 = vmatmul.bf16.gmra.mxu0 %v7556
      %v7642 = vpop.f32.mrf.mxu0
      %v7643 = vadd.f32 0.0, %v7642
      %v7644 = vpop.f32.mrf.mxu0
      %v7645 = vadd.f32 0.0, %v7644
      %7646 = vmatmul.bf16.gmra.mxu0 %v7559
      %v7647 = vpop.f32.mrf.mxu0
      %v7648 = vadd.f32 0.0, %v7647
      %v7649 = vpop.f32.mrf.mxu0
      %v7650 = vadd.f32 0.0, %v7649
      %7651 = vmatmul.bf16.gmra.mxu0 %v7562
      %v7652 = vpop.f32.mrf.mxu0
      %v7653 = vadd.f32 0.0, %v7652
      %v7654 = vpop.f32.mrf.mxu0
      %v7655 = vadd.f32 0.0, %v7654
      %7656 = vmatmul.bf16.gmra.mxu0 %v7565
      %v7657 = vpop.f32.mrf.mxu0
      %v7658 = vadd.f32 0.0, %v7657
      %v7659 = vpop.f32.mrf.mxu0
      %v7660 = vadd.f32 0.0, %v7659
      %7661 = vmatmul.bf16.gmra.mxu0 %v7568
      %v7662 = vpop.f32.mrf.mxu0
      %v7663 = vadd.f32 0.0, %v7662
      %v7664 = vpop.f32.mrf.mxu0
      %v7665 = vadd.f32 0.0, %v7664
      %7666 = vmatmul.bf16.gmra.mxu0 %v7571
      %v7667 = vpop.f32.mrf.mxu0
      %v7668 = vadd.f32 0.0, %v7667
      %v7669 = vpop.f32.mrf.mxu0
      %v7670 = vadd.f32 0.0, %v7669
      %7671 = vdwg.mxu0
      %v7672 = vadd.f32 %v7412, %v7583
      %v7673 = vadd.f32 %v7413, %v7585
      %v7674 = vadd.f32 %v7414, %v7588
      %v7675 = vadd.f32 %v7415, %v7590
      %v7676 = vadd.f32 %v7416, %v7593
      %v7677 = vadd.f32 %v7417, %v7595
      %v7678 = vadd.f32 %v7418, %v7598
      %v7679 = vadd.f32 %v7419, %v7600
      %v7680 = vadd.f32 %v7420, %v7603
      %v7681 = vadd.f32 %v7421, %v7605
      %v7682 = vadd.f32 %v7422, %v7608
      %v7683 = vadd.f32 %v7423, %v7610
      %v7684 = vadd.f32 %v7424, %v7613
      %v7685 = vadd.f32 %v7425, %v7615
      %v7686 = vadd.f32 %v7426, %v7618
      %v7687 = vadd.f32 %v7427, %v7620
      %v7688 = vadd.f32 %v7428, %v7623
      %v7689 = vadd.f32 %v7429, %v7625
      %v7690 = vadd.f32 %v7430, %v7628
      %v7691 = vadd.f32 %v7431, %v7630
      %v7692 = vadd.f32 %v7432, %v7633
      %v7693 = vadd.f32 %v7433, %v7635
      %v7694 = vadd.f32 %v7434, %v7638
      %v7695 = vadd.f32 %v7435, %v7640
      %v7696 = vadd.f32 %v7436, %v7643
      %v7697 = vadd.f32 %v7437, %v7645
      %v7698 = vadd.f32 %v7438, %v7648
      %v7699 = vadd.f32 %v7439, %v7650
      %v7700 = vadd.f32 %v7440, %v7653
      %v7701 = vadd.f32 %v7441, %v7655
      %v7702 = vadd.f32 %v7442, %v7658
      %v7703 = vadd.f32 %v7443, %v7660
      %v7704 = vadd.f32 %v7444, %v7663
      %v7705 = vadd.f32 %v7445, %v7665
      %v7706 = vadd.f32 %v7446, %v7668
      %v7707 = vadd.f32 %v7447, %v7670
      %v7708 = vld [vmem:[#allocation2 + $0x18] sm:$0xff]
      %v7709 = vld [vmem:[#allocation2 + $0x20] sm:$0xff]
      %v7710 = vld [vmem:[#allocation2 + $0x28] sm:$0xff]
      %v7711 = vld [vmem:[#allocation2 + $0x30] sm:$0xff]
      %v7712 = vld [vmem:[#allocation2 + $0x38] sm:$0xff]
      %v7713 = vld [vmem:[#allocation2 + $0x40] sm:$0xff]
      %v7714 = vld [vmem:[#allocation2 + $0x48] sm:$0xff]
      %v7715 = vld [vmem:[#allocation2 + $0x50] sm:$0xff]
      %v7716 = vld [vmem:[#allocation2 + $0x58] sm:$0xff]
      %v7717 = vld [vmem:[#allocation2 + $0x60] sm:$0xff]
      %v7718 = vld [vmem:[#allocation2 + $0x68] sm:$0xff]
      %v7719 = vld [vmem:[#allocation2 + $0x70] sm:$0xff]
      %v7720 = vld [vmem:[#allocation2 + $0x78] sm:$0xff]
      %v7721 = vld [vmem:[#allocation2 + $0x80] sm:$0xff]
      %v7722 = vld [vmem:[#allocation2 + $0x88] sm:$0xff]
      %v7723 = vld [vmem:[#allocation2 + $0x90] sm:$0xff]
      %v7724 = vld [vmem:[#allocation2 + $0x98] sm:$0xff]
      %v7725 = vld [vmem:[#allocation2 + $0xa0] sm:$0xff]
      %v7726 = vld [vmem:[#allocation2 + $0xa8] sm:$0xff]
      %v7727 = vld [vmem:[#allocation2 + $0xb0] sm:$0xff]
      %v7728 = vld [vmem:[#allocation2 + $0xb8] sm:$0xff]
      %v7729 = vld [vmem:[#allocation2 + $0xc0] sm:$0xff]
      %v7730 = vld [vmem:[#allocation2 + $0xc8] sm:$0xff]
      %v7731 = vld [vmem:[#allocation2 + $0xd0] sm:$0xff]
      %v7732 = vld [vmem:[#allocation2 + $0xd8] sm:$0xff]
      %v7733 = vld [vmem:[#allocation2 + $0xe0] sm:$0xff]
      %v7734 = vld [vmem:[#allocation2 + $0xe8] sm:$0xff]
      %v7735 = vld [vmem:[#allocation2 + $0xf0] sm:$0xff]
      %v7736 = vld [vmem:[#allocation2 + $0xf8] sm:$0xff]
      %v7737 = vld [vmem:[#allocation2 + $0x100] sm:$0xff]
      %v7738 = vld [vmem:[#allocation2 + $0x108] sm:$0xff]
      %v7739 = vld [vmem:[#allocation2 + $0x110] sm:$0xff]
      %v7740 = vld [vmem:[#allocation2 + $0x118] sm:$0xff]
      %v7741 = vld [vmem:[#allocation2 + $0x120] sm:$0xff]
      %v7742 = vld [vmem:[#allocation2 + $0x128] sm:$0xff]
      %v7743 = vld [vmem:[#allocation2 + $0x130] sm:$0xff]
      %v7744 = vld [vmem:[%s6] sm:$0x1]
      %v7746 = vperm.slane %v7744, 0
      %v7748 = vadd.f32 %v7672, %v7746
      %v7749 = vadd.f32 %v7673, %v7746
      %v7750 = vadd.f32 %v7674, %v7746
      %v7751 = vadd.f32 %v7675, %v7746
      %v7752 = vadd.f32 %v7676, %v7746
      %v7753 = vadd.f32 %v7677, %v7746
      %v7754 = vadd.f32 %v7678, %v7746
      %v7755 = vadd.f32 %v7679, %v7746
      %v7756 = vadd.f32 %v7680, %v7746
      %v7757 = vadd.f32 %v7681, %v7746
      %v7758 = vadd.f32 %v7682, %v7746
      %v7759 = vadd.f32 %v7683, %v7746
      %v7760 = vadd.f32 %v7684, %v7746
      %v7761 = vadd.f32 %v7685, %v7746
      %v7762 = vadd.f32 %v7686, %v7746
      %v7763 = vadd.f32 %v7687, %v7746
      %v7764 = vadd.f32 %v7688, %v7746
      %v7765 = vadd.f32 %v7689, %v7746
      %v7766 = vadd.f32 %v7690, %v7746
      %v7767 = vadd.f32 %v7691, %v7746
      %v7768 = vadd.f32 %v7692, %v7746
      %v7769 = vadd.f32 %v7693, %v7746
      %v7770 = vadd.f32 %v7694, %v7746
      %v7771 = vadd.f32 %v7695, %v7746
      %v7772 = vadd.f32 %v7696, %v7746
      %v7773 = vadd.f32 %v7697, %v7746
      %v7774 = vadd.f32 %v7698, %v7746
      %v7775 = vadd.f32 %v7699, %v7746
      %v7776 = vadd.f32 %v7700, %v7746
      %v7777 = vadd.f32 %v7701, %v7746
      %v7778 = vadd.f32 %v7702, %v7746
      %v7779 = vadd.f32 %v7703, %v7746
      %v7780 = vadd.f32 %v7704, %v7746
      %v7781 = vadd.f32 %v7705, %v7746
      %v7782 = vadd.f32 %v7706, %v7746
      %v7783 = vadd.f32 %v7707, %v7746
      %v7784 = vadd.f32 %v7748, %v7708
      %v7785 = vadd.f32 %v7749, %v7709
      %v7786 = vadd.f32 %v7750, %v7710
      %v7787 = vadd.f32 %v7751, %v7711
      %v7788 = vadd.f32 %v7752, %v7712
      %v7789 = vadd.f32 %v7753, %v7713
      %v7790 = vadd.f32 %v7754, %v7714
      %v7791 = vadd.f32 %v7755, %v7715
      %v7792 = vadd.f32 %v7756, %v7716
      %v7793 = vadd.f32 %v7757, %v7717
      %v7794 = vadd.f32 %v7758, %v7718
      %v7795 = vadd.f32 %v7759, %v7719
      %v7796 = vadd.f32 %v7760, %v7720
      %v7797 = vadd.f32 %v7761, %v7721
      %v7798 = vadd.f32 %v7762, %v7722
      %v7799 = vadd.f32 %v7763, %v7723
      %v7800 = vadd.f32 %v7764, %v7724
      %v7801 = vadd.f32 %v7765, %v7725
      %v7802 = vadd.f32 %v7766, %v7726
      %v7803 = vadd.f32 %v7767, %v7727
      %v7804 = vadd.f32 %v7768, %v7728
      %v7805 = vadd.f32 %v7769, %v7729
      %v7806 = vadd.f32 %v7770, %v7730
      %v7807 = vadd.f32 %v7771, %v7731
      %v7808 = vadd.f32 %v7772, %v7732
      %v7809 = vadd.f32 %v7773, %v7733
      %v7810 = vadd.f32 %v7774, %v7734
      %v7811 = vadd.f32 %v7775, %v7735
      %v7812 = vadd.f32 %v7776, %v7736
      %v7813 = vadd.f32 %v7777, %v7737
      %v7814 = vadd.f32 %v7778, %v7738
      %v7815 = vadd.f32 %v7779, %v7739
      %v7816 = vadd.f32 %v7780, %v7740
      %v7817 = vadd.f32 %v7781, %v7741
      %v7818 = vadd.f32 %v7782, %v7742
      %v7819 = vadd.f32 %v7783, %v7743
      %v7820 = vmax.f32 %v7784, 0.0
      %v7821 = vmax.f32 %v7785, 0.0
      %v7822 = vmax.f32 %v7786, 0.0
      %v7823 = vmax.f32 %v7787, 0.0
      %v7824 = vmax.f32 %v7788, 0.0
      %v7825 = vmax.f32 %v7789, 0.0
      %v7826 = vmax.f32 %v7790, 0.0
      %v7827 = vmax.f32 %v7791, 0.0
      %v7828 = vmax.f32 %v7792, 0.0
      %v7829 = vmax.f32 %v7793, 0.0
      %v7830 = vmax.f32 %v7794, 0.0
      %v7831 = vmax.f32 %v7795, 0.0
      %v7832 = vmax.f32 %v7796, 0.0
      %v7833 = vmax.f32 %v7797, 0.0
      %v7834 = vmax.f32 %v7798, 0.0
      %v7835 = vmax.f32 %v7799, 0.0
      %v7836 = vmax.f32 %v7800, 0.0
      %v7837 = vmax.f32 %v7801, 0.0
      %v7838 = vmax.f32 %v7802, 0.0
      %v7839 = vmax.f32 %v7803, 0.0
      %v7840 = vmax.f32 %v7804, 0.0
      %v7841 = vmax.f32 %v7805, 0.0
      %v7842 = vmax.f32 %v7806, 0.0
      %v7843 = vmax.f32 %v7807, 0.0
      %v7844 = vmax.f32 %v7808, 0.0
      %v7845 = vmax.f32 %v7809, 0.0
      %v7846 = vmax.f32 %v7810, 0.0
      %v7847 = vmax.f32 %v7811, 0.0
      %v7848 = vmax.f32 %v7812, 0.0
      %v7849 = vmax.f32 %v7813, 0.0
      %v7850 = vmax.f32 %v7814, 0.0
      %v7851 = vmax.f32 %v7815, 0.0
      %v7852 = vmax.f32 %v7816, 0.0
      %v7853 = vmax.f32 %v7817, 0.0
      %v7854 = vmax.f32 %v7818, 0.0
      %v7855 = vmax.f32 %v7819, 0.0
      %v7856 = vmul.f32 %v7820, %v2690
      %v7857 = vmul.f32 %v7821, %v2695
      %v7858 = vmul.f32 %v7822, %v2700
      %v7859 = vmul.f32 %v7823, %v2705
      %v7860 = vmul.f32 %v7824, %v2710
      %v7861 = vmul.f32 %v7825, %v2715
      %v7862 = vmul.f32 %v7826, %v2720
      %v7863 = vmul.f32 %v7827, %v2725
      %v7864 = vmul.f32 %v7828, %v2730
      %v7865 = vmul.f32 %v7829, %v2735
      %v7866 = vmul.f32 %v7830, %v2740
      %v7867 = vmul.f32 %v7831, %v2745
      %v7868 = vmul.f32 %v7832, %v2750
      %v7869 = vmul.f32 %v7833, %v2755
      %v7870 = vmul.f32 %v7834, %v2760
      %v7871 = vmul.f32 %v7835, %v2765
      %v7872 = vmul.f32 %v7836, %v2770
      %v7873 = vmul.f32 %v7837, %v2775
      %v7874 = vmul.f32 %v7838, %v2780
      %v7875 = vmul.f32 %v7839, %v2785
      %v7876 = vmul.f32 %v7840, %v2790
      %v7877 = vmul.f32 %v7841, %v2795
      %v7878 = vmul.f32 %v7842, %v2800
      %v7879 = vmul.f32 %v7843, %v2805
      %v7880 = vmul.f32 %v7844, %v2810
      %v7881 = vmul.f32 %v7845, %v2815
      %v7882 = vmul.f32 %v7846, %v2820
      %v7883 = vmul.f32 %v7847, %v2825
      %v7884 = vmul.f32 %v7848, %v2830
      %v7885 = vmul.f32 %v7849, %v2835
      %v7886 = vmul.f32 %v7850, %v2840
      %v7887 = vmul.f32 %v7851, %v2845
      %v7888 = vmul.f32 %v7852, %v2850
      %v7889 = vmul.f32 %v7853, %v2855
      %v7890 = vmul.f32 %v7854, %v2860
      %v7891 = vmul.f32 %v7855, %v2865
      %7892 = vst.msk [vmem:[%s305] sm:$0xff] %vm472, %v7856
      %7893 = vst.msk [vmem:[%s305 + $0x8] sm:$0xff] %vm472, %v7857
      %7894 = vst.msk [vmem:[%s305 + $0x10] sm:$0xff] %vm472, %v7858
      %7895 = vst.msk [vmem:[%s305 + $0x18] sm:$0xff] %vm472, %v7859
      %7896 = vst.msk [vmem:[%s305 + $0x20] sm:$0xff] %vm472, %v7860
      %7897 = vst.msk [vmem:[%s305 + $0x28] sm:$0xff] %vm472, %v7861
      %7898 = vst.msk [vmem:[%s305 + $0x30] sm:$0xff] %vm472, %v7862
      %7899 = vst.msk [vmem:[%s305 + $0x38] sm:$0xff] %vm472, %v7863
      %7900 = vst.msk [vmem:[%s305 + $0x40] sm:$0xff] %vm472, %v7864
      %7901 = vst.msk [vmem:[%s305 + $0x48] sm:$0xff] %vm472, %v7865
      %7902 = vst.msk [vmem:[%s305 + $0x50] sm:$0xff] %vm472, %v7866
      %7903 = vst.msk [vmem:[%s305 + $0x58] sm:$0xff] %vm472, %v7867
      %7904 = vst.msk [vmem:[%s305 + $0x60] sm:$0xff] %vm472, %v7868
      %7905 = vst.msk [vmem:[%s305 + $0x68] sm:$0xff] %vm472, %v7869
      %7906 = vst.msk [vmem:[%s305 + $0x70] sm:$0xff] %vm472, %v7870
      %7907 = vst.msk [vmem:[%s305 + $0x78] sm:$0xff] %vm472, %v7871
      %7908 = vst.msk [vmem:[%s305 + $0x80] sm:$0xff] %vm472, %v7872
      %7909 = vst.msk [vmem:[%s305 + $0x88] sm:$0xff] %vm472, %v7873
      %7910 = vst.msk [vmem:[%s305 + $0x90] sm:$0xff] %vm472, %v7874
      %7911 = vst.msk [vmem:[%s305 + $0x98] sm:$0xff] %vm472, %v7875
      %7912 = vst.msk [vmem:[%s305 + $0xa0] sm:$0xff] %vm472, %v7876
      %7913 = vst.msk [vmem:[%s305 + $0xa8] sm:$0xff] %vm472, %v7877
      %7914 = vst.msk [vmem:[%s305 + $0xb0] sm:$0xff] %vm472, %v7878
      %7915 = vst.msk [vmem:[%s305 + $0xb8] sm:$0xff] %vm472, %v7879
      %7916 = vst.msk [vmem:[%s305 + $0xc0] sm:$0xff] %vm472, %v7880
      %7917 = vst.msk [vmem:[%s305 + $0xc8] sm:$0xff] %vm472, %v7881
      %7918 = vst.msk [vmem:[%s305 + $0xd0] sm:$0xff] %vm472, %v7882
      %7919 = vst.msk [vmem:[%s305 + $0xd8] sm:$0xff] %vm472, %v7883
      %7920 = vst.msk [vmem:[%s305 + $0xe0] sm:$0xff] %vm472, %v7884
      %7921 = vst.msk [vmem:[%s305 + $0xe8] sm:$0xff] %vm472, %v7885
      %7922 = vst.msk [vmem:[%s305 + $0xf0] sm:$0xff] %vm472, %v7886
      %7923 = vst.msk [vmem:[%s305 + $0xf8] sm:$0xff] %vm472, %v7887
      %7924 = vst.msk [vmem:[%s305 + $0x100] sm:$0xff] %vm472, %v7888
      %7925 = vst.msk [vmem:[%s305 + $0x108] sm:$0xff] %vm472, %v7889
      %7926 = vst.msk [vmem:[%s305 + $0x110] sm:$0xff] %vm472, %v7890
      %7927 = vst.msk [vmem:[%s305 + $0x118] sm:$0xff] %vm472, %v7891
      %p7928 = scmp.lt.s32.totalorder %s19, 1
      %s7929 = scalar_select %p7928, %s19, 1
      %s7930 = smul.addr %s7929, 36
      %s7931 = smul.addr %s7930, 8
      %s7932 = scalar_lea.vmem %s8, %s7931
      // Predicated region
      $region53: #{tpu_custom_call.1} parent=51 // pred_check
        %p7933 = pneg %p210
      $region54: #{tpu_custom_call.1} parent=51 // pred_check_branch
        %7935 = sbr.rel (%p7933) target = $region56
      $region55: #{tpu_custom_call.1} parent=51 // pred_region
        _
      $region56: #{tpu_custom_call.1} parent=51 // pred_fallthru
        _
    $region52: #{tpu_custom_call.1} parent=5 // pred_fallthru
      _
    %p7936 = scmp.le.s32.totalorder 2, %s14
    // Predicated region
    $region57: #{tpu_custom_call.1} parent=5 // pred_check
      %p7937 = pneg %p7936
    $region58: #{tpu_custom_call.1} parent=5 // pred_check_branch
      %7939 = sbr.rel (%p7937) target = $region60
    $region59: #{tpu_custom_call.1} parent=5 // pred_region
      %s7940 = ssub.s32 %s14, 2
      // Predicated region
      $region61: #{tpu_custom_call.1} parent=59 // pred_check
        %p7941 = pneg %p216
      $region62: #{tpu_custom_call.1} parent=59 // pred_check_branch
        %7943 = sbr.rel (%p7941) target = $region64
      $region63: #{tpu_custom_call.1} parent=59 // pred_region
        %p7944 = scmp.lt.s32.totalorder %s20, 1
        %s7945 = scalar_select %p7944, %s20, 1
        %s7946 = smul.addr %s7945, 36
        %s7947 = smul.addr %s7946, 8
        %s7948 = scalar_lea.vmem %s8, %s7947
      $region64: #{tpu_custom_call.1} parent=59 // pred_fallthru
        _
    $region60: #{tpu_custom_call.1} parent=5 // pred_fallthru
      _
  $region6: #{tpu_custom_call.1} parent=0 // loop_footer
    %s18 = sadd.s32 1, %s14
  $region7: #{tpu_custom_call.1} parent=0 // loop_footer_branch
    %13 = sbr.rel target = $region3
  $region8: #{tpu_custom_call.1} parent=0 // loop_exit
    _

</llo_original>
